<compile_context>
chip_gen: v7x
topology: tpu7x:2x2x1
jax: 0.10.0
libtpu: 0.0.40
codegen_flags: <defaults>
</compile_context>

<pallas_src>
import math

import jax
import jax.numpy as jnp
from jax.experimental import pallas as pl
from jax.experimental.pallas import tpu as pltpu


def _round_up(x, m):
    return ((x + m - 1) // m) * m


def _pad2d(a, rows, cols):
    r, c = a.shape
    if r == rows and c == cols:
        return a
    return jnp.zeros((rows, cols), a.dtype).at[:r, :c].set(a)


def _adv_net_kernel(x_ref, w1_ref, b1_ref, w2_ref, b2_ref, w3_ref, b3_ref,
                    o_ref):
    # ---- layer 1: Linear -> ReLU (Dropout = identity in eval mode) ----
    # bf16 MXU operands, f32 accumulation; bias-add / ReLU stay in f32.
    h = jnp.dot(x_ref[...].astype(jnp.bfloat16), w1_ref[...],
                preferred_element_type=jnp.float32)
    h = jnp.maximum(h + b1_ref[...], 0.0)

    # ---- layer 2: Linear -> ReLU (Dropout = identity in eval mode) ----
    h = jnp.dot(h.astype(jnp.bfloat16), w2_ref[...],
                preferred_element_type=jnp.float32)
    h = jnp.maximum(h + b2_ref[...], 0.0)

    # ---- head: Linear (output lane-padded to 128 -> unmasked dense store) ----
    y = jnp.dot(h.astype(jnp.bfloat16), w3_ref[...],
                preferred_element_type=jnp.float32)
    o_ref[...] = (y + b3_ref[...]).astype(o_ref.dtype)


def prepare_params(params):
    """Pad feature dims to 128-lane multiples and cast weights to bf16 ONCE.

    Call this outside the inference loop; per-call padding/casting would burn
    HBM bandwidth and dispatch latency on every forward.
    """
    in_feature, hidden = params["w1"].shape
    num_classes = params["w3"].shape[1]
    in_p = _round_up(in_feature, 128)
    hid_p = _round_up(hidden, 128)
    out_p = _round_up(num_classes, 128)
    return {
        "_prepared": True,
        "dims": (in_feature, hidden, num_classes),
        "padded_dims": (in_p, hid_p, out_p),
        # Weights: bf16 MXU operands.  Biases stay f32 (f32 VPU bias-add/ReLU).
        "w1": _pad2d(params["w1"], in_p, hid_p).astype(jnp.bfloat16),
        "b1": _pad2d(params["b1"], 1, hid_p).astype(jnp.float32),
        "w2": _pad2d(params["w2"], hid_p, hid_p).astype(jnp.bfloat16),
        "b2": _pad2d(params["b2"], 1, hid_p).astype(jnp.float32),
        "w3": _pad2d(params["w3"], hid_p, out_p).astype(jnp.bfloat16),
        "b3": _pad2d(params["b3"], 1, out_p).astype(jnp.float32),
    }


def _choose_block_b(batch, requested):
    """Pick the batch tile (rows per grid step).

    - multiple of 8 sublanes (f32); once >= 128, a multiple of 128 so the M dim
      maps onto whole MXU passes (128 divides v6e/v7x's 256-wide MXU too);
    - small enough that the batch grid has >= 4 steps whenever the batch
      permits (2 per v7x TensorCore), so BlockSpec double-buffering of the
      x tile and megacore sharding actually engage.
    """
    batch_p8 = _round_up(batch, 8)
    tile = min(_round_up(max(requested, 8), 8), batch_p8)
    if batch_p8 >= 32:            # can afford >= 4 grid steps
        tile = min(tile, max(8, (batch_p8 // 4) // 8 * 8))
    elif batch_p8 >= 16:          # at least 2 steps (double-buffer the x DMA)
        tile = min(tile, max(8, (batch_p8 // 2) // 8 * 8))
    if tile >= 128:
        tile = (tile // 128) * 128
    return tile


def _vmem_limit_bytes(block_b, in_p, hid_p, out_p):
    """Size the VMEM limit from the actual footprint instead of a blanket 64MiB."""
    weights = (in_p * hid_p + hid_p * hid_p + hid_p * out_p) * 2   # bf16, resident
    biases = (2 * hid_p + out_p) * 4                                # f32, resident
    io_tiles = 2 * block_b * (in_p + out_p) * 4                     # double-buffered x/out
    h_tmp = 3 * block_b * hid_p * 4                                 # f32 activations + slack
    est = weights + biases + io_tiles + h_tmp
    # 2x headroom (compiler scratch / weight double-buffer fallback), floor 24 MiB.
    return int(min(100 * 2**20, max(24 * 2**20, 2 * est)))


def adversarial_network_forward(x, params, *, block_b=256):
    """Fused Pallas forward pass of AdversarialNetwork (eval mode).

    x: [B, in_feature] float32.
    params: output of prepare_params() (preferred) or raw params from make_params().
    """
    if not params.get("_prepared", False):
        # Convenience fallback; prefer calling prepare_params() once outside.
        params = prepare_params(params)

    B, in_feature = x.shape
    in_f, _, num_classes = params["dims"]
    assert in_feature == in_f, (in_feature, in_f)
    in_p, hid_p, out_p = params["padded_dims"]

    block_b = _choose_block_b(B, block_b)
    B_p = _round_up(B, block_b)
    x_p = _pad2d(x.astype(jnp.float32), B_p, in_p)

    def run(single_buffer_weights):
        if single_buffer_weights:
            # Grid-invariant (constant index map) -> never re-fetched; one buffer.
            res = lambda shape: pl.BlockSpec(shape, lambda i: (0, 0),
                                             pipeline_mode=pl.Buffered(1))
        else:
            res = lambda shape: pl.BlockSpec(shape, lambda i: (0, 0))

        grid_spec = pltpu.PrefetchScalarGridSpec(
            num_scalar_prefetch=0,
            grid=(B_p // block_b,),
            in_specs=[
                pl.BlockSpec((block_b, in_p), lambda i: (i, 0)),   # x tile
                res((in_p, hid_p)),                                # w1 (bf16)
                res((1, hid_p)),                                   # b1 (f32)
                res((hid_p, hid_p)),                               # w2 (bf16)
                res((1, hid_p)),                                   # b2 (f32)
                res((hid_p, out_p)),                               # w3 (bf16)
                res((1, out_p)),                                   # b3 (f32)
            ],
            out_specs=pl.BlockSpec((block_b, out_p), lambda i: (i, 0)),
        )
        return pl.pallas_call(
            _adv_net_kernel,
            out_shape=jax.ShapeDtypeStruct((B_p, out_p), jnp.float32),
            grid_spec=grid_spec,
            compiler_params=pltpu.CompilerParams(
                dimension_semantics=("parallel",),
                vmem_limit_bytes=_vmem_limit_bytes(block_b, in_p, hid_p, out_p),
            ),
        )(x_p, params["w1"], params["b1"], params["w2"], params["b2"],
          params["w3"], params["b3"])

    try:
        out = run(single_buffer_weights=True)
    except Exception:
        # Fallback for jax builds that reject Buffered(1); weights still fit
        # comfortably when double-buffered at these shapes.
        out = run(single_buffer_weights=False)

    # Strip batch / output-lane padding.
    return out[:B, :num_classes]


def make_params(key, in_feature=256, hidden_size=1024, num_classes=2):
    """Deterministic params mirroring the PyTorch module's init.

    Weights: normal(0, 0.01) for layers 1/2, normal(0, 0.3) for layer 3
    (stored transposed as (in, out)).  Biases: PyTorch default
    uniform(-1/sqrt(fan_in), 1/sqrt(fan_in)).
    """
    k1, k2, k3, kb1, kb2, kb3 = jax.random.split(key, 6)

    def bias(k, fan_in, fan_out):
        bound = 1.0 / math.sqrt(fan_in)
        return jax.random.uniform(k, (1, fan_out), jnp.float32, -bound, bound)

    w1 = 0.01 * jax.random.normal(k1, (in_feature, hidden_size), jnp.float32)
    w2 = 0.01 * jax.random.normal(k2, (hidden_size, hidden_size), jnp.float32)
    w3 = 0.3 * jax.random.normal(k3, (hidden_size, num_classes), jnp.float32)
    return {
        "w1": w1, "b1": bias(kb1, in_feature, hidden_size),
        "w2": w2, "b2": bias(kb2, hidden_size, hidden_size),
        "w3": w3, "b3": bias(kb3, hidden_size, num_classes),
    }


def reference_forward(x, p, *, operand_dtype=None):
    """Plain-JAX reference of the eval-mode forward pass.

    With operand_dtype=jnp.bfloat16 it mimics the kernel's bf16-operand /
    f32-accumulate matmuls (biases and activations stay f32).
    """
    hp = jax.lax.Precision.HIGHEST
    if operand_dtype is not None:
        cast = lambda a: a.astype(operand_dtype).astype(jnp.float32)
    else:
        cast = lambda a: a
    h = jnp.maximum(jnp.dot(cast(x), cast(p["w1"]), precision=hp) + p["b1"], 0.0)
    h = jnp.maximum(jnp.dot(cast(h), cast(p["w2"]), precision=hp) + p["b2"], 0.0)
    return jnp.dot(cast(h), cast(p["w3"]), precision=hp) + p["b3"]


if __name__ == "__main__":
    # Module defaults: in_feature=256, hidden_size=1024, 2 output logits.
    B, IN_FEATURE, HIDDEN, NUM_CLASSES = 64, 256, 1024, 2

    key = jax.random.PRNGKey(0)
    kx, kp = jax.random.split(key)
    x = jax.random.normal(kx, (B, IN_FEATURE), jnp.float32)
    params = make_params(kp, IN_FEATURE, HIDDEN, NUM_CLASSES)

    # Pad + bf16-cast the weights once, outside the per-call hot path.
    prepared = prepare_params(params)

    # block_b auto-clamps to 16 rows here -> a 4-step "parallel" batch grid, so
    # the x-tile DMA pipeline (and v7x megacore split) is exercised even at
    # this small smoke-test batch.
    y = adversarial_network_forward(x, prepared, block_b=256)
    y = jax.block_until_ready(y)
    assert y.shape == (B, NUM_CLASSES)

    # Tight check vs a reference applying the same bf16 operand rounding.
    y_bf16_ref = reference_forward(x, params, operand_dtype=jnp.bfloat16)
    assert jnp.allclose(y, y_bf16_ref, atol=2e-3, rtol=2e-3), \
        "mismatch vs bf16-operand reference"

    # Loose check vs the original full-f32 module semantics.
    y_f32_ref = reference_forward(x, params)
    assert jnp.allclose(y, y_f32_ref, atol=2e-2, rtol=2e-2), \
        "mismatch vs f32 reference"

    print("KERNEL_OK")
</pallas_src>

<mosaic_0001>
module attributes {stable_mosaic.version = 11 : i64} {
  func.func @_adv_net_kernel(%arg0: i32, %arg1: memref<16x256xf32, #tpu.memory_space<vmem>>, %arg2: memref<256x1024xbf16, #tpu.memory_space<vmem>>, %arg3: memref<1x1024xf32, #tpu.memory_space<vmem>>, %arg4: memref<1024x1024xbf16, #tpu.memory_space<vmem>>, %arg5: memref<1x1024xf32, #tpu.memory_space<vmem>>, %arg6: memref<1024x128xbf16, #tpu.memory_space<vmem>>, %arg7: memref<1x128xf32, #tpu.memory_space<vmem>>, %arg8: memref<16x128xf32, #tpu.memory_space<vmem>>) attributes {dimension_semantics = [#tpu.dimension_semantics<parallel>], iteration_bounds = array<i64: 4>, scalar_prefetch = 0 : i64, scratch_operands = 0 : i64, tpu.core_type = #tpu.core_type<tc>, window_params = [{transform_indices = @transform_0, window_bounds = array<i64: 16, 256>}, {pipeline_mode = #tpu.pipeline_mode<synchronous>, transform_indices = @transform_1, window_bounds = array<i64: 256, 1024>}, {pipeline_mode = #tpu.pipeline_mode<synchronous>, transform_indices = @transform_2, window_bounds = array<i64: 1, 1024>}, {pipeline_mode = #tpu.pipeline_mode<synchronous>, transform_indices = @transform_3, window_bounds = array<i64: 1024, 1024>}, {pipeline_mode = #tpu.pipeline_mode<synchronous>, transform_indices = @transform_4, window_bounds = array<i64: 1, 1024>}, {pipeline_mode = #tpu.pipeline_mode<synchronous>, transform_indices = @transform_5, window_bounds = array<i64: 1024, 128>}, {pipeline_mode = #tpu.pipeline_mode<synchronous>, transform_indices = @transform_6, window_bounds = array<i64: 1, 128>}, {transform_indices = @transform_7, window_bounds = array<i64: 16, 128>}]} {
    %c0 = arith.constant 0 : index
    %c0_0 = arith.constant 0 : index
    %0 = vector.load %arg1[%c0, %c0_0] : memref<16x256xf32, #tpu.memory_space<vmem>>, vector<16x256xf32>
    %1 = arith.truncf %0 : vector<16x256xf32> to vector<16x256xbf16>
    %c0_1 = arith.constant 0 : index
    %c0_2 = arith.constant 0 : index
    %2 = vector.load %arg2[%c0_1, %c0_2] : memref<256x1024xbf16, #tpu.memory_space<vmem>>, vector<256x1024xbf16>
    %cst = arith.constant dense<0.000000e+00> : vector<16x1024xf32>
    %3 = tpu.matmul %1, %2, %cst {dimension_numbers = #tpu.dot_dimension_numbers<[1], [0], [0], [1], [0, 0, 1, 1], [], []>} : vector<16x256xbf16>, vector<256x1024xbf16>, vector<16x1024xf32> -> vector<16x1024xf32>
    %c0_3 = arith.constant 0 : index
    %c0_4 = arith.constant 0 : index
    %4 = vector.load %arg3[%c0_3, %c0_4] : memref<1x1024xf32, #tpu.memory_space<vmem>>, vector<1x1024xf32>
    %5 = vector.broadcast %4 : vector<1x1024xf32> to vector<16x1024xf32>
    %6 = arith.addf %3, %5 : vector<16x1024xf32>
    %cst_5 = arith.constant 0.000000e+00 : f32
    %7 = vector.broadcast %cst_5 : f32 to vector<16x1024xf32>
    %8 = arith.maximumf %6, %7 : vector<16x1024xf32>
    %9 = arith.truncf %8 : vector<16x1024xf32> to vector<16x1024xbf16>
    %c0_6 = arith.constant 0 : index
    %c0_7 = arith.constant 0 : index
    %10 = vector.load %arg4[%c0_6, %c0_7] : memref<1024x1024xbf16, #tpu.memory_space<vmem>>, vector<1024x1024xbf16>
    %cst_8 = arith.constant dense<0.000000e+00> : vector<16x1024xf32>
    %11 = tpu.matmul %9, %10, %cst_8 {dimension_numbers = #tpu.dot_dimension_numbers<[1], [0], [0], [1], [0, 0, 1, 1], [], []>} : vector<16x1024xbf16>, vector<1024x1024xbf16>, vector<16x1024xf32> -> vector<16x1024xf32>
    %c0_9 = arith.constant 0 : index
    %c0_10 = arith.constant 0 : index
    %12 = vector.load %arg5[%c0_9, %c0_10] : memref<1x1024xf32, #tpu.memory_space<vmem>>, vector<1x1024xf32>
    %13 = vector.broadcast %12 : vector<1x1024xf32> to vector<16x1024xf32>
    %14 = arith.addf %11, %13 : vector<16x1024xf32>
    %cst_11 = arith.constant 0.000000e+00 : f32
    %15 = vector.broadcast %cst_11 : f32 to vector<16x1024xf32>
    %16 = arith.maximumf %14, %15 : vector<16x1024xf32>
    %17 = arith.truncf %16 : vector<16x1024xf32> to vector<16x1024xbf16>
    %c0_12 = arith.constant 0 : index
    %c0_13 = arith.constant 0 : index
    %18 = vector.load %arg6[%c0_12, %c0_13] : memref<1024x128xbf16, #tpu.memory_space<vmem>>, vector<1024x128xbf16>
    %cst_14 = arith.constant dense<0.000000e+00> : vector<16x128xf32>
    %19 = tpu.matmul %17, %18, %cst_14 {dimension_numbers = #tpu.dot_dimension_numbers<[1], [0], [0], [1], [0, 0, 1, 1], [], []>} : vector<16x1024xbf16>, vector<1024x128xbf16>, vector<16x128xf32> -> vector<16x128xf32>
    %c0_15 = arith.constant 0 : index
    %c0_16 = arith.constant 0 : index
    %20 = vector.load %arg7[%c0_15, %c0_16] : memref<1x128xf32, #tpu.memory_space<vmem>>, vector<1x128xf32>
    %21 = vector.broadcast %20 : vector<1x128xf32> to vector<16x128xf32>
    %22 = arith.addf %19, %21 : vector<16x128xf32>
    %c0_17 = arith.constant 0 : index
    %c0_18 = arith.constant 0 : index
    %23 = vector.load %arg8[%c0_17, %c0_18] : memref<16x128xf32, #tpu.memory_space<vmem>>, vector<16x128xf32>
    tpu.vector_store %arg8[%c0_17, %c0_18], %22 {strides = array<i32>} : memref<16x128xf32, #tpu.memory_space<vmem>>, vector<16x128xf32>,
    return
  }
  func.func @transform_0(%arg0: i32) -> (i32, i32) {
    %c0_i32 = arith.constant 0 : i32
    %c0_i32_0 = arith.constant 0 : i32
    return %arg0, %c0_i32 : i32, i32
  }
  func.func @transform_1(%arg0: i32) -> (i32, i32) {
    %c0_i32 = arith.constant 0 : i32
    %c0_i32_0 = arith.constant 0 : i32
    %c0_i32_1 = arith.constant 0 : i32
    return %c0_i32, %c0_i32_0 : i32, i32
  }
  func.func @transform_2(%arg0: i32) -> (i32, i32) {
    %c0_i32 = arith.constant 0 : i32
    %c0_i32_0 = arith.constant 0 : i32
    %c0_i32_1 = arith.constant 0 : i32
    return %c0_i32, %c0_i32_0 : i32, i32
  }
  func.func @transform_3(%arg0: i32) -> (i32, i32) {
    %c0_i32 = arith.constant 0 : i32
    %c0_i32_0 = arith.constant 0 : i32
    %c0_i32_1 = arith.constant 0 : i32
    return %c0_i32, %c0_i32_0 : i32, i32
  }
  func.func @transform_4(%arg0: i32) -> (i32, i32) {
    %c0_i32 = arith.constant 0 : i32
    %c0_i32_0 = arith.constant 0 : i32
    %c0_i32_1 = arith.constant 0 : i32
    return %c0_i32, %c0_i32_0 : i32, i32
  }
  func.func @transform_5(%arg0: i32) -> (i32, i32) {
    %c0_i32 = arith.constant 0 : i32
    %c0_i32_0 = arith.constant 0 : i32
    %c0_i32_1 = arith.constant 0 : i32
    return %c0_i32, %c0_i32_0 : i32, i32
  }
  func.func @transform_6(%arg0: i32) -> (i32, i32) {
    %c0_i32 = arith.constant 0 : i32
    %c0_i32_0 = arith.constant 0 : i32
    %c0_i32_1 = arith.constant 0 : i32
    return %c0_i32, %c0_i32_0 : i32, i32
  }
  func.func @transform_7(%arg0: i32) -> (i32, i32) {
    %c0_i32 = arith.constant 0 : i32
    %c0_i32_0 = arith.constant 0 : i32
    return %arg0, %c0_i32 : i32, i32
  }
}

module attributes {stable_mosaic.version = 11 : i64} {
  func.func @_adv_net_kernel(%arg0: i32, %arg1: memref<16x256xf32, #tpu.memory_space<vmem>>, %arg2: memref<256x1024xbf16, #tpu.memory_space<vmem>>, %arg3: memref<1x1024xf32, #tpu.memory_space<vmem>>, %arg4: memref<1024x1024xbf16, #tpu.memory_space<vmem>>, %arg5: memref<1x1024xf32, #tpu.memory_space<vmem>>, %arg6: memref<1024x128xbf16, #tpu.memory_space<vmem>>, %arg7: memref<1x128xf32, #tpu.memory_space<vmem>>, %arg8: memref<16x128xf32, #tpu.memory_space<vmem>>) attributes {dimension_semantics = [#tpu.dimension_semantics<parallel>], iteration_bounds = array<i64: 4>, scalar_prefetch = 0 : i64, scratch_operands = 0 : i64, tpu.core_type = #tpu.core_type<tc>, window_params = [{transform_indices = @transform_0, window_bounds = array<i64: 16, 256>}, {pipeline_mode = #tpu.pipeline_mode<synchronous>, transform_indices = @transform_1, window_bounds = array<i64: 256, 1024>}, {pipeline_mode = #tpu.pipeline_mode<synchronous>, transform_indices = @transform_2, window_bounds = array<i64: 1, 1024>}, {pipeline_mode = #tpu.pipeline_mode<synchronous>, transform_indices = @transform_3, window_bounds = array<i64: 1024, 1024>}, {pipeline_mode = #tpu.pipeline_mode<synchronous>, transform_indices = @transform_4, window_bounds = array<i64: 1, 1024>}, {pipeline_mode = #tpu.pipeline_mode<synchronous>, transform_indices = @transform_5, window_bounds = array<i64: 1024, 128>}, {pipeline_mode = #tpu.pipeline_mode<synchronous>, transform_indices = @transform_6, window_bounds = array<i64: 1, 128>}, {transform_indices = @transform_7, window_bounds = array<i64: 16, 128>}]} {
    %c0 = arith.constant 0 : index
    %c0_0 = arith.constant 0 : index
    %0 = vector.load %arg1[%c0, %c0_0] : memref<16x256xf32, #tpu.memory_space<vmem>>, vector<16x256xf32>
    %1 = arith.truncf %0 : vector<16x256xf32> to vector<16x256xbf16>
    %c0_1 = arith.constant 0 : index
    %c0_2 = arith.constant 0 : index
    %2 = vector.load %arg2[%c0_1, %c0_2] : memref<256x1024xbf16, #tpu.memory_space<vmem>>, vector<256x1024xbf16>
    %cst = arith.constant dense<0.000000e+00> : vector<16x1024xf32>
    %3 = tpu.matmul %1, %2, %cst {dimension_numbers = #tpu.dot_dimension_numbers<[1], [0], [0], [1], [0, 0, 1, 1], [], []>} : vector<16x256xbf16>, vector<256x1024xbf16>, vector<16x1024xf32> -> vector<16x1024xf32>
    %c0_3 = arith.constant 0 : index
    %c0_4 = arith.constant 0 : index
    %4 = vector.load %arg3[%c0_3, %c0_4] : memref<1x1024xf32, #tpu.memory_space<vmem>>, vector<1x1024xf32>
    %5 = vector.broadcast %4 : vector<1x1024xf32> to vector<16x1024xf32>
    %6 = arith.addf %3, %5 : vector<16x1024xf32>
    %cst_5 = arith.constant 0.000000e+00 : f32
    %7 = vector.broadcast %cst_5 : f32 to vector<16x1024xf32>
    %8 = arith.maximumf %6, %7 : vector<16x1024xf32>
    %9 = arith.truncf %8 : vector<16x1024xf32> to vector<16x1024xbf16>
    %c0_6 = arith.constant 0 : index
    %c0_7 = arith.constant 0 : index
    %10 = vector.load %arg4[%c0_6, %c0_7] : memref<1024x1024xbf16, #tpu.memory_space<vmem>>, vector<1024x1024xbf16>
    %cst_8 = arith.constant dense<0.000000e+00> : vector<16x1024xf32>
    %11 = tpu.matmul %9, %10, %cst_8 {dimension_numbers = #tpu.dot_dimension_numbers<[1], [0], [0], [1], [0, 0, 1, 1], [], []>} : vector<16x1024xbf16>, vector<1024x1024xbf16>, vector<16x1024xf32> -> vector<16x1024xf32>
    %c0_9 = arith.constant 0 : index
    %c0_10 = arith.constant 0 : index
    %12 = vector.load %arg5[%c0_9, %c0_10] : memref<1x1024xf32, #tpu.memory_space<vmem>>, vector<1x1024xf32>
    %13 = vector.broadcast %12 : vector<1x1024xf32> to vector<16x1024xf32>
    %14 = arith.addf %11, %13 : vector<16x1024xf32>
    %cst_11 = arith.constant 0.000000e+00 : f32
    %15 = vector.broadcast %cst_11 : f32 to vector<16x1024xf32>
    %16 = arith.maximumf %14, %15 : vector<16x1024xf32>
    %17 = arith.truncf %16 : vector<16x1024xf32> to vector<16x1024xbf16>
    %c0_12 = arith.constant 0 : index
    %c0_13 = arith.constant 0 : index
    %18 = vector.load %arg6[%c0_12, %c0_13] : memref<1024x128xbf16, #tpu.memory_space<vmem>>, vector<1024x128xbf16>
    %cst_14 = arith.constant dense<0.000000e+00> : vector<16x128xf32>
    %19 = tpu.matmul %17, %18, %cst_14 {dimension_numbers = #tpu.dot_dimension_numbers<[1], [0], [0], [1], [0, 0, 1, 1], [], []>} : vector<16x1024xbf16>, vector<1024x128xbf16>, vector<16x128xf32> -> vector<16x128xf32>
    %c0_15 = arith.constant 0 : index
    %c0_16 = arith.constant 0 : index
    %20 = vector.load %arg7[%c0_15, %c0_16] : memref<1x128xf32, #tpu.memory_space<vmem>>, vector<1x128xf32>
    %21 = vector.broadcast %20 : vector<1x128xf32> to vector<16x128xf32>
    %22 = arith.addf %19, %21 : vector<16x128xf32>
    %c0_17 = arith.constant 0 : index
    %c0_18 = arith.constant 0 : index
    %23 = vector.load %arg8[%c0_17, %c0_18] : memref<16x128xf32, #tpu.memory_space<vmem>>, vector<16x128xf32>
    tpu.vector_store %arg8[%c0_17, %c0_18], %22 {strides = array<i32>} : memref<16x128xf32, #tpu.memory_space<vmem>>, vector<16x128xf32>,
    return
  }
  func.func @transform_0(%arg0: i32) -> (i32, i32) {
    %c0_i32 = arith.constant 0 : i32
    %c0_i32_0 = arith.constant 0 : i32
    return %arg0, %c0_i32 : i32, i32
  }
  func.func @transform_1(%arg0: i32) -> (i32, i32) {
    %c0_i32 = arith.constant 0 : i32
    %c0_i32_0 = arith.constant 0 : i32
    %c0_i32_1 = arith.constant 0 : i32
    return %c0_i32, %c0_i32_0 : i32, i32
  }
  func.func @transform_2(%arg0: i32) -> (i32, i32) {
    %c0_i32 = arith.constant 0 : i32
    %c0_i32_0 = arith.constant 0 : i32
    %c0_i32_1 = arith.constant 0 : i32
    return %c0_i32, %c0_i32_0 : i32, i32
  }
  func.func @transform_3(%arg0: i32) -> (i32, i32) {
    %c0_i32 = arith.constant 0 : i32
    %c0_i32_0 = arith.constant 0 : i32
    %c0_i32_1 = arith.constant 0 : i32
    return %c0_i32, %c0_i32_0 : i32, i32
  }
  func.func @transform_4(%arg0: i32) -> (i32, i32) {
    %c0_i32 = arith.constant 0 : i32
    %c0_i32_0 = arith.constant 0 : i32
    %c0_i32_1 = arith.constant 0 : i32
    return %c0_i32, %c0_i32_0 : i32, i32
  }
  func.func @transform_5(%arg0: i32) -> (i32, i32) {
    %c0_i32 = arith.constant 0 : i32
    %c0_i32_0 = arith.constant 0 : i32
    %c0_i32_1 = arith.constant 0 : i32
    return %c0_i32, %c0_i32_0 : i32, i32
  }
  func.func @transform_6(%arg0: i32) -> (i32, i32) {
    %c0_i32 = arith.constant 0 : i32
    %c0_i32_0 = arith.constant 0 : i32
    %c0_i32_1 = arith.constant 0 : i32
    return %c0_i32, %c0_i32_0 : i32, i32
  }
  func.func @transform_7(%arg0: i32) -> (i32, i32) {
    %c0_i32 = arith.constant 0 : i32
    %c0_i32_0 = arith.constant 0 : i32
    return %arg0, %c0_i32 : i32, i32
  }
}

</mosaic_0001>

<llo_original>
// kernel: tpu_custom_call.1
$region0: #{tpu_custom_call.1}
  #allocation0 [shape = 'u32[]', space=smem, size = 0x4, offset = 0x4, fixed_abs, tag = 'smem constant byte address 0x4 - core index']
  #allocation1 [shape = 'u32[144,128]{1,0:T(1,128)}', space=vmem, size = 0x12000, scoped, tag = 'internal scratch']
  %s0 = inlined_call_operand.hbm [shape: f32[64,256], index: 0, kind: input, shape index: {}]
  %s1 = inlined_call_operand.hbm [shape: bf16[256,1024], index: 1, kind: input, shape index: {}]
  %s2 = inlined_call_operand.hbm [shape: f32[1,1024], index: 2, kind: input, shape index: {}]
  %s3 = inlined_call_operand.hbm [shape: bf16[1024,1024], index: 3, kind: input, shape index: {}]
  %s4 = inlined_call_operand.hbm [shape: f32[1,1024], index: 4, kind: input, shape index: {}]
  %s5 = inlined_call_operand.hbm [shape: bf16[1024,128], index: 5, kind: input, shape index: {}]
  %s6 = inlined_call_operand.hbm [shape: f32[1,128], index: 6, kind: input, shape index: {}]
  %s7 = inlined_call_operand.hbm [shape: f32[64,128], index: 7, kind: output, shape index: {}]
  %s8 = sld [smem:[#allocation0]]
  $region89: #{tpu_custom_call.1} parent=0
    _
  %s10 = ssub.s32 1, %s8
  %s11 = scalar_select 0, %s10, %s8
  $region1: #{tpu_custom_call.1} parent=0
    #allocation2 [shape = 'u8[32768]{0}', space=vmem, size = 0x8000, scoped, tag = 'input window, operand 0']
    #allocation3 [shape = 's32[2]{0}', space=sflag, size = 0x8, scoped, tag = 'scoped memory for tpu_custom_call.1']
    #allocation4 [shape = 's32[2]{0}', space=sflag, size = 0x8, scoped, tag = 'scoped memory for tpu_custom_call.1']
    #allocation5 [shape = 'u8[524288]{0}', space=vmem, size = 0x80000, scoped, tag = 'input window, operand 1, single buffered']
    #allocation6 [shape = 's32[1]{0}', space=sflag, size = 0x4, scoped, tag = 'scoped memory for tpu_custom_call.1']
    #allocation7 [shape = 'u8[4096]{0}', space=vmem, size = 0x1000, scoped, tag = 'input window, operand 2, single buffered']
    #allocation8 [shape = 'u8[2097152]{0}', space=vmem, size = 0x200000, scoped, tag = 'input window, operand 3, single buffered']
    #allocation9 [shape = 's32[1]{0}', space=sflag, size = 0x4, scoped, tag = 'scoped memory for tpu_custom_call.1']
    #allocation10 [shape = 'u8[4096]{0}', space=vmem, size = 0x1000, scoped, tag = 'input window, operand 4, single buffered']
    #allocation11 [shape = 'u8[262144]{0}', space=vmem, size = 0x40000, scoped, tag = 'input window, operand 5, single buffered']
    #allocation12 [shape = 's32[1]{0}', space=sflag, size = 0x4, scoped, tag = 'scoped memory for tpu_custom_call.1']
    #allocation13 [shape = 'u8[512]{0}', space=vmem, size = 0x400, scoped, tag = 'input window, operand 6, single buffered']
    #allocation14 [shape = 'u8[16384]{0}', space=vmem, size = 0x4000, scoped, tag = 'output window, operand 0']
    %12 = vsyncpa [#allocation3], 0
    %s13 = scalar_lea.sflag [#allocation3], 1
    %14 = vsyncpa %s13, 0
    %15 = vsyncpa [#allocation6], 0
    %16 = vsyncpa [#allocation9], 0
    %17 = vsyncpa [#allocation12], 0
    %18 = vsyncpa [#allocation4], 0
    %s19 = scalar_lea.sflag [#allocation4], 1
    %20 = vsyncpa %s19, 0
    loop: start=0, step=1, limit=6
    $region2: #{tpu_custom_call.1} parent=1 // loop_pre_header
      _
    $region3: #{tpu_custom_call.1} parent=1 // loop_header
      %s22 = sphi 0, %s26
      %p23 = scmp.ge.s32.totalorder %s22, 6
      %s32 = sphi 0, %s34
      %s35 = sphi 0, %s32
      %s36 = sphi 0, %s35
      %s52 = sphi 0, %s36
      %s56 = sphi 0, %s56
      %s58 = sphi 0, %s56
      %s59 = sphi 0, %s58
      %s73 = sphi 0, %s59
      %s77 = sphi 0, %s77
      %s79 = sphi 0, %s77
      %s80 = sphi 0, %s79
      %s94 = sphi 0, %s80
      %s98 = sphi 0, %s98
      %s100 = sphi 0, %s98
      %s101 = sphi 0, %s100
      %s115 = sphi 0, %s101
      %s119 = sphi 0, %s119
      %s121 = sphi 0, %s119
      %s122 = sphi 0, %s121
      %s136 = sphi 0, %s122
      %s140 = sphi 0, %s140
      %s142 = sphi 0, %s140
      %s143 = sphi 0, %s142
      %s157 = sphi 0, %s143
      %s161 = sphi 0, %s161
      %s163 = sphi 0, %s161
      %s164 = sphi 0, %s163
      %s178 = sphi 0, %s164
      %s184 = sphi 0, %s186
      %s187 = sphi 0, %s184
      %s188 = sphi 0, %s187
      %s204 = sphi 0, %s188
    $region4: #{tpu_custom_call.1} parent=1 // loop_header_branch
      %25 = sbr.rel (%p23) target = $region8
    $region5: #{tpu_custom_call.1} parent=1 // loop_body
      %s27 = ssub.s32 %s22, 1
      %s28 = ssub.s32 %s22, 2
      %s29 = sadd.s32 %s22, 1
      %s30 = ssub.s32 %s22, %s29
      %p31 = scmp.eq.s32.totalorder %s30, 0
      %s33 = sadd.s32 %s32, 1
      %s34 = scalar_select %p31, %s32, %s33
      %p37 = pneg %p31
      %p38 = scmp.eq.s32.totalorder %s22, 3
      %p39 = por %p37, %p38
      %p40 = scmp.ne.s32.totalorder %s32, %s35
      %p41 = scmp.eq.s32.totalorder %s22, 0
      %p42 = por %p40, %p41
      %p43 = scmp.ne.s32.totalorder %s32, %s35
      %p44 = scmp.eq.s32.totalorder %s27, 3
      %p45 = por %p43, %p44
      %p46 = scmp.ne.s32.totalorder %s35, %s36
      %p47 = scmp.eq.s32.totalorder %s27, 0
      %p48 = por %p46, %p47
      %p49 = scmp.ne.s32.totalorder %s35, %s36
      %p50 = scmp.eq.s32.totalorder %s28, 3
      %p51 = por %p49, %p50
      %p53 = scmp.ne.s32.totalorder %s36, %s52
      %p54 = scmp.eq.s32.totalorder %s28, 0
      %p55 = por %p53, %p54
      %s57 = sadd.s32 %s56, 1
      %p60 = scmp.eq.s32.totalorder %s22, 3
      %p61 = scmp.ne.s32.totalorder %s56, %s58
      %p62 = scmp.eq.s32.totalorder %s22, 0
      %p63 = por %p61, %p62
      %p64 = scmp.ne.s32.totalorder %s56, %s58
      %p65 = scmp.eq.s32.totalorder %s27, 3
      %p66 = por %p64, %p65
      %p67 = scmp.ne.s32.totalorder %s58, %s59
      %p68 = scmp.eq.s32.totalorder %s27, 0
      %p69 = por %p67, %p68
      %p70 = scmp.ne.s32.totalorder %s58, %s59
      %p71 = scmp.eq.s32.totalorder %s28, 3
      %p72 = por %p70, %p71
      %p74 = scmp.ne.s32.totalorder %s59, %s73
      %p75 = scmp.eq.s32.totalorder %s28, 0
      %p76 = por %p74, %p75
      %s78 = sadd.s32 %s77, 1
      %p81 = scmp.eq.s32.totalorder %s22, 3
      %p82 = scmp.ne.s32.totalorder %s77, %s79
      %p83 = scmp.eq.s32.totalorder %s22, 0
      %p84 = por %p82, %p83
      %p85 = scmp.ne.s32.totalorder %s77, %s79
      %p86 = scmp.eq.s32.totalorder %s27, 3
      %p87 = por %p85, %p86
      %p88 = scmp.ne.s32.totalorder %s79, %s80
      %p89 = scmp.eq.s32.totalorder %s27, 0
      %p90 = por %p88, %p89
      %p91 = scmp.ne.s32.totalorder %s79, %s80
      %p92 = scmp.eq.s32.totalorder %s28, 3
      %p93 = por %p91, %p92
      %p95 = scmp.ne.s32.totalorder %s80, %s94
      %p96 = scmp.eq.s32.totalorder %s28, 0
      %p97 = por %p95, %p96
      %s99 = sadd.s32 %s98, 1
      %p102 = scmp.eq.s32.totalorder %s22, 3
      %p103 = scmp.ne.s32.totalorder %s98, %s100
      %p104 = scmp.eq.s32.totalorder %s22, 0
      %p105 = por %p103, %p104
      %p106 = scmp.ne.s32.totalorder %s98, %s100
      %p107 = scmp.eq.s32.totalorder %s27, 3
      %p108 = por %p106, %p107
      %p109 = scmp.ne.s32.totalorder %s100, %s101
      %p110 = scmp.eq.s32.totalorder %s27, 0
      %p111 = por %p109, %p110
      %p112 = scmp.ne.s32.totalorder %s100, %s101
      %p113 = scmp.eq.s32.totalorder %s28, 3
      %p114 = por %p112, %p113
      %p116 = scmp.ne.s32.totalorder %s101, %s115
      %p117 = scmp.eq.s32.totalorder %s28, 0
      %p118 = por %p116, %p117
      %s120 = sadd.s32 %s119, 1
      %p123 = scmp.eq.s32.totalorder %s22, 3
      %p124 = scmp.ne.s32.totalorder %s119, %s121
      %p125 = scmp.eq.s32.totalorder %s22, 0
      %p126 = por %p124, %p125
      %p127 = scmp.ne.s32.totalorder %s119, %s121
      %p128 = scmp.eq.s32.totalorder %s27, 3
      %p129 = por %p127, %p128
      %p130 = scmp.ne.s32.totalorder %s121, %s122
      %p131 = scmp.eq.s32.totalorder %s27, 0
      %p132 = por %p130, %p131
      %p133 = scmp.ne.s32.totalorder %s121, %s122
      %p134 = scmp.eq.s32.totalorder %s28, 3
      %p135 = por %p133, %p134
      %p137 = scmp.ne.s32.totalorder %s122, %s136
      %p138 = scmp.eq.s32.totalorder %s28, 0
      %p139 = por %p137, %p138
      %s141 = sadd.s32 %s140, 1
      %p144 = scmp.eq.s32.totalorder %s22, 3
      %p145 = scmp.ne.s32.totalorder %s140, %s142
      %p146 = scmp.eq.s32.totalorder %s22, 0
      %p147 = por %p145, %p146
      %p148 = scmp.ne.s32.totalorder %s140, %s142
      %p149 = scmp.eq.s32.totalorder %s27, 3
      %p150 = por %p148, %p149
      %p151 = scmp.ne.s32.totalorder %s142, %s143
      %p152 = scmp.eq.s32.totalorder %s27, 0
      %p153 = por %p151, %p152
      %p154 = scmp.ne.s32.totalorder %s142, %s143
      %p155 = scmp.eq.s32.totalorder %s28, 3
      %p156 = por %p154, %p155
      %p158 = scmp.ne.s32.totalorder %s143, %s157
      %p159 = scmp.eq.s32.totalorder %s28, 0
      %p160 = por %p158, %p159
      %s162 = sadd.s32 %s161, 1
      %p165 = scmp.eq.s32.totalorder %s22, 3
      %p166 = scmp.ne.s32.totalorder %s161, %s163
      %p167 = scmp.eq.s32.totalorder %s22, 0
      %p168 = por %p166, %p167
      %p169 = scmp.ne.s32.totalorder %s161, %s163
      %p170 = scmp.eq.s32.totalorder %s27, 3
      %p171 = por %p169, %p170
      %p172 = scmp.ne.s32.totalorder %s163, %s164
      %p173 = scmp.eq.s32.totalorder %s27, 0
      %p174 = por %p172, %p173
      %p175 = scmp.ne.s32.totalorder %s163, %s164
      %p176 = scmp.eq.s32.totalorder %s28, 3
      %p177 = por %p175, %p176
      %p179 = scmp.ne.s32.totalorder %s164, %s178
      %p180 = scmp.eq.s32.totalorder %s28, 0
      %p181 = por %p179, %p180
      %s182 = ssub.s32 %s22, %s29
      %p183 = scmp.eq.s32.totalorder %s182, 0
      %s185 = sadd.s32 %s184, 1
      %s186 = scalar_select %p183, %s184, %s185
      %p189 = pneg %p183
      %p190 = scmp.eq.s32.totalorder %s22, 3
      %p191 = por %p189, %p190
      %p192 = scmp.ne.s32.totalorder %s184, %s187
      %p193 = scmp.eq.s32.totalorder %s22, 0
      %p194 = por %p192, %p193
      %p195 = scmp.ne.s32.totalorder %s184, %s187
      %p196 = scmp.eq.s32.totalorder %s27, 3
      %p197 = por %p195, %p196
      %p198 = scmp.ne.s32.totalorder %s187, %s188
      %p199 = scmp.eq.s32.totalorder %s27, 0
      %p200 = por %p198, %p199
      %p201 = scmp.ne.s32.totalorder %s187, %s188
      %p202 = scmp.eq.s32.totalorder %s28, 3
      %p203 = por %p201, %p202
      %p205 = scmp.ne.s32.totalorder %s188, %s204
      %p206 = scmp.eq.s32.totalorder %s28, 0
      %p207 = por %p205, %p206
      %p208 = scmp.le.s32.totalorder 1, %s22
      %p209 = scmp.lt.s32.totalorder %s22, 5
      %p210 = pnand %p208, %p209
      %p211 = pneg %p210
      // Predicated region
      $region9: #{tpu_custom_call.1} parent=5 // pred_check
        _
      $region10: #{tpu_custom_call.1} parent=5 // pred_check_branch
        %213 = sbr.rel (%p210) target = $region12
      $region11: #{tpu_custom_call.1} parent=5 // pred_region
        %s214 = ssub.s32 %s22, 1
        // Predicated region
        $region13: #{tpu_custom_call.1} parent=11 // pred_check
          %p215 = pneg %p69
        $region14: #{tpu_custom_call.1} parent=11 // pred_check_branch
          %217 = sbr.rel (%p215) target = $region16
        $region15: #{tpu_custom_call.1} parent=11 // pred_region
          %s219 = ssub.s32 16384, 16384
          %220 = vsyncadd [#allocation6], %s219
          %s221 = sshll.u32 [#allocation5], 4
          %s222 = int_to_ptr.vmem [resolvable:$true] %s221
          %227 = dma.hbm_to_vmem [thread:$0]  %s1, 16384, %s222, [#allocation6], 512, 512, 32
        $region16: #{tpu_custom_call.1} parent=11 // pred_fallthru
          _
        // Predicated region
        $region17: #{tpu_custom_call.1} parent=11 // pred_check
          %p228 = pneg %p90
        $region18: #{tpu_custom_call.1} parent=11 // pred_check_branch
          %230 = sbr.rel (%p228) target = $region20
        $region19: #{tpu_custom_call.1} parent=11 // pred_region
          %s232 = ssub.s32 128, 128
          %233 = vsyncadd [#allocation6], %s232
          %s235 = sshll.u32 [#allocation7], 4
          %s236 = int_to_ptr.vmem [resolvable:$true] %s235
          %238 = dma.hbm_to_vmem [thread:$0]  %s2, 128, %s236, [#allocation6]
        $region20: #{tpu_custom_call.1} parent=11 // pred_fallthru
          _
        // Predicated region
        $region21: #{tpu_custom_call.1} parent=11 // pred_check
          %p239 = pneg %p111
        $region22: #{tpu_custom_call.1} parent=11 // pred_check_branch
          %241 = sbr.rel (%p239) target = $region24
        $region23: #{tpu_custom_call.1} parent=11 // pred_region
          %s243 = ssub.s32 65536, 65536
          %244 = vsyncadd [#allocation9], %s243
          %s245 = sshll.u32 [#allocation8], 4
          %s246 = int_to_ptr.vmem [resolvable:$true] %s245
          %251 = dma.hbm_to_vmem [thread:$0]  %s3, 65536, %s246, [#allocation9], 512, 512, 32
        $region24: #{tpu_custom_call.1} parent=11 // pred_fallthru
          _
        // Predicated region
        $region25: #{tpu_custom_call.1} parent=11 // pred_check
          %p252 = pneg %p132
        $region26: #{tpu_custom_call.1} parent=11 // pred_check_branch
          %254 = sbr.rel (%p252) target = $region28
        $region27: #{tpu_custom_call.1} parent=11 // pred_region
          %s256 = ssub.s32 128, 128
          %257 = vsyncadd [#allocation9], %s256
          %s259 = sshll.u32 [#allocation10], 4
          %s260 = int_to_ptr.vmem [resolvable:$true] %s259
          %262 = dma.hbm_to_vmem [thread:$0]  %s4, 128, %s260, [#allocation9]
        $region28: #{tpu_custom_call.1} parent=11 // pred_fallthru
          _
        // Predicated region
        $region29: #{tpu_custom_call.1} parent=11 // pred_check
          %p263 = pneg %p153
        $region30: #{tpu_custom_call.1} parent=11 // pred_check_branch
          %265 = sbr.rel (%p263) target = $region32
        $region31: #{tpu_custom_call.1} parent=11 // pred_region
          %s267 = ssub.s32 8192, 8192
          %268 = vsyncadd [#allocation12], %s267
          %s269 = sshll.u32 [#allocation11], 4
          %s270 = int_to_ptr.vmem [resolvable:$true] %s269
          %275 = dma.hbm_to_vmem [thread:$0]  %s5, 8192, %s270, [#allocation12], 64, 64, 4
        $region32: #{tpu_custom_call.1} parent=11 // pred_fallthru
          _
        // Predicated region
        $region33: #{tpu_custom_call.1} parent=11 // pred_check
          %p276 = pneg %p174
        $region34: #{tpu_custom_call.1} parent=11 // pred_check_branch
          %278 = sbr.rel (%p276) target = $region36
        $region35: #{tpu_custom_call.1} parent=11 // pred_region
          %s280 = ssub.s32 16, 16
          %281 = vsyncadd [#allocation12], %s280
          %s283 = sshll.u32 [#allocation13], 4
          %s284 = int_to_ptr.vmem [resolvable:$true] %s283
          %286 = dma.hbm_to_vmem [thread:$0]  %s6, 16, %s284, [#allocation12]
        $region36: #{tpu_custom_call.1} parent=11 // pred_fallthru
          _
      $region12: #{tpu_custom_call.1} parent=5 // pred_fallthru
        _
      %p287 = scmp.lt.s32.totalorder %s22, 4
      // Predicated region
      $region37: #{tpu_custom_call.1} parent=5 // pred_check
        %p288 = pneg %p287
      $region38: #{tpu_custom_call.1} parent=5 // pred_check_branch
        %290 = sbr.rel (%p288) target = $region40
      $region39: #{tpu_custom_call.1} parent=5 // pred_region
        // Predicated region
        $region41: #{tpu_custom_call.1} parent=39 // pred_check
          %p291 = pneg %p42
        $region42: #{tpu_custom_call.1} parent=39 // pred_check_branch
          %293 = sbr.rel (%p291) target = $region44
        $region43: #{tpu_custom_call.1} parent=39 // pred_region
          %s294 = sand.u32 %s32, 1
          %s295 = scalar_lea.sflag [#allocation3], %s294
          %s296 = sand.u32 %s32, 1
          %s297 = smul.addr %s296, 32
          %s298 = scalar_lea.vmem [#allocation2], %s297
          %s299 = smul.u32 2, %s22
          %s301 = ssub.s32 512, 512
          %302 = vsyncadd %s295, %s301
          %s303 = smul.addr %s299, 2
          %s304 = smul.addr %s303, 128
          %s305 = scalar_lea.hbm %s0, %s304
          %s306 = sshll.u32 %s298, 4
          %s307 = int_to_ptr.vmem [resolvable:$true] %s306
          %312 = dma.hbm_to_vmem [thread:$0]  %s305, 512, %s307, %s295, 256, 256, 16
        $region44: #{tpu_custom_call.1} parent=39 // pred_fallthru
          _
      $region40: #{tpu_custom_call.1} parent=5 // pred_fallthru
        _
      %p313 = scmp.le.s32.totalorder 1, %s22
      %p314 = scmp.lt.s32.totalorder %s22, 5
      %p315 = pnand %p313, %p314
      %p316 = pneg %p315
      // Predicated region
      $region45: #{tpu_custom_call.1} parent=5 // pred_check
        _
      $region46: #{tpu_custom_call.1} parent=5 // pred_check_branch
        %318 = sbr.rel (%p315) target = $region48
      $region47: #{tpu_custom_call.1} parent=5 // pred_region
        %s319 = ssub.s32 %s22, 1
        %s320 = sand.u32 %s35, 1
        %s321 = scalar_lea.sflag [#allocation3], %s320
        %s322 = sand.u32 %s35, 1
        %s323 = smul.addr %s322, 32
        %s324 = scalar_lea.vmem [#allocation2], %s323
        // Predicated region
        $region49: #{tpu_custom_call.1} parent=47 // pred_check
          %p325 = pneg %p48
        $region50: #{tpu_custom_call.1} parent=47 // pred_check_branch
          %327 = sbr.rel (%p325) target = $region52
        $region51: #{tpu_custom_call.1} parent=47 // pred_region
          %328 = dma.done %s321, 512
        $region52: #{tpu_custom_call.1} parent=47 // pred_fallthru
          _
        // Predicated region
        $region53: #{tpu_custom_call.1} parent=47 // pred_check
          %p329 = pneg %p69
        $region54: #{tpu_custom_call.1} parent=47 // pred_check_branch
          %331 = sbr.rel (%p329) target = $region56
        $region55: #{tpu_custom_call.1} parent=47 // pred_region
          %332 = dma.done [#allocation6], 16384
        $region56: #{tpu_custom_call.1} parent=47 // pred_fallthru
          _
        // Predicated region
        $region57: #{tpu_custom_call.1} parent=47 // pred_check
          %p333 = pneg %p90
        $region58: #{tpu_custom_call.1} parent=47 // pred_check_branch
          %335 = sbr.rel (%p333) target = $region60
        $region59: #{tpu_custom_call.1} parent=47 // pred_region
          %336 = dma.done [#allocation6], 128
        $region60: #{tpu_custom_call.1} parent=47 // pred_fallthru
          _
        // Predicated region
        $region61: #{tpu_custom_call.1} parent=47 // pred_check
          %p337 = pneg %p111
        $region62: #{tpu_custom_call.1} parent=47 // pred_check_branch
          %339 = sbr.rel (%p337) target = $region64
        $region63: #{tpu_custom_call.1} parent=47 // pred_region
          %340 = dma.done [#allocation9], 65536
        $region64: #{tpu_custom_call.1} parent=47 // pred_fallthru
          _
        // Predicated region
        $region65: #{tpu_custom_call.1} parent=47 // pred_check
          %p341 = pneg %p132
        $region66: #{tpu_custom_call.1} parent=47 // pred_check_branch
          %343 = sbr.rel (%p341) target = $region68
        $region67: #{tpu_custom_call.1} parent=47 // pred_region
          %344 = dma.done [#allocation9], 128
        $region68: #{tpu_custom_call.1} parent=47 // pred_fallthru
          _
        // Predicated region
        $region69: #{tpu_custom_call.1} parent=47 // pred_check
          %p345 = pneg %p153
        $region70: #{tpu_custom_call.1} parent=47 // pred_check_branch
          %347 = sbr.rel (%p345) target = $region72
        $region71: #{tpu_custom_call.1} parent=47 // pred_region
          %348 = dma.done [#allocation12], 8192
        $region72: #{tpu_custom_call.1} parent=47 // pred_fallthru
          _
        // Predicated region
        $region73: #{tpu_custom_call.1} parent=47 // pred_check
          %p349 = pneg %p174
        $region74: #{tpu_custom_call.1} parent=47 // pred_check_branch
          %351 = sbr.rel (%p349) target = $region76
        $region75: #{tpu_custom_call.1} parent=47 // pred_region
          %352 = dma.done [#allocation12], 16
        $region76: #{tpu_custom_call.1} parent=47 // pred_fallthru
          _
        %s353 = sand.u32 %s35, 1
        %s354 = scalar_lea.sflag [#allocation3], %s353
        %s355 = sand.u32 %s35, 1
        %s356 = smul.addr %s355, 32
        %s357 = scalar_lea.vmem [#allocation2], %s356
        %p358 = pneg %p48
        %p359 = pneg %p45
        %p360 = pneg %p69
        %p361 = pneg %p66
        %p362 = pneg %p90
        %p363 = pneg %p87
        %p364 = pneg %p111
        %p365 = pneg %p108
        %p366 = pneg %p132
        %p367 = pneg %p129
        %p368 = pneg %p153
        %p369 = pneg %p150
        %p370 = pneg %p174
        %p371 = pneg %p171
        %p372 = pneg %p200
        %p373 = pneg %p197
        %s374 = sand.u32 %s187, 1
        %s375 = scalar_lea.sflag [#allocation4], %s374
        %s376 = sand.u32 %s187, 1
        %s377 = smul.addr %s376, 16
        %s378 = scalar_lea.vmem [#allocation14], %s377
        %s379 = smul.u32 2, %s27
        %s380 = smul.u32 2, %s27
        %v382 = vld [vmem:[%s324] sm:$0xff]
        %v383 = vld [vmem:[%s324 + $0x8] sm:$0xff]
        %v384 = vld [vmem:[%s324 + $0x10] sm:$0xff]
        %v385 = vld [vmem:[%s324 + $0x18] sm:$0xff]
        %v386 = vpack.c.bf16 %v384, %v382
        %v387 = vpack.c.bf16 %v385, %v383
        %v388 = vld [vmem:[#allocation5] sm:$0xff]
        %v389 = vld [vmem:[#allocation5 + $0x8] sm:$0xff]
        %v390 = vld [vmem:[#allocation5 + $0x10] sm:$0xff]
        %v391 = vld [vmem:[#allocation5 + $0x18] sm:$0xff]
        %v392 = vld [vmem:[#allocation5 + $0x20] sm:$0xff]
        %v393 = vld [vmem:[#allocation5 + $0x28] sm:$0xff]
        %v394 = vld [vmem:[#allocation5 + $0x30] sm:$0xff]
        %v395 = vld [vmem:[#allocation5 + $0x38] sm:$0xff]
        %v396 = vld [vmem:[#allocation5 + $0x40] sm:$0xff]
        %v397 = vld [vmem:[#allocation5 + $0x48] sm:$0xff]
        %v398 = vld [vmem:[#allocation5 + $0x50] sm:$0xff]
        %v399 = vld [vmem:[#allocation5 + $0x58] sm:$0xff]
        %v400 = vld [vmem:[#allocation5 + $0x60] sm:$0xff]
        %v401 = vld [vmem:[#allocation5 + $0x68] sm:$0xff]
        %v402 = vld [vmem:[#allocation5 + $0x70] sm:$0xff]
        %v403 = vld [vmem:[#allocation5 + $0x78] sm:$0xff]
        %v404 = vld [vmem:[#allocation5 + $0x80] sm:$0xff]
        %v405 = vld [vmem:[#allocation5 + $0x88] sm:$0xff]
        %v406 = vld [vmem:[#allocation5 + $0x90] sm:$0xff]
        %v407 = vld [vmem:[#allocation5 + $0x98] sm:$0xff]
        %v408 = vld [vmem:[#allocation5 + $0xa0] sm:$0xff]
        %v409 = vld [vmem:[#allocation5 + $0xa8] sm:$0xff]
        %v410 = vld [vmem:[#allocation5 + $0xb0] sm:$0xff]
        %v411 = vld [vmem:[#allocation5 + $0xb8] sm:$0xff]
        %v412 = vld [vmem:[#allocation5 + $0xc0] sm:$0xff]
        %v413 = vld [vmem:[#allocation5 + $0xc8] sm:$0xff]
        %v414 = vld [vmem:[#allocation5 + $0xd0] sm:$0xff]
        %v415 = vld [vmem:[#allocation5 + $0xd8] sm:$0xff]
        %v416 = vld [vmem:[#allocation5 + $0xe0] sm:$0xff]
        %v417 = vld [vmem:[#allocation5 + $0xe8] sm:$0xff]
        %v418 = vld [vmem:[#allocation5 + $0xf0] sm:$0xff]
        %v419 = vld [vmem:[#allocation5 + $0xf8] sm:$0xff]
        %v420 = vld [vmem:[#allocation5 + $0x100] sm:$0xff]
        %v421 = vld [vmem:[#allocation5 + $0x108] sm:$0xff]
        %v422 = vld [vmem:[#allocation5 + $0x110] sm:$0xff]
        %v423 = vld [vmem:[#allocation5 + $0x118] sm:$0xff]
        %v424 = vld [vmem:[#allocation5 + $0x120] sm:$0xff]
        %v425 = vld [vmem:[#allocation5 + $0x128] sm:$0xff]
        %v426 = vld [vmem:[#allocation5 + $0x130] sm:$0xff]
        %v427 = vld [vmem:[#allocation5 + $0x138] sm:$0xff]
        %v428 = vld [vmem:[#allocation5 + $0x140] sm:$0xff]
        %v429 = vld [vmem:[#allocation5 + $0x148] sm:$0xff]
        %v430 = vld [vmem:[#allocation5 + $0x150] sm:$0xff]
        %v431 = vld [vmem:[#allocation5 + $0x158] sm:$0xff]
        %v432 = vld [vmem:[#allocation5 + $0x160] sm:$0xff]
        %v433 = vld [vmem:[#allocation5 + $0x168] sm:$0xff]
        %v434 = vld [vmem:[#allocation5 + $0x170] sm:$0xff]
        %v435 = vld [vmem:[#allocation5 + $0x178] sm:$0xff]
        %v436 = vld [vmem:[#allocation5 + $0x180] sm:$0xff]
        %v437 = vld [vmem:[#allocation5 + $0x188] sm:$0xff]
        %v438 = vld [vmem:[#allocation5 + $0x190] sm:$0xff]
        %v439 = vld [vmem:[#allocation5 + $0x198] sm:$0xff]
        %v440 = vld [vmem:[#allocation5 + $0x1a0] sm:$0xff]
        %v441 = vld [vmem:[#allocation5 + $0x1a8] sm:$0xff]
        %v442 = vld [vmem:[#allocation5 + $0x1b0] sm:$0xff]
        %v443 = vld [vmem:[#allocation5 + $0x1b8] sm:$0xff]
        %v444 = vld [vmem:[#allocation5 + $0x1c0] sm:$0xff]
        %v445 = vld [vmem:[#allocation5 + $0x1c8] sm:$0xff]
        %v446 = vld [vmem:[#allocation5 + $0x1d0] sm:$0xff]
        %v447 = vld [vmem:[#allocation5 + $0x1d8] sm:$0xff]
        %v448 = vld [vmem:[#allocation5 + $0x1e0] sm:$0xff]
        %v449 = vld [vmem:[#allocation5 + $0x1e8] sm:$0xff]
        %v450 = vld [vmem:[#allocation5 + $0x1f0] sm:$0xff]
        %v451 = vld [vmem:[#allocation5 + $0x1f8] sm:$0xff]
        %v452 = vld [vmem:[#allocation5 + $0x200] sm:$0xff]
        %v453 = vld [vmem:[#allocation5 + $0x208] sm:$0xff]
        %v454 = vld [vmem:[#allocation5 + $0x210] sm:$0xff]
        %v455 = vld [vmem:[#allocation5 + $0x218] sm:$0xff]
        %v456 = vld [vmem:[#allocation5 + $0x220] sm:$0xff]
        %v457 = vld [vmem:[#allocation5 + $0x228] sm:$0xff]
        %v458 = vld [vmem:[#allocation5 + $0x230] sm:$0xff]
        %v459 = vld [vmem:[#allocation5 + $0x238] sm:$0xff]
        %v460 = vld [vmem:[#allocation5 + $0x240] sm:$0xff]
        %v461 = vld [vmem:[#allocation5 + $0x248] sm:$0xff]
        %v462 = vld [vmem:[#allocation5 + $0x250] sm:$0xff]
        %v463 = vld [vmem:[#allocation5 + $0x258] sm:$0xff]
        %v464 = vld [vmem:[#allocation5 + $0x260] sm:$0xff]
        %v465 = vld [vmem:[#allocation5 + $0x268] sm:$0xff]
        %v466 = vld [vmem:[#allocation5 + $0x270] sm:$0xff]
        %v467 = vld [vmem:[#allocation5 + $0x278] sm:$0xff]
        %v468 = vld [vmem:[#allocation5 + $0x280] sm:$0xff]
        %v469 = vld [vmem:[#allocation5 + $0x288] sm:$0xff]
        %v470 = vld [vmem:[#allocation5 + $0x290] sm:$0xff]
        %v471 = vld [vmem:[#allocation5 + $0x298] sm:$0xff]
        %v472 = vld [vmem:[#allocation5 + $0x2a0] sm:$0xff]
        %v473 = vld [vmem:[#allocation5 + $0x2a8] sm:$0xff]
        %v474 = vld [vmem:[#allocation5 + $0x2b0] sm:$0xff]
        %v475 = vld [vmem:[#allocation5 + $0x2b8] sm:$0xff]
        %v476 = vld [vmem:[#allocation5 + $0x2c0] sm:$0xff]
        %v477 = vld [vmem:[#allocation5 + $0x2c8] sm:$0xff]
        %v478 = vld [vmem:[#allocation5 + $0x2d0] sm:$0xff]
        %v479 = vld [vmem:[#allocation5 + $0x2d8] sm:$0xff]
        %v480 = vld [vmem:[#allocation5 + $0x2e0] sm:$0xff]
        %v481 = vld [vmem:[#allocation5 + $0x2e8] sm:$0xff]
        %v482 = vld [vmem:[#allocation5 + $0x2f0] sm:$0xff]
        %v483 = vld [vmem:[#allocation5 + $0x2f8] sm:$0xff]
        %v484 = vld [vmem:[#allocation5 + $0x300] sm:$0xff]
        %v485 = vld [vmem:[#allocation5 + $0x308] sm:$0xff]
        %v486 = vld [vmem:[#allocation5 + $0x310] sm:$0xff]
        %v487 = vld [vmem:[#allocation5 + $0x318] sm:$0xff]
        %v488 = vld [vmem:[#allocation5 + $0x320] sm:$0xff]
        %v489 = vld [vmem:[#allocation5 + $0x328] sm:$0xff]
        %v490 = vld [vmem:[#allocation5 + $0x330] sm:$0xff]
        %v491 = vld [vmem:[#allocation5 + $0x338] sm:$0xff]
        %v492 = vld [vmem:[#allocation5 + $0x340] sm:$0xff]
        %v493 = vld [vmem:[#allocation5 + $0x348] sm:$0xff]
        %v494 = vld [vmem:[#allocation5 + $0x350] sm:$0xff]
        %v495 = vld [vmem:[#allocation5 + $0x358] sm:$0xff]
        %v496 = vld [vmem:[#allocation5 + $0x360] sm:$0xff]
        %v497 = vld [vmem:[#allocation5 + $0x368] sm:$0xff]
        %v498 = vld [vmem:[#allocation5 + $0x370] sm:$0xff]
        %v499 = vld [vmem:[#allocation5 + $0x378] sm:$0xff]
        %v500 = vld [vmem:[#allocation5 + $0x380] sm:$0xff]
        %v501 = vld [vmem:[#allocation5 + $0x388] sm:$0xff]
        %v502 = vld [vmem:[#allocation5 + $0x390] sm:$0xff]
        %v503 = vld [vmem:[#allocation5 + $0x398] sm:$0xff]
        %v504 = vld [vmem:[#allocation5 + $0x3a0] sm:$0xff]
        %v505 = vld [vmem:[#allocation5 + $0x3a8] sm:$0xff]
        %v506 = vld [vmem:[#allocation5 + $0x3b0] sm:$0xff]
        %v507 = vld [vmem:[#allocation5 + $0x3b8] sm:$0xff]
        %v508 = vld [vmem:[#allocation5 + $0x3c0] sm:$0xff]
        %v509 = vld [vmem:[#allocation5 + $0x3c8] sm:$0xff]
        %v510 = vld [vmem:[#allocation5 + $0x3d0] sm:$0xff]
        %v511 = vld [vmem:[#allocation5 + $0x3d8] sm:$0xff]
        %v512 = vld [vmem:[#allocation5 + $0x3e0] sm:$0xff]
        %v513 = vld [vmem:[#allocation5 + $0x3e8] sm:$0xff]
        %v514 = vld [vmem:[#allocation5 + $0x3f0] sm:$0xff]
        %v515 = vld [vmem:[#allocation5 + $0x3f8] sm:$0xff]
        %v516 = vld [vmem:[#allocation7] sm:$0xff]
        %v518 = vlaneseq
        %v519 = vshrl.u32 %v518, 7
        %v520 = vsub.s32 0, %v519
        %v521 = vrot.slane %v516, %v520
        %v522 = vlaneseq
        %v523 = vshrl.u32 %v522, 7
        %v524 = vsub.s32 1, %v523
        %v525 = vrot.slane %v516, %v524
        %v526 = vlaneseq
        %v527 = vshrl.u32 %v526, 7
        %v528 = vsub.s32 2, %v527
        %v529 = vrot.slane %v516, %v528
        %v530 = vlaneseq
        %v531 = vshrl.u32 %v530, 7
        %v532 = vsub.s32 3, %v531
        %v533 = vrot.slane %v516, %v532
        %v534 = vlaneseq
        %v535 = vshrl.u32 %v534, 7
        %v536 = vsub.s32 4, %v535
        %v537 = vrot.slane %v516, %v536
        %v538 = vlaneseq
        %v539 = vshrl.u32 %v538, 7
        %v540 = vsub.s32 5, %v539
        %v541 = vrot.slane %v516, %v540
        %v542 = vlaneseq
        %v543 = vshrl.u32 %v542, 7
        %v544 = vsub.s32 6, %v543
        %v545 = vrot.slane %v516, %v544
        %v546 = vlaneseq
        %v547 = vshrl.u32 %v546, 7
        %v548 = vsub.s32 7, %v547
        %v549 = vrot.slane %v516, %v548
        %v686 = vunpack.c.l.b16 %v388
        %v687 = vunpack.c.h.b16 %v388
        %v688 = vunpack.c.l.b16 %v389
        %v689 = vunpack.c.h.b16 %v389
        %v690 = vunpack.c.l.b16 %v390
        %v691 = vunpack.c.h.b16 %v390
        %v692 = vunpack.c.l.b16 %v391
        %v693 = vunpack.c.h.b16 %v391
        %v694 = vunpack.c.l.b16 %v392
        %v695 = vunpack.c.h.b16 %v392
        %v696 = vunpack.c.l.b16 %v393
        %v697 = vunpack.c.h.b16 %v393
        %v698 = vunpack.c.l.b16 %v394
        %v699 = vunpack.c.h.b16 %v394
        %v700 = vunpack.c.l.b16 %v395
        %v701 = vunpack.c.h.b16 %v395
        %v702 = vunpack.c.l.b16 %v396
        %v703 = vunpack.c.h.b16 %v396
        %v704 = vunpack.c.l.b16 %v397
        %v705 = vunpack.c.h.b16 %v397
        %v706 = vunpack.c.l.b16 %v398
        %v707 = vunpack.c.h.b16 %v398
        %v708 = vunpack.c.l.b16 %v399
        %v709 = vunpack.c.h.b16 %v399
        %v710 = vunpack.c.l.b16 %v400
        %v711 = vunpack.c.h.b16 %v400
        %v712 = vunpack.c.l.b16 %v401
        %v713 = vunpack.c.h.b16 %v401
        %v714 = vunpack.c.l.b16 %v402
        %v715 = vunpack.c.h.b16 %v402
        %v716 = vunpack.c.l.b16 %v403
        %v717 = vunpack.c.h.b16 %v403
        %v718 = vunpack.c.l.b16 %v404
        %v719 = vunpack.c.h.b16 %v404
        %v720 = vunpack.c.l.b16 %v405
        %v721 = vunpack.c.h.b16 %v405
        %v722 = vunpack.c.l.b16 %v406
        %v723 = vunpack.c.h.b16 %v406
        %v724 = vunpack.c.l.b16 %v407
        %v725 = vunpack.c.h.b16 %v407
        %v726 = vunpack.c.l.b16 %v408
        %v727 = vunpack.c.h.b16 %v408
        %v728 = vunpack.c.l.b16 %v409
        %v729 = vunpack.c.h.b16 %v409
        %v730 = vunpack.c.l.b16 %v410
        %v731 = vunpack.c.h.b16 %v410
        %v732 = vunpack.c.l.b16 %v411
        %v733 = vunpack.c.h.b16 %v411
        %v734 = vunpack.c.l.b16 %v412
        %v735 = vunpack.c.h.b16 %v412
        %v736 = vunpack.c.l.b16 %v413
        %v737 = vunpack.c.h.b16 %v413
        %v738 = vunpack.c.l.b16 %v414
        %v739 = vunpack.c.h.b16 %v414
        %v740 = vunpack.c.l.b16 %v415
        %v741 = vunpack.c.h.b16 %v415
        %v742 = vunpack.c.l.b16 %v416
        %v743 = vunpack.c.h.b16 %v416
        %v744 = vunpack.c.l.b16 %v417
        %v745 = vunpack.c.h.b16 %v417
        %v746 = vunpack.c.l.b16 %v418
        %v747 = vunpack.c.h.b16 %v418
        %v748 = vunpack.c.l.b16 %v419
        %v749 = vunpack.c.h.b16 %v419
        %v750 = vunpack.c.l.b16 %v420
        %v751 = vunpack.c.h.b16 %v420
        %v752 = vunpack.c.l.b16 %v421
        %v753 = vunpack.c.h.b16 %v421
        %v754 = vunpack.c.l.b16 %v422
        %v755 = vunpack.c.h.b16 %v422
        %v756 = vunpack.c.l.b16 %v423
        %v757 = vunpack.c.h.b16 %v423
        %v758 = vunpack.c.l.b16 %v424
        %v759 = vunpack.c.h.b16 %v424
        %v760 = vunpack.c.l.b16 %v425
        %v761 = vunpack.c.h.b16 %v425
        %v762 = vunpack.c.l.b16 %v426
        %v763 = vunpack.c.h.b16 %v426
        %v764 = vunpack.c.l.b16 %v427
        %v765 = vunpack.c.h.b16 %v427
        %v766 = vunpack.c.l.b16 %v428
        %v767 = vunpack.c.h.b16 %v428
        %v768 = vunpack.c.l.b16 %v429
        %v769 = vunpack.c.h.b16 %v429
        %v770 = vunpack.c.l.b16 %v430
        %v771 = vunpack.c.h.b16 %v430
        %v772 = vunpack.c.l.b16 %v431
        %v773 = vunpack.c.h.b16 %v431
        %v774 = vunpack.c.l.b16 %v432
        %v775 = vunpack.c.h.b16 %v432
        %v776 = vunpack.c.l.b16 %v433
        %v777 = vunpack.c.h.b16 %v433
        %v778 = vunpack.c.l.b16 %v434
        %v779 = vunpack.c.h.b16 %v434
        %v780 = vunpack.c.l.b16 %v435
        %v781 = vunpack.c.h.b16 %v435
        %v782 = vunpack.c.l.b16 %v436
        %v783 = vunpack.c.h.b16 %v436
        %v784 = vunpack.c.l.b16 %v437
        %v785 = vunpack.c.h.b16 %v437
        %v786 = vunpack.c.l.b16 %v438
        %v787 = vunpack.c.h.b16 %v438
        %v788 = vunpack.c.l.b16 %v439
        %v789 = vunpack.c.h.b16 %v439
        %v790 = vunpack.c.l.b16 %v440
        %v791 = vunpack.c.h.b16 %v440
        %v792 = vunpack.c.l.b16 %v441
        %v793 = vunpack.c.h.b16 %v441
        %v794 = vunpack.c.l.b16 %v442
        %v795 = vunpack.c.h.b16 %v442
        %v796 = vunpack.c.l.b16 %v443
        %v797 = vunpack.c.h.b16 %v443
        %v798 = vunpack.c.l.b16 %v444
        %v799 = vunpack.c.h.b16 %v444
        %v800 = vunpack.c.l.b16 %v445
        %v801 = vunpack.c.h.b16 %v445
        %v802 = vunpack.c.l.b16 %v446
        %v803 = vunpack.c.h.b16 %v446
        %v804 = vunpack.c.l.b16 %v447
        %v805 = vunpack.c.h.b16 %v447
        %v806 = vunpack.c.l.b16 %v448
        %v807 = vunpack.c.h.b16 %v448
        %v808 = vunpack.c.l.b16 %v449
        %v809 = vunpack.c.h.b16 %v449
        %v810 = vunpack.c.l.b16 %v450
        %v811 = vunpack.c.h.b16 %v450
        %v812 = vunpack.c.l.b16 %v451
        %v813 = vunpack.c.h.b16 %v451
        %v814 = vunpack.c.l.b16 %v452
        %v815 = vunpack.c.h.b16 %v452
        %v816 = vunpack.c.l.b16 %v453
        %v817 = vunpack.c.h.b16 %v453
        %v818 = vunpack.c.l.b16 %v454
        %v819 = vunpack.c.h.b16 %v454
        %v820 = vunpack.c.l.b16 %v455
        %v821 = vunpack.c.h.b16 %v455
        %v822 = vunpack.c.l.b16 %v456
        %v823 = vunpack.c.h.b16 %v456
        %v824 = vunpack.c.l.b16 %v457
        %v825 = vunpack.c.h.b16 %v457
        %v826 = vunpack.c.l.b16 %v458
        %v827 = vunpack.c.h.b16 %v458
        %v828 = vunpack.c.l.b16 %v459
        %v829 = vunpack.c.h.b16 %v459
        %v830 = vunpack.c.l.b16 %v460
        %v831 = vunpack.c.h.b16 %v460
        %v832 = vunpack.c.l.b16 %v461
        %v833 = vunpack.c.h.b16 %v461
        %v834 = vunpack.c.l.b16 %v462
        %v835 = vunpack.c.h.b16 %v462
        %v836 = vunpack.c.l.b16 %v463
        %v837 = vunpack.c.h.b16 %v463
        %v838 = vunpack.c.l.b16 %v464
        %v839 = vunpack.c.h.b16 %v464
        %v840 = vunpack.c.l.b16 %v465
        %v841 = vunpack.c.h.b16 %v465
        %v842 = vunpack.c.l.b16 %v466
        %v843 = vunpack.c.h.b16 %v466
        %v844 = vunpack.c.l.b16 %v467
        %v845 = vunpack.c.h.b16 %v467
        %v846 = vunpack.c.l.b16 %v468
        %v847 = vunpack.c.h.b16 %v468
        %v848 = vunpack.c.l.b16 %v469
        %v849 = vunpack.c.h.b16 %v469
        %v850 = vunpack.c.l.b16 %v470
        %v851 = vunpack.c.h.b16 %v470
        %v852 = vunpack.c.l.b16 %v471
        %v853 = vunpack.c.h.b16 %v471
        %v854 = vunpack.c.l.b16 %v472
        %v855 = vunpack.c.h.b16 %v472
        %v856 = vunpack.c.l.b16 %v473
        %v857 = vunpack.c.h.b16 %v473
        %v858 = vunpack.c.l.b16 %v474
        %v859 = vunpack.c.h.b16 %v474
        %v860 = vunpack.c.l.b16 %v475
        %v861 = vunpack.c.h.b16 %v475
        %v862 = vunpack.c.l.b16 %v476
        %v863 = vunpack.c.h.b16 %v476
        %v864 = vunpack.c.l.b16 %v477
        %v865 = vunpack.c.h.b16 %v477
        %v866 = vunpack.c.l.b16 %v478
        %v867 = vunpack.c.h.b16 %v478
        %v868 = vunpack.c.l.b16 %v479
        %v869 = vunpack.c.h.b16 %v479
        %v870 = vunpack.c.l.b16 %v480
        %v871 = vunpack.c.h.b16 %v480
        %v872 = vunpack.c.l.b16 %v481
        %v873 = vunpack.c.h.b16 %v481
        %v874 = vunpack.c.l.b16 %v482
        %v875 = vunpack.c.h.b16 %v482
        %v876 = vunpack.c.l.b16 %v483
        %v877 = vunpack.c.h.b16 %v483
        %v878 = vunpack.c.l.b16 %v484
        %v879 = vunpack.c.h.b16 %v484
        %v880 = vunpack.c.l.b16 %v485
        %v881 = vunpack.c.h.b16 %v485
        %v882 = vunpack.c.l.b16 %v486
        %v883 = vunpack.c.h.b16 %v486
        %v884 = vunpack.c.l.b16 %v487
        %v885 = vunpack.c.h.b16 %v487
        %v886 = vunpack.c.l.b16 %v488
        %v887 = vunpack.c.h.b16 %v488
        %v888 = vunpack.c.l.b16 %v489
        %v889 = vunpack.c.h.b16 %v489
        %v890 = vunpack.c.l.b16 %v490
        %v891 = vunpack.c.h.b16 %v490
        %v892 = vunpack.c.l.b16 %v491
        %v893 = vunpack.c.h.b16 %v491
        %v894 = vunpack.c.l.b16 %v492
        %v895 = vunpack.c.h.b16 %v492
        %v896 = vunpack.c.l.b16 %v493
        %v897 = vunpack.c.h.b16 %v493
        %v898 = vunpack.c.l.b16 %v494
        %v899 = vunpack.c.h.b16 %v494
        %v900 = vunpack.c.l.b16 %v495
        %v901 = vunpack.c.h.b16 %v495
        %v902 = vunpack.c.l.b16 %v496
        %v903 = vunpack.c.h.b16 %v496
        %v904 = vunpack.c.l.b16 %v497
        %v905 = vunpack.c.h.b16 %v497
        %v906 = vunpack.c.l.b16 %v498
        %v907 = vunpack.c.h.b16 %v498
        %v908 = vunpack.c.l.b16 %v499
        %v909 = vunpack.c.h.b16 %v499
        %v910 = vunpack.c.l.b16 %v500
        %v911 = vunpack.c.h.b16 %v500
        %v912 = vunpack.c.l.b16 %v501
        %v913 = vunpack.c.h.b16 %v501
        %v914 = vunpack.c.l.b16 %v502
        %v915 = vunpack.c.h.b16 %v502
        %v916 = vunpack.c.l.b16 %v503
        %v917 = vunpack.c.h.b16 %v503
        %v918 = vunpack.c.l.b16 %v504
        %v919 = vunpack.c.h.b16 %v504
        %v920 = vunpack.c.l.b16 %v505
        %v921 = vunpack.c.h.b16 %v505
        %v922 = vunpack.c.l.b16 %v506
        %v923 = vunpack.c.h.b16 %v506
        %v924 = vunpack.c.l.b16 %v507
        %v925 = vunpack.c.h.b16 %v507
        %v926 = vunpack.c.l.b16 %v508
        %v927 = vunpack.c.h.b16 %v508
        %v928 = vunpack.c.l.b16 %v509
        %v929 = vunpack.c.h.b16 %v509
        %v930 = vunpack.c.l.b16 %v510
        %v931 = vunpack.c.h.b16 %v510
        %v932 = vunpack.c.l.b16 %v511
        %v933 = vunpack.c.h.b16 %v511
        %v934 = vunpack.c.l.b16 %v512
        %v935 = vunpack.c.h.b16 %v512
        %v936 = vunpack.c.l.b16 %v513
        %v937 = vunpack.c.h.b16 %v513
        %v938 = vunpack.c.l.b16 %v514
        %v939 = vunpack.c.h.b16 %v514
        %v940 = vunpack.c.l.b16 %v515
        %v941 = vunpack.c.h.b16 %v515
        %v942 = vpack.c.b16 %v694, %v686
        %v943 = vpack.c.b16 %v695, %v687
        %v944 = vpack.c.b16 %v696, %v688
        %v945 = vpack.c.b16 %v697, %v689
        %v946 = vpack.c.b16 %v698, %v690
        %v947 = vpack.c.b16 %v699, %v691
        %v948 = vpack.c.b16 %v700, %v692
        %v949 = vpack.c.b16 %v701, %v693
        %v950 = vpack.c.b16 %v710, %v702
        %v951 = vpack.c.b16 %v711, %v703
        %v952 = vpack.c.b16 %v712, %v704
        %v953 = vpack.c.b16 %v713, %v705
        %v954 = vpack.c.b16 %v714, %v706
        %v955 = vpack.c.b16 %v715, %v707
        %v956 = vpack.c.b16 %v716, %v708
        %v957 = vpack.c.b16 %v717, %v709
        %v958 = vpack.c.b16 %v726, %v718
        %v959 = vpack.c.b16 %v727, %v719
        %v960 = vpack.c.b16 %v728, %v720
        %v961 = vpack.c.b16 %v729, %v721
        %v962 = vpack.c.b16 %v730, %v722
        %v963 = vpack.c.b16 %v731, %v723
        %v964 = vpack.c.b16 %v732, %v724
        %v965 = vpack.c.b16 %v733, %v725
        %v966 = vpack.c.b16 %v742, %v734
        %v967 = vpack.c.b16 %v743, %v735
        %v968 = vpack.c.b16 %v744, %v736
        %v969 = vpack.c.b16 %v745, %v737
        %v970 = vpack.c.b16 %v746, %v738
        %v971 = vpack.c.b16 %v747, %v739
        %v972 = vpack.c.b16 %v748, %v740
        %v973 = vpack.c.b16 %v749, %v741
        %v974 = vpack.c.b16 %v758, %v750
        %v975 = vpack.c.b16 %v759, %v751
        %v976 = vpack.c.b16 %v760, %v752
        %v977 = vpack.c.b16 %v761, %v753
        %v978 = vpack.c.b16 %v762, %v754
        %v979 = vpack.c.b16 %v763, %v755
        %v980 = vpack.c.b16 %v764, %v756
        %v981 = vpack.c.b16 %v765, %v757
        %v982 = vpack.c.b16 %v774, %v766
        %v983 = vpack.c.b16 %v775, %v767
        %v984 = vpack.c.b16 %v776, %v768
        %v985 = vpack.c.b16 %v777, %v769
        %v986 = vpack.c.b16 %v778, %v770
        %v987 = vpack.c.b16 %v779, %v771
        %v988 = vpack.c.b16 %v780, %v772
        %v989 = vpack.c.b16 %v781, %v773
        %v990 = vpack.c.b16 %v790, %v782
        %v991 = vpack.c.b16 %v791, %v783
        %v992 = vpack.c.b16 %v792, %v784
        %v993 = vpack.c.b16 %v793, %v785
        %v994 = vpack.c.b16 %v794, %v786
        %v995 = vpack.c.b16 %v795, %v787
        %v996 = vpack.c.b16 %v796, %v788
        %v997 = vpack.c.b16 %v797, %v789
        %v998 = vpack.c.b16 %v806, %v798
        %v999 = vpack.c.b16 %v807, %v799
        %v1000 = vpack.c.b16 %v808, %v800
        %v1001 = vpack.c.b16 %v809, %v801
        %v1002 = vpack.c.b16 %v810, %v802
        %v1003 = vpack.c.b16 %v811, %v803
        %v1004 = vpack.c.b16 %v812, %v804
        %v1005 = vpack.c.b16 %v813, %v805
        %v1006 = vpack.c.b16 %v822, %v814
        %v1007 = vpack.c.b16 %v823, %v815
        %v1008 = vpack.c.b16 %v824, %v816
        %v1009 = vpack.c.b16 %v825, %v817
        %v1010 = vpack.c.b16 %v826, %v818
        %v1011 = vpack.c.b16 %v827, %v819
        %v1012 = vpack.c.b16 %v828, %v820
        %v1013 = vpack.c.b16 %v829, %v821
        %v1014 = vpack.c.b16 %v838, %v830
        %v1015 = vpack.c.b16 %v839, %v831
        %v1016 = vpack.c.b16 %v840, %v832
        %v1017 = vpack.c.b16 %v841, %v833
        %v1018 = vpack.c.b16 %v842, %v834
        %v1019 = vpack.c.b16 %v843, %v835
        %v1020 = vpack.c.b16 %v844, %v836
        %v1021 = vpack.c.b16 %v845, %v837
        %v1022 = vpack.c.b16 %v854, %v846
        %v1023 = vpack.c.b16 %v855, %v847
        %v1024 = vpack.c.b16 %v856, %v848
        %v1025 = vpack.c.b16 %v857, %v849
        %v1026 = vpack.c.b16 %v858, %v850
        %v1027 = vpack.c.b16 %v859, %v851
        %v1028 = vpack.c.b16 %v860, %v852
        %v1029 = vpack.c.b16 %v861, %v853
        %v1030 = vpack.c.b16 %v870, %v862
        %v1031 = vpack.c.b16 %v871, %v863
        %v1032 = vpack.c.b16 %v872, %v864
        %v1033 = vpack.c.b16 %v873, %v865
        %v1034 = vpack.c.b16 %v874, %v866
        %v1035 = vpack.c.b16 %v875, %v867
        %v1036 = vpack.c.b16 %v876, %v868
        %v1037 = vpack.c.b16 %v877, %v869
        %v1038 = vpack.c.b16 %v886, %v878
        %v1039 = vpack.c.b16 %v887, %v879
        %v1040 = vpack.c.b16 %v888, %v880
        %v1041 = vpack.c.b16 %v889, %v881
        %v1042 = vpack.c.b16 %v890, %v882
        %v1043 = vpack.c.b16 %v891, %v883
        %v1044 = vpack.c.b16 %v892, %v884
        %v1045 = vpack.c.b16 %v893, %v885
        %v1046 = vpack.c.b16 %v902, %v894
        %v1047 = vpack.c.b16 %v903, %v895
        %v1048 = vpack.c.b16 %v904, %v896
        %v1049 = vpack.c.b16 %v905, %v897
        %v1050 = vpack.c.b16 %v906, %v898
        %v1051 = vpack.c.b16 %v907, %v899
        %v1052 = vpack.c.b16 %v908, %v900
        %v1053 = vpack.c.b16 %v909, %v901
        %v1054 = vpack.c.b16 %v918, %v910
        %v1055 = vpack.c.b16 %v919, %v911
        %v1056 = vpack.c.b16 %v920, %v912
        %v1057 = vpack.c.b16 %v921, %v913
        %v1058 = vpack.c.b16 %v922, %v914
        %v1059 = vpack.c.b16 %v923, %v915
        %v1060 = vpack.c.b16 %v924, %v916
        %v1061 = vpack.c.b16 %v925, %v917
        %v1062 = vpack.c.b16 %v934, %v926
        %v1063 = vpack.c.b16 %v935, %v927
        %v1064 = vpack.c.b16 %v936, %v928
        %v1065 = vpack.c.b16 %v937, %v929
        %v1066 = vpack.c.b16 %v938, %v930
        %v1067 = vpack.c.b16 %v939, %v931
        %v1068 = vpack.c.b16 %v940, %v932
        %v1069 = vpack.c.b16 %v941, %v933
        %1198 = vmatprep.subr.bf16.mxu0 %v943
        %1199 = vmatpush1.bf16.msra.mxu0 %v942
        %1200 = vmatprep.subr.bf16.mxu0 %v951
        %1201 = vmatpush1.bf16.msra.mxu0 %v950
        %1202 = vmatprep.subr.bf16.mxu0 %v959
        %1203 = vmatpush1.bf16.msra.mxu0 %v958
        %1204 = vmatprep.subr.bf16.mxu0 %v967
        %1205 = vmatpush1.bf16.msra.mxu0 %v966
        %1206 = vmatprep.subr.bf16.mxu0 %v975
        %1207 = vmatpush1.bf16.msra.mxu0 %v974
        %1208 = vmatprep.subr.bf16.mxu0 %v983
        %1209 = vmatpush1.bf16.msra.mxu0 %v982
        %1210 = vmatprep.subr.bf16.mxu0 %v991
        %1211 = vmatpush1.bf16.msra.mxu0 %v990
        %1212 = vmatprep.subr.bf16.mxu0 %v999
        %1213 = vmatpush1.bf16.msra.mxu0 %v998
        %1214 = vmatprep.subr.bf16.mxu0 %v1007
        %1215 = vmatpush1.bf16.msra.mxu0 %v1006
        %1216 = vmatprep.subr.bf16.mxu0 %v1015
        %1217 = vmatpush1.bf16.msra.mxu0 %v1014
        %1218 = vmatprep.subr.bf16.mxu0 %v1023
        %1219 = vmatpush1.bf16.msra.mxu0 %v1022
        %1220 = vmatprep.subr.bf16.mxu0 %v1031
        %1221 = vmatpush1.bf16.msra.mxu0 %v1030
        %1222 = vmatprep.subr.bf16.mxu0 %v1039
        %1223 = vmatpush1.bf16.msra.mxu0 %v1038
        %1224 = vmatprep.subr.bf16.mxu0 %v1047
        %1225 = vmatpush1.bf16.msra.mxu0 %v1046
        %1226 = vmatprep.subr.bf16.mxu0 %v1055
        %1227 = vmatpush1.bf16.msra.mxu0 %v1054
        %1228 = vmatprep.subr.bf16.mxu0 %v1063
        %1229 = vmatpush1.bf16.msra.mxu0 %v1062
        %1230 = vmatprep.mubr.bf16.mxu0 %v387
        %1231 = vmatmul.mubr.bf16.gmra.mrb[0].mxu0 %v386
        %v1232 = vpop.f32.mrb[0].mxu0
        %v1233 = vadd.f32 %v521, %v1232
        %v1234 = vpop.f32.mrb[0].mxu0
        %v1235 = vadd.f32 %v525, %v1234
        %v1236 = vpop.f32.mrb[0].mxu0
        %v1237 = vadd.f32 %v521, %v1236
        %v1238 = vpop.f32.mrb[0].mxu0
        %v1239 = vadd.f32 %v525, %v1238
        %1240 = vdwg.mxu0
        %1241 = vmatprep.subr.bf16.mxu0 %v945
        %1242 = vmatpush1.bf16.msra.mxu0 %v944
        %1243 = vmatprep.subr.bf16.mxu0 %v953
        %1244 = vmatpush1.bf16.msra.mxu0 %v952
        %1245 = vmatprep.subr.bf16.mxu0 %v961
        %1246 = vmatpush1.bf16.msra.mxu0 %v960
        %1247 = vmatprep.subr.bf16.mxu0 %v969
        %1248 = vmatpush1.bf16.msra.mxu0 %v968
        %1249 = vmatprep.subr.bf16.mxu0 %v977
        %1250 = vmatpush1.bf16.msra.mxu0 %v976
        %1251 = vmatprep.subr.bf16.mxu0 %v985
        %1252 = vmatpush1.bf16.msra.mxu0 %v984
        %1253 = vmatprep.subr.bf16.mxu0 %v993
        %1254 = vmatpush1.bf16.msra.mxu0 %v992
        %1255 = vmatprep.subr.bf16.mxu0 %v1001
        %1256 = vmatpush1.bf16.msra.mxu0 %v1000
        %1257 = vmatprep.subr.bf16.mxu0 %v1009
        %1258 = vmatpush1.bf16.msra.mxu0 %v1008
        %1259 = vmatprep.subr.bf16.mxu0 %v1017
        %1260 = vmatpush1.bf16.msra.mxu0 %v1016
        %1261 = vmatprep.subr.bf16.mxu0 %v1025
        %1262 = vmatpush1.bf16.msra.mxu0 %v1024
        %1263 = vmatprep.subr.bf16.mxu0 %v1033
        %1264 = vmatpush1.bf16.msra.mxu0 %v1032
        %1265 = vmatprep.subr.bf16.mxu0 %v1041
        %1266 = vmatpush1.bf16.msra.mxu0 %v1040
        %1267 = vmatprep.subr.bf16.mxu0 %v1049
        %1268 = vmatpush1.bf16.msra.mxu0 %v1048
        %1269 = vmatprep.subr.bf16.mxu0 %v1057
        %1270 = vmatpush1.bf16.msra.mxu0 %v1056
        %1271 = vmatprep.subr.bf16.mxu0 %v1065
        %1272 = vmatpush1.bf16.msra.mxu0 %v1064
        %1273 = vmatprep.mubr.bf16.mxu0 %v387
        %1274 = vmatmul.mubr.bf16.gmra.mrb[0].mxu0 %v386
        %v1275 = vpop.f32.mrb[0].mxu0
        %v1276 = vadd.f32 %v529, %v1275
        %v1277 = vpop.f32.mrb[0].mxu0
        %v1278 = vadd.f32 %v533, %v1277
        %v1279 = vpop.f32.mrb[0].mxu0
        %v1280 = vadd.f32 %v529, %v1279
        %v1281 = vpop.f32.mrb[0].mxu0
        %v1282 = vadd.f32 %v533, %v1281
        %1283 = vdwg.mxu0
        %1284 = vmatprep.subr.bf16.mxu0 %v947
        %1285 = vmatpush1.bf16.msra.mxu0 %v946
        %1286 = vmatprep.subr.bf16.mxu0 %v955
        %1287 = vmatpush1.bf16.msra.mxu0 %v954
        %1288 = vmatprep.subr.bf16.mxu0 %v963
        %1289 = vmatpush1.bf16.msra.mxu0 %v962
        %1290 = vmatprep.subr.bf16.mxu0 %v971
        %1291 = vmatpush1.bf16.msra.mxu0 %v970
        %1292 = vmatprep.subr.bf16.mxu0 %v979
        %1293 = vmatpush1.bf16.msra.mxu0 %v978
        %1294 = vmatprep.subr.bf16.mxu0 %v987
        %1295 = vmatpush1.bf16.msra.mxu0 %v986
        %1296 = vmatprep.subr.bf16.mxu0 %v995
        %1297 = vmatpush1.bf16.msra.mxu0 %v994
        %1298 = vmatprep.subr.bf16.mxu0 %v1003
        %1299 = vmatpush1.bf16.msra.mxu0 %v1002
        %1300 = vmatprep.subr.bf16.mxu0 %v1011
        %1301 = vmatpush1.bf16.msra.mxu0 %v1010
        %1302 = vmatprep.subr.bf16.mxu0 %v1019
        %1303 = vmatpush1.bf16.msra.mxu0 %v1018
        %1304 = vmatprep.subr.bf16.mxu0 %v1027
        %1305 = vmatpush1.bf16.msra.mxu0 %v1026
        %1306 = vmatprep.subr.bf16.mxu0 %v1035
        %1307 = vmatpush1.bf16.msra.mxu0 %v1034
        %1308 = vmatprep.subr.bf16.mxu0 %v1043
        %1309 = vmatpush1.bf16.msra.mxu0 %v1042
        %1310 = vmatprep.subr.bf16.mxu0 %v1051
        %1311 = vmatpush1.bf16.msra.mxu0 %v1050
        %1312 = vmatprep.subr.bf16.mxu0 %v1059
        %1313 = vmatpush1.bf16.msra.mxu0 %v1058
        %1314 = vmatprep.subr.bf16.mxu0 %v1067
        %1315 = vmatpush1.bf16.msra.mxu0 %v1066
        %1316 = vmatprep.mubr.bf16.mxu0 %v387
        %1317 = vmatmul.mubr.bf16.gmra.mrb[0].mxu0 %v386
        %v1318 = vpop.f32.mrb[0].mxu0
        %v1319 = vadd.f32 %v537, %v1318
        %v1320 = vpop.f32.mrb[0].mxu0
        %v1321 = vadd.f32 %v541, %v1320
        %v1322 = vpop.f32.mrb[0].mxu0
        %v1323 = vadd.f32 %v537, %v1322
        %v1324 = vpop.f32.mrb[0].mxu0
        %v1325 = vadd.f32 %v541, %v1324
        %1326 = vdwg.mxu0
        %1327 = vmatprep.subr.bf16.mxu0 %v949
        %1328 = vmatpush1.bf16.msra.mxu0 %v948
        %1329 = vmatprep.subr.bf16.mxu0 %v957
        %1330 = vmatpush1.bf16.msra.mxu0 %v956
        %1331 = vmatprep.subr.bf16.mxu0 %v965
        %1332 = vmatpush1.bf16.msra.mxu0 %v964
        %1333 = vmatprep.subr.bf16.mxu0 %v973
        %1334 = vmatpush1.bf16.msra.mxu0 %v972
        %1335 = vmatprep.subr.bf16.mxu0 %v981
        %1336 = vmatpush1.bf16.msra.mxu0 %v980
        %1337 = vmatprep.subr.bf16.mxu0 %v989
        %1338 = vmatpush1.bf16.msra.mxu0 %v988
        %1339 = vmatprep.subr.bf16.mxu0 %v997
        %1340 = vmatpush1.bf16.msra.mxu0 %v996
        %1341 = vmatprep.subr.bf16.mxu0 %v1005
        %1342 = vmatpush1.bf16.msra.mxu0 %v1004
        %1343 = vmatprep.subr.bf16.mxu0 %v1013
        %1344 = vmatpush1.bf16.msra.mxu0 %v1012
        %1345 = vmatprep.subr.bf16.mxu0 %v1021
        %1346 = vmatpush1.bf16.msra.mxu0 %v1020
        %1347 = vmatprep.subr.bf16.mxu0 %v1029
        %1348 = vmatpush1.bf16.msra.mxu0 %v1028
        %1349 = vmatprep.subr.bf16.mxu0 %v1037
        %1350 = vmatpush1.bf16.msra.mxu0 %v1036
        %1351 = vmatprep.subr.bf16.mxu0 %v1045
        %1352 = vmatpush1.bf16.msra.mxu0 %v1044
        %1353 = vmatprep.subr.bf16.mxu0 %v1053
        %1354 = vmatpush1.bf16.msra.mxu0 %v1052
        %1355 = vmatprep.subr.bf16.mxu0 %v1061
        %1356 = vmatpush1.bf16.msra.mxu0 %v1060
        %1357 = vmatprep.subr.bf16.mxu0 %v1069
        %1358 = vmatpush1.bf16.msra.mxu0 %v1068
        %1359 = vmatprep.mubr.bf16.mxu0 %v387
        %1360 = vmatmul.mubr.bf16.gmra.mrb[0].mxu0 %v386
        %v1361 = vpop.f32.mrb[0].mxu0
        %v1362 = vadd.f32 %v545, %v1361
        %v1363 = vpop.f32.mrb[0].mxu0
        %v1364 = vadd.f32 %v549, %v1363
        %v1365 = vpop.f32.mrb[0].mxu0
        %v1366 = vadd.f32 %v545, %v1365
        %v1367 = vpop.f32.mrb[0].mxu0
        %v1368 = vadd.f32 %v549, %v1367
        %1369 = vdwg.mxu0
        %v1370 = vmax.f32 %v1233, 0.0
        %v1371 = vmax.f32 %v1235, 0.0
        %v1372 = vmax.f32 %v1276, 0.0
        %v1373 = vmax.f32 %v1278, 0.0
        %v1374 = vmax.f32 %v1319, 0.0
        %v1375 = vmax.f32 %v1321, 0.0
        %v1376 = vmax.f32 %v1362, 0.0
        %v1377 = vmax.f32 %v1364, 0.0
        %v1378 = vmax.f32 %v1237, 0.0
        %v1379 = vmax.f32 %v1239, 0.0
        %v1380 = vmax.f32 %v1280, 0.0
        %v1381 = vmax.f32 %v1282, 0.0
        %v1382 = vmax.f32 %v1323, 0.0
        %v1383 = vmax.f32 %v1325, 0.0
        %v1384 = vmax.f32 %v1366, 0.0
        %v1385 = vmax.f32 %v1368, 0.0
        %v1386 = vpack.c.bf16 %v1378, %v1370
        %v1387 = vpack.c.bf16 %v1379, %v1371
        %v1388 = vpack.c.bf16 %v1380, %v1372
        %v1389 = vpack.c.bf16 %v1381, %v1373
        %v1390 = vpack.c.bf16 %v1382, %v1374
        %v1391 = vpack.c.bf16 %v1383, %v1375
        %v1392 = vpack.c.bf16 %v1384, %v1376
        %v1393 = vpack.c.bf16 %v1385, %v1377
        %v1394 = vld [vmem:[#allocation8] sm:$0xff]
        %v1395 = vld [vmem:[#allocation8 + $0x8] sm:$0xff]
        %v1396 = vld [vmem:[#allocation8 + $0x10] sm:$0xff]
        %v1397 = vld [vmem:[#allocation8 + $0x18] sm:$0xff]
        %v1398 = vld [vmem:[#allocation8 + $0x20] sm:$0xff]
        %v1399 = vld [vmem:[#allocation8 + $0x28] sm:$0xff]
        %v1400 = vld [vmem:[#allocation8 + $0x30] sm:$0xff]
        %v1401 = vld [vmem:[#allocation8 + $0x38] sm:$0xff]
        %v1402 = vld [vmem:[#allocation8 + $0x40] sm:$0xff]
        %v1403 = vld [vmem:[#allocation8 + $0x48] sm:$0xff]
        %v1404 = vld [vmem:[#allocation8 + $0x50] sm:$0xff]
        %v1405 = vld [vmem:[#allocation8 + $0x58] sm:$0xff]
        %v1406 = vld [vmem:[#allocation8 + $0x60] sm:$0xff]
        %v1407 = vld [vmem:[#allocation8 + $0x68] sm:$0xff]
        %v1408 = vld [vmem:[#allocation8 + $0x70] sm:$0xff]
        %v1409 = vld [vmem:[#allocation8 + $0x78] sm:$0xff]
        %v1410 = vld [vmem:[#allocation8 + $0x80] sm:$0xff]
        %v1411 = vld [vmem:[#allocation8 + $0x88] sm:$0xff]
        %v1412 = vld [vmem:[#allocation8 + $0x90] sm:$0xff]
        %v1413 = vld [vmem:[#allocation8 + $0x98] sm:$0xff]
        %v1414 = vld [vmem:[#allocation8 + $0xa0] sm:$0xff]
        %v1415 = vld [vmem:[#allocation8 + $0xa8] sm:$0xff]
        %v1416 = vld [vmem:[#allocation8 + $0xb0] sm:$0xff]
        %v1417 = vld [vmem:[#allocation8 + $0xb8] sm:$0xff]
        %v1418 = vld [vmem:[#allocation8 + $0xc0] sm:$0xff]
        %v1419 = vld [vmem:[#allocation8 + $0xc8] sm:$0xff]
        %v1420 = vld [vmem:[#allocation8 + $0xd0] sm:$0xff]
        %v1421 = vld [vmem:[#allocation8 + $0xd8] sm:$0xff]
        %v1422 = vld [vmem:[#allocation8 + $0xe0] sm:$0xff]
        %v1423 = vld [vmem:[#allocation8 + $0xe8] sm:$0xff]
        %v1424 = vld [vmem:[#allocation8 + $0xf0] sm:$0xff]
        %v1425 = vld [vmem:[#allocation8 + $0xf8] sm:$0xff]
        %v1426 = vld [vmem:[#allocation8 + $0x100] sm:$0xff]
        %v1427 = vld [vmem:[#allocation8 + $0x108] sm:$0xff]
        %v1428 = vld [vmem:[#allocation8 + $0x110] sm:$0xff]
        %v1429 = vld [vmem:[#allocation8 + $0x118] sm:$0xff]
        %v1430 = vld [vmem:[#allocation8 + $0x120] sm:$0xff]
        %v1431 = vld [vmem:[#allocation8 + $0x128] sm:$0xff]
        %v1432 = vld [vmem:[#allocation8 + $0x130] sm:$0xff]
        %v1433 = vld [vmem:[#allocation8 + $0x138] sm:$0xff]
        %v1434 = vld [vmem:[#allocation8 + $0x140] sm:$0xff]
        %v1435 = vld [vmem:[#allocation8 + $0x148] sm:$0xff]
        %v1436 = vld [vmem:[#allocation8 + $0x150] sm:$0xff]
        %v1437 = vld [vmem:[#allocation8 + $0x158] sm:$0xff]
        %v1438 = vld [vmem:[#allocation8 + $0x160] sm:$0xff]
        %v1439 = vld [vmem:[#allocation8 + $0x168] sm:$0xff]
        %v1440 = vld [vmem:[#allocation8 + $0x170] sm:$0xff]
        %v1441 = vld [vmem:[#allocation8 + $0x178] sm:$0xff]
        %v1442 = vld [vmem:[#allocation8 + $0x180] sm:$0xff]
        %v1443 = vld [vmem:[#allocation8 + $0x188] sm:$0xff]
        %v1444 = vld [vmem:[#allocation8 + $0x190] sm:$0xff]
        %v1445 = vld [vmem:[#allocation8 + $0x198] sm:$0xff]
        %v1446 = vld [vmem:[#allocation8 + $0x1a0] sm:$0xff]
        %v1447 = vld [vmem:[#allocation8 + $0x1a8] sm:$0xff]
        %v1448 = vld [vmem:[#allocation8 + $0x1b0] sm:$0xff]
        %v1449 = vld [vmem:[#allocation8 + $0x1b8] sm:$0xff]
        %v1450 = vld [vmem:[#allocation8 + $0x1c0] sm:$0xff]
        %v1451 = vld [vmem:[#allocation8 + $0x1c8] sm:$0xff]
        %v1452 = vld [vmem:[#allocation8 + $0x1d0] sm:$0xff]
        %v1453 = vld [vmem:[#allocation8 + $0x1d8] sm:$0xff]
        %v1454 = vld [vmem:[#allocation8 + $0x1e0] sm:$0xff]
        %v1455 = vld [vmem:[#allocation8 + $0x1e8] sm:$0xff]
        %v1456 = vld [vmem:[#allocation8 + $0x1f0] sm:$0xff]
        %v1457 = vld [vmem:[#allocation8 + $0x1f8] sm:$0xff]
        %v1458 = vld [vmem:[#allocation8 + $0x200] sm:$0xff]
        %v1459 = vld [vmem:[#allocation8 + $0x208] sm:$0xff]
        %v1460 = vld [vmem:[#allocation8 + $0x210] sm:$0xff]
        %v1461 = vld [vmem:[#allocation8 + $0x218] sm:$0xff]
        %v1462 = vld [vmem:[#allocation8 + $0x220] sm:$0xff]
        %v1463 = vld [vmem:[#allocation8 + $0x228] sm:$0xff]
        %v1464 = vld [vmem:[#allocation8 + $0x230] sm:$0xff]
        %v1465 = vld [vmem:[#allocation8 + $0x238] sm:$0xff]
        %v1466 = vld [vmem:[#allocation8 + $0x240] sm:$0xff]
        %v1467 = vld [vmem:[#allocation8 + $0x248] sm:$0xff]
        %v1468 = vld [vmem:[#allocation8 + $0x250] sm:$0xff]
        %v1469 = vld [vmem:[#allocation8 + $0x258] sm:$0xff]
        %v1470 = vld [vmem:[#allocation8 + $0x260] sm:$0xff]
        %v1471 = vld [vmem:[#allocation8 + $0x268] sm:$0xff]
        %v1472 = vld [vmem:[#allocation8 + $0x270] sm:$0xff]
        %v1473 = vld [vmem:[#allocation8 + $0x278] sm:$0xff]
        %v1474 = vld [vmem:[#allocation8 + $0x280] sm:$0xff]
        %v1475 = vld [vmem:[#allocation8 + $0x288] sm:$0xff]
        %v1476 = vld [vmem:[#allocation8 + $0x290] sm:$0xff]
        %v1477 = vld [vmem:[#allocation8 + $0x298] sm:$0xff]
        %v1478 = vld [vmem:[#allocation8 + $0x2a0] sm:$0xff]
        %v1479 = vld [vmem:[#allocation8 + $0x2a8] sm:$0xff]
        %v1480 = vld [vmem:[#allocation8 + $0x2b0] sm:$0xff]
        %v1481 = vld [vmem:[#allocation8 + $0x2b8] sm:$0xff]
        %v1482 = vld [vmem:[#allocation8 + $0x2c0] sm:$0xff]
        %v1483 = vld [vmem:[#allocation8 + $0x2c8] sm:$0xff]
        %v1484 = vld [vmem:[#allocation8 + $0x2d0] sm:$0xff]
        %v1485 = vld [vmem:[#allocation8 + $0x2d8] sm:$0xff]
        %v1486 = vld [vmem:[#allocation8 + $0x2e0] sm:$0xff]
        %v1487 = vld [vmem:[#allocation8 + $0x2e8] sm:$0xff]
        %v1488 = vld [vmem:[#allocation8 + $0x2f0] sm:$0xff]
        %v1489 = vld [vmem:[#allocation8 + $0x2f8] sm:$0xff]
        %v1490 = vld [vmem:[#allocation8 + $0x300] sm:$0xff]
        %v1491 = vld [vmem:[#allocation8 + $0x308] sm:$0xff]
        %v1492 = vld [vmem:[#allocation8 + $0x310] sm:$0xff]
        %v1493 = vld [vmem:[#allocation8 + $0x318] sm:$0xff]
        %v1494 = vld [vmem:[#allocation8 + $0x320] sm:$0xff]
        %v1495 = vld [vmem:[#allocation8 + $0x328] sm:$0xff]
        %v1496 = vld [vmem:[#allocation8 + $0x330] sm:$0xff]
        %v1497 = vld [vmem:[#allocation8 + $0x338] sm:$0xff]
        %v1498 = vld [vmem:[#allocation8 + $0x340] sm:$0xff]
        %v1499 = vld [vmem:[#allocation8 + $0x348] sm:$0xff]
        %v1500 = vld [vmem:[#allocation8 + $0x350] sm:$0xff]
        %v1501 = vld [vmem:[#allocation8 + $0x358] sm:$0xff]
        %v1502 = vld [vmem:[#allocation8 + $0x360] sm:$0xff]
        %v1503 = vld [vmem:[#allocation8 + $0x368] sm:$0xff]
        %v1504 = vld [vmem:[#allocation8 + $0x370] sm:$0xff]
        %v1505 = vld [vmem:[#allocation8 + $0x378] sm:$0xff]
        %v1506 = vld [vmem:[#allocation8 + $0x380] sm:$0xff]
        %v1507 = vld [vmem:[#allocation8 + $0x388] sm:$0xff]
        %v1508 = vld [vmem:[#allocation8 + $0x390] sm:$0xff]
        %v1509 = vld [vmem:[#allocation8 + $0x398] sm:$0xff]
        %v1510 = vld [vmem:[#allocation8 + $0x3a0] sm:$0xff]
        %v1511 = vld [vmem:[#allocation8 + $0x3a8] sm:$0xff]
        %v1512 = vld [vmem:[#allocation8 + $0x3b0] sm:$0xff]
        %v1513 = vld [vmem:[#allocation8 + $0x3b8] sm:$0xff]
        %v1514 = vld [vmem:[#allocation8 + $0x3c0] sm:$0xff]
        %v1515 = vld [vmem:[#allocation8 + $0x3c8] sm:$0xff]
        %v1516 = vld [vmem:[#allocation8 + $0x3d0] sm:$0xff]
        %v1517 = vld [vmem:[#allocation8 + $0x3d8] sm:$0xff]
        %v1518 = vld [vmem:[#allocation8 + $0x3e0] sm:$0xff]
        %v1519 = vld [vmem:[#allocation8 + $0x3e8] sm:$0xff]
        %v1520 = vld [vmem:[#allocation8 + $0x3f0] sm:$0xff]
        %v1521 = vld [vmem:[#allocation8 + $0x3f8] sm:$0xff]
        %v1522 = vld [vmem:[#allocation8 + $0x400] sm:$0xff]
        %v1523 = vld [vmem:[#allocation8 + $0x408] sm:$0xff]
        %v1524 = vld [vmem:[#allocation8 + $0x410] sm:$0xff]
        %v1525 = vld [vmem:[#allocation8 + $0x418] sm:$0xff]
        %v1526 = vld [vmem:[#allocation8 + $0x420] sm:$0xff]
        %v1527 = vld [vmem:[#allocation8 + $0x428] sm:$0xff]
        %v1528 = vld [vmem:[#allocation8 + $0x430] sm:$0xff]
        %v1529 = vld [vmem:[#allocation8 + $0x438] sm:$0xff]
        %v1530 = vld [vmem:[#allocation8 + $0x440] sm:$0xff]
        %v1531 = vld [vmem:[#allocation8 + $0x448] sm:$0xff]
        %v1532 = vld [vmem:[#allocation8 + $0x450] sm:$0xff]
        %v1533 = vld [vmem:[#allocation8 + $0x458] sm:$0xff]
        %v1534 = vld [vmem:[#allocation8 + $0x460] sm:$0xff]
        %v1535 = vld [vmem:[#allocation8 + $0x468] sm:$0xff]
        %v1536 = vld [vmem:[#allocation8 + $0x470] sm:$0xff]
        %v1537 = vld [vmem:[#allocation8 + $0x478] sm:$0xff]
        %v1538 = vld [vmem:[#allocation8 + $0x480] sm:$0xff]
        %v1539 = vld [vmem:[#allocation8 + $0x488] sm:$0xff]
        %v1540 = vld [vmem:[#allocation8 + $0x490] sm:$0xff]
        %v1541 = vld [vmem:[#allocation8 + $0x498] sm:$0xff]
        %v1542 = vld [vmem:[#allocation8 + $0x4a0] sm:$0xff]
        %v1543 = vld [vmem:[#allocation8 + $0x4a8] sm:$0xff]
        %v1544 = vld [vmem:[#allocation8 + $0x4b0] sm:$0xff]
        %v1545 = vld [vmem:[#allocation8 + $0x4b8] sm:$0xff]
        %v1546 = vld [vmem:[#allocation8 + $0x4c0] sm:$0xff]
        %v1547 = vld [vmem:[#allocation8 + $0x4c8] sm:$0xff]
        %v1548 = vld [vmem:[#allocation8 + $0x4d0] sm:$0xff]
        %v1549 = vld [vmem:[#allocation8 + $0x4d8] sm:$0xff]
        %v1550 = vld [vmem:[#allocation8 + $0x4e0] sm:$0xff]
        %v1551 = vld [vmem:[#allocation8 + $0x4e8] sm:$0xff]
        %v1552 = vld [vmem:[#allocation8 + $0x4f0] sm:$0xff]
        %v1553 = vld [vmem:[#allocation8 + $0x4f8] sm:$0xff]
        %v1554 = vld [vmem:[#allocation8 + $0x500] sm:$0xff]
        %v1555 = vld [vmem:[#allocation8 + $0x508] sm:$0xff]
        %v1556 = vld [vmem:[#allocation8 + $0x510] sm:$0xff]
        %v1557 = vld [vmem:[#allocation8 + $0x518] sm:$0xff]
        %v1558 = vld [vmem:[#allocation8 + $0x520] sm:$0xff]
        %v1559 = vld [vmem:[#allocation8 + $0x528] sm:$0xff]
        %v1560 = vld [vmem:[#allocation8 + $0x530] sm:$0xff]
        %v1561 = vld [vmem:[#allocation8 + $0x538] sm:$0xff]
        %v1562 = vld [vmem:[#allocation8 + $0x540] sm:$0xff]
        %v1563 = vld [vmem:[#allocation8 + $0x548] sm:$0xff]
        %v1564 = vld [vmem:[#allocation8 + $0x550] sm:$0xff]
        %v1565 = vld [vmem:[#allocation8 + $0x558] sm:$0xff]
        %v1566 = vld [vmem:[#allocation8 + $0x560] sm:$0xff]
        %v1567 = vld [vmem:[#allocation8 + $0x568] sm:$0xff]
        %v1568 = vld [vmem:[#allocation8 + $0x570] sm:$0xff]
        %v1569 = vld [vmem:[#allocation8 + $0x578] sm:$0xff]
        %v1570 = vld [vmem:[#allocation8 + $0x580] sm:$0xff]
        %v1571 = vld [vmem:[#allocation8 + $0x588] sm:$0xff]
        %v1572 = vld [vmem:[#allocation8 + $0x590] sm:$0xff]
        %v1573 = vld [vmem:[#allocation8 + $0x598] sm:$0xff]
        %v1574 = vld [vmem:[#allocation8 + $0x5a0] sm:$0xff]
        %v1575 = vld [vmem:[#allocation8 + $0x5a8] sm:$0xff]
        %v1576 = vld [vmem:[#allocation8 + $0x5b0] sm:$0xff]
        %v1577 = vld [vmem:[#allocation8 + $0x5b8] sm:$0xff]
        %v1578 = vld [vmem:[#allocation8 + $0x5c0] sm:$0xff]
        %v1579 = vld [vmem:[#allocation8 + $0x5c8] sm:$0xff]
        %v1580 = vld [vmem:[#allocation8 + $0x5d0] sm:$0xff]
        %v1581 = vld [vmem:[#allocation8 + $0x5d8] sm:$0xff]
        %v1582 = vld [vmem:[#allocation8 + $0x5e0] sm:$0xff]
        %v1583 = vld [vmem:[#allocation8 + $0x5e8] sm:$0xff]
        %v1584 = vld [vmem:[#allocation8 + $0x5f0] sm:$0xff]
        %v1585 = vld [vmem:[#allocation8 + $0x5f8] sm:$0xff]
        %v1586 = vld [vmem:[#allocation8 + $0x600] sm:$0xff]
        %v1587 = vld [vmem:[#allocation8 + $0x608] sm:$0xff]
        %v1588 = vld [vmem:[#allocation8 + $0x610] sm:$0xff]
        %v1589 = vld [vmem:[#allocation8 + $0x618] sm:$0xff]
        %v1590 = vld [vmem:[#allocation8 + $0x620] sm:$0xff]
        %v1591 = vld [vmem:[#allocation8 + $0x628] sm:$0xff]
        %v1592 = vld [vmem:[#allocation8 + $0x630] sm:$0xff]
        %v1593 = vld [vmem:[#allocation8 + $0x638] sm:$0xff]
        %v1594 = vld [vmem:[#allocation8 + $0x640] sm:$0xff]
        %v1595 = vld [vmem:[#allocation8 + $0x648] sm:$0xff]
        %v1596 = vld [vmem:[#allocation8 + $0x650] sm:$0xff]
        %v1597 = vld [vmem:[#allocation8 + $0x658] sm:$0xff]
        %v1598 = vld [vmem:[#allocation8 + $0x660] sm:$0xff]
        %v1599 = vld [vmem:[#allocation8 + $0x668] sm:$0xff]
        %v1600 = vld [vmem:[#allocation8 + $0x670] sm:$0xff]
        %v1601 = vld [vmem:[#allocation8 + $0x678] sm:$0xff]
        %v1602 = vld [vmem:[#allocation8 + $0x680] sm:$0xff]
        %v1603 = vld [vmem:[#allocation8 + $0x688] sm:$0xff]
        %v1604 = vld [vmem:[#allocation8 + $0x690] sm:$0xff]
        %v1605 = vld [vmem:[#allocation8 + $0x698] sm:$0xff]
        %v1606 = vld [vmem:[#allocation8 + $0x6a0] sm:$0xff]
        %v1607 = vld [vmem:[#allocation8 + $0x6a8] sm:$0xff]
        %v1608 = vld [vmem:[#allocation8 + $0x6b0] sm:$0xff]
        %v1609 = vld [vmem:[#allocation8 + $0x6b8] sm:$0xff]
        %v1610 = vld [vmem:[#allocation8 + $0x6c0] sm:$0xff]
        %v1611 = vld [vmem:[#allocation8 + $0x6c8] sm:$0xff]
        %v1612 = vld [vmem:[#allocation8 + $0x6d0] sm:$0xff]
        %v1613 = vld [vmem:[#allocation8 + $0x6d8] sm:$0xff]
        %v1614 = vld [vmem:[#allocation8 + $0x6e0] sm:$0xff]
        %v1615 = vld [vmem:[#allocation8 + $0x6e8] sm:$0xff]
        %v1616 = vld [vmem:[#allocation8 + $0x6f0] sm:$0xff]
        %v1617 = vld [vmem:[#allocation8 + $0x6f8] sm:$0xff]
        %v1618 = vld [vmem:[#allocation8 + $0x700] sm:$0xff]
        %v1619 = vld [vmem:[#allocation8 + $0x708] sm:$0xff]
        %v1620 = vld [vmem:[#allocation8 + $0x710] sm:$0xff]
        %v1621 = vld [vmem:[#allocation8 + $0x718] sm:$0xff]
        %v1622 = vld [vmem:[#allocation8 + $0x720] sm:$0xff]
        %v1623 = vld [vmem:[#allocation8 + $0x728] sm:$0xff]
        %v1624 = vld [vmem:[#allocation8 + $0x730] sm:$0xff]
        %v1625 = vld [vmem:[#allocation8 + $0x738] sm:$0xff]
        %v1626 = vld [vmem:[#allocation8 + $0x740] sm:$0xff]
        %v1627 = vld [vmem:[#allocation8 + $0x748] sm:$0xff]
        %v1628 = vld [vmem:[#allocation8 + $0x750] sm:$0xff]
        %v1629 = vld [vmem:[#allocation8 + $0x758] sm:$0xff]
        %v1630 = vld [vmem:[#allocation8 + $0x760] sm:$0xff]
        %v1631 = vld [vmem:[#allocation8 + $0x768] sm:$0xff]
        %v1632 = vld [vmem:[#allocation8 + $0x770] sm:$0xff]
        %v1633 = vld [vmem:[#allocation8 + $0x778] sm:$0xff]
        %v1634 = vld [vmem:[#allocation8 + $0x780] sm:$0xff]
        %v1635 = vld [vmem:[#allocation8 + $0x788] sm:$0xff]
        %v1636 = vld [vmem:[#allocation8 + $0x790] sm:$0xff]
        %v1637 = vld [vmem:[#allocation8 + $0x798] sm:$0xff]
        %v1638 = vld [vmem:[#allocation8 + $0x7a0] sm:$0xff]
        %v1639 = vld [vmem:[#allocation8 + $0x7a8] sm:$0xff]
        %v1640 = vld [vmem:[#allocation8 + $0x7b0] sm:$0xff]
        %v1641 = vld [vmem:[#allocation8 + $0x7b8] sm:$0xff]
        %v1642 = vld [vmem:[#allocation8 + $0x7c0] sm:$0xff]
        %v1643 = vld [vmem:[#allocation8 + $0x7c8] sm:$0xff]
        %v1644 = vld [vmem:[#allocation8 + $0x7d0] sm:$0xff]
        %v1645 = vld [vmem:[#allocation8 + $0x7d8] sm:$0xff]
        %v1646 = vld [vmem:[#allocation8 + $0x7e0] sm:$0xff]
        %v1647 = vld [vmem:[#allocation8 + $0x7e8] sm:$0xff]
        %v1648 = vld [vmem:[#allocation8 + $0x7f0] sm:$0xff]
        %v1649 = vld [vmem:[#allocation8 + $0x7f8] sm:$0xff]
        %v1650 = vld [vmem:[#allocation8 + $0x800] sm:$0xff]
        %v1651 = vld [vmem:[#allocation8 + $0x808] sm:$0xff]
        %v1652 = vld [vmem:[#allocation8 + $0x810] sm:$0xff]
        %v1653 = vld [vmem:[#allocation8 + $0x818] sm:$0xff]
        %v1654 = vld [vmem:[#allocation8 + $0x820] sm:$0xff]
        %v1655 = vld [vmem:[#allocation8 + $0x828] sm:$0xff]
        %v1656 = vld [vmem:[#allocation8 + $0x830] sm:$0xff]
        %v1657 = vld [vmem:[#allocation8 + $0x838] sm:$0xff]
        %v1658 = vld [vmem:[#allocation8 + $0x840] sm:$0xff]
        %v1659 = vld [vmem:[#allocation8 + $0x848] sm:$0xff]
        %v1660 = vld [vmem:[#allocation8 + $0x850] sm:$0xff]
        %v1661 = vld [vmem:[#allocation8 + $0x858] sm:$0xff]
        %v1662 = vld [vmem:[#allocation8 + $0x860] sm:$0xff]
        %v1663 = vld [vmem:[#allocation8 + $0x868] sm:$0xff]
        %v1664 = vld [vmem:[#allocation8 + $0x870] sm:$0xff]
        %v1665 = vld [vmem:[#allocation8 + $0x878] sm:$0xff]
        %v1666 = vld [vmem:[#allocation8 + $0x880] sm:$0xff]
        %v1667 = vld [vmem:[#allocation8 + $0x888] sm:$0xff]
        %v1668 = vld [vmem:[#allocation8 + $0x890] sm:$0xff]
        %v1669 = vld [vmem:[#allocation8 + $0x898] sm:$0xff]
        %v1670 = vld [vmem:[#allocation8 + $0x8a0] sm:$0xff]
        %v1671 = vld [vmem:[#allocation8 + $0x8a8] sm:$0xff]
        %v1672 = vld [vmem:[#allocation8 + $0x8b0] sm:$0xff]
        %v1673 = vld [vmem:[#allocation8 + $0x8b8] sm:$0xff]
        %v1674 = vld [vmem:[#allocation8 + $0x8c0] sm:$0xff]
        %v1675 = vld [vmem:[#allocation8 + $0x8c8] sm:$0xff]
        %v1676 = vld [vmem:[#allocation8 + $0x8d0] sm:$0xff]
        %v1677 = vld [vmem:[#allocation8 + $0x8d8] sm:$0xff]
        %v1678 = vld [vmem:[#allocation8 + $0x8e0] sm:$0xff]
        %v1679 = vld [vmem:[#allocation8 + $0x8e8] sm:$0xff]
        %v1680 = vld [vmem:[#allocation8 + $0x8f0] sm:$0xff]
        %v1681 = vld [vmem:[#allocation8 + $0x8f8] sm:$0xff]
        %v1682 = vld [vmem:[#allocation8 + $0x900] sm:$0xff]
        %v1683 = vld [vmem:[#allocation8 + $0x908] sm:$0xff]
        %v1684 = vld [vmem:[#allocation8 + $0x910] sm:$0xff]
        %v1685 = vld [vmem:[#allocation8 + $0x918] sm:$0xff]
        %v1686 = vld [vmem:[#allocation8 + $0x920] sm:$0xff]
        %v1687 = vld [vmem:[#allocation8 + $0x928] sm:$0xff]
        %v1688 = vld [vmem:[#allocation8 + $0x930] sm:$0xff]
        %v1689 = vld [vmem:[#allocation8 + $0x938] sm:$0xff]
        %v1690 = vld [vmem:[#allocation8 + $0x940] sm:$0xff]
        %v1691 = vld [vmem:[#allocation8 + $0x948] sm:$0xff]
        %v1692 = vld [vmem:[#allocation8 + $0x950] sm:$0xff]
        %v1693 = vld [vmem:[#allocation8 + $0x958] sm:$0xff]
        %v1694 = vld [vmem:[#allocation8 + $0x960] sm:$0xff]
        %v1695 = vld [vmem:[#allocation8 + $0x968] sm:$0xff]
        %v1696 = vld [vmem:[#allocation8 + $0x970] sm:$0xff]
        %v1697 = vld [vmem:[#allocation8 + $0x978] sm:$0xff]
        %v1698 = vld [vmem:[#allocation8 + $0x980] sm:$0xff]
        %v1699 = vld [vmem:[#allocation8 + $0x988] sm:$0xff]
        %v1700 = vld [vmem:[#allocation8 + $0x990] sm:$0xff]
        %v1701 = vld [vmem:[#allocation8 + $0x998] sm:$0xff]
        %v1702 = vld [vmem:[#allocation8 + $0x9a0] sm:$0xff]
        %v1703 = vld [vmem:[#allocation8 + $0x9a8] sm:$0xff]
        %v1704 = vld [vmem:[#allocation8 + $0x9b0] sm:$0xff]
        %v1705 = vld [vmem:[#allocation8 + $0x9b8] sm:$0xff]
        %v1706 = vld [vmem:[#allocation8 + $0x9c0] sm:$0xff]
        %v1707 = vld [vmem:[#allocation8 + $0x9c8] sm:$0xff]
        %v1708 = vld [vmem:[#allocation8 + $0x9d0] sm:$0xff]
        %v1709 = vld [vmem:[#allocation8 + $0x9d8] sm:$0xff]
        %v1710 = vld [vmem:[#allocation8 + $0x9e0] sm:$0xff]
        %v1711 = vld [vmem:[#allocation8 + $0x9e8] sm:$0xff]
        %v1712 = vld [vmem:[#allocation8 + $0x9f0] sm:$0xff]
        %v1713 = vld [vmem:[#allocation8 + $0x9f8] sm:$0xff]
        %v1714 = vld [vmem:[#allocation8 + $0xa00] sm:$0xff]
        %v1715 = vld [vmem:[#allocation8 + $0xa08] sm:$0xff]
        %v1716 = vld [vmem:[#allocation8 + $0xa10] sm:$0xff]
        %v1717 = vld [vmem:[#allocation8 + $0xa18] sm:$0xff]
        %v1718 = vld [vmem:[#allocation8 + $0xa20] sm:$0xff]
        %v1719 = vld [vmem:[#allocation8 + $0xa28] sm:$0xff]
        %v1720 = vld [vmem:[#allocation8 + $0xa30] sm:$0xff]
        %v1721 = vld [vmem:[#allocation8 + $0xa38] sm:$0xff]
        %v1722 = vld [vmem:[#allocation8 + $0xa40] sm:$0xff]
        %v1723 = vld [vmem:[#allocation8 + $0xa48] sm:$0xff]
        %v1724 = vld [vmem:[#allocation8 + $0xa50] sm:$0xff]
        %v1725 = vld [vmem:[#allocation8 + $0xa58] sm:$0xff]
        %v1726 = vld [vmem:[#allocation8 + $0xa60] sm:$0xff]
        %v1727 = vld [vmem:[#allocation8 + $0xa68] sm:$0xff]
        %v1728 = vld [vmem:[#allocation8 + $0xa70] sm:$0xff]
        %v1729 = vld [vmem:[#allocation8 + $0xa78] sm:$0xff]
        %v1730 = vld [vmem:[#allocation8 + $0xa80] sm:$0xff]
        %v1731 = vld [vmem:[#allocation8 + $0xa88] sm:$0xff]
        %v1732 = vld [vmem:[#allocation8 + $0xa90] sm:$0xff]
        %v1733 = vld [vmem:[#allocation8 + $0xa98] sm:$0xff]
        %v1734 = vld [vmem:[#allocation8 + $0xaa0] sm:$0xff]
        %v1735 = vld [vmem:[#allocation8 + $0xaa8] sm:$0xff]
        %v1736 = vld [vmem:[#allocation8 + $0xab0] sm:$0xff]
        %v1737 = vld [vmem:[#allocation8 + $0xab8] sm:$0xff]
        %v1738 = vld [vmem:[#allocation8 + $0xac0] sm:$0xff]
        %v1739 = vld [vmem:[#allocation8 + $0xac8] sm:$0xff]
        %v1740 = vld [vmem:[#allocation8 + $0xad0] sm:$0xff]
        %v1741 = vld [vmem:[#allocation8 + $0xad8] sm:$0xff]
        %v1742 = vld [vmem:[#allocation8 + $0xae0] sm:$0xff]
        %v1743 = vld [vmem:[#allocation8 + $0xae8] sm:$0xff]
        %v1744 = vld [vmem:[#allocation8 + $0xaf0] sm:$0xff]
        %v1745 = vld [vmem:[#allocation8 + $0xaf8] sm:$0xff]
        %v1746 = vld [vmem:[#allocation8 + $0xb00] sm:$0xff]
        %v1747 = vld [vmem:[#allocation8 + $0xb08] sm:$0xff]
        %v1748 = vld [vmem:[#allocation8 + $0xb10] sm:$0xff]
        %v1749 = vld [vmem:[#allocation8 + $0xb18] sm:$0xff]
        %v1750 = vld [vmem:[#allocation8 + $0xb20] sm:$0xff]
        %v1751 = vld [vmem:[#allocation8 + $0xb28] sm:$0xff]
        %v1752 = vld [vmem:[#allocation8 + $0xb30] sm:$0xff]
        %v1753 = vld [vmem:[#allocation8 + $0xb38] sm:$0xff]
        %v1754 = vld [vmem:[#allocation8 + $0xb40] sm:$0xff]
        %v1755 = vld [vmem:[#allocation8 + $0xb48] sm:$0xff]
        %v1756 = vld [vmem:[#allocation8 + $0xb50] sm:$0xff]
        %v1757 = vld [vmem:[#allocation8 + $0xb58] sm:$0xff]
        %v1758 = vld [vmem:[#allocation8 + $0xb60] sm:$0xff]
        %v1759 = vld [vmem:[#allocation8 + $0xb68] sm:$0xff]
        %v1760 = vld [vmem:[#allocation8 + $0xb70] sm:$0xff]
        %v1761 = vld [vmem:[#allocation8 + $0xb78] sm:$0xff]
        %v1762 = vld [vmem:[#allocation8 + $0xb80] sm:$0xff]
        %v1763 = vld [vmem:[#allocation8 + $0xb88] sm:$0xff]
        %v1764 = vld [vmem:[#allocation8 + $0xb90] sm:$0xff]
        %v1765 = vld [vmem:[#allocation8 + $0xb98] sm:$0xff]
        %v1766 = vld [vmem:[#allocation8 + $0xba0] sm:$0xff]
        %v1767 = vld [vmem:[#allocation8 + $0xba8] sm:$0xff]
        %v1768 = vld [vmem:[#allocation8 + $0xbb0] sm:$0xff]
        %v1769 = vld [vmem:[#allocation8 + $0xbb8] sm:$0xff]
        %v1770 = vld [vmem:[#allocation8 + $0xbc0] sm:$0xff]
        %v1771 = vld [vmem:[#allocation8 + $0xbc8] sm:$0xff]
        %v1772 = vld [vmem:[#allocation8 + $0xbd0] sm:$0xff]
        %v1773 = vld [vmem:[#allocation8 + $0xbd8] sm:$0xff]
        %v1774 = vld [vmem:[#allocation8 + $0xbe0] sm:$0xff]
        %v1775 = vld [vmem:[#allocation8 + $0xbe8] sm:$0xff]
        %v1776 = vld [vmem:[#allocation8 + $0xbf0] sm:$0xff]
        %v1777 = vld [vmem:[#allocation8 + $0xbf8] sm:$0xff]
        %v1778 = vld [vmem:[#allocation8 + $0xc00] sm:$0xff]
        %v1779 = vld [vmem:[#allocation8 + $0xc08] sm:$0xff]
        %v1780 = vld [vmem:[#allocation8 + $0xc10] sm:$0xff]
        %v1781 = vld [vmem:[#allocation8 + $0xc18] sm:$0xff]
        %v1782 = vld [vmem:[#allocation8 + $0xc20] sm:$0xff]
        %v1783 = vld [vmem:[#allocation8 + $0xc28] sm:$0xff]
        %v1784 = vld [vmem:[#allocation8 + $0xc30] sm:$0xff]
        %v1785 = vld [vmem:[#allocation8 + $0xc38] sm:$0xff]
        %v1786 = vld [vmem:[#allocation8 + $0xc40] sm:$0xff]
        %v1787 = vld [vmem:[#allocation8 + $0xc48] sm:$0xff]
        %v1788 = vld [vmem:[#allocation8 + $0xc50] sm:$0xff]
        %v1789 = vld [vmem:[#allocation8 + $0xc58] sm:$0xff]
        %v1790 = vld [vmem:[#allocation8 + $0xc60] sm:$0xff]
        %v1791 = vld [vmem:[#allocation8 + $0xc68] sm:$0xff]
        %v1792 = vld [vmem:[#allocation8 + $0xc70] sm:$0xff]
        %v1793 = vld [vmem:[#allocation8 + $0xc78] sm:$0xff]
        %v1794 = vld [vmem:[#allocation8 + $0xc80] sm:$0xff]
        %v1795 = vld [vmem:[#allocation8 + $0xc88] sm:$0xff]
        %v1796 = vld [vmem:[#allocation8 + $0xc90] sm:$0xff]
        %v1797 = vld [vmem:[#allocation8 + $0xc98] sm:$0xff]
        %v1798 = vld [vmem:[#allocation8 + $0xca0] sm:$0xff]
        %v1799 = vld [vmem:[#allocation8 + $0xca8] sm:$0xff]
        %v1800 = vld [vmem:[#allocation8 + $0xcb0] sm:$0xff]
        %v1801 = vld [vmem:[#allocation8 + $0xcb8] sm:$0xff]
        %v1802 = vld [vmem:[#allocation8 + $0xcc0] sm:$0xff]
        %v1803 = vld [vmem:[#allocation8 + $0xcc8] sm:$0xff]
        %v1804 = vld [vmem:[#allocation8 + $0xcd0] sm:$0xff]
        %v1805 = vld [vmem:[#allocation8 + $0xcd8] sm:$0xff]
        %v1806 = vld [vmem:[#allocation8 + $0xce0] sm:$0xff]
        %v1807 = vld [vmem:[#allocation8 + $0xce8] sm:$0xff]
        %v1808 = vld [vmem:[#allocation8 + $0xcf0] sm:$0xff]
        %v1809 = vld [vmem:[#allocation8 + $0xcf8] sm:$0xff]
        %v1810 = vld [vmem:[#allocation8 + $0xd00] sm:$0xff]
        %v1811 = vld [vmem:[#allocation8 + $0xd08] sm:$0xff]
        %v1812 = vld [vmem:[#allocation8 + $0xd10] sm:$0xff]
        %v1813 = vld [vmem:[#allocation8 + $0xd18] sm:$0xff]
        %v1814 = vld [vmem:[#allocation8 + $0xd20] sm:$0xff]
        %v1815 = vld [vmem:[#allocation8 + $0xd28] sm:$0xff]
        %v1816 = vld [vmem:[#allocation8 + $0xd30] sm:$0xff]
        %v1817 = vld [vmem:[#allocation8 + $0xd38] sm:$0xff]
        %v1818 = vld [vmem:[#allocation8 + $0xd40] sm:$0xff]
        %v1819 = vld [vmem:[#allocation8 + $0xd48] sm:$0xff]
        %v1820 = vld [vmem:[#allocation8 + $0xd50] sm:$0xff]
        %v1821 = vld [vmem:[#allocation8 + $0xd58] sm:$0xff]
        %v1822 = vld [vmem:[#allocation8 + $0xd60] sm:$0xff]
        %v1823 = vld [vmem:[#allocation8 + $0xd68] sm:$0xff]
        %v1824 = vld [vmem:[#allocation8 + $0xd70] sm:$0xff]
        %v1825 = vld [vmem:[#allocation8 + $0xd78] sm:$0xff]
        %v1826 = vld [vmem:[#allocation8 + $0xd80] sm:$0xff]
        %v1827 = vld [vmem:[#allocation8 + $0xd88] sm:$0xff]
        %v1828 = vld [vmem:[#allocation8 + $0xd90] sm:$0xff]
        %v1829 = vld [vmem:[#allocation8 + $0xd98] sm:$0xff]
        %v1830 = vld [vmem:[#allocation8 + $0xda0] sm:$0xff]
        %v1831 = vld [vmem:[#allocation8 + $0xda8] sm:$0xff]
        %v1832 = vld [vmem:[#allocation8 + $0xdb0] sm:$0xff]
        %v1833 = vld [vmem:[#allocation8 + $0xdb8] sm:$0xff]
        %v1834 = vld [vmem:[#allocation8 + $0xdc0] sm:$0xff]
        %v1835 = vld [vmem:[#allocation8 + $0xdc8] sm:$0xff]
        %v1836 = vld [vmem:[#allocation8 + $0xdd0] sm:$0xff]
        %v1837 = vld [vmem:[#allocation8 + $0xdd8] sm:$0xff]
        %v1838 = vld [vmem:[#allocation8 + $0xde0] sm:$0xff]
        %v1839 = vld [vmem:[#allocation8 + $0xde8] sm:$0xff]
        %v1840 = vld [vmem:[#allocation8 + $0xdf0] sm:$0xff]
        %v1841 = vld [vmem:[#allocation8 + $0xdf8] sm:$0xff]
        %v1842 = vld [vmem:[#allocation8 + $0xe00] sm:$0xff]
        %v1843 = vld [vmem:[#allocation8 + $0xe08] sm:$0xff]
        %v1844 = vld [vmem:[#allocation8 + $0xe10] sm:$0xff]
        %v1845 = vld [vmem:[#allocation8 + $0xe18] sm:$0xff]
        %v1846 = vld [vmem:[#allocation8 + $0xe20] sm:$0xff]
        %v1847 = vld [vmem:[#allocation8 + $0xe28] sm:$0xff]
        %v1848 = vld [vmem:[#allocation8 + $0xe30] sm:$0xff]
        %v1849 = vld [vmem:[#allocation8 + $0xe38] sm:$0xff]
        %v1850 = vld [vmem:[#allocation8 + $0xe40] sm:$0xff]
        %v1851 = vld [vmem:[#allocation8 + $0xe48] sm:$0xff]
        %v1852 = vld [vmem:[#allocation8 + $0xe50] sm:$0xff]
        %v1853 = vld [vmem:[#allocation8 + $0xe58] sm:$0xff]
        %v1854 = vld [vmem:[#allocation8 + $0xe60] sm:$0xff]
        %v1855 = vld [vmem:[#allocation8 + $0xe68] sm:$0xff]
        %v1856 = vld [vmem:[#allocation8 + $0xe70] sm:$0xff]
        %v1857 = vld [vmem:[#allocation8 + $0xe78] sm:$0xff]
        %v1858 = vld [vmem:[#allocation8 + $0xe80] sm:$0xff]
        %v1859 = vld [vmem:[#allocation8 + $0xe88] sm:$0xff]
        %v1860 = vld [vmem:[#allocation8 + $0xe90] sm:$0xff]
        %v1861 = vld [vmem:[#allocation8 + $0xe98] sm:$0xff]
        %v1862 = vld [vmem:[#allocation8 + $0xea0] sm:$0xff]
        %v1863 = vld [vmem:[#allocation8 + $0xea8] sm:$0xff]
        %v1864 = vld [vmem:[#allocation8 + $0xeb0] sm:$0xff]
        %v1865 = vld [vmem:[#allocation8 + $0xeb8] sm:$0xff]
        %v1866 = vld [vmem:[#allocation8 + $0xec0] sm:$0xff]
        %v1867 = vld [vmem:[#allocation8 + $0xec8] sm:$0xff]
        %v1868 = vld [vmem:[#allocation8 + $0xed0] sm:$0xff]
        %v1869 = vld [vmem:[#allocation8 + $0xed8] sm:$0xff]
        %v1870 = vld [vmem:[#allocation8 + $0xee0] sm:$0xff]
        %v1871 = vld [vmem:[#allocation8 + $0xee8] sm:$0xff]
        %v1872 = vld [vmem:[#allocation8 + $0xef0] sm:$0xff]
        %v1873 = vld [vmem:[#allocation8 + $0xef8] sm:$0xff]
        %v1874 = vld [vmem:[#allocation8 + $0xf00] sm:$0xff]
        %v1875 = vld [vmem:[#allocation8 + $0xf08] sm:$0xff]
        %v1876 = vld [vmem:[#allocation8 + $0xf10] sm:$0xff]
        %v1877 = vld [vmem:[#allocation8 + $0xf18] sm:$0xff]
        %v1878 = vld [vmem:[#allocation8 + $0xf20] sm:$0xff]
        %v1879 = vld [vmem:[#allocation8 + $0xf28] sm:$0xff]
        %v1880 = vld [vmem:[#allocation8 + $0xf30] sm:$0xff]
        %v1881 = vld [vmem:[#allocation8 + $0xf38] sm:$0xff]
        %v1882 = vld [vmem:[#allocation8 + $0xf40] sm:$0xff]
        %v1883 = vld [vmem:[#allocation8 + $0xf48] sm:$0xff]
        %v1884 = vld [vmem:[#allocation8 + $0xf50] sm:$0xff]
        %v1885 = vld [vmem:[#allocation8 + $0xf58] sm:$0xff]
        %v1886 = vld [vmem:[#allocation8 + $0xf60] sm:$0xff]
        %v1887 = vld [vmem:[#allocation8 + $0xf68] sm:$0xff]
        %v1888 = vld [vmem:[#allocation8 + $0xf70] sm:$0xff]
        %v1889 = vld [vmem:[#allocation8 + $0xf78] sm:$0xff]
        %v1890 = vld [vmem:[#allocation8 + $0xf80] sm:$0xff]
        %v1891 = vld [vmem:[#allocation8 + $0xf88] sm:$0xff]
        %v1892 = vld [vmem:[#allocation8 + $0xf90] sm:$0xff]
        %v1893 = vld [vmem:[#allocation8 + $0xf98] sm:$0xff]
        %v1894 = vld [vmem:[#allocation8 + $0xfa0] sm:$0xff]
        %v1895 = vld [vmem:[#allocation8 + $0xfa8] sm:$0xff]
        %v1896 = vld [vmem:[#allocation8 + $0xfb0] sm:$0xff]
        %v1897 = vld [vmem:[#allocation8 + $0xfb8] sm:$0xff]
        %v1898 = vld [vmem:[#allocation8 + $0xfc0] sm:$0xff]
        %v1899 = vld [vmem:[#allocation8 + $0xfc8] sm:$0xff]
        %v1900 = vld [vmem:[#allocation8 + $0xfd0] sm:$0xff]
        %v1901 = vld [vmem:[#allocation8 + $0xfd8] sm:$0xff]
        %v1902 = vld [vmem:[#allocation8 + $0xfe0] sm:$0xff]
        %v1903 = vld [vmem:[#allocation8 + $0xfe8] sm:$0xff]
        %v1904 = vld [vmem:[#allocation8 + $0xff0] sm:$0xff]
        %v1905 = vld [vmem:[#allocation8 + $0xff8] sm:$0xff]
        %v1906 = vld [vmem:[#allocation10] sm:$0xff]
        %v1908 = vlaneseq
        %v1909 = vshrl.u32 %v1908, 7
        %v1910 = vsub.s32 0, %v1909
        %v1911 = vrot.slane %v1906, %v1910
        %v1912 = vlaneseq
        %v1913 = vshrl.u32 %v1912, 7
        %v1914 = vsub.s32 1, %v1913
        %v1915 = vrot.slane %v1906, %v1914
        %v1916 = vlaneseq
        %v1917 = vshrl.u32 %v1916, 7
        %v1918 = vsub.s32 2, %v1917
        %v1919 = vrot.slane %v1906, %v1918
        %v1920 = vlaneseq
        %v1921 = vshrl.u32 %v1920, 7
        %v1922 = vsub.s32 3, %v1921
        %v1923 = vrot.slane %v1906, %v1922
        %v1924 = vlaneseq
        %v1925 = vshrl.u32 %v1924, 7
        %v1926 = vsub.s32 4, %v1925
        %v1927 = vrot.slane %v1906, %v1926
        %v1928 = vlaneseq
        %v1929 = vshrl.u32 %v1928, 7
        %v1930 = vsub.s32 5, %v1929
        %v1931 = vrot.slane %v1906, %v1930
        %v1932 = vlaneseq
        %v1933 = vshrl.u32 %v1932, 7
        %v1934 = vsub.s32 6, %v1933
        %v1935 = vrot.slane %v1906, %v1934
        %v1936 = vlaneseq
        %v1937 = vshrl.u32 %v1936, 7
        %v1938 = vsub.s32 7, %v1937
        %v1939 = vrot.slane %v1906, %v1938
        %v2460 = vunpack.c.l.b16 %v1394
        %v2461 = vunpack.c.h.b16 %v1394
        %v2462 = vunpack.c.l.b16 %v1395
        %v2463 = vunpack.c.h.b16 %v1395
        %v2464 = vunpack.c.l.b16 %v1396
        %v2465 = vunpack.c.h.b16 %v1396
        %v2466 = vunpack.c.l.b16 %v1397
        %v2467 = vunpack.c.h.b16 %v1397
        %v2468 = vunpack.c.l.b16 %v1398
        %v2469 = vunpack.c.h.b16 %v1398
        %v2470 = vunpack.c.l.b16 %v1399
        %v2471 = vunpack.c.h.b16 %v1399
        %v2472 = vunpack.c.l.b16 %v1400
        %v2473 = vunpack.c.h.b16 %v1400
        %v2474 = vunpack.c.l.b16 %v1401
        %v2475 = vunpack.c.h.b16 %v1401
        %v2476 = vunpack.c.l.b16 %v1402
        %v2477 = vunpack.c.h.b16 %v1402
        %v2478 = vunpack.c.l.b16 %v1403
        %v2479 = vunpack.c.h.b16 %v1403
        %v2480 = vunpack.c.l.b16 %v1404
        %v2481 = vunpack.c.h.b16 %v1404
        %v2482 = vunpack.c.l.b16 %v1405
        %v2483 = vunpack.c.h.b16 %v1405
        %v2484 = vunpack.c.l.b16 %v1406
        %v2485 = vunpack.c.h.b16 %v1406
        %v2486 = vunpack.c.l.b16 %v1407
        %v2487 = vunpack.c.h.b16 %v1407
        %v2488 = vunpack.c.l.b16 %v1408
        %v2489 = vunpack.c.h.b16 %v1408
        %v2490 = vunpack.c.l.b16 %v1409
        %v2491 = vunpack.c.h.b16 %v1409
        %v2492 = vunpack.c.l.b16 %v1410
        %v2493 = vunpack.c.h.b16 %v1410
        %v2494 = vunpack.c.l.b16 %v1411
        %v2495 = vunpack.c.h.b16 %v1411
        %v2496 = vunpack.c.l.b16 %v1412
        %v2497 = vunpack.c.h.b16 %v1412
        %v2498 = vunpack.c.l.b16 %v1413
        %v2499 = vunpack.c.h.b16 %v1413
        %v2500 = vunpack.c.l.b16 %v1414
        %v2501 = vunpack.c.h.b16 %v1414
        %v2502 = vunpack.c.l.b16 %v1415
        %v2503 = vunpack.c.h.b16 %v1415
        %v2504 = vunpack.c.l.b16 %v1416
        %v2505 = vunpack.c.h.b16 %v1416
        %v2506 = vunpack.c.l.b16 %v1417
        %v2507 = vunpack.c.h.b16 %v1417
        %v2508 = vunpack.c.l.b16 %v1418
        %v2509 = vunpack.c.h.b16 %v1418
        %v2510 = vunpack.c.l.b16 %v1419
        %v2511 = vunpack.c.h.b16 %v1419
        %v2512 = vunpack.c.l.b16 %v1420
        %v2513 = vunpack.c.h.b16 %v1420
        %v2514 = vunpack.c.l.b16 %v1421
        %v2515 = vunpack.c.h.b16 %v1421
        %v2516 = vunpack.c.l.b16 %v1422
        %v2517 = vunpack.c.h.b16 %v1422
        %v2518 = vunpack.c.l.b16 %v1423
        %v2519 = vunpack.c.h.b16 %v1423
        %v2520 = vunpack.c.l.b16 %v1424
        %v2521 = vunpack.c.h.b16 %v1424
        %v2522 = vunpack.c.l.b16 %v1425
        %v2523 = vunpack.c.h.b16 %v1425
        %v2524 = vunpack.c.l.b16 %v1426
        %v2525 = vunpack.c.h.b16 %v1426
        %v2526 = vunpack.c.l.b16 %v1427
        %v2527 = vunpack.c.h.b16 %v1427
        %v2528 = vunpack.c.l.b16 %v1428
        %v2529 = vunpack.c.h.b16 %v1428
        %v2530 = vunpack.c.l.b16 %v1429
        %v2531 = vunpack.c.h.b16 %v1429
        %v2532 = vunpack.c.l.b16 %v1430
        %v2533 = vunpack.c.h.b16 %v1430
        %v2534 = vunpack.c.l.b16 %v1431
        %v2535 = vunpack.c.h.b16 %v1431
        %v2536 = vunpack.c.l.b16 %v1432
        %v2537 = vunpack.c.h.b16 %v1432
        %v2538 = vunpack.c.l.b16 %v1433
        %v2539 = vunpack.c.h.b16 %v1433
        %v2540 = vunpack.c.l.b16 %v1434
        %v2541 = vunpack.c.h.b16 %v1434
        %v2542 = vunpack.c.l.b16 %v1435
        %v2543 = vunpack.c.h.b16 %v1435
        %v2544 = vunpack.c.l.b16 %v1436
        %v2545 = vunpack.c.h.b16 %v1436
        %v2546 = vunpack.c.l.b16 %v1437
        %v2547 = vunpack.c.h.b16 %v1437
        %v2548 = vunpack.c.l.b16 %v1438
        %v2549 = vunpack.c.h.b16 %v1438
        %v2550 = vunpack.c.l.b16 %v1439
        %v2551 = vunpack.c.h.b16 %v1439
        %v2552 = vunpack.c.l.b16 %v1440
        %v2553 = vunpack.c.h.b16 %v1440
        %v2554 = vunpack.c.l.b16 %v1441
        %v2555 = vunpack.c.h.b16 %v1441
        %v2556 = vunpack.c.l.b16 %v1442
        %v2557 = vunpack.c.h.b16 %v1442
        %v2558 = vunpack.c.l.b16 %v1443
        %v2559 = vunpack.c.h.b16 %v1443
        %v2560 = vunpack.c.l.b16 %v1444
        %v2561 = vunpack.c.h.b16 %v1444
        %v2562 = vunpack.c.l.b16 %v1445
        %v2563 = vunpack.c.h.b16 %v1445
        %v2564 = vunpack.c.l.b16 %v1446
        %v2565 = vunpack.c.h.b16 %v1446
        %v2566 = vunpack.c.l.b16 %v1447
        %v2567 = vunpack.c.h.b16 %v1447
        %v2568 = vunpack.c.l.b16 %v1448
        %v2569 = vunpack.c.h.b16 %v1448
        %v2570 = vunpack.c.l.b16 %v1449
        %v2571 = vunpack.c.h.b16 %v1449
        %v2572 = vunpack.c.l.b16 %v1450
        %v2573 = vunpack.c.h.b16 %v1450
        %v2574 = vunpack.c.l.b16 %v1451
        %v2575 = vunpack.c.h.b16 %v1451
        %v2576 = vunpack.c.l.b16 %v1452
        %v2577 = vunpack.c.h.b16 %v1452
        %v2578 = vunpack.c.l.b16 %v1453
        %v2579 = vunpack.c.h.b16 %v1453
        %v2580 = vunpack.c.l.b16 %v1454
        %v2581 = vunpack.c.h.b16 %v1454
        %v2582 = vunpack.c.l.b16 %v1455
        %v2583 = vunpack.c.h.b16 %v1455
        %v2584 = vunpack.c.l.b16 %v1456
        %v2585 = vunpack.c.h.b16 %v1456
        %v2586 = vunpack.c.l.b16 %v1457
        %v2587 = vunpack.c.h.b16 %v1457
        %v2588 = vunpack.c.l.b16 %v1458
        %v2589 = vunpack.c.h.b16 %v1458
        %v2590 = vunpack.c.l.b16 %v1459
        %v2591 = vunpack.c.h.b16 %v1459
        %v2592 = vunpack.c.l.b16 %v1460
        %v2593 = vunpack.c.h.b16 %v1460
        %v2594 = vunpack.c.l.b16 %v1461
        %v2595 = vunpack.c.h.b16 %v1461
        %v2596 = vunpack.c.l.b16 %v1462
        %v2597 = vunpack.c.h.b16 %v1462
        %v2598 = vunpack.c.l.b16 %v1463
        %v2599 = vunpack.c.h.b16 %v1463
        %v2600 = vunpack.c.l.b16 %v1464
        %v2601 = vunpack.c.h.b16 %v1464
        %v2602 = vunpack.c.l.b16 %v1465
        %v2603 = vunpack.c.h.b16 %v1465
        %v2604 = vunpack.c.l.b16 %v1466
        %v2605 = vunpack.c.h.b16 %v1466
        %v2606 = vunpack.c.l.b16 %v1467
        %v2607 = vunpack.c.h.b16 %v1467
        %v2608 = vunpack.c.l.b16 %v1468
        %v2609 = vunpack.c.h.b16 %v1468
        %v2610 = vunpack.c.l.b16 %v1469
        %v2611 = vunpack.c.h.b16 %v1469
        %v2612 = vunpack.c.l.b16 %v1470
        %v2613 = vunpack.c.h.b16 %v1470
        %v2614 = vunpack.c.l.b16 %v1471
        %v2615 = vunpack.c.h.b16 %v1471
        %v2616 = vunpack.c.l.b16 %v1472
        %v2617 = vunpack.c.h.b16 %v1472
        %v2618 = vunpack.c.l.b16 %v1473
        %v2619 = vunpack.c.h.b16 %v1473
        %v2620 = vunpack.c.l.b16 %v1474
        %v2621 = vunpack.c.h.b16 %v1474
        %v2622 = vunpack.c.l.b16 %v1475
        %v2623 = vunpack.c.h.b16 %v1475
        %v2624 = vunpack.c.l.b16 %v1476
        %v2625 = vunpack.c.h.b16 %v1476
        %v2626 = vunpack.c.l.b16 %v1477
        %v2627 = vunpack.c.h.b16 %v1477
        %v2628 = vunpack.c.l.b16 %v1478
        %v2629 = vunpack.c.h.b16 %v1478
        %v2630 = vunpack.c.l.b16 %v1479
        %v2631 = vunpack.c.h.b16 %v1479
        %v2632 = vunpack.c.l.b16 %v1480
        %v2633 = vunpack.c.h.b16 %v1480
        %v2634 = vunpack.c.l.b16 %v1481
        %v2635 = vunpack.c.h.b16 %v1481
        %v2636 = vunpack.c.l.b16 %v1482
        %v2637 = vunpack.c.h.b16 %v1482
        %v2638 = vunpack.c.l.b16 %v1483
        %v2639 = vunpack.c.h.b16 %v1483
        %v2640 = vunpack.c.l.b16 %v1484
        %v2641 = vunpack.c.h.b16 %v1484
        %v2642 = vunpack.c.l.b16 %v1485
        %v2643 = vunpack.c.h.b16 %v1485
        %v2644 = vunpack.c.l.b16 %v1486
        %v2645 = vunpack.c.h.b16 %v1486
        %v2646 = vunpack.c.l.b16 %v1487
        %v2647 = vunpack.c.h.b16 %v1487
        %v2648 = vunpack.c.l.b16 %v1488
        %v2649 = vunpack.c.h.b16 %v1488
        %v2650 = vunpack.c.l.b16 %v1489
        %v2651 = vunpack.c.h.b16 %v1489
        %v2652 = vunpack.c.l.b16 %v1490
        %v2653 = vunpack.c.h.b16 %v1490
        %v2654 = vunpack.c.l.b16 %v1491
        %v2655 = vunpack.c.h.b16 %v1491
        %v2656 = vunpack.c.l.b16 %v1492
        %v2657 = vunpack.c.h.b16 %v1492
        %v2658 = vunpack.c.l.b16 %v1493
        %v2659 = vunpack.c.h.b16 %v1493
        %v2660 = vunpack.c.l.b16 %v1494
        %v2661 = vunpack.c.h.b16 %v1494
        %v2662 = vunpack.c.l.b16 %v1495
        %v2663 = vunpack.c.h.b16 %v1495
        %v2664 = vunpack.c.l.b16 %v1496
        %v2665 = vunpack.c.h.b16 %v1496
        %v2666 = vunpack.c.l.b16 %v1497
        %v2667 = vunpack.c.h.b16 %v1497
        %v2668 = vunpack.c.l.b16 %v1498
        %v2669 = vunpack.c.h.b16 %v1498
        %v2670 = vunpack.c.l.b16 %v1499
        %v2671 = vunpack.c.h.b16 %v1499
        %v2672 = vunpack.c.l.b16 %v1500
        %v2673 = vunpack.c.h.b16 %v1500
        %v2674 = vunpack.c.l.b16 %v1501
        %v2675 = vunpack.c.h.b16 %v1501
        %v2676 = vunpack.c.l.b16 %v1502
        %v2677 = vunpack.c.h.b16 %v1502
        %v2678 = vunpack.c.l.b16 %v1503
        %v2679 = vunpack.c.h.b16 %v1503
        %v2680 = vunpack.c.l.b16 %v1504
        %v2681 = vunpack.c.h.b16 %v1504
        %v2682 = vunpack.c.l.b16 %v1505
        %v2683 = vunpack.c.h.b16 %v1505
        %v2684 = vunpack.c.l.b16 %v1506
        %v2685 = vunpack.c.h.b16 %v1506
        %v2686 = vunpack.c.l.b16 %v1507
        %v2687 = vunpack.c.h.b16 %v1507
        %v2688 = vunpack.c.l.b16 %v1508
        %v2689 = vunpack.c.h.b16 %v1508
        %v2690 = vunpack.c.l.b16 %v1509
        %v2691 = vunpack.c.h.b16 %v1509
        %v2692 = vunpack.c.l.b16 %v1510
        %v2693 = vunpack.c.h.b16 %v1510
        %v2694 = vunpack.c.l.b16 %v1511
        %v2695 = vunpack.c.h.b16 %v1511
        %v2696 = vunpack.c.l.b16 %v1512
        %v2697 = vunpack.c.h.b16 %v1512
        %v2698 = vunpack.c.l.b16 %v1513
        %v2699 = vunpack.c.h.b16 %v1513
        %v2700 = vunpack.c.l.b16 %v1514
        %v2701 = vunpack.c.h.b16 %v1514
        %v2702 = vunpack.c.l.b16 %v1515
        %v2703 = vunpack.c.h.b16 %v1515
        %v2704 = vunpack.c.l.b16 %v1516
        %v2705 = vunpack.c.h.b16 %v1516
        %v2706 = vunpack.c.l.b16 %v1517
        %v2707 = vunpack.c.h.b16 %v1517
        %v2708 = vunpack.c.l.b16 %v1518
        %v2709 = vunpack.c.h.b16 %v1518
        %v2710 = vunpack.c.l.b16 %v1519
        %v2711 = vunpack.c.h.b16 %v1519
        %v2712 = vunpack.c.l.b16 %v1520
        %v2713 = vunpack.c.h.b16 %v1520
        %v2714 = vunpack.c.l.b16 %v1521
        %v2715 = vunpack.c.h.b16 %v1521
        %v2716 = vunpack.c.l.b16 %v1522
        %v2717 = vunpack.c.h.b16 %v1522
        %v2718 = vunpack.c.l.b16 %v1523
        %v2719 = vunpack.c.h.b16 %v1523
        %v2720 = vunpack.c.l.b16 %v1524
        %v2721 = vunpack.c.h.b16 %v1524
        %v2722 = vunpack.c.l.b16 %v1525
        %v2723 = vunpack.c.h.b16 %v1525
        %v2724 = vunpack.c.l.b16 %v1526
        %v2725 = vunpack.c.h.b16 %v1526
        %v2726 = vunpack.c.l.b16 %v1527
        %v2727 = vunpack.c.h.b16 %v1527
        %v2728 = vunpack.c.l.b16 %v1528
        %v2729 = vunpack.c.h.b16 %v1528
        %v2730 = vunpack.c.l.b16 %v1529
        %v2731 = vunpack.c.h.b16 %v1529
        %v2732 = vunpack.c.l.b16 %v1530
        %v2733 = vunpack.c.h.b16 %v1530
        %v2734 = vunpack.c.l.b16 %v1531
        %v2735 = vunpack.c.h.b16 %v1531
        %v2736 = vunpack.c.l.b16 %v1532
        %v2737 = vunpack.c.h.b16 %v1532
        %v2738 = vunpack.c.l.b16 %v1533
        %v2739 = vunpack.c.h.b16 %v1533
        %v2740 = vunpack.c.l.b16 %v1534
        %v2741 = vunpack.c.h.b16 %v1534
        %v2742 = vunpack.c.l.b16 %v1535
        %v2743 = vunpack.c.h.b16 %v1535
        %v2744 = vunpack.c.l.b16 %v1536
        %v2745 = vunpack.c.h.b16 %v1536
        %v2746 = vunpack.c.l.b16 %v1537
        %v2747 = vunpack.c.h.b16 %v1537
        %v2748 = vunpack.c.l.b16 %v1538
        %v2749 = vunpack.c.h.b16 %v1538
        %v2750 = vunpack.c.l.b16 %v1539
        %v2751 = vunpack.c.h.b16 %v1539
        %v2752 = vunpack.c.l.b16 %v1540
        %v2753 = vunpack.c.h.b16 %v1540
        %v2754 = vunpack.c.l.b16 %v1541
        %v2755 = vunpack.c.h.b16 %v1541
        %v2756 = vunpack.c.l.b16 %v1542
        %v2757 = vunpack.c.h.b16 %v1542
        %v2758 = vunpack.c.l.b16 %v1543
        %v2759 = vunpack.c.h.b16 %v1543
        %v2760 = vunpack.c.l.b16 %v1544
        %v2761 = vunpack.c.h.b16 %v1544
        %v2762 = vunpack.c.l.b16 %v1545
        %v2763 = vunpack.c.h.b16 %v1545
        %v2764 = vunpack.c.l.b16 %v1546
        %v2765 = vunpack.c.h.b16 %v1546
        %v2766 = vunpack.c.l.b16 %v1547
        %v2767 = vunpack.c.h.b16 %v1547
        %v2768 = vunpack.c.l.b16 %v1548
        %v2769 = vunpack.c.h.b16 %v1548
        %v2770 = vunpack.c.l.b16 %v1549
        %v2771 = vunpack.c.h.b16 %v1549
        %v2772 = vunpack.c.l.b16 %v1550
        %v2773 = vunpack.c.h.b16 %v1550
        %v2774 = vunpack.c.l.b16 %v1551
        %v2775 = vunpack.c.h.b16 %v1551
        %v2776 = vunpack.c.l.b16 %v1552
        %v2777 = vunpack.c.h.b16 %v1552
        %v2778 = vunpack.c.l.b16 %v1553
        %v2779 = vunpack.c.h.b16 %v1553
        %v2780 = vunpack.c.l.b16 %v1554
        %v2781 = vunpack.c.h.b16 %v1554
        %v2782 = vunpack.c.l.b16 %v1555
        %v2783 = vunpack.c.h.b16 %v1555
        %v2784 = vunpack.c.l.b16 %v1556
        %v2785 = vunpack.c.h.b16 %v1556
        %v2786 = vunpack.c.l.b16 %v1557
        %v2787 = vunpack.c.h.b16 %v1557
        %v2788 = vunpack.c.l.b16 %v1558
        %v2789 = vunpack.c.h.b16 %v1558
        %v2790 = vunpack.c.l.b16 %v1559
        %v2791 = vunpack.c.h.b16 %v1559
        %v2792 = vunpack.c.l.b16 %v1560
        %v2793 = vunpack.c.h.b16 %v1560
        %v2794 = vunpack.c.l.b16 %v1561
        %v2795 = vunpack.c.h.b16 %v1561
        %v2796 = vunpack.c.l.b16 %v1562
        %v2797 = vunpack.c.h.b16 %v1562
        %v2798 = vunpack.c.l.b16 %v1563
        %v2799 = vunpack.c.h.b16 %v1563
        %v2800 = vunpack.c.l.b16 %v1564
        %v2801 = vunpack.c.h.b16 %v1564
        %v2802 = vunpack.c.l.b16 %v1565
        %v2803 = vunpack.c.h.b16 %v1565
        %v2804 = vunpack.c.l.b16 %v1566
        %v2805 = vunpack.c.h.b16 %v1566
        %v2806 = vunpack.c.l.b16 %v1567
        %v2807 = vunpack.c.h.b16 %v1567
        %v2808 = vunpack.c.l.b16 %v1568
        %v2809 = vunpack.c.h.b16 %v1568
        %v2810 = vunpack.c.l.b16 %v1569
        %v2811 = vunpack.c.h.b16 %v1569
        %v2812 = vunpack.c.l.b16 %v1570
        %v2813 = vunpack.c.h.b16 %v1570
        %v2814 = vunpack.c.l.b16 %v1571
        %v2815 = vunpack.c.h.b16 %v1571
        %v2816 = vunpack.c.l.b16 %v1572
        %v2817 = vunpack.c.h.b16 %v1572
        %v2818 = vunpack.c.l.b16 %v1573
        %v2819 = vunpack.c.h.b16 %v1573
        %v2820 = vunpack.c.l.b16 %v1574
        %v2821 = vunpack.c.h.b16 %v1574
        %v2822 = vunpack.c.l.b16 %v1575
        %v2823 = vunpack.c.h.b16 %v1575
        %v2824 = vunpack.c.l.b16 %v1576
        %v2825 = vunpack.c.h.b16 %v1576
        %v2826 = vunpack.c.l.b16 %v1577
        %v2827 = vunpack.c.h.b16 %v1577
        %v2828 = vunpack.c.l.b16 %v1578
        %v2829 = vunpack.c.h.b16 %v1578
        %v2830 = vunpack.c.l.b16 %v1579
        %v2831 = vunpack.c.h.b16 %v1579
        %v2832 = vunpack.c.l.b16 %v1580
        %v2833 = vunpack.c.h.b16 %v1580
        %v2834 = vunpack.c.l.b16 %v1581
        %v2835 = vunpack.c.h.b16 %v1581
        %v2836 = vunpack.c.l.b16 %v1582
        %v2837 = vunpack.c.h.b16 %v1582
        %v2838 = vunpack.c.l.b16 %v1583
        %v2839 = vunpack.c.h.b16 %v1583
        %v2840 = vunpack.c.l.b16 %v1584
        %v2841 = vunpack.c.h.b16 %v1584
        %v2842 = vunpack.c.l.b16 %v1585
        %v2843 = vunpack.c.h.b16 %v1585
        %v2844 = vunpack.c.l.b16 %v1586
        %v2845 = vunpack.c.h.b16 %v1586
        %v2846 = vunpack.c.l.b16 %v1587
        %v2847 = vunpack.c.h.b16 %v1587
        %v2848 = vunpack.c.l.b16 %v1588
        %v2849 = vunpack.c.h.b16 %v1588
        %v2850 = vunpack.c.l.b16 %v1589
        %v2851 = vunpack.c.h.b16 %v1589
        %v2852 = vunpack.c.l.b16 %v1590
        %v2853 = vunpack.c.h.b16 %v1590
        %v2854 = vunpack.c.l.b16 %v1591
        %v2855 = vunpack.c.h.b16 %v1591
        %v2856 = vunpack.c.l.b16 %v1592
        %v2857 = vunpack.c.h.b16 %v1592
        %v2858 = vunpack.c.l.b16 %v1593
        %v2859 = vunpack.c.h.b16 %v1593
        %v2860 = vunpack.c.l.b16 %v1594
        %v2861 = vunpack.c.h.b16 %v1594
        %v2862 = vunpack.c.l.b16 %v1595
        %v2863 = vunpack.c.h.b16 %v1595
        %v2864 = vunpack.c.l.b16 %v1596
        %v2865 = vunpack.c.h.b16 %v1596
        %v2866 = vunpack.c.l.b16 %v1597
        %v2867 = vunpack.c.h.b16 %v1597
        %v2868 = vunpack.c.l.b16 %v1598
        %v2869 = vunpack.c.h.b16 %v1598
        %v2870 = vunpack.c.l.b16 %v1599
        %v2871 = vunpack.c.h.b16 %v1599
        %v2872 = vunpack.c.l.b16 %v1600
        %v2873 = vunpack.c.h.b16 %v1600
        %v2874 = vunpack.c.l.b16 %v1601
        %v2875 = vunpack.c.h.b16 %v1601
        %v2876 = vunpack.c.l.b16 %v1602
        %v2877 = vunpack.c.h.b16 %v1602
        %v2878 = vunpack.c.l.b16 %v1603
        %v2879 = vunpack.c.h.b16 %v1603
        %v2880 = vunpack.c.l.b16 %v1604
        %v2881 = vunpack.c.h.b16 %v1604
        %v2882 = vunpack.c.l.b16 %v1605
        %v2883 = vunpack.c.h.b16 %v1605
        %v2884 = vunpack.c.l.b16 %v1606
        %v2885 = vunpack.c.h.b16 %v1606
        %v2886 = vunpack.c.l.b16 %v1607
        %v2887 = vunpack.c.h.b16 %v1607
        %v2888 = vunpack.c.l.b16 %v1608
        %v2889 = vunpack.c.h.b16 %v1608
        %v2890 = vunpack.c.l.b16 %v1609
        %v2891 = vunpack.c.h.b16 %v1609
        %v2892 = vunpack.c.l.b16 %v1610
        %v2893 = vunpack.c.h.b16 %v1610
        %v2894 = vunpack.c.l.b16 %v1611
        %v2895 = vunpack.c.h.b16 %v1611
        %v2896 = vunpack.c.l.b16 %v1612
        %v2897 = vunpack.c.h.b16 %v1612
        %v2898 = vunpack.c.l.b16 %v1613
        %v2899 = vunpack.c.h.b16 %v1613
        %v2900 = vunpack.c.l.b16 %v1614
        %v2901 = vunpack.c.h.b16 %v1614
        %v2902 = vunpack.c.l.b16 %v1615
        %v2903 = vunpack.c.h.b16 %v1615
        %v2904 = vunpack.c.l.b16 %v1616
        %v2905 = vunpack.c.h.b16 %v1616
        %v2906 = vunpack.c.l.b16 %v1617
        %v2907 = vunpack.c.h.b16 %v1617
        %v2908 = vunpack.c.l.b16 %v1618
        %v2909 = vunpack.c.h.b16 %v1618
        %v2910 = vunpack.c.l.b16 %v1619
        %v2911 = vunpack.c.h.b16 %v1619
        %v2912 = vunpack.c.l.b16 %v1620
        %v2913 = vunpack.c.h.b16 %v1620
        %v2914 = vunpack.c.l.b16 %v1621
        %v2915 = vunpack.c.h.b16 %v1621
        %v2916 = vunpack.c.l.b16 %v1622
        %v2917 = vunpack.c.h.b16 %v1622
        %v2918 = vunpack.c.l.b16 %v1623
        %v2919 = vunpack.c.h.b16 %v1623
        %v2920 = vunpack.c.l.b16 %v1624
        %v2921 = vunpack.c.h.b16 %v1624
        %v2922 = vunpack.c.l.b16 %v1625
        %v2923 = vunpack.c.h.b16 %v1625
        %v2924 = vunpack.c.l.b16 %v1626
        %v2925 = vunpack.c.h.b16 %v1626
        %v2926 = vunpack.c.l.b16 %v1627
        %v2927 = vunpack.c.h.b16 %v1627
        %v2928 = vunpack.c.l.b16 %v1628
        %v2929 = vunpack.c.h.b16 %v1628
        %v2930 = vunpack.c.l.b16 %v1629
        %v2931 = vunpack.c.h.b16 %v1629
        %v2932 = vunpack.c.l.b16 %v1630
        %v2933 = vunpack.c.h.b16 %v1630
        %v2934 = vunpack.c.l.b16 %v1631
        %v2935 = vunpack.c.h.b16 %v1631
        %v2936 = vunpack.c.l.b16 %v1632
        %v2937 = vunpack.c.h.b16 %v1632
        %v2938 = vunpack.c.l.b16 %v1633
        %v2939 = vunpack.c.h.b16 %v1633
        %v2940 = vunpack.c.l.b16 %v1634
        %v2941 = vunpack.c.h.b16 %v1634
        %v2942 = vunpack.c.l.b16 %v1635
        %v2943 = vunpack.c.h.b16 %v1635
        %v2944 = vunpack.c.l.b16 %v1636
        %v2945 = vunpack.c.h.b16 %v1636
        %v2946 = vunpack.c.l.b16 %v1637
        %v2947 = vunpack.c.h.b16 %v1637
        %v2948 = vunpack.c.l.b16 %v1638
        %v2949 = vunpack.c.h.b16 %v1638
        %v2950 = vunpack.c.l.b16 %v1639
        %v2951 = vunpack.c.h.b16 %v1639
        %v2952 = vunpack.c.l.b16 %v1640
        %v2953 = vunpack.c.h.b16 %v1640
        %v2954 = vunpack.c.l.b16 %v1641
        %v2955 = vunpack.c.h.b16 %v1641
        %v2956 = vunpack.c.l.b16 %v1642
        %v2957 = vunpack.c.h.b16 %v1642
        %v2958 = vunpack.c.l.b16 %v1643
        %v2959 = vunpack.c.h.b16 %v1643
        %v2960 = vunpack.c.l.b16 %v1644
        %v2961 = vunpack.c.h.b16 %v1644
        %v2962 = vunpack.c.l.b16 %v1645
        %v2963 = vunpack.c.h.b16 %v1645
        %v2964 = vunpack.c.l.b16 %v1646
        %v2965 = vunpack.c.h.b16 %v1646
        %v2966 = vunpack.c.l.b16 %v1647
        %v2967 = vunpack.c.h.b16 %v1647
        %v2968 = vunpack.c.l.b16 %v1648
        %v2969 = vunpack.c.h.b16 %v1648
        %v2970 = vunpack.c.l.b16 %v1649
        %v2971 = vunpack.c.h.b16 %v1649
        %v2972 = vunpack.c.l.b16 %v1650
        %v2973 = vunpack.c.h.b16 %v1650
        %v2974 = vunpack.c.l.b16 %v1651
        %v2975 = vunpack.c.h.b16 %v1651
        %v2976 = vunpack.c.l.b16 %v1652
        %v2977 = vunpack.c.h.b16 %v1652
        %v2978 = vunpack.c.l.b16 %v1653
        %v2979 = vunpack.c.h.b16 %v1653
        %v2980 = vunpack.c.l.b16 %v1654
        %v2981 = vunpack.c.h.b16 %v1654
        %v2982 = vunpack.c.l.b16 %v1655
        %v2983 = vunpack.c.h.b16 %v1655
        %v2984 = vunpack.c.l.b16 %v1656
        %v2985 = vunpack.c.h.b16 %v1656
        %v2986 = vunpack.c.l.b16 %v1657
        %v2987 = vunpack.c.h.b16 %v1657
        %v2988 = vunpack.c.l.b16 %v1658
        %v2989 = vunpack.c.h.b16 %v1658
        %v2990 = vunpack.c.l.b16 %v1659
        %v2991 = vunpack.c.h.b16 %v1659
        %v2992 = vunpack.c.l.b16 %v1660
        %v2993 = vunpack.c.h.b16 %v1660
        %v2994 = vunpack.c.l.b16 %v1661
        %v2995 = vunpack.c.h.b16 %v1661
        %v2996 = vunpack.c.l.b16 %v1662
        %v2997 = vunpack.c.h.b16 %v1662
        %v2998 = vunpack.c.l.b16 %v1663
        %v2999 = vunpack.c.h.b16 %v1663
        %v3000 = vunpack.c.l.b16 %v1664
        %v3001 = vunpack.c.h.b16 %v1664
        %v3002 = vunpack.c.l.b16 %v1665
        %v3003 = vunpack.c.h.b16 %v1665
        %v3004 = vunpack.c.l.b16 %v1666
        %v3005 = vunpack.c.h.b16 %v1666
        %v3006 = vunpack.c.l.b16 %v1667
        %v3007 = vunpack.c.h.b16 %v1667
        %v3008 = vunpack.c.l.b16 %v1668
        %v3009 = vunpack.c.h.b16 %v1668
        %v3010 = vunpack.c.l.b16 %v1669
        %v3011 = vunpack.c.h.b16 %v1669
        %v3012 = vunpack.c.l.b16 %v1670
        %v3013 = vunpack.c.h.b16 %v1670
        %v3014 = vunpack.c.l.b16 %v1671
        %v3015 = vunpack.c.h.b16 %v1671
        %v3016 = vunpack.c.l.b16 %v1672
        %v3017 = vunpack.c.h.b16 %v1672
        %v3018 = vunpack.c.l.b16 %v1673
        %v3019 = vunpack.c.h.b16 %v1673
        %v3020 = vunpack.c.l.b16 %v1674
        %v3021 = vunpack.c.h.b16 %v1674
        %v3022 = vunpack.c.l.b16 %v1675
        %v3023 = vunpack.c.h.b16 %v1675
        %v3024 = vunpack.c.l.b16 %v1676
        %v3025 = vunpack.c.h.b16 %v1676
        %v3026 = vunpack.c.l.b16 %v1677
        %v3027 = vunpack.c.h.b16 %v1677
        %v3028 = vunpack.c.l.b16 %v1678
        %v3029 = vunpack.c.h.b16 %v1678
        %v3030 = vunpack.c.l.b16 %v1679
        %v3031 = vunpack.c.h.b16 %v1679
        %v3032 = vunpack.c.l.b16 %v1680
        %v3033 = vunpack.c.h.b16 %v1680
        %v3034 = vunpack.c.l.b16 %v1681
        %v3035 = vunpack.c.h.b16 %v1681
        %v3036 = vunpack.c.l.b16 %v1682
        %v3037 = vunpack.c.h.b16 %v1682
        %v3038 = vunpack.c.l.b16 %v1683
        %v3039 = vunpack.c.h.b16 %v1683
        %v3040 = vunpack.c.l.b16 %v1684
        %v3041 = vunpack.c.h.b16 %v1684
        %v3042 = vunpack.c.l.b16 %v1685
        %v3043 = vunpack.c.h.b16 %v1685
        %v3044 = vunpack.c.l.b16 %v1686
        %v3045 = vunpack.c.h.b16 %v1686
        %v3046 = vunpack.c.l.b16 %v1687
        %v3047 = vunpack.c.h.b16 %v1687
        %v3048 = vunpack.c.l.b16 %v1688
        %v3049 = vunpack.c.h.b16 %v1688
        %v3050 = vunpack.c.l.b16 %v1689
        %v3051 = vunpack.c.h.b16 %v1689
        %v3052 = vunpack.c.l.b16 %v1690
        %v3053 = vunpack.c.h.b16 %v1690
        %v3054 = vunpack.c.l.b16 %v1691
        %v3055 = vunpack.c.h.b16 %v1691
        %v3056 = vunpack.c.l.b16 %v1692
        %v3057 = vunpack.c.h.b16 %v1692
        %v3058 = vunpack.c.l.b16 %v1693
        %v3059 = vunpack.c.h.b16 %v1693
        %v3060 = vunpack.c.l.b16 %v1694
        %v3061 = vunpack.c.h.b16 %v1694
        %v3062 = vunpack.c.l.b16 %v1695
        %v3063 = vunpack.c.h.b16 %v1695
        %v3064 = vunpack.c.l.b16 %v1696
        %v3065 = vunpack.c.h.b16 %v1696
        %v3066 = vunpack.c.l.b16 %v1697
        %v3067 = vunpack.c.h.b16 %v1697
        %v3068 = vunpack.c.l.b16 %v1698
        %v3069 = vunpack.c.h.b16 %v1698
        %v3070 = vunpack.c.l.b16 %v1699
        %v3071 = vunpack.c.h.b16 %v1699
        %v3072 = vunpack.c.l.b16 %v1700
        %v3073 = vunpack.c.h.b16 %v1700
        %v3074 = vunpack.c.l.b16 %v1701
        %v3075 = vunpack.c.h.b16 %v1701
        %v3076 = vunpack.c.l.b16 %v1702
        %v3077 = vunpack.c.h.b16 %v1702
        %v3078 = vunpack.c.l.b16 %v1703
        %v3079 = vunpack.c.h.b16 %v1703
        %v3080 = vunpack.c.l.b16 %v1704
        %v3081 = vunpack.c.h.b16 %v1704
        %v3082 = vunpack.c.l.b16 %v1705
        %v3083 = vunpack.c.h.b16 %v1705
        %v3084 = vunpack.c.l.b16 %v1706
        %v3085 = vunpack.c.h.b16 %v1706
        %v3086 = vunpack.c.l.b16 %v1707
        %v3087 = vunpack.c.h.b16 %v1707
        %v3088 = vunpack.c.l.b16 %v1708
        %v3089 = vunpack.c.h.b16 %v1708
        %v3090 = vunpack.c.l.b16 %v1709
        %v3091 = vunpack.c.h.b16 %v1709
        %v3092 = vunpack.c.l.b16 %v1710
        %v3093 = vunpack.c.h.b16 %v1710
        %v3094 = vunpack.c.l.b16 %v1711
        %v3095 = vunpack.c.h.b16 %v1711
        %v3096 = vunpack.c.l.b16 %v1712
        %v3097 = vunpack.c.h.b16 %v1712
        %v3098 = vunpack.c.l.b16 %v1713
        %v3099 = vunpack.c.h.b16 %v1713
        %v3100 = vunpack.c.l.b16 %v1714
        %v3101 = vunpack.c.h.b16 %v1714
        %v3102 = vunpack.c.l.b16 %v1715
        %v3103 = vunpack.c.h.b16 %v1715
        %v3104 = vunpack.c.l.b16 %v1716
        %v3105 = vunpack.c.h.b16 %v1716
        %v3106 = vunpack.c.l.b16 %v1717
        %v3107 = vunpack.c.h.b16 %v1717
        %v3108 = vunpack.c.l.b16 %v1718
        %v3109 = vunpack.c.h.b16 %v1718
        %v3110 = vunpack.c.l.b16 %v1719
        %v3111 = vunpack.c.h.b16 %v1719
        %v3112 = vunpack.c.l.b16 %v1720
        %v3113 = vunpack.c.h.b16 %v1720
        %v3114 = vunpack.c.l.b16 %v1721
        %v3115 = vunpack.c.h.b16 %v1721
        %v3116 = vunpack.c.l.b16 %v1722
        %v3117 = vunpack.c.h.b16 %v1722
        %v3118 = vunpack.c.l.b16 %v1723
        %v3119 = vunpack.c.h.b16 %v1723
        %v3120 = vunpack.c.l.b16 %v1724
        %v3121 = vunpack.c.h.b16 %v1724
        %v3122 = vunpack.c.l.b16 %v1725
        %v3123 = vunpack.c.h.b16 %v1725
        %v3124 = vunpack.c.l.b16 %v1726
        %v3125 = vunpack.c.h.b16 %v1726
        %v3126 = vunpack.c.l.b16 %v1727
        %v3127 = vunpack.c.h.b16 %v1727
        %v3128 = vunpack.c.l.b16 %v1728
        %v3129 = vunpack.c.h.b16 %v1728
        %v3130 = vunpack.c.l.b16 %v1729
        %v3131 = vunpack.c.h.b16 %v1729
        %v3132 = vunpack.c.l.b16 %v1730
        %v3133 = vunpack.c.h.b16 %v1730
        %v3134 = vunpack.c.l.b16 %v1731
        %v3135 = vunpack.c.h.b16 %v1731
        %v3136 = vunpack.c.l.b16 %v1732
        %v3137 = vunpack.c.h.b16 %v1732
        %v3138 = vunpack.c.l.b16 %v1733
        %v3139 = vunpack.c.h.b16 %v1733
        %v3140 = vunpack.c.l.b16 %v1734
        %v3141 = vunpack.c.h.b16 %v1734
        %v3142 = vunpack.c.l.b16 %v1735
        %v3143 = vunpack.c.h.b16 %v1735
        %v3144 = vunpack.c.l.b16 %v1736
        %v3145 = vunpack.c.h.b16 %v1736
        %v3146 = vunpack.c.l.b16 %v1737
        %v3147 = vunpack.c.h.b16 %v1737
        %v3148 = vunpack.c.l.b16 %v1738
        %v3149 = vunpack.c.h.b16 %v1738
        %v3150 = vunpack.c.l.b16 %v1739
        %v3151 = vunpack.c.h.b16 %v1739
        %v3152 = vunpack.c.l.b16 %v1740
        %v3153 = vunpack.c.h.b16 %v1740
        %v3154 = vunpack.c.l.b16 %v1741
        %v3155 = vunpack.c.h.b16 %v1741
        %v3156 = vunpack.c.l.b16 %v1742
        %v3157 = vunpack.c.h.b16 %v1742
        %v3158 = vunpack.c.l.b16 %v1743
        %v3159 = vunpack.c.h.b16 %v1743
        %v3160 = vunpack.c.l.b16 %v1744
        %v3161 = vunpack.c.h.b16 %v1744
        %v3162 = vunpack.c.l.b16 %v1745
        %v3163 = vunpack.c.h.b16 %v1745
        %v3164 = vunpack.c.l.b16 %v1746
        %v3165 = vunpack.c.h.b16 %v1746
        %v3166 = vunpack.c.l.b16 %v1747
        %v3167 = vunpack.c.h.b16 %v1747
        %v3168 = vunpack.c.l.b16 %v1748
        %v3169 = vunpack.c.h.b16 %v1748
        %v3170 = vunpack.c.l.b16 %v1749
        %v3171 = vunpack.c.h.b16 %v1749
        %v3172 = vunpack.c.l.b16 %v1750
        %v3173 = vunpack.c.h.b16 %v1750
        %v3174 = vunpack.c.l.b16 %v1751
        %v3175 = vunpack.c.h.b16 %v1751
        %v3176 = vunpack.c.l.b16 %v1752
        %v3177 = vunpack.c.h.b16 %v1752
        %v3178 = vunpack.c.l.b16 %v1753
        %v3179 = vunpack.c.h.b16 %v1753
        %v3180 = vunpack.c.l.b16 %v1754
        %v3181 = vunpack.c.h.b16 %v1754
        %v3182 = vunpack.c.l.b16 %v1755
        %v3183 = vunpack.c.h.b16 %v1755
        %v3184 = vunpack.c.l.b16 %v1756
        %v3185 = vunpack.c.h.b16 %v1756
        %v3186 = vunpack.c.l.b16 %v1757
        %v3187 = vunpack.c.h.b16 %v1757
        %v3188 = vunpack.c.l.b16 %v1758
        %v3189 = vunpack.c.h.b16 %v1758
        %v3190 = vunpack.c.l.b16 %v1759
        %v3191 = vunpack.c.h.b16 %v1759
        %v3192 = vunpack.c.l.b16 %v1760
        %v3193 = vunpack.c.h.b16 %v1760
        %v3194 = vunpack.c.l.b16 %v1761
        %v3195 = vunpack.c.h.b16 %v1761
        %v3196 = vunpack.c.l.b16 %v1762
        %v3197 = vunpack.c.h.b16 %v1762
        %v3198 = vunpack.c.l.b16 %v1763
        %v3199 = vunpack.c.h.b16 %v1763
        %v3200 = vunpack.c.l.b16 %v1764
        %v3201 = vunpack.c.h.b16 %v1764
        %v3202 = vunpack.c.l.b16 %v1765
        %v3203 = vunpack.c.h.b16 %v1765
        %v3204 = vunpack.c.l.b16 %v1766
        %v3205 = vunpack.c.h.b16 %v1766
        %v3206 = vunpack.c.l.b16 %v1767
        %v3207 = vunpack.c.h.b16 %v1767
        %v3208 = vunpack.c.l.b16 %v1768
        %v3209 = vunpack.c.h.b16 %v1768
        %v3210 = vunpack.c.l.b16 %v1769
        %v3211 = vunpack.c.h.b16 %v1769
        %v3212 = vunpack.c.l.b16 %v1770
        %v3213 = vunpack.c.h.b16 %v1770
        %v3214 = vunpack.c.l.b16 %v1771
        %v3215 = vunpack.c.h.b16 %v1771
        %v3216 = vunpack.c.l.b16 %v1772
        %v3217 = vunpack.c.h.b16 %v1772
        %v3218 = vunpack.c.l.b16 %v1773
        %v3219 = vunpack.c.h.b16 %v1773
        %v3220 = vunpack.c.l.b16 %v1774
        %v3221 = vunpack.c.h.b16 %v1774
        %v3222 = vunpack.c.l.b16 %v1775
        %v3223 = vunpack.c.h.b16 %v1775
        %v3224 = vunpack.c.l.b16 %v1776
        %v3225 = vunpack.c.h.b16 %v1776
        %v3226 = vunpack.c.l.b16 %v1777
        %v3227 = vunpack.c.h.b16 %v1777
        %v3228 = vunpack.c.l.b16 %v1778
        %v3229 = vunpack.c.h.b16 %v1778
        %v3230 = vunpack.c.l.b16 %v1779
        %v3231 = vunpack.c.h.b16 %v1779
        %v3232 = vunpack.c.l.b16 %v1780
        %v3233 = vunpack.c.h.b16 %v1780
        %v3234 = vunpack.c.l.b16 %v1781
        %v3235 = vunpack.c.h.b16 %v1781
        %v3236 = vunpack.c.l.b16 %v1782
        %v3237 = vunpack.c.h.b16 %v1782
        %v3238 = vunpack.c.l.b16 %v1783
        %v3239 = vunpack.c.h.b16 %v1783
        %v3240 = vunpack.c.l.b16 %v1784
        %v3241 = vunpack.c.h.b16 %v1784
        %v3242 = vunpack.c.l.b16 %v1785
        %v3243 = vunpack.c.h.b16 %v1785
        %v3244 = vunpack.c.l.b16 %v1786
        %v3245 = vunpack.c.h.b16 %v1786
        %v3246 = vunpack.c.l.b16 %v1787
        %v3247 = vunpack.c.h.b16 %v1787
        %v3248 = vunpack.c.l.b16 %v1788
        %v3249 = vunpack.c.h.b16 %v1788
        %v3250 = vunpack.c.l.b16 %v1789
        %v3251 = vunpack.c.h.b16 %v1789
        %v3252 = vunpack.c.l.b16 %v1790
        %v3253 = vunpack.c.h.b16 %v1790
        %v3254 = vunpack.c.l.b16 %v1791
        %v3255 = vunpack.c.h.b16 %v1791
        %v3256 = vunpack.c.l.b16 %v1792
        %v3257 = vunpack.c.h.b16 %v1792
        %v3258 = vunpack.c.l.b16 %v1793
        %v3259 = vunpack.c.h.b16 %v1793
        %v3260 = vunpack.c.l.b16 %v1794
        %v3261 = vunpack.c.h.b16 %v1794
        %v3262 = vunpack.c.l.b16 %v1795
        %v3263 = vunpack.c.h.b16 %v1795
        %v3264 = vunpack.c.l.b16 %v1796
        %v3265 = vunpack.c.h.b16 %v1796
        %v3266 = vunpack.c.l.b16 %v1797
        %v3267 = vunpack.c.h.b16 %v1797
        %v3268 = vunpack.c.l.b16 %v1798
        %v3269 = vunpack.c.h.b16 %v1798
        %v3270 = vunpack.c.l.b16 %v1799
        %v3271 = vunpack.c.h.b16 %v1799
        %v3272 = vunpack.c.l.b16 %v1800
        %v3273 = vunpack.c.h.b16 %v1800
        %v3274 = vunpack.c.l.b16 %v1801
        %v3275 = vunpack.c.h.b16 %v1801
        %v3276 = vunpack.c.l.b16 %v1802
        %v3277 = vunpack.c.h.b16 %v1802
        %v3278 = vunpack.c.l.b16 %v1803
        %v3279 = vunpack.c.h.b16 %v1803
        %v3280 = vunpack.c.l.b16 %v1804
        %v3281 = vunpack.c.h.b16 %v1804
        %v3282 = vunpack.c.l.b16 %v1805
        %v3283 = vunpack.c.h.b16 %v1805
        %v3284 = vunpack.c.l.b16 %v1806
        %v3285 = vunpack.c.h.b16 %v1806
        %v3286 = vunpack.c.l.b16 %v1807
        %v3287 = vunpack.c.h.b16 %v1807
        %v3288 = vunpack.c.l.b16 %v1808
        %v3289 = vunpack.c.h.b16 %v1808
        %v3290 = vunpack.c.l.b16 %v1809
        %v3291 = vunpack.c.h.b16 %v1809
        %v3292 = vunpack.c.l.b16 %v1810
        %v3293 = vunpack.c.h.b16 %v1810
        %v3294 = vunpack.c.l.b16 %v1811
        %v3295 = vunpack.c.h.b16 %v1811
        %v3296 = vunpack.c.l.b16 %v1812
        %v3297 = vunpack.c.h.b16 %v1812
        %v3298 = vunpack.c.l.b16 %v1813
        %v3299 = vunpack.c.h.b16 %v1813
        %v3300 = vunpack.c.l.b16 %v1814
        %v3301 = vunpack.c.h.b16 %v1814
        %v3302 = vunpack.c.l.b16 %v1815
        %v3303 = vunpack.c.h.b16 %v1815
        %v3304 = vunpack.c.l.b16 %v1816
        %v3305 = vunpack.c.h.b16 %v1816
        %v3306 = vunpack.c.l.b16 %v1817
        %v3307 = vunpack.c.h.b16 %v1817
        %v3308 = vunpack.c.l.b16 %v1818
        %v3309 = vunpack.c.h.b16 %v1818
        %v3310 = vunpack.c.l.b16 %v1819
        %v3311 = vunpack.c.h.b16 %v1819
        %v3312 = vunpack.c.l.b16 %v1820
        %v3313 = vunpack.c.h.b16 %v1820
        %v3314 = vunpack.c.l.b16 %v1821
        %v3315 = vunpack.c.h.b16 %v1821
        %v3316 = vunpack.c.l.b16 %v1822
        %v3317 = vunpack.c.h.b16 %v1822
        %v3318 = vunpack.c.l.b16 %v1823
        %v3319 = vunpack.c.h.b16 %v1823
        %v3320 = vunpack.c.l.b16 %v1824
        %v3321 = vunpack.c.h.b16 %v1824
        %v3322 = vunpack.c.l.b16 %v1825
        %v3323 = vunpack.c.h.b16 %v1825
        %v3324 = vunpack.c.l.b16 %v1826
        %v3325 = vunpack.c.h.b16 %v1826
        %v3326 = vunpack.c.l.b16 %v1827
        %v3327 = vunpack.c.h.b16 %v1827
        %v3328 = vunpack.c.l.b16 %v1828
        %v3329 = vunpack.c.h.b16 %v1828
        %v3330 = vunpack.c.l.b16 %v1829
        %v3331 = vunpack.c.h.b16 %v1829
        %v3332 = vunpack.c.l.b16 %v1830
        %v3333 = vunpack.c.h.b16 %v1830
        %v3334 = vunpack.c.l.b16 %v1831
        %v3335 = vunpack.c.h.b16 %v1831
        %v3336 = vunpack.c.l.b16 %v1832
        %v3337 = vunpack.c.h.b16 %v1832
        %v3338 = vunpack.c.l.b16 %v1833
        %v3339 = vunpack.c.h.b16 %v1833
        %v3340 = vunpack.c.l.b16 %v1834
        %v3341 = vunpack.c.h.b16 %v1834
        %v3342 = vunpack.c.l.b16 %v1835
        %v3343 = vunpack.c.h.b16 %v1835
        %v3344 = vunpack.c.l.b16 %v1836
        %v3345 = vunpack.c.h.b16 %v1836
        %v3346 = vunpack.c.l.b16 %v1837
        %v3347 = vunpack.c.h.b16 %v1837
        %v3348 = vunpack.c.l.b16 %v1838
        %v3349 = vunpack.c.h.b16 %v1838
        %v3350 = vunpack.c.l.b16 %v1839
        %v3351 = vunpack.c.h.b16 %v1839
        %v3352 = vunpack.c.l.b16 %v1840
        %v3353 = vunpack.c.h.b16 %v1840
        %v3354 = vunpack.c.l.b16 %v1841
        %v3355 = vunpack.c.h.b16 %v1841
        %v3356 = vunpack.c.l.b16 %v1842
        %v3357 = vunpack.c.h.b16 %v1842
        %v3358 = vunpack.c.l.b16 %v1843
        %v3359 = vunpack.c.h.b16 %v1843
        %v3360 = vunpack.c.l.b16 %v1844
        %v3361 = vunpack.c.h.b16 %v1844
        %v3362 = vunpack.c.l.b16 %v1845
        %v3363 = vunpack.c.h.b16 %v1845
        %v3364 = vunpack.c.l.b16 %v1846
        %v3365 = vunpack.c.h.b16 %v1846
        %v3366 = vunpack.c.l.b16 %v1847
        %v3367 = vunpack.c.h.b16 %v1847
        %v3368 = vunpack.c.l.b16 %v1848
        %v3369 = vunpack.c.h.b16 %v1848
        %v3370 = vunpack.c.l.b16 %v1849
        %v3371 = vunpack.c.h.b16 %v1849
        %v3372 = vunpack.c.l.b16 %v1850
        %v3373 = vunpack.c.h.b16 %v1850
        %v3374 = vunpack.c.l.b16 %v1851
        %v3375 = vunpack.c.h.b16 %v1851
        %v3376 = vunpack.c.l.b16 %v1852
        %v3377 = vunpack.c.h.b16 %v1852
        %v3378 = vunpack.c.l.b16 %v1853
        %v3379 = vunpack.c.h.b16 %v1853
        %v3380 = vunpack.c.l.b16 %v1854
        %v3381 = vunpack.c.h.b16 %v1854
        %v3382 = vunpack.c.l.b16 %v1855
        %v3383 = vunpack.c.h.b16 %v1855
        %v3384 = vunpack.c.l.b16 %v1856
        %v3385 = vunpack.c.h.b16 %v1856
        %v3386 = vunpack.c.l.b16 %v1857
        %v3387 = vunpack.c.h.b16 %v1857
        %v3388 = vunpack.c.l.b16 %v1858
        %v3389 = vunpack.c.h.b16 %v1858
        %v3390 = vunpack.c.l.b16 %v1859
        %v3391 = vunpack.c.h.b16 %v1859
        %v3392 = vunpack.c.l.b16 %v1860
        %v3393 = vunpack.c.h.b16 %v1860
        %v3394 = vunpack.c.l.b16 %v1861
        %v3395 = vunpack.c.h.b16 %v1861
        %v3396 = vunpack.c.l.b16 %v1862
        %v3397 = vunpack.c.h.b16 %v1862
        %v3398 = vunpack.c.l.b16 %v1863
        %v3399 = vunpack.c.h.b16 %v1863
        %v3400 = vunpack.c.l.b16 %v1864
        %v3401 = vunpack.c.h.b16 %v1864
        %v3402 = vunpack.c.l.b16 %v1865
        %v3403 = vunpack.c.h.b16 %v1865
        %v3404 = vunpack.c.l.b16 %v1866
        %v3405 = vunpack.c.h.b16 %v1866
        %v3406 = vunpack.c.l.b16 %v1867
        %v3407 = vunpack.c.h.b16 %v1867
        %v3408 = vunpack.c.l.b16 %v1868
        %v3409 = vunpack.c.h.b16 %v1868
        %v3410 = vunpack.c.l.b16 %v1869
        %v3411 = vunpack.c.h.b16 %v1869
        %v3412 = vunpack.c.l.b16 %v1870
        %v3413 = vunpack.c.h.b16 %v1870
        %v3414 = vunpack.c.l.b16 %v1871
        %v3415 = vunpack.c.h.b16 %v1871
        %v3416 = vunpack.c.l.b16 %v1872
        %v3417 = vunpack.c.h.b16 %v1872
        %v3418 = vunpack.c.l.b16 %v1873
        %v3419 = vunpack.c.h.b16 %v1873
        %v3420 = vunpack.c.l.b16 %v1874
        %v3421 = vunpack.c.h.b16 %v1874
        %v3422 = vunpack.c.l.b16 %v1875
        %v3423 = vunpack.c.h.b16 %v1875
        %v3424 = vunpack.c.l.b16 %v1876
        %v3425 = vunpack.c.h.b16 %v1876
        %v3426 = vunpack.c.l.b16 %v1877
        %v3427 = vunpack.c.h.b16 %v1877
        %v3428 = vunpack.c.l.b16 %v1878
        %v3429 = vunpack.c.h.b16 %v1878
        %v3430 = vunpack.c.l.b16 %v1879
        %v3431 = vunpack.c.h.b16 %v1879
        %v3432 = vunpack.c.l.b16 %v1880
        %v3433 = vunpack.c.h.b16 %v1880
        %v3434 = vunpack.c.l.b16 %v1881
        %v3435 = vunpack.c.h.b16 %v1881
        %v3436 = vunpack.c.l.b16 %v1882
        %v3437 = vunpack.c.h.b16 %v1882
        %v3438 = vunpack.c.l.b16 %v1883
        %v3439 = vunpack.c.h.b16 %v1883
        %v3440 = vunpack.c.l.b16 %v1884
        %v3441 = vunpack.c.h.b16 %v1884
        %v3442 = vunpack.c.l.b16 %v1885
        %v3443 = vunpack.c.h.b16 %v1885
        %v3444 = vunpack.c.l.b16 %v1886
        %v3445 = vunpack.c.h.b16 %v1886
        %v3446 = vunpack.c.l.b16 %v1887
        %v3447 = vunpack.c.h.b16 %v1887
        %v3448 = vunpack.c.l.b16 %v1888
        %v3449 = vunpack.c.h.b16 %v1888
        %v3450 = vunpack.c.l.b16 %v1889
        %v3451 = vunpack.c.h.b16 %v1889
        %v3452 = vunpack.c.l.b16 %v1890
        %v3453 = vunpack.c.h.b16 %v1890
        %v3454 = vunpack.c.l.b16 %v1891
        %v3455 = vunpack.c.h.b16 %v1891
        %v3456 = vunpack.c.l.b16 %v1892
        %v3457 = vunpack.c.h.b16 %v1892
        %v3458 = vunpack.c.l.b16 %v1893
        %v3459 = vunpack.c.h.b16 %v1893
        %v3460 = vunpack.c.l.b16 %v1894
        %v3461 = vunpack.c.h.b16 %v1894
        %v3462 = vunpack.c.l.b16 %v1895
        %v3463 = vunpack.c.h.b16 %v1895
        %v3464 = vunpack.c.l.b16 %v1896
        %v3465 = vunpack.c.h.b16 %v1896
        %v3466 = vunpack.c.l.b16 %v1897
        %v3467 = vunpack.c.h.b16 %v1897
        %v3468 = vunpack.c.l.b16 %v1898
        %v3469 = vunpack.c.h.b16 %v1898
        %v3470 = vunpack.c.l.b16 %v1899
        %v3471 = vunpack.c.h.b16 %v1899
        %v3472 = vunpack.c.l.b16 %v1900
        %v3473 = vunpack.c.h.b16 %v1900
        %v3474 = vunpack.c.l.b16 %v1901
        %v3475 = vunpack.c.h.b16 %v1901
        %v3476 = vunpack.c.l.b16 %v1902
        %v3477 = vunpack.c.h.b16 %v1902
        %v3478 = vunpack.c.l.b16 %v1903
        %v3479 = vunpack.c.h.b16 %v1903
        %v3480 = vunpack.c.l.b16 %v1904
        %v3481 = vunpack.c.h.b16 %v1904
        %v3482 = vunpack.c.l.b16 %v1905
        %v3483 = vunpack.c.h.b16 %v1905
        %v3484 = vpack.c.b16 %v2468, %v2460
        %v3485 = vpack.c.b16 %v2469, %v2461
        %v3486 = vpack.c.b16 %v2470, %v2462
        %v3487 = vpack.c.b16 %v2471, %v2463
        %v3488 = vpack.c.b16 %v2472, %v2464
        %v3489 = vpack.c.b16 %v2473, %v2465
        %v3490 = vpack.c.b16 %v2474, %v2466
        %v3491 = vpack.c.b16 %v2475, %v2467
        %v3492 = vpack.c.b16 %v2484, %v2476
        %v3493 = vpack.c.b16 %v2485, %v2477
        %v3494 = vpack.c.b16 %v2486, %v2478
        %v3495 = vpack.c.b16 %v2487, %v2479
        %v3496 = vpack.c.b16 %v2488, %v2480
        %v3497 = vpack.c.b16 %v2489, %v2481
        %v3498 = vpack.c.b16 %v2490, %v2482
        %v3499 = vpack.c.b16 %v2491, %v2483
        %v3500 = vpack.c.b16 %v2500, %v2492
        %v3501 = vpack.c.b16 %v2501, %v2493
        %v3502 = vpack.c.b16 %v2502, %v2494
        %v3503 = vpack.c.b16 %v2503, %v2495
        %v3504 = vpack.c.b16 %v2504, %v2496
        %v3505 = vpack.c.b16 %v2505, %v2497
        %v3506 = vpack.c.b16 %v2506, %v2498
        %v3507 = vpack.c.b16 %v2507, %v2499
        %v3508 = vpack.c.b16 %v2516, %v2508
        %v3509 = vpack.c.b16 %v2517, %v2509
        %v3510 = vpack.c.b16 %v2518, %v2510
        %v3511 = vpack.c.b16 %v2519, %v2511
        %v3512 = vpack.c.b16 %v2520, %v2512
        %v3513 = vpack.c.b16 %v2521, %v2513
        %v3514 = vpack.c.b16 %v2522, %v2514
        %v3515 = vpack.c.b16 %v2523, %v2515
        %v3516 = vpack.c.b16 %v2532, %v2524
        %v3517 = vpack.c.b16 %v2533, %v2525
        %v3518 = vpack.c.b16 %v2534, %v2526
        %v3519 = vpack.c.b16 %v2535, %v2527
        %v3520 = vpack.c.b16 %v2536, %v2528
        %v3521 = vpack.c.b16 %v2537, %v2529
        %v3522 = vpack.c.b16 %v2538, %v2530
        %v3523 = vpack.c.b16 %v2539, %v2531
        %v3524 = vpack.c.b16 %v2548, %v2540
        %v3525 = vpack.c.b16 %v2549, %v2541
        %v3526 = vpack.c.b16 %v2550, %v2542
        %v3527 = vpack.c.b16 %v2551, %v2543
        %v3528 = vpack.c.b16 %v2552, %v2544
        %v3529 = vpack.c.b16 %v2553, %v2545
        %v3530 = vpack.c.b16 %v2554, %v2546
        %v3531 = vpack.c.b16 %v2555, %v2547
        %v3532 = vpack.c.b16 %v2564, %v2556
        %v3533 = vpack.c.b16 %v2565, %v2557
        %v3534 = vpack.c.b16 %v2566, %v2558
        %v3535 = vpack.c.b16 %v2567, %v2559
        %v3536 = vpack.c.b16 %v2568, %v2560
        %v3537 = vpack.c.b16 %v2569, %v2561
        %v3538 = vpack.c.b16 %v2570, %v2562
        %v3539 = vpack.c.b16 %v2571, %v2563
        %v3540 = vpack.c.b16 %v2580, %v2572
        %v3541 = vpack.c.b16 %v2581, %v2573
        %v3542 = vpack.c.b16 %v2582, %v2574
        %v3543 = vpack.c.b16 %v2583, %v2575
        %v3544 = vpack.c.b16 %v2584, %v2576
        %v3545 = vpack.c.b16 %v2585, %v2577
        %v3546 = vpack.c.b16 %v2586, %v2578
        %v3547 = vpack.c.b16 %v2587, %v2579
        %v3548 = vpack.c.b16 %v2596, %v2588
        %v3549 = vpack.c.b16 %v2597, %v2589
        %v3550 = vpack.c.b16 %v2598, %v2590
        %v3551 = vpack.c.b16 %v2599, %v2591
        %v3552 = vpack.c.b16 %v2600, %v2592
        %v3553 = vpack.c.b16 %v2601, %v2593
        %v3554 = vpack.c.b16 %v2602, %v2594
        %v3555 = vpack.c.b16 %v2603, %v2595
        %v3556 = vpack.c.b16 %v2612, %v2604
        %v3557 = vpack.c.b16 %v2613, %v2605
        %v3558 = vpack.c.b16 %v2614, %v2606
        %v3559 = vpack.c.b16 %v2615, %v2607
        %v3560 = vpack.c.b16 %v2616, %v2608
        %v3561 = vpack.c.b16 %v2617, %v2609
        %v3562 = vpack.c.b16 %v2618, %v2610
        %v3563 = vpack.c.b16 %v2619, %v2611
        %v3564 = vpack.c.b16 %v2628, %v2620
        %v3565 = vpack.c.b16 %v2629, %v2621
        %v3566 = vpack.c.b16 %v2630, %v2622
        %v3567 = vpack.c.b16 %v2631, %v2623
        %v3568 = vpack.c.b16 %v2632, %v2624
        %v3569 = vpack.c.b16 %v2633, %v2625
        %v3570 = vpack.c.b16 %v2634, %v2626
        %v3571 = vpack.c.b16 %v2635, %v2627
        %v3572 = vpack.c.b16 %v2644, %v2636
        %v3573 = vpack.c.b16 %v2645, %v2637
        %v3574 = vpack.c.b16 %v2646, %v2638
        %v3575 = vpack.c.b16 %v2647, %v2639
        %v3576 = vpack.c.b16 %v2648, %v2640
        %v3577 = vpack.c.b16 %v2649, %v2641
        %v3578 = vpack.c.b16 %v2650, %v2642
        %v3579 = vpack.c.b16 %v2651, %v2643
        %v3580 = vpack.c.b16 %v2660, %v2652
        %v3581 = vpack.c.b16 %v2661, %v2653
        %v3582 = vpack.c.b16 %v2662, %v2654
        %v3583 = vpack.c.b16 %v2663, %v2655
        %v3584 = vpack.c.b16 %v2664, %v2656
        %v3585 = vpack.c.b16 %v2665, %v2657
        %v3586 = vpack.c.b16 %v2666, %v2658
        %v3587 = vpack.c.b16 %v2667, %v2659
        %v3588 = vpack.c.b16 %v2676, %v2668
        %v3589 = vpack.c.b16 %v2677, %v2669
        %v3590 = vpack.c.b16 %v2678, %v2670
        %v3591 = vpack.c.b16 %v2679, %v2671
        %v3592 = vpack.c.b16 %v2680, %v2672
        %v3593 = vpack.c.b16 %v2681, %v2673
        %v3594 = vpack.c.b16 %v2682, %v2674
        %v3595 = vpack.c.b16 %v2683, %v2675
        %v3596 = vpack.c.b16 %v2692, %v2684
        %v3597 = vpack.c.b16 %v2693, %v2685
        %v3598 = vpack.c.b16 %v2694, %v2686
        %v3599 = vpack.c.b16 %v2695, %v2687
        %v3600 = vpack.c.b16 %v2696, %v2688
        %v3601 = vpack.c.b16 %v2697, %v2689
        %v3602 = vpack.c.b16 %v2698, %v2690
        %v3603 = vpack.c.b16 %v2699, %v2691
        %v3604 = vpack.c.b16 %v2708, %v2700
        %v3605 = vpack.c.b16 %v2709, %v2701
        %v3606 = vpack.c.b16 %v2710, %v2702
        %v3607 = vpack.c.b16 %v2711, %v2703
        %v3608 = vpack.c.b16 %v2712, %v2704
        %v3609 = vpack.c.b16 %v2713, %v2705
        %v3610 = vpack.c.b16 %v2714, %v2706
        %v3611 = vpack.c.b16 %v2715, %v2707
        %v3612 = vpack.c.b16 %v2724, %v2716
        %v3613 = vpack.c.b16 %v2725, %v2717
        %v3614 = vpack.c.b16 %v2726, %v2718
        %v3615 = vpack.c.b16 %v2727, %v2719
        %v3616 = vpack.c.b16 %v2728, %v2720
        %v3617 = vpack.c.b16 %v2729, %v2721
        %v3618 = vpack.c.b16 %v2730, %v2722
        %v3619 = vpack.c.b16 %v2731, %v2723
        %v3620 = vpack.c.b16 %v2740, %v2732
        %v3621 = vpack.c.b16 %v2741, %v2733
        %v3622 = vpack.c.b16 %v2742, %v2734
        %v3623 = vpack.c.b16 %v2743, %v2735
        %v3624 = vpack.c.b16 %v2744, %v2736
        %v3625 = vpack.c.b16 %v2745, %v2737
        %v3626 = vpack.c.b16 %v2746, %v2738
        %v3627 = vpack.c.b16 %v2747, %v2739
        %v3628 = vpack.c.b16 %v2756, %v2748
        %v3629 = vpack.c.b16 %v2757, %v2749
        %v3630 = vpack.c.b16 %v2758, %v2750
        %v3631 = vpack.c.b16 %v2759, %v2751
        %v3632 = vpack.c.b16 %v2760, %v2752
        %v3633 = vpack.c.b16 %v2761, %v2753
        %v3634 = vpack.c.b16 %v2762, %v2754
        %v3635 = vpack.c.b16 %v2763, %v2755
        %v3636 = vpack.c.b16 %v2772, %v2764
        %v3637 = vpack.c.b16 %v2773, %v2765
        %v3638 = vpack.c.b16 %v2774, %v2766
        %v3639 = vpack.c.b16 %v2775, %v2767
        %v3640 = vpack.c.b16 %v2776, %v2768
        %v3641 = vpack.c.b16 %v2777, %v2769
        %v3642 = vpack.c.b16 %v2778, %v2770
        %v3643 = vpack.c.b16 %v2779, %v2771
        %v3644 = vpack.c.b16 %v2788, %v2780
        %v3645 = vpack.c.b16 %v2789, %v2781
        %v3646 = vpack.c.b16 %v2790, %v2782
        %v3647 = vpack.c.b16 %v2791, %v2783
        %v3648 = vpack.c.b16 %v2792, %v2784
        %v3649 = vpack.c.b16 %v2793, %v2785
        %v3650 = vpack.c.b16 %v2794, %v2786
        %v3651 = vpack.c.b16 %v2795, %v2787
        %v3652 = vpack.c.b16 %v2804, %v2796
        %v3653 = vpack.c.b16 %v2805, %v2797
        %v3654 = vpack.c.b16 %v2806, %v2798
        %v3655 = vpack.c.b16 %v2807, %v2799
        %v3656 = vpack.c.b16 %v2808, %v2800
        %v3657 = vpack.c.b16 %v2809, %v2801
        %v3658 = vpack.c.b16 %v2810, %v2802
        %v3659 = vpack.c.b16 %v2811, %v2803
        %v3660 = vpack.c.b16 %v2820, %v2812
        %v3661 = vpack.c.b16 %v2821, %v2813
        %v3662 = vpack.c.b16 %v2822, %v2814
        %v3663 = vpack.c.b16 %v2823, %v2815
        %v3664 = vpack.c.b16 %v2824, %v2816
        %v3665 = vpack.c.b16 %v2825, %v2817
        %v3666 = vpack.c.b16 %v2826, %v2818
        %v3667 = vpack.c.b16 %v2827, %v2819
        %v3668 = vpack.c.b16 %v2836, %v2828
        %v3669 = vpack.c.b16 %v2837, %v2829
        %v3670 = vpack.c.b16 %v2838, %v2830
        %v3671 = vpack.c.b16 %v2839, %v2831
        %v3672 = vpack.c.b16 %v2840, %v2832
        %v3673 = vpack.c.b16 %v2841, %v2833
        %v3674 = vpack.c.b16 %v2842, %v2834
        %v3675 = vpack.c.b16 %v2843, %v2835
        %v3676 = vpack.c.b16 %v2852, %v2844
        %v3677 = vpack.c.b16 %v2853, %v2845
        %v3678 = vpack.c.b16 %v2854, %v2846
        %v3679 = vpack.c.b16 %v2855, %v2847
        %v3680 = vpack.c.b16 %v2856, %v2848
        %v3681 = vpack.c.b16 %v2857, %v2849
        %v3682 = vpack.c.b16 %v2858, %v2850
        %v3683 = vpack.c.b16 %v2859, %v2851
        %v3684 = vpack.c.b16 %v2868, %v2860
        %v3685 = vpack.c.b16 %v2869, %v2861
        %v3686 = vpack.c.b16 %v2870, %v2862
        %v3687 = vpack.c.b16 %v2871, %v2863
        %v3688 = vpack.c.b16 %v2872, %v2864
        %v3689 = vpack.c.b16 %v2873, %v2865
        %v3690 = vpack.c.b16 %v2874, %v2866
        %v3691 = vpack.c.b16 %v2875, %v2867
        %v3692 = vpack.c.b16 %v2884, %v2876
        %v3693 = vpack.c.b16 %v2885, %v2877
        %v3694 = vpack.c.b16 %v2886, %v2878
        %v3695 = vpack.c.b16 %v2887, %v2879
        %v3696 = vpack.c.b16 %v2888, %v2880
        %v3697 = vpack.c.b16 %v2889, %v2881
        %v3698 = vpack.c.b16 %v2890, %v2882
        %v3699 = vpack.c.b16 %v2891, %v2883
        %v3700 = vpack.c.b16 %v2900, %v2892
        %v3701 = vpack.c.b16 %v2901, %v2893
        %v3702 = vpack.c.b16 %v2902, %v2894
        %v3703 = vpack.c.b16 %v2903, %v2895
        %v3704 = vpack.c.b16 %v2904, %v2896
        %v3705 = vpack.c.b16 %v2905, %v2897
        %v3706 = vpack.c.b16 %v2906, %v2898
        %v3707 = vpack.c.b16 %v2907, %v2899
        %v3708 = vpack.c.b16 %v2916, %v2908
        %v3709 = vpack.c.b16 %v2917, %v2909
        %v3710 = vpack.c.b16 %v2918, %v2910
        %v3711 = vpack.c.b16 %v2919, %v2911
        %v3712 = vpack.c.b16 %v2920, %v2912
        %v3713 = vpack.c.b16 %v2921, %v2913
        %v3714 = vpack.c.b16 %v2922, %v2914
        %v3715 = vpack.c.b16 %v2923, %v2915
        %v3716 = vpack.c.b16 %v2932, %v2924
        %v3717 = vpack.c.b16 %v2933, %v2925
        %v3718 = vpack.c.b16 %v2934, %v2926
        %v3719 = vpack.c.b16 %v2935, %v2927
        %v3720 = vpack.c.b16 %v2936, %v2928
        %v3721 = vpack.c.b16 %v2937, %v2929
        %v3722 = vpack.c.b16 %v2938, %v2930
        %v3723 = vpack.c.b16 %v2939, %v2931
        %v3724 = vpack.c.b16 %v2948, %v2940
        %v3725 = vpack.c.b16 %v2949, %v2941
        %v3726 = vpack.c.b16 %v2950, %v2942
        %v3727 = vpack.c.b16 %v2951, %v2943
        %v3728 = vpack.c.b16 %v2952, %v2944
        %v3729 = vpack.c.b16 %v2953, %v2945
        %v3730 = vpack.c.b16 %v2954, %v2946
        %v3731 = vpack.c.b16 %v2955, %v2947
        %v3732 = vpack.c.b16 %v2964, %v2956
        %v3733 = vpack.c.b16 %v2965, %v2957
        %v3734 = vpack.c.b16 %v2966, %v2958
        %v3735 = vpack.c.b16 %v2967, %v2959
        %v3736 = vpack.c.b16 %v2968, %v2960
        %v3737 = vpack.c.b16 %v2969, %v2961
        %v3738 = vpack.c.b16 %v2970, %v2962
        %v3739 = vpack.c.b16 %v2971, %v2963
        %v3740 = vpack.c.b16 %v2980, %v2972
        %v3741 = vpack.c.b16 %v2981, %v2973
        %v3742 = vpack.c.b16 %v2982, %v2974
        %v3743 = vpack.c.b16 %v2983, %v2975
        %v3744 = vpack.c.b16 %v2984, %v2976
        %v3745 = vpack.c.b16 %v2985, %v2977
        %v3746 = vpack.c.b16 %v2986, %v2978
        %v3747 = vpack.c.b16 %v2987, %v2979
        %v3748 = vpack.c.b16 %v2996, %v2988
        %v3749 = vpack.c.b16 %v2997, %v2989
        %v3750 = vpack.c.b16 %v2998, %v2990
        %v3751 = vpack.c.b16 %v2999, %v2991
        %v3752 = vpack.c.b16 %v3000, %v2992
        %v3753 = vpack.c.b16 %v3001, %v2993
        %v3754 = vpack.c.b16 %v3002, %v2994
        %v3755 = vpack.c.b16 %v3003, %v2995
        %v3756 = vpack.c.b16 %v3012, %v3004
        %v3757 = vpack.c.b16 %v3013, %v3005
        %v3758 = vpack.c.b16 %v3014, %v3006
        %v3759 = vpack.c.b16 %v3015, %v3007
        %v3760 = vpack.c.b16 %v3016, %v3008
        %v3761 = vpack.c.b16 %v3017, %v3009
        %v3762 = vpack.c.b16 %v3018, %v3010
        %v3763 = vpack.c.b16 %v3019, %v3011
        %v3764 = vpack.c.b16 %v3028, %v3020
        %v3765 = vpack.c.b16 %v3029, %v3021
        %v3766 = vpack.c.b16 %v3030, %v3022
        %v3767 = vpack.c.b16 %v3031, %v3023
        %v3768 = vpack.c.b16 %v3032, %v3024
        %v3769 = vpack.c.b16 %v3033, %v3025
        %v3770 = vpack.c.b16 %v3034, %v3026
        %v3771 = vpack.c.b16 %v3035, %v3027
        %v3772 = vpack.c.b16 %v3044, %v3036
        %v3773 = vpack.c.b16 %v3045, %v3037
        %v3774 = vpack.c.b16 %v3046, %v3038
        %v3775 = vpack.c.b16 %v3047, %v3039
        %v3776 = vpack.c.b16 %v3048, %v3040
        %v3777 = vpack.c.b16 %v3049, %v3041
        %v3778 = vpack.c.b16 %v3050, %v3042
        %v3779 = vpack.c.b16 %v3051, %v3043
        %v3780 = vpack.c.b16 %v3060, %v3052
        %v3781 = vpack.c.b16 %v3061, %v3053
        %v3782 = vpack.c.b16 %v3062, %v3054
        %v3783 = vpack.c.b16 %v3063, %v3055
        %v3784 = vpack.c.b16 %v3064, %v3056
        %v3785 = vpack.c.b16 %v3065, %v3057
        %v3786 = vpack.c.b16 %v3066, %v3058
        %v3787 = vpack.c.b16 %v3067, %v3059
        %v3788 = vpack.c.b16 %v3076, %v3068
        %v3789 = vpack.c.b16 %v3077, %v3069
        %v3790 = vpack.c.b16 %v3078, %v3070
        %v3791 = vpack.c.b16 %v3079, %v3071
        %v3792 = vpack.c.b16 %v3080, %v3072
        %v3793 = vpack.c.b16 %v3081, %v3073
        %v3794 = vpack.c.b16 %v3082, %v3074
        %v3795 = vpack.c.b16 %v3083, %v3075
        %v3796 = vpack.c.b16 %v3092, %v3084
        %v3797 = vpack.c.b16 %v3093, %v3085
        %v3798 = vpack.c.b16 %v3094, %v3086
        %v3799 = vpack.c.b16 %v3095, %v3087
        %v3800 = vpack.c.b16 %v3096, %v3088
        %v3801 = vpack.c.b16 %v3097, %v3089
        %v3802 = vpack.c.b16 %v3098, %v3090
        %v3803 = vpack.c.b16 %v3099, %v3091
        %v3804 = vpack.c.b16 %v3108, %v3100
        %v3805 = vpack.c.b16 %v3109, %v3101
        %v3806 = vpack.c.b16 %v3110, %v3102
        %v3807 = vpack.c.b16 %v3111, %v3103
        %v3808 = vpack.c.b16 %v3112, %v3104
        %v3809 = vpack.c.b16 %v3113, %v3105
        %v3810 = vpack.c.b16 %v3114, %v3106
        %v3811 = vpack.c.b16 %v3115, %v3107
        %v3812 = vpack.c.b16 %v3124, %v3116
        %v3813 = vpack.c.b16 %v3125, %v3117
        %v3814 = vpack.c.b16 %v3126, %v3118
        %v3815 = vpack.c.b16 %v3127, %v3119
        %v3816 = vpack.c.b16 %v3128, %v3120
        %v3817 = vpack.c.b16 %v3129, %v3121
        %v3818 = vpack.c.b16 %v3130, %v3122
        %v3819 = vpack.c.b16 %v3131, %v3123
        %v3820 = vpack.c.b16 %v3140, %v3132
        %v3821 = vpack.c.b16 %v3141, %v3133
        %v3822 = vpack.c.b16 %v3142, %v3134
        %v3823 = vpack.c.b16 %v3143, %v3135
        %v3824 = vpack.c.b16 %v3144, %v3136
        %v3825 = vpack.c.b16 %v3145, %v3137
        %v3826 = vpack.c.b16 %v3146, %v3138
        %v3827 = vpack.c.b16 %v3147, %v3139
        %v3828 = vpack.c.b16 %v3156, %v3148
        %v3829 = vpack.c.b16 %v3157, %v3149
        %v3830 = vpack.c.b16 %v3158, %v3150
        %v3831 = vpack.c.b16 %v3159, %v3151
        %v3832 = vpack.c.b16 %v3160, %v3152
        %v3833 = vpack.c.b16 %v3161, %v3153
        %v3834 = vpack.c.b16 %v3162, %v3154
        %v3835 = vpack.c.b16 %v3163, %v3155
        %v3836 = vpack.c.b16 %v3172, %v3164
        %v3837 = vpack.c.b16 %v3173, %v3165
        %v3838 = vpack.c.b16 %v3174, %v3166
        %v3839 = vpack.c.b16 %v3175, %v3167
        %v3840 = vpack.c.b16 %v3176, %v3168
        %v3841 = vpack.c.b16 %v3177, %v3169
        %v3842 = vpack.c.b16 %v3178, %v3170
        %v3843 = vpack.c.b16 %v3179, %v3171
        %v3844 = vpack.c.b16 %v3188, %v3180
        %v3845 = vpack.c.b16 %v3189, %v3181
        %v3846 = vpack.c.b16 %v3190, %v3182
        %v3847 = vpack.c.b16 %v3191, %v3183
        %v3848 = vpack.c.b16 %v3192, %v3184
        %v3849 = vpack.c.b16 %v3193, %v3185
        %v3850 = vpack.c.b16 %v3194, %v3186
        %v3851 = vpack.c.b16 %v3195, %v3187
        %v3852 = vpack.c.b16 %v3204, %v3196
        %v3853 = vpack.c.b16 %v3205, %v3197
        %v3854 = vpack.c.b16 %v3206, %v3198
        %v3855 = vpack.c.b16 %v3207, %v3199
        %v3856 = vpack.c.b16 %v3208, %v3200
        %v3857 = vpack.c.b16 %v3209, %v3201
        %v3858 = vpack.c.b16 %v3210, %v3202
        %v3859 = vpack.c.b16 %v3211, %v3203
        %v3860 = vpack.c.b16 %v3220, %v3212
        %v3861 = vpack.c.b16 %v3221, %v3213
        %v3862 = vpack.c.b16 %v3222, %v3214
        %v3863 = vpack.c.b16 %v3223, %v3215
        %v3864 = vpack.c.b16 %v3224, %v3216
        %v3865 = vpack.c.b16 %v3225, %v3217
        %v3866 = vpack.c.b16 %v3226, %v3218
        %v3867 = vpack.c.b16 %v3227, %v3219
        %v3868 = vpack.c.b16 %v3236, %v3228
        %v3869 = vpack.c.b16 %v3237, %v3229
        %v3870 = vpack.c.b16 %v3238, %v3230
        %v3871 = vpack.c.b16 %v3239, %v3231
        %v3872 = vpack.c.b16 %v3240, %v3232
        %v3873 = vpack.c.b16 %v3241, %v3233
        %v3874 = vpack.c.b16 %v3242, %v3234
        %v3875 = vpack.c.b16 %v3243, %v3235
        %v3876 = vpack.c.b16 %v3252, %v3244
        %v3877 = vpack.c.b16 %v3253, %v3245
        %v3878 = vpack.c.b16 %v3254, %v3246
        %v3879 = vpack.c.b16 %v3255, %v3247
        %v3880 = vpack.c.b16 %v3256, %v3248
        %v3881 = vpack.c.b16 %v3257, %v3249
        %v3882 = vpack.c.b16 %v3258, %v3250
        %v3883 = vpack.c.b16 %v3259, %v3251
        %v3884 = vpack.c.b16 %v3268, %v3260
        %v3885 = vpack.c.b16 %v3269, %v3261
        %v3886 = vpack.c.b16 %v3270, %v3262
        %v3887 = vpack.c.b16 %v3271, %v3263
        %v3888 = vpack.c.b16 %v3272, %v3264
        %v3889 = vpack.c.b16 %v3273, %v3265
        %v3890 = vpack.c.b16 %v3274, %v3266
        %v3891 = vpack.c.b16 %v3275, %v3267
        %v3892 = vpack.c.b16 %v3284, %v3276
        %v3893 = vpack.c.b16 %v3285, %v3277
        %v3894 = vpack.c.b16 %v3286, %v3278
        %v3895 = vpack.c.b16 %v3287, %v3279
        %v3896 = vpack.c.b16 %v3288, %v3280
        %v3897 = vpack.c.b16 %v3289, %v3281
        %v3898 = vpack.c.b16 %v3290, %v3282
        %v3899 = vpack.c.b16 %v3291, %v3283
        %v3900 = vpack.c.b16 %v3300, %v3292
        %v3901 = vpack.c.b16 %v3301, %v3293
        %v3902 = vpack.c.b16 %v3302, %v3294
        %v3903 = vpack.c.b16 %v3303, %v3295
        %v3904 = vpack.c.b16 %v3304, %v3296
        %v3905 = vpack.c.b16 %v3305, %v3297
        %v3906 = vpack.c.b16 %v3306, %v3298
        %v3907 = vpack.c.b16 %v3307, %v3299
        %v3908 = vpack.c.b16 %v3316, %v3308
        %v3909 = vpack.c.b16 %v3317, %v3309
        %v3910 = vpack.c.b16 %v3318, %v3310
        %v3911 = vpack.c.b16 %v3319, %v3311
        %v3912 = vpack.c.b16 %v3320, %v3312
        %v3913 = vpack.c.b16 %v3321, %v3313
        %v3914 = vpack.c.b16 %v3322, %v3314
        %v3915 = vpack.c.b16 %v3323, %v3315
        %v3916 = vpack.c.b16 %v3332, %v3324
        %v3917 = vpack.c.b16 %v3333, %v3325
        %v3918 = vpack.c.b16 %v3334, %v3326
        %v3919 = vpack.c.b16 %v3335, %v3327
        %v3920 = vpack.c.b16 %v3336, %v3328
        %v3921 = vpack.c.b16 %v3337, %v3329
        %v3922 = vpack.c.b16 %v3338, %v3330
        %v3923 = vpack.c.b16 %v3339, %v3331
        %v3924 = vpack.c.b16 %v3348, %v3340
        %v3925 = vpack.c.b16 %v3349, %v3341
        %v3926 = vpack.c.b16 %v3350, %v3342
        %v3927 = vpack.c.b16 %v3351, %v3343
        %v3928 = vpack.c.b16 %v3352, %v3344
        %v3929 = vpack.c.b16 %v3353, %v3345
        %v3930 = vpack.c.b16 %v3354, %v3346
        %v3931 = vpack.c.b16 %v3355, %v3347
        %v3932 = vpack.c.b16 %v3364, %v3356
        %v3933 = vpack.c.b16 %v3365, %v3357
        %v3934 = vpack.c.b16 %v3366, %v3358
        %v3935 = vpack.c.b16 %v3367, %v3359
        %v3936 = vpack.c.b16 %v3368, %v3360
        %v3937 = vpack.c.b16 %v3369, %v3361
        %v3938 = vpack.c.b16 %v3370, %v3362
        %v3939 = vpack.c.b16 %v3371, %v3363
        %v3940 = vpack.c.b16 %v3380, %v3372
        %v3941 = vpack.c.b16 %v3381, %v3373
        %v3942 = vpack.c.b16 %v3382, %v3374
        %v3943 = vpack.c.b16 %v3383, %v3375
        %v3944 = vpack.c.b16 %v3384, %v3376
        %v3945 = vpack.c.b16 %v3385, %v3377
        %v3946 = vpack.c.b16 %v3386, %v3378
        %v3947 = vpack.c.b16 %v3387, %v3379
        %v3948 = vpack.c.b16 %v3396, %v3388
        %v3949 = vpack.c.b16 %v3397, %v3389
        %v3950 = vpack.c.b16 %v3398, %v3390
        %v3951 = vpack.c.b16 %v3399, %v3391
        %v3952 = vpack.c.b16 %v3400, %v3392
        %v3953 = vpack.c.b16 %v3401, %v3393
        %v3954 = vpack.c.b16 %v3402, %v3394
        %v3955 = vpack.c.b16 %v3403, %v3395
        %v3956 = vpack.c.b16 %v3412, %v3404
        %v3957 = vpack.c.b16 %v3413, %v3405
        %v3958 = vpack.c.b16 %v3414, %v3406
        %v3959 = vpack.c.b16 %v3415, %v3407
        %v3960 = vpack.c.b16 %v3416, %v3408
        %v3961 = vpack.c.b16 %v3417, %v3409
        %v3962 = vpack.c.b16 %v3418, %v3410
        %v3963 = vpack.c.b16 %v3419, %v3411
        %v3964 = vpack.c.b16 %v3428, %v3420
        %v3965 = vpack.c.b16 %v3429, %v3421
        %v3966 = vpack.c.b16 %v3430, %v3422
        %v3967 = vpack.c.b16 %v3431, %v3423
        %v3968 = vpack.c.b16 %v3432, %v3424
        %v3969 = vpack.c.b16 %v3433, %v3425
        %v3970 = vpack.c.b16 %v3434, %v3426
        %v3971 = vpack.c.b16 %v3435, %v3427
        %v3972 = vpack.c.b16 %v3444, %v3436
        %v3973 = vpack.c.b16 %v3445, %v3437
        %v3974 = vpack.c.b16 %v3446, %v3438
        %v3975 = vpack.c.b16 %v3447, %v3439
        %v3976 = vpack.c.b16 %v3448, %v3440
        %v3977 = vpack.c.b16 %v3449, %v3441
        %v3978 = vpack.c.b16 %v3450, %v3442
        %v3979 = vpack.c.b16 %v3451, %v3443
        %v3980 = vpack.c.b16 %v3460, %v3452
        %v3981 = vpack.c.b16 %v3461, %v3453
        %v3982 = vpack.c.b16 %v3462, %v3454
        %v3983 = vpack.c.b16 %v3463, %v3455
        %v3984 = vpack.c.b16 %v3464, %v3456
        %v3985 = vpack.c.b16 %v3465, %v3457
        %v3986 = vpack.c.b16 %v3466, %v3458
        %v3987 = vpack.c.b16 %v3467, %v3459
        %v3988 = vpack.c.b16 %v3476, %v3468
        %v3989 = vpack.c.b16 %v3477, %v3469
        %v3990 = vpack.c.b16 %v3478, %v3470
        %v3991 = vpack.c.b16 %v3479, %v3471
        %v3992 = vpack.c.b16 %v3480, %v3472
        %v3993 = vpack.c.b16 %v3481, %v3473
        %v3994 = vpack.c.b16 %v3482, %v3474
        %v3995 = vpack.c.b16 %v3483, %v3475
        %4508 = vmatprep.subr.bf16.mxu0 %v3485
        %4509 = vmatpush1.bf16.msra.mxu0 %v3484
        %4510 = vmatprep.subr.bf16.mxu0 %v3493
        %4511 = vmatpush1.bf16.msra.mxu0 %v3492
        %4512 = vmatprep.subr.bf16.mxu0 %v3501
        %4513 = vmatpush1.bf16.msra.mxu0 %v3500
        %4514 = vmatprep.subr.bf16.mxu0 %v3509
        %4515 = vmatpush1.bf16.msra.mxu0 %v3508
        %4516 = vmatprep.subr.bf16.mxu0 %v3517
        %4517 = vmatpush1.bf16.msra.mxu0 %v3516
        %4518 = vmatprep.subr.bf16.mxu0 %v3525
        %4519 = vmatpush1.bf16.msra.mxu0 %v3524
        %4520 = vmatprep.subr.bf16.mxu0 %v3533
        %4521 = vmatpush1.bf16.msra.mxu0 %v3532
        %4522 = vmatprep.subr.bf16.mxu0 %v3541
        %4523 = vmatpush1.bf16.msra.mxu0 %v3540
        %4524 = vmatprep.subr.bf16.mxu0 %v3549
        %4525 = vmatpush1.bf16.msra.mxu0 %v3548
        %4526 = vmatprep.subr.bf16.mxu0 %v3557
        %4527 = vmatpush1.bf16.msra.mxu0 %v3556
        %4528 = vmatprep.subr.bf16.mxu0 %v3565
        %4529 = vmatpush1.bf16.msra.mxu0 %v3564
        %4530 = vmatprep.subr.bf16.mxu0 %v3573
        %4531 = vmatpush1.bf16.msra.mxu0 %v3572
        %4532 = vmatprep.subr.bf16.mxu0 %v3581
        %4533 = vmatpush1.bf16.msra.mxu0 %v3580
        %4534 = vmatprep.subr.bf16.mxu0 %v3589
        %4535 = vmatpush1.bf16.msra.mxu0 %v3588
        %4536 = vmatprep.subr.bf16.mxu0 %v3597
        %4537 = vmatpush1.bf16.msra.mxu0 %v3596
        %4538 = vmatprep.subr.bf16.mxu0 %v3605
        %4539 = vmatpush1.bf16.msra.mxu0 %v3604
        %4540 = vmatprep.mubr.bf16.mxu0 %v1387
        %4541 = vmatmul.mubr.bf16.gmra.mrb[0].mxu0 %v1386
        %v4542 = vpop.f32.mrb[0].mxu0
        %v4543 = vadd.f32 %v1911, %v4542
        %v4544 = vpop.f32.mrb[0].mxu0
        %v4545 = vadd.f32 %v1915, %v4544
        %v4546 = vpop.f32.mrb[0].mxu0
        %v4547 = vadd.f32 %v1911, %v4546
        %v4548 = vpop.f32.mrb[0].mxu0
        %v4549 = vadd.f32 %v1915, %v4548
        %4550 = vdwg.mxu0
        %4551 = vmatprep.subr.bf16.mxu0 %v3613
        %4552 = vmatpush1.bf16.msra.mxu0 %v3612
        %4553 = vmatprep.subr.bf16.mxu0 %v3621
        %4554 = vmatpush1.bf16.msra.mxu0 %v3620
        %4555 = vmatprep.subr.bf16.mxu0 %v3629
        %4556 = vmatpush1.bf16.msra.mxu0 %v3628
        %4557 = vmatprep.subr.bf16.mxu0 %v3637
        %4558 = vmatpush1.bf16.msra.mxu0 %v3636
        %4559 = vmatprep.subr.bf16.mxu0 %v3645
        %4560 = vmatpush1.bf16.msra.mxu0 %v3644
        %4561 = vmatprep.subr.bf16.mxu0 %v3653
        %4562 = vmatpush1.bf16.msra.mxu0 %v3652
        %4563 = vmatprep.subr.bf16.mxu0 %v3661
        %4564 = vmatpush1.bf16.msra.mxu0 %v3660
        %4565 = vmatprep.subr.bf16.mxu0 %v3669
        %4566 = vmatpush1.bf16.msra.mxu0 %v3668
        %4567 = vmatprep.subr.bf16.mxu0 %v3677
        %4568 = vmatpush1.bf16.msra.mxu0 %v3676
        %4569 = vmatprep.subr.bf16.mxu0 %v3685
        %4570 = vmatpush1.bf16.msra.mxu0 %v3684
        %4571 = vmatprep.subr.bf16.mxu0 %v3693
        %4572 = vmatpush1.bf16.msra.mxu0 %v3692
        %4573 = vmatprep.subr.bf16.mxu0 %v3701
        %4574 = vmatpush1.bf16.msra.mxu0 %v3700
        %4575 = vmatprep.subr.bf16.mxu0 %v3709
        %4576 = vmatpush1.bf16.msra.mxu0 %v3708
        %4577 = vmatprep.subr.bf16.mxu0 %v3717
        %4578 = vmatpush1.bf16.msra.mxu0 %v3716
        %4579 = vmatprep.subr.bf16.mxu0 %v3725
        %4580 = vmatpush1.bf16.msra.mxu0 %v3724
        %4581 = vmatprep.subr.bf16.mxu0 %v3733
        %4582 = vmatpush1.bf16.msra.mxu0 %v3732
        %4583 = vmatprep.mubr.bf16.mxu0 %v1389
        %4584 = vmatmul.mubr.bf16.gmra.mrb[0].mxu0 %v1388
        %v4585 = vpop.f32.mrb[0].mxu0
        %v4586 = vadd.f32 %v4543, %v4585
        %v4587 = vpop.f32.mrb[0].mxu0
        %v4588 = vadd.f32 %v4545, %v4587
        %v4589 = vpop.f32.mrb[0].mxu0
        %v4590 = vadd.f32 %v4547, %v4589
        %v4591 = vpop.f32.mrb[0].mxu0
        %v4592 = vadd.f32 %v4549, %v4591
        %4593 = vdwg.mxu0
        %4594 = vmatprep.subr.bf16.mxu0 %v3741
        %4595 = vmatpush1.bf16.msra.mxu0 %v3740
        %4596 = vmatprep.subr.bf16.mxu0 %v3749
        %4597 = vmatpush1.bf16.msra.mxu0 %v3748
        %4598 = vmatprep.subr.bf16.mxu0 %v3757
        %4599 = vmatpush1.bf16.msra.mxu0 %v3756
        %4600 = vmatprep.subr.bf16.mxu0 %v3765
        %4601 = vmatpush1.bf16.msra.mxu0 %v3764
        %4602 = vmatprep.subr.bf16.mxu0 %v3773
        %4603 = vmatpush1.bf16.msra.mxu0 %v3772
        %4604 = vmatprep.subr.bf16.mxu0 %v3781
        %4605 = vmatpush1.bf16.msra.mxu0 %v3780
        %4606 = vmatprep.subr.bf16.mxu0 %v3789
        %4607 = vmatpush1.bf16.msra.mxu0 %v3788
        %4608 = vmatprep.subr.bf16.mxu0 %v3797
        %4609 = vmatpush1.bf16.msra.mxu0 %v3796
        %4610 = vmatprep.subr.bf16.mxu0 %v3805
        %4611 = vmatpush1.bf16.msra.mxu0 %v3804
        %4612 = vmatprep.subr.bf16.mxu0 %v3813
        %4613 = vmatpush1.bf16.msra.mxu0 %v3812
        %4614 = vmatprep.subr.bf16.mxu0 %v3821
        %4615 = vmatpush1.bf16.msra.mxu0 %v3820
        %4616 = vmatprep.subr.bf16.mxu0 %v3829
        %4617 = vmatpush1.bf16.msra.mxu0 %v3828
        %4618 = vmatprep.subr.bf16.mxu0 %v3837
        %4619 = vmatpush1.bf16.msra.mxu0 %v3836
        %4620 = vmatprep.subr.bf16.mxu0 %v3845
        %4621 = vmatpush1.bf16.msra.mxu0 %v3844
        %4622 = vmatprep.subr.bf16.mxu0 %v3853
        %4623 = vmatpush1.bf16.msra.mxu0 %v3852
        %4624 = vmatprep.subr.bf16.mxu0 %v3861
        %4625 = vmatpush1.bf16.msra.mxu0 %v3860
        %4626 = vmatprep.mubr.bf16.mxu0 %v1391
        %4627 = vmatmul.mubr.bf16.gmra.mrb[0].mxu0 %v1390
        %v4628 = vpop.f32.mrb[0].mxu0
        %v4629 = vadd.f32 %v4586, %v4628
        %v4630 = vpop.f32.mrb[0].mxu0
        %v4631 = vadd.f32 %v4588, %v4630
        %v4632 = vpop.f32.mrb[0].mxu0
        %v4633 = vadd.f32 %v4590, %v4632
        %v4634 = vpop.f32.mrb[0].mxu0
        %v4635 = vadd.f32 %v4592, %v4634
        %4636 = vdwg.mxu0
        %4637 = vmatprep.subr.bf16.mxu0 %v3869
        %4638 = vmatpush1.bf16.msra.mxu0 %v3868
        %4639 = vmatprep.subr.bf16.mxu0 %v3877
        %4640 = vmatpush1.bf16.msra.mxu0 %v3876
        %4641 = vmatprep.subr.bf16.mxu0 %v3885
        %4642 = vmatpush1.bf16.msra.mxu0 %v3884
        %4643 = vmatprep.subr.bf16.mxu0 %v3893
        %4644 = vmatpush1.bf16.msra.mxu0 %v3892
        %4645 = vmatprep.subr.bf16.mxu0 %v3901
        %4646 = vmatpush1.bf16.msra.mxu0 %v3900
        %4647 = vmatprep.subr.bf16.mxu0 %v3909
        %4648 = vmatpush1.bf16.msra.mxu0 %v3908
        %4649 = vmatprep.subr.bf16.mxu0 %v3917
        %4650 = vmatpush1.bf16.msra.mxu0 %v3916
        %4651 = vmatprep.subr.bf16.mxu0 %v3925
        %4652 = vmatpush1.bf16.msra.mxu0 %v3924
        %4653 = vmatprep.subr.bf16.mxu0 %v3933
        %4654 = vmatpush1.bf16.msra.mxu0 %v3932
        %4655 = vmatprep.subr.bf16.mxu0 %v3941
        %4656 = vmatpush1.bf16.msra.mxu0 %v3940
        %4657 = vmatprep.subr.bf16.mxu0 %v3949
        %4658 = vmatpush1.bf16.msra.mxu0 %v3948
        %4659 = vmatprep.subr.bf16.mxu0 %v3957
        %4660 = vmatpush1.bf16.msra.mxu0 %v3956
        %4661 = vmatprep.subr.bf16.mxu0 %v3965
        %4662 = vmatpush1.bf16.msra.mxu0 %v3964
        %4663 = vmatprep.subr.bf16.mxu0 %v3973
        %4664 = vmatpush1.bf16.msra.mxu0 %v3972
        %4665 = vmatprep.subr.bf16.mxu0 %v3981
        %4666 = vmatpush1.bf16.msra.mxu0 %v3980
        %4667 = vmatprep.subr.bf16.mxu0 %v3989
        %4668 = vmatpush1.bf16.msra.mxu0 %v3988
        %4669 = vmatprep.mubr.bf16.mxu0 %v1393
        %4670 = vmatmul.mubr.bf16.gmra.mrb[0].mxu0 %v1392
        %v4671 = vpop.f32.mrb[0].mxu0
        %v4672 = vadd.f32 %v4629, %v4671
        %v4673 = vpop.f32.mrb[0].mxu0
        %v4674 = vadd.f32 %v4631, %v4673
        %v4675 = vpop.f32.mrb[0].mxu0
        %v4676 = vadd.f32 %v4633, %v4675
        %v4677 = vpop.f32.mrb[0].mxu0
        %v4678 = vadd.f32 %v4635, %v4677
        %4679 = vdwg.mxu0
        %4680 = vmatprep.subr.bf16.mxu0 %v3487
        %4681 = vmatpush1.bf16.msra.mxu0 %v3486
        %4682 = vmatprep.subr.bf16.mxu0 %v3495
        %4683 = vmatpush1.bf16.msra.mxu0 %v3494
        %4684 = vmatprep.subr.bf16.mxu0 %v3503
        %4685 = vmatpush1.bf16.msra.mxu0 %v3502
        %4686 = vmatprep.subr.bf16.mxu0 %v3511
        %4687 = vmatpush1.bf16.msra.mxu0 %v3510
        %4688 = vmatprep.subr.bf16.mxu0 %v3519
        %4689 = vmatpush1.bf16.msra.mxu0 %v3518
        %4690 = vmatprep.subr.bf16.mxu0 %v3527
        %4691 = vmatpush1.bf16.msra.mxu0 %v3526
        %4692 = vmatprep.subr.bf16.mxu0 %v3535
        %4693 = vmatpush1.bf16.msra.mxu0 %v3534
        %4694 = vmatprep.subr.bf16.mxu0 %v3543
        %4695 = vmatpush1.bf16.msra.mxu0 %v3542
        %4696 = vmatprep.subr.bf16.mxu0 %v3551
        %4697 = vmatpush1.bf16.msra.mxu0 %v3550
        %4698 = vmatprep.subr.bf16.mxu0 %v3559
        %4699 = vmatpush1.bf16.msra.mxu0 %v3558
        %4700 = vmatprep.subr.bf16.mxu0 %v3567
        %4701 = vmatpush1.bf16.msra.mxu0 %v3566
        %4702 = vmatprep.subr.bf16.mxu0 %v3575
        %4703 = vmatpush1.bf16.msra.mxu0 %v3574
        %4704 = vmatprep.subr.bf16.mxu0 %v3583
        %4705 = vmatpush1.bf16.msra.mxu0 %v3582
        %4706 = vmatprep.subr.bf16.mxu0 %v3591
        %4707 = vmatpush1.bf16.msra.mxu0 %v3590
        %4708 = vmatprep.subr.bf16.mxu0 %v3599
        %4709 = vmatpush1.bf16.msra.mxu0 %v3598
        %4710 = vmatprep.subr.bf16.mxu0 %v3607
        %4711 = vmatpush1.bf16.msra.mxu0 %v3606
        %4712 = vmatprep.mubr.bf16.mxu0 %v1387
        %4713 = vmatmul.mubr.bf16.gmra.mrb[0].mxu0 %v1386
        %v4714 = vpop.f32.mrb[0].mxu0
        %v4715 = vadd.f32 %v1919, %v4714
        %v4716 = vpop.f32.mrb[0].mxu0
        %v4717 = vadd.f32 %v1923, %v4716
        %v4718 = vpop.f32.mrb[0].mxu0
        %v4719 = vadd.f32 %v1919, %v4718
        %v4720 = vpop.f32.mrb[0].mxu0
        %v4721 = vadd.f32 %v1923, %v4720
        %4722 = vdwg.mxu0
        %4723 = vmatprep.subr.bf16.mxu0 %v3615
        %4724 = vmatpush1.bf16.msra.mxu0 %v3614
        %4725 = vmatprep.subr.bf16.mxu0 %v3623
        %4726 = vmatpush1.bf16.msra.mxu0 %v3622
        %4727 = vmatprep.subr.bf16.mxu0 %v3631
        %4728 = vmatpush1.bf16.msra.mxu0 %v3630
        %4729 = vmatprep.subr.bf16.mxu0 %v3639
        %4730 = vmatpush1.bf16.msra.mxu0 %v3638
        %4731 = vmatprep.subr.bf16.mxu0 %v3647
        %4732 = vmatpush1.bf16.msra.mxu0 %v3646
        %4733 = vmatprep.subr.bf16.mxu0 %v3655
        %4734 = vmatpush1.bf16.msra.mxu0 %v3654
        %4735 = vmatprep.subr.bf16.mxu0 %v3663
        %4736 = vmatpush1.bf16.msra.mxu0 %v3662
        %4737 = vmatprep.subr.bf16.mxu0 %v3671
        %4738 = vmatpush1.bf16.msra.mxu0 %v3670
        %4739 = vmatprep.subr.bf16.mxu0 %v3679
        %4740 = vmatpush1.bf16.msra.mxu0 %v3678
        %4741 = vmatprep.subr.bf16.mxu0 %v3687
        %4742 = vmatpush1.bf16.msra.mxu0 %v3686
        %4743 = vmatprep.subr.bf16.mxu0 %v3695
        %4744 = vmatpush1.bf16.msra.mxu0 %v3694
        %4745 = vmatprep.subr.bf16.mxu0 %v3703
        %4746 = vmatpush1.bf16.msra.mxu0 %v3702
        %4747 = vmatprep.subr.bf16.mxu0 %v3711
        %4748 = vmatpush1.bf16.msra.mxu0 %v3710
        %4749 = vmatprep.subr.bf16.mxu0 %v3719
        %4750 = vmatpush1.bf16.msra.mxu0 %v3718
        %4751 = vmatprep.subr.bf16.mxu0 %v3727
        %4752 = vmatpush1.bf16.msra.mxu0 %v3726
        %4753 = vmatprep.subr.bf16.mxu0 %v3735
        %4754 = vmatpush1.bf16.msra.mxu0 %v3734
        %4755 = vmatprep.mubr.bf16.mxu0 %v1389
        %4756 = vmatmul.mubr.bf16.gmra.mrb[0].mxu0 %v1388
        %v4757 = vpop.f32.mrb[0].mxu0
        %v4758 = vadd.f32 %v4715, %v4757
        %v4759 = vpop.f32.mrb[0].mxu0
        %v4760 = vadd.f32 %v4717, %v4759
        %v4761 = vpop.f32.mrb[0].mxu0
        %v4762 = vadd.f32 %v4719, %v4761
        %v4763 = vpop.f32.mrb[0].mxu0
        %v4764 = vadd.f32 %v4721, %v4763
        %4765 = vdwg.mxu0
        %4766 = vmatprep.subr.bf16.mxu0 %v3743
        %4767 = vmatpush1.bf16.msra.mxu0 %v3742
        %4768 = vmatprep.subr.bf16.mxu0 %v3751
        %4769 = vmatpush1.bf16.msra.mxu0 %v3750
        %4770 = vmatprep.subr.bf16.mxu0 %v3759
        %4771 = vmatpush1.bf16.msra.mxu0 %v3758
        %4772 = vmatprep.subr.bf16.mxu0 %v3767
        %4773 = vmatpush1.bf16.msra.mxu0 %v3766
        %4774 = vmatprep.subr.bf16.mxu0 %v3775
        %4775 = vmatpush1.bf16.msra.mxu0 %v3774
        %4776 = vmatprep.subr.bf16.mxu0 %v3783
        %4777 = vmatpush1.bf16.msra.mxu0 %v3782
        %4778 = vmatprep.subr.bf16.mxu0 %v3791
        %4779 = vmatpush1.bf16.msra.mxu0 %v3790
        %4780 = vmatprep.subr.bf16.mxu0 %v3799
        %4781 = vmatpush1.bf16.msra.mxu0 %v3798
        %4782 = vmatprep.subr.bf16.mxu0 %v3807
        %4783 = vmatpush1.bf16.msra.mxu0 %v3806
        %4784 = vmatprep.subr.bf16.mxu0 %v3815
        %4785 = vmatpush1.bf16.msra.mxu0 %v3814
        %4786 = vmatprep.subr.bf16.mxu0 %v3823
        %4787 = vmatpush1.bf16.msra.mxu0 %v3822
        %4788 = vmatprep.subr.bf16.mxu0 %v3831
        %4789 = vmatpush1.bf16.msra.mxu0 %v3830
        %4790 = vmatprep.subr.bf16.mxu0 %v3839
        %4791 = vmatpush1.bf16.msra.mxu0 %v3838
        %4792 = vmatprep.subr.bf16.mxu0 %v3847
        %4793 = vmatpush1.bf16.msra.mxu0 %v3846
        %4794 = vmatprep.subr.bf16.mxu0 %v3855
        %4795 = vmatpush1.bf16.msra.mxu0 %v3854
        %4796 = vmatprep.subr.bf16.mxu0 %v3863
        %4797 = vmatpush1.bf16.msra.mxu0 %v3862
        %4798 = vmatprep.mubr.bf16.mxu0 %v1391
        %4799 = vmatmul.mubr.bf16.gmra.mrb[0].mxu0 %v1390
        %v4800 = vpop.f32.mrb[0].mxu0
        %v4801 = vadd.f32 %v4758, %v4800
        %v4802 = vpop.f32.mrb[0].mxu0
        %v4803 = vadd.f32 %v4760, %v4802
        %v4804 = vpop.f32.mrb[0].mxu0
        %v4805 = vadd.f32 %v4762, %v4804
        %v4806 = vpop.f32.mrb[0].mxu0
        %v4807 = vadd.f32 %v4764, %v4806
        %4808 = vdwg.mxu0
        %4809 = vmatprep.subr.bf16.mxu0 %v3871
        %4810 = vmatpush1.bf16.msra.mxu0 %v3870
        %4811 = vmatprep.subr.bf16.mxu0 %v3879
        %4812 = vmatpush1.bf16.msra.mxu0 %v3878
        %4813 = vmatprep.subr.bf16.mxu0 %v3887
        %4814 = vmatpush1.bf16.msra.mxu0 %v3886
        %4815 = vmatprep.subr.bf16.mxu0 %v3895
        %4816 = vmatpush1.bf16.msra.mxu0 %v3894
        %4817 = vmatprep.subr.bf16.mxu0 %v3903
        %4818 = vmatpush1.bf16.msra.mxu0 %v3902
        %4819 = vmatprep.subr.bf16.mxu0 %v3911
        %4820 = vmatpush1.bf16.msra.mxu0 %v3910
        %4821 = vmatprep.subr.bf16.mxu0 %v3919
        %4822 = vmatpush1.bf16.msra.mxu0 %v3918
        %4823 = vmatprep.subr.bf16.mxu0 %v3927
        %4824 = vmatpush1.bf16.msra.mxu0 %v3926
        %4825 = vmatprep.subr.bf16.mxu0 %v3935
        %4826 = vmatpush1.bf16.msra.mxu0 %v3934
        %4827 = vmatprep.subr.bf16.mxu0 %v3943
        %4828 = vmatpush1.bf16.msra.mxu0 %v3942
        %4829 = vmatprep.subr.bf16.mxu0 %v3951
        %4830 = vmatpush1.bf16.msra.mxu0 %v3950
        %4831 = vmatprep.subr.bf16.mxu0 %v3959
        %4832 = vmatpush1.bf16.msra.mxu0 %v3958
        %4833 = vmatprep.subr.bf16.mxu0 %v3967
        %4834 = vmatpush1.bf16.msra.mxu0 %v3966
        %4835 = vmatprep.subr.bf16.mxu0 %v3975
        %4836 = vmatpush1.bf16.msra.mxu0 %v3974
        %4837 = vmatprep.subr.bf16.mxu0 %v3983
        %4838 = vmatpush1.bf16.msra.mxu0 %v3982
        %4839 = vmatprep.subr.bf16.mxu0 %v3991
        %4840 = vmatpush1.bf16.msra.mxu0 %v3990
        %4841 = vmatprep.mubr.bf16.mxu0 %v1393
        %4842 = vmatmul.mubr.bf16.gmra.mrb[0].mxu0 %v1392
        %v4843 = vpop.f32.mrb[0].mxu0
        %v4844 = vadd.f32 %v4801, %v4843
        %v4845 = vpop.f32.mrb[0].mxu0
        %v4846 = vadd.f32 %v4803, %v4845
        %v4847 = vpop.f32.mrb[0].mxu0
        %v4848 = vadd.f32 %v4805, %v4847
        %v4849 = vpop.f32.mrb[0].mxu0
        %v4850 = vadd.f32 %v4807, %v4849
        %4851 = vdwg.mxu0
        %4852 = vmatprep.subr.bf16.mxu0 %v3489
        %4853 = vmatpush1.bf16.msra.mxu0 %v3488
        %4854 = vmatprep.subr.bf16.mxu0 %v3497
        %4855 = vmatpush1.bf16.msra.mxu0 %v3496
        %4856 = vmatprep.subr.bf16.mxu0 %v3505
        %4857 = vmatpush1.bf16.msra.mxu0 %v3504
        %4858 = vmatprep.subr.bf16.mxu0 %v3513
        %4859 = vmatpush1.bf16.msra.mxu0 %v3512
        %4860 = vmatprep.subr.bf16.mxu0 %v3521
        %4861 = vmatpush1.bf16.msra.mxu0 %v3520
        %4862 = vmatprep.subr.bf16.mxu0 %v3529
        %4863 = vmatpush1.bf16.msra.mxu0 %v3528
        %4864 = vmatprep.subr.bf16.mxu0 %v3537
        %4865 = vmatpush1.bf16.msra.mxu0 %v3536
        %4866 = vmatprep.subr.bf16.mxu0 %v3545
        %4867 = vmatpush1.bf16.msra.mxu0 %v3544
        %4868 = vmatprep.subr.bf16.mxu0 %v3553
        %4869 = vmatpush1.bf16.msra.mxu0 %v3552
        %4870 = vmatprep.subr.bf16.mxu0 %v3561
        %4871 = vmatpush1.bf16.msra.mxu0 %v3560
        %4872 = vmatprep.subr.bf16.mxu0 %v3569
        %4873 = vmatpush1.bf16.msra.mxu0 %v3568
        %4874 = vmatprep.subr.bf16.mxu0 %v3577
        %4875 = vmatpush1.bf16.msra.mxu0 %v3576
        %4876 = vmatprep.subr.bf16.mxu0 %v3585
        %4877 = vmatpush1.bf16.msra.mxu0 %v3584
        %4878 = vmatprep.subr.bf16.mxu0 %v3593
        %4879 = vmatpush1.bf16.msra.mxu0 %v3592
        %4880 = vmatprep.subr.bf16.mxu0 %v3601
        %4881 = vmatpush1.bf16.msra.mxu0 %v3600
        %4882 = vmatprep.subr.bf16.mxu0 %v3609
        %4883 = vmatpush1.bf16.msra.mxu0 %v3608
        %4884 = vmatprep.mubr.bf16.mxu0 %v1387
        %4885 = vmatmul.mubr.bf16.gmra.mrb[0].mxu0 %v1386
        %v4886 = vpop.f32.mrb[0].mxu0
        %v4887 = vadd.f32 %v1927, %v4886
        %v4888 = vpop.f32.mrb[0].mxu0
        %v4889 = vadd.f32 %v1931, %v4888
        %v4890 = vpop.f32.mrb[0].mxu0
        %v4891 = vadd.f32 %v1927, %v4890
        %v4892 = vpop.f32.mrb[0].mxu0
        %v4893 = vadd.f32 %v1931, %v4892
        %4894 = vdwg.mxu0
        %4895 = vmatprep.subr.bf16.mxu0 %v3617
        %4896 = vmatpush1.bf16.msra.mxu0 %v3616
        %4897 = vmatprep.subr.bf16.mxu0 %v3625
        %4898 = vmatpush1.bf16.msra.mxu0 %v3624
        %4899 = vmatprep.subr.bf16.mxu0 %v3633
        %4900 = vmatpush1.bf16.msra.mxu0 %v3632
        %4901 = vmatprep.subr.bf16.mxu0 %v3641
        %4902 = vmatpush1.bf16.msra.mxu0 %v3640
        %4903 = vmatprep.subr.bf16.mxu0 %v3649
        %4904 = vmatpush1.bf16.msra.mxu0 %v3648
        %4905 = vmatprep.subr.bf16.mxu0 %v3657
        %4906 = vmatpush1.bf16.msra.mxu0 %v3656
        %4907 = vmatprep.subr.bf16.mxu0 %v3665
        %4908 = vmatpush1.bf16.msra.mxu0 %v3664
        %4909 = vmatprep.subr.bf16.mxu0 %v3673
        %4910 = vmatpush1.bf16.msra.mxu0 %v3672
        %4911 = vmatprep.subr.bf16.mxu0 %v3681
        %4912 = vmatpush1.bf16.msra.mxu0 %v3680
        %4913 = vmatprep.subr.bf16.mxu0 %v3689
        %4914 = vmatpush1.bf16.msra.mxu0 %v3688
        %4915 = vmatprep.subr.bf16.mxu0 %v3697
        %4916 = vmatpush1.bf16.msra.mxu0 %v3696
        %4917 = vmatprep.subr.bf16.mxu0 %v3705
        %4918 = vmatpush1.bf16.msra.mxu0 %v3704
        %4919 = vmatprep.subr.bf16.mxu0 %v3713
        %4920 = vmatpush1.bf16.msra.mxu0 %v3712
        %4921 = vmatprep.subr.bf16.mxu0 %v3721
        %4922 = vmatpush1.bf16.msra.mxu0 %v3720
        %4923 = vmatprep.subr.bf16.mxu0 %v3729
        %4924 = vmatpush1.bf16.msra.mxu0 %v3728
        %4925 = vmatprep.subr.bf16.mxu0 %v3737
        %4926 = vmatpush1.bf16.msra.mxu0 %v3736
        %4927 = vmatprep.mubr.bf16.mxu0 %v1389
        %4928 = vmatmul.mubr.bf16.gmra.mrb[0].mxu0 %v1388
        %v4929 = vpop.f32.mrb[0].mxu0
        %v4930 = vadd.f32 %v4887, %v4929
        %v4931 = vpop.f32.mrb[0].mxu0
        %v4932 = vadd.f32 %v4889, %v4931
        %v4933 = vpop.f32.mrb[0].mxu0
        %v4934 = vadd.f32 %v4891, %v4933
        %v4935 = vpop.f32.mrb[0].mxu0
        %v4936 = vadd.f32 %v4893, %v4935
        %4937 = vdwg.mxu0
        %4938 = vmatprep.subr.bf16.mxu0 %v3745
        %4939 = vmatpush1.bf16.msra.mxu0 %v3744
        %4940 = vmatprep.subr.bf16.mxu0 %v3753
        %4941 = vmatpush1.bf16.msra.mxu0 %v3752
        %4942 = vmatprep.subr.bf16.mxu0 %v3761
        %4943 = vmatpush1.bf16.msra.mxu0 %v3760
        %4944 = vmatprep.subr.bf16.mxu0 %v3769
        %4945 = vmatpush1.bf16.msra.mxu0 %v3768
        %4946 = vmatprep.subr.bf16.mxu0 %v3777
        %4947 = vmatpush1.bf16.msra.mxu0 %v3776
        %4948 = vmatprep.subr.bf16.mxu0 %v3785
        %4949 = vmatpush1.bf16.msra.mxu0 %v3784
        %4950 = vmatprep.subr.bf16.mxu0 %v3793
        %4951 = vmatpush1.bf16.msra.mxu0 %v3792
        %4952 = vmatprep.subr.bf16.mxu0 %v3801
        %4953 = vmatpush1.bf16.msra.mxu0 %v3800
        %4954 = vmatprep.subr.bf16.mxu0 %v3809
        %4955 = vmatpush1.bf16.msra.mxu0 %v3808
        %4956 = vmatprep.subr.bf16.mxu0 %v3817
        %4957 = vmatpush1.bf16.msra.mxu0 %v3816
        %4958 = vmatprep.subr.bf16.mxu0 %v3825
        %4959 = vmatpush1.bf16.msra.mxu0 %v3824
        %4960 = vmatprep.subr.bf16.mxu0 %v3833
        %4961 = vmatpush1.bf16.msra.mxu0 %v3832
        %4962 = vmatprep.subr.bf16.mxu0 %v3841
        %4963 = vmatpush1.bf16.msra.mxu0 %v3840
        %4964 = vmatprep.subr.bf16.mxu0 %v3849
        %4965 = vmatpush1.bf16.msra.mxu0 %v3848
        %4966 = vmatprep.subr.bf16.mxu0 %v3857
        %4967 = vmatpush1.bf16.msra.mxu0 %v3856
        %4968 = vmatprep.subr.bf16.mxu0 %v3865
        %4969 = vmatpush1.bf16.msra.mxu0 %v3864
        %4970 = vmatprep.mubr.bf16.mxu0 %v1391
        %4971 = vmatmul.mubr.bf16.gmra.mrb[0].mxu0 %v1390
        %v4972 = vpop.f32.mrb[0].mxu0
        %v4973 = vadd.f32 %v4930, %v4972
        %v4974 = vpop.f32.mrb[0].mxu0
        %v4975 = vadd.f32 %v4932, %v4974
        %v4976 = vpop.f32.mrb[0].mxu0
        %v4977 = vadd.f32 %v4934, %v4976
        %v4978 = vpop.f32.mrb[0].mxu0
        %v4979 = vadd.f32 %v4936, %v4978
        %4980 = vdwg.mxu0
        %4981 = vmatprep.subr.bf16.mxu0 %v3873
        %4982 = vmatpush1.bf16.msra.mxu0 %v3872
        %4983 = vmatprep.subr.bf16.mxu0 %v3881
        %4984 = vmatpush1.bf16.msra.mxu0 %v3880
        %4985 = vmatprep.subr.bf16.mxu0 %v3889
        %4986 = vmatpush1.bf16.msra.mxu0 %v3888
        %4987 = vmatprep.subr.bf16.mxu0 %v3897
        %4988 = vmatpush1.bf16.msra.mxu0 %v3896
        %4989 = vmatprep.subr.bf16.mxu0 %v3905
        %4990 = vmatpush1.bf16.msra.mxu0 %v3904
        %4991 = vmatprep.subr.bf16.mxu0 %v3913
        %4992 = vmatpush1.bf16.msra.mxu0 %v3912
        %4993 = vmatprep.subr.bf16.mxu0 %v3921
        %4994 = vmatpush1.bf16.msra.mxu0 %v3920
        %4995 = vmatprep.subr.bf16.mxu0 %v3929
        %4996 = vmatpush1.bf16.msra.mxu0 %v3928
        %4997 = vmatprep.subr.bf16.mxu0 %v3937
        %4998 = vmatpush1.bf16.msra.mxu0 %v3936
        %4999 = vmatprep.subr.bf16.mxu0 %v3945
        %5000 = vmatpush1.bf16.msra.mxu0 %v3944
        %5001 = vmatprep.subr.bf16.mxu0 %v3953
        %5002 = vmatpush1.bf16.msra.mxu0 %v3952
        %5003 = vmatprep.subr.bf16.mxu0 %v3961
        %5004 = vmatpush1.bf16.msra.mxu0 %v3960
        %5005 = vmatprep.subr.bf16.mxu0 %v3969
        %5006 = vmatpush1.bf16.msra.mxu0 %v3968
        %5007 = vmatprep.subr.bf16.mxu0 %v3977
        %5008 = vmatpush1.bf16.msra.mxu0 %v3976
        %5009 = vmatprep.subr.bf16.mxu0 %v3985
        %5010 = vmatpush1.bf16.msra.mxu0 %v3984
        %5011 = vmatprep.subr.bf16.mxu0 %v3993
        %5012 = vmatpush1.bf16.msra.mxu0 %v3992
        %5013 = vmatprep.mubr.bf16.mxu0 %v1393
        %5014 = vmatmul.mubr.bf16.gmra.mrb[0].mxu0 %v1392
        %v5015 = vpop.f32.mrb[0].mxu0
        %v5016 = vadd.f32 %v4973, %v5015
        %v5017 = vpop.f32.mrb[0].mxu0
        %v5018 = vadd.f32 %v4975, %v5017
        %v5019 = vpop.f32.mrb[0].mxu0
        %v5020 = vadd.f32 %v4977, %v5019
        %v5021 = vpop.f32.mrb[0].mxu0
        %v5022 = vadd.f32 %v4979, %v5021
        %5023 = vdwg.mxu0
        %5024 = vmatprep.subr.bf16.mxu0 %v3491
        %5025 = vmatpush1.bf16.msra.mxu0 %v3490
        %5026 = vmatprep.subr.bf16.mxu0 %v3499
        %5027 = vmatpush1.bf16.msra.mxu0 %v3498
        %5028 = vmatprep.subr.bf16.mxu0 %v3507
        %5029 = vmatpush1.bf16.msra.mxu0 %v3506
        %5030 = vmatprep.subr.bf16.mxu0 %v3515
        %5031 = vmatpush1.bf16.msra.mxu0 %v3514
        %5032 = vmatprep.subr.bf16.mxu0 %v3523
        %5033 = vmatpush1.bf16.msra.mxu0 %v3522
        %5034 = vmatprep.subr.bf16.mxu0 %v3531
        %5035 = vmatpush1.bf16.msra.mxu0 %v3530
        %5036 = vmatprep.subr.bf16.mxu0 %v3539
        %5037 = vmatpush1.bf16.msra.mxu0 %v3538
        %5038 = vmatprep.subr.bf16.mxu0 %v3547
        %5039 = vmatpush1.bf16.msra.mxu0 %v3546
        %5040 = vmatprep.subr.bf16.mxu0 %v3555
        %5041 = vmatpush1.bf16.msra.mxu0 %v3554
        %5042 = vmatprep.subr.bf16.mxu0 %v3563
        %5043 = vmatpush1.bf16.msra.mxu0 %v3562
        %5044 = vmatprep.subr.bf16.mxu0 %v3571
        %5045 = vmatpush1.bf16.msra.mxu0 %v3570
        %5046 = vmatprep.subr.bf16.mxu0 %v3579
        %5047 = vmatpush1.bf16.msra.mxu0 %v3578
        %5048 = vmatprep.subr.bf16.mxu0 %v3587
        %5049 = vmatpush1.bf16.msra.mxu0 %v3586
        %5050 = vmatprep.subr.bf16.mxu0 %v3595
        %5051 = vmatpush1.bf16.msra.mxu0 %v3594
        %5052 = vmatprep.subr.bf16.mxu0 %v3603
        %5053 = vmatpush1.bf16.msra.mxu0 %v3602
        %5054 = vmatprep.subr.bf16.mxu0 %v3611
        %5055 = vmatpush1.bf16.msra.mxu0 %v3610
        %5056 = vmatprep.mubr.bf16.mxu0 %v1387
        %5057 = vmatmul.mubr.bf16.gmra.mrb[0].mxu0 %v1386
        %v5058 = vpop.f32.mrb[0].mxu0
        %v5059 = vadd.f32 %v1935, %v5058
        %v5060 = vpop.f32.mrb[0].mxu0
        %v5061 = vadd.f32 %v1939, %v5060
        %v5062 = vpop.f32.mrb[0].mxu0
        %v5063 = vadd.f32 %v1935, %v5062
        %v5064 = vpop.f32.mrb[0].mxu0
        %v5065 = vadd.f32 %v1939, %v5064
        %5066 = vdwg.mxu0
        %5067 = vmatprep.subr.bf16.mxu0 %v3619
        %5068 = vmatpush1.bf16.msra.mxu0 %v3618
        %5069 = vmatprep.subr.bf16.mxu0 %v3627
        %5070 = vmatpush1.bf16.msra.mxu0 %v3626
        %5071 = vmatprep.subr.bf16.mxu0 %v3635
        %5072 = vmatpush1.bf16.msra.mxu0 %v3634
        %5073 = vmatprep.subr.bf16.mxu0 %v3643
        %5074 = vmatpush1.bf16.msra.mxu0 %v3642
        %5075 = vmatprep.subr.bf16.mxu0 %v3651
        %5076 = vmatpush1.bf16.msra.mxu0 %v3650
        %5077 = vmatprep.subr.bf16.mxu0 %v3659
        %5078 = vmatpush1.bf16.msra.mxu0 %v3658
        %5079 = vmatprep.subr.bf16.mxu0 %v3667
        %5080 = vmatpush1.bf16.msra.mxu0 %v3666
        %5081 = vmatprep.subr.bf16.mxu0 %v3675
        %5082 = vmatpush1.bf16.msra.mxu0 %v3674
        %5083 = vmatprep.subr.bf16.mxu0 %v3683
        %5084 = vmatpush1.bf16.msra.mxu0 %v3682
        %5085 = vmatprep.subr.bf16.mxu0 %v3691
        %5086 = vmatpush1.bf16.msra.mxu0 %v3690
        %5087 = vmatprep.subr.bf16.mxu0 %v3699
        %5088 = vmatpush1.bf16.msra.mxu0 %v3698
        %5089 = vmatprep.subr.bf16.mxu0 %v3707
        %5090 = vmatpush1.bf16.msra.mxu0 %v3706
        %5091 = vmatprep.subr.bf16.mxu0 %v3715
        %5092 = vmatpush1.bf16.msra.mxu0 %v3714
        %5093 = vmatprep.subr.bf16.mxu0 %v3723
        %5094 = vmatpush1.bf16.msra.mxu0 %v3722
        %5095 = vmatprep.subr.bf16.mxu0 %v3731
        %5096 = vmatpush1.bf16.msra.mxu0 %v3730
        %5097 = vmatprep.subr.bf16.mxu0 %v3739
        %5098 = vmatpush1.bf16.msra.mxu0 %v3738
        %5099 = vmatprep.mubr.bf16.mxu0 %v1389
        %5100 = vmatmul.mubr.bf16.gmra.mrb[0].mxu0 %v1388
        %v5101 = vpop.f32.mrb[0].mxu0
        %v5102 = vadd.f32 %v5059, %v5101
        %v5103 = vpop.f32.mrb[0].mxu0
        %v5104 = vadd.f32 %v5061, %v5103
        %v5105 = vpop.f32.mrb[0].mxu0
        %v5106 = vadd.f32 %v5063, %v5105
        %v5107 = vpop.f32.mrb[0].mxu0
        %v5108 = vadd.f32 %v5065, %v5107
        %5109 = vdwg.mxu0
        %5110 = vmatprep.subr.bf16.mxu0 %v3747
        %5111 = vmatpush1.bf16.msra.mxu0 %v3746
        %5112 = vmatprep.subr.bf16.mxu0 %v3755
        %5113 = vmatpush1.bf16.msra.mxu0 %v3754
        %5114 = vmatprep.subr.bf16.mxu0 %v3763
        %5115 = vmatpush1.bf16.msra.mxu0 %v3762
        %5116 = vmatprep.subr.bf16.mxu0 %v3771
        %5117 = vmatpush1.bf16.msra.mxu0 %v3770
        %5118 = vmatprep.subr.bf16.mxu0 %v3779
        %5119 = vmatpush1.bf16.msra.mxu0 %v3778
        %5120 = vmatprep.subr.bf16.mxu0 %v3787
        %5121 = vmatpush1.bf16.msra.mxu0 %v3786
        %5122 = vmatprep.subr.bf16.mxu0 %v3795
        %5123 = vmatpush1.bf16.msra.mxu0 %v3794
        %5124 = vmatprep.subr.bf16.mxu0 %v3803
        %5125 = vmatpush1.bf16.msra.mxu0 %v3802
        %5126 = vmatprep.subr.bf16.mxu0 %v3811
        %5127 = vmatpush1.bf16.msra.mxu0 %v3810
        %5128 = vmatprep.subr.bf16.mxu0 %v3819
        %5129 = vmatpush1.bf16.msra.mxu0 %v3818
        %5130 = vmatprep.subr.bf16.mxu0 %v3827
        %5131 = vmatpush1.bf16.msra.mxu0 %v3826
        %5132 = vmatprep.subr.bf16.mxu0 %v3835
        %5133 = vmatpush1.bf16.msra.mxu0 %v3834
        %5134 = vmatprep.subr.bf16.mxu0 %v3843
        %5135 = vmatpush1.bf16.msra.mxu0 %v3842
        %5136 = vmatprep.subr.bf16.mxu0 %v3851
        %5137 = vmatpush1.bf16.msra.mxu0 %v3850
        %5138 = vmatprep.subr.bf16.mxu0 %v3859
        %5139 = vmatpush1.bf16.msra.mxu0 %v3858
        %5140 = vmatprep.subr.bf16.mxu0 %v3867
        %5141 = vmatpush1.bf16.msra.mxu0 %v3866
        %5142 = vmatprep.mubr.bf16.mxu0 %v1391
        %5143 = vmatmul.mubr.bf16.gmra.mrb[0].mxu0 %v1390
        %v5144 = vpop.f32.mrb[0].mxu0
        %v5145 = vadd.f32 %v5102, %v5144
        %v5146 = vpop.f32.mrb[0].mxu0
        %v5147 = vadd.f32 %v5104, %v5146
        %v5148 = vpop.f32.mrb[0].mxu0
        %v5149 = vadd.f32 %v5106, %v5148
        %v5150 = vpop.f32.mrb[0].mxu0
        %v5151 = vadd.f32 %v5108, %v5150
        %5152 = vdwg.mxu0
        %5153 = vmatprep.subr.bf16.mxu0 %v3875
        %5154 = vmatpush1.bf16.msra.mxu0 %v3874
        %5155 = vmatprep.subr.bf16.mxu0 %v3883
        %5156 = vmatpush1.bf16.msra.mxu0 %v3882
        %5157 = vmatprep.subr.bf16.mxu0 %v3891
        %5158 = vmatpush1.bf16.msra.mxu0 %v3890
        %5159 = vmatprep.subr.bf16.mxu0 %v3899
        %5160 = vmatpush1.bf16.msra.mxu0 %v3898
        %5161 = vmatprep.subr.bf16.mxu0 %v3907
        %5162 = vmatpush1.bf16.msra.mxu0 %v3906
        %5163 = vmatprep.subr.bf16.mxu0 %v3915
        %5164 = vmatpush1.bf16.msra.mxu0 %v3914
        %5165 = vmatprep.subr.bf16.mxu0 %v3923
        %5166 = vmatpush1.bf16.msra.mxu0 %v3922
        %5167 = vmatprep.subr.bf16.mxu0 %v3931
        %5168 = vmatpush1.bf16.msra.mxu0 %v3930
        %5169 = vmatprep.subr.bf16.mxu0 %v3939
        %5170 = vmatpush1.bf16.msra.mxu0 %v3938
        %5171 = vmatprep.subr.bf16.mxu0 %v3947
        %5172 = vmatpush1.bf16.msra.mxu0 %v3946
        %5173 = vmatprep.subr.bf16.mxu0 %v3955
        %5174 = vmatpush1.bf16.msra.mxu0 %v3954
        %5175 = vmatprep.subr.bf16.mxu0 %v3963
        %5176 = vmatpush1.bf16.msra.mxu0 %v3962
        %5177 = vmatprep.subr.bf16.mxu0 %v3971
        %5178 = vmatpush1.bf16.msra.mxu0 %v3970
        %5179 = vmatprep.subr.bf16.mxu0 %v3979
        %5180 = vmatpush1.bf16.msra.mxu0 %v3978
        %5181 = vmatprep.subr.bf16.mxu0 %v3987
        %5182 = vmatpush1.bf16.msra.mxu0 %v3986
        %5183 = vmatprep.subr.bf16.mxu0 %v3995
        %5184 = vmatpush1.bf16.msra.mxu0 %v3994
        %5185 = vmatprep.mubr.bf16.mxu0 %v1393
        %5186 = vmatmul.mubr.bf16.gmra.mrb[0].mxu0 %v1392
        %v5187 = vpop.f32.mrb[0].mxu0
        %v5188 = vadd.f32 %v5145, %v5187
        %v5189 = vpop.f32.mrb[0].mxu0
        %v5190 = vadd.f32 %v5147, %v5189
        %v5191 = vpop.f32.mrb[0].mxu0
        %v5192 = vadd.f32 %v5149, %v5191
        %v5193 = vpop.f32.mrb[0].mxu0
        %v5194 = vadd.f32 %v5151, %v5193
        %5195 = vdwg.mxu0
        %v5196 = vmax.f32 %v4672, 0.0
        %v5197 = vmax.f32 %v4674, 0.0
        %v5198 = vmax.f32 %v4844, 0.0
        %v5199 = vmax.f32 %v4846, 0.0
        %v5200 = vmax.f32 %v5016, 0.0
        %v5201 = vmax.f32 %v5018, 0.0
        %v5202 = vmax.f32 %v5188, 0.0
        %v5203 = vmax.f32 %v5190, 0.0
        %v5204 = vmax.f32 %v4676, 0.0
        %v5205 = vmax.f32 %v4678, 0.0
        %v5206 = vmax.f32 %v4848, 0.0
        %v5207 = vmax.f32 %v4850, 0.0
        %v5208 = vmax.f32 %v5020, 0.0
        %v5209 = vmax.f32 %v5022, 0.0
        %v5210 = vmax.f32 %v5192, 0.0
        %v5211 = vmax.f32 %v5194, 0.0
        %v5212 = vpack.c.bf16 %v5204, %v5196
        %v5213 = vpack.c.bf16 %v5205, %v5197
        %v5214 = vpack.c.bf16 %v5206, %v5198
        %v5215 = vpack.c.bf16 %v5207, %v5199
        %v5216 = vpack.c.bf16 %v5208, %v5200
        %v5217 = vpack.c.bf16 %v5209, %v5201
        %v5218 = vpack.c.bf16 %v5210, %v5202
        %v5219 = vpack.c.bf16 %v5211, %v5203
        %v5220 = vld [vmem:[#allocation11] sm:$0xf]
        %v5221 = vld [vmem:[#allocation11 + $0x4] sm:$0xf]
        %v5222 = vld [vmem:[#allocation11 + $0x8] sm:$0xf]
        %v5223 = vld [vmem:[#allocation11 + $0xc] sm:$0xf]
        %v5224 = vld [vmem:[#allocation11 + $0x10] sm:$0xf]
        %v5225 = vld [vmem:[#allocation11 + $0x14] sm:$0xf]
        %v5226 = vld [vmem:[#allocation11 + $0x18] sm:$0xf]
        %v5227 = vld [vmem:[#allocation11 + $0x1c] sm:$0xf]
        %v5228 = vld [vmem:[#allocation11 + $0x20] sm:$0xf]
        %v5229 = vld [vmem:[#allocation11 + $0x24] sm:$0xf]
        %v5230 = vld [vmem:[#allocation11 + $0x28] sm:$0xf]
        %v5231 = vld [vmem:[#allocation11 + $0x2c] sm:$0xf]
        %v5232 = vld [vmem:[#allocation11 + $0x30] sm:$0xf]
        %v5233 = vld [vmem:[#allocation11 + $0x34] sm:$0xf]
        %v5234 = vld [vmem:[#allocation11 + $0x38] sm:$0xf]
        %v5235 = vld [vmem:[#allocation11 + $0x3c] sm:$0xf]
        %v5236 = vld [vmem:[#allocation11 + $0x40] sm:$0xf]
        %v5237 = vld [vmem:[#allocation11 + $0x44] sm:$0xf]
        %v5238 = vld [vmem:[#allocation11 + $0x48] sm:$0xf]
        %v5239 = vld [vmem:[#allocation11 + $0x4c] sm:$0xf]
        %v5240 = vld [vmem:[#allocation11 + $0x50] sm:$0xf]
        %v5241 = vld [vmem:[#allocation11 + $0x54] sm:$0xf]
        %v5242 = vld [vmem:[#allocation11 + $0x58] sm:$0xf]
        %v5243 = vld [vmem:[#allocation11 + $0x5c] sm:$0xf]
        %v5244 = vld [vmem:[#allocation11 + $0x60] sm:$0xf]
        %v5245 = vld [vmem:[#allocation11 + $0x64] sm:$0xf]
        %v5246 = vld [vmem:[#allocation11 + $0x68] sm:$0xf]
        %v5247 = vld [vmem:[#allocation11 + $0x6c] sm:$0xf]
        %v5248 = vld [vmem:[#allocation11 + $0x70] sm:$0xf]
        %v5249 = vld [vmem:[#allocation11 + $0x74] sm:$0xf]
        %v5250 = vld [vmem:[#allocation11 + $0x78] sm:$0xf]
        %v5251 = vld [vmem:[#allocation11 + $0x7c] sm:$0xf]
        %v5252 = vld [vmem:[#allocation11 + $0x80] sm:$0xf]
        %v5253 = vld [vmem:[#allocation11 + $0x84] sm:$0xf]
        %v5254 = vld [vmem:[#allocation11 + $0x88] sm:$0xf]
        %v5255 = vld [vmem:[#allocation11 + $0x8c] sm:$0xf]
        %v5256 = vld [vmem:[#allocation11 + $0x90] sm:$0xf]
        %v5257 = vld [vmem:[#allocation11 + $0x94] sm:$0xf]
        %v5258 = vld [vmem:[#allocation11 + $0x98] sm:$0xf]
        %v5259 = vld [vmem:[#allocation11 + $0x9c] sm:$0xf]
        %v5260 = vld [vmem:[#allocation11 + $0xa0] sm:$0xf]
        %v5261 = vld [vmem:[#allocation11 + $0xa4] sm:$0xf]
        %v5262 = vld [vmem:[#allocation11 + $0xa8] sm:$0xf]
        %v5263 = vld [vmem:[#allocation11 + $0xac] sm:$0xf]
        %v5264 = vld [vmem:[#allocation11 + $0xb0] sm:$0xf]
        %v5265 = vld [vmem:[#allocation11 + $0xb4] sm:$0xf]
        %v5266 = vld [vmem:[#allocation11 + $0xb8] sm:$0xf]
        %v5267 = vld [vmem:[#allocation11 + $0xbc] sm:$0xf]
        %v5268 = vld [vmem:[#allocation11 + $0xc0] sm:$0xf]
        %v5269 = vld [vmem:[#allocation11 + $0xc4] sm:$0xf]
        %v5270 = vld [vmem:[#allocation11 + $0xc8] sm:$0xf]
        %v5271 = vld [vmem:[#allocation11 + $0xcc] sm:$0xf]
        %v5272 = vld [vmem:[#allocation11 + $0xd0] sm:$0xf]
        %v5273 = vld [vmem:[#allocation11 + $0xd4] sm:$0xf]
        %v5274 = vld [vmem:[#allocation11 + $0xd8] sm:$0xf]
        %v5275 = vld [vmem:[#allocation11 + $0xdc] sm:$0xf]
        %v5276 = vld [vmem:[#allocation11 + $0xe0] sm:$0xf]
        %v5277 = vld [vmem:[#allocation11 + $0xe4] sm:$0xf]
        %v5278 = vld [vmem:[#allocation11 + $0xe8] sm:$0xf]
        %v5279 = vld [vmem:[#allocation11 + $0xec] sm:$0xf]
        %v5280 = vld [vmem:[#allocation11 + $0xf0] sm:$0xf]
        %v5281 = vld [vmem:[#allocation11 + $0xf4] sm:$0xf]
        %v5282 = vld [vmem:[#allocation11 + $0xf8] sm:$0xf]
        %v5283 = vld [vmem:[#allocation11 + $0xfc] sm:$0xf]
        %v5284 = vld [vmem:[#allocation11 + $0x100] sm:$0xf]
        %v5285 = vld [vmem:[#allocation11 + $0x104] sm:$0xf]
        %v5286 = vld [vmem:[#allocation11 + $0x108] sm:$0xf]
        %v5287 = vld [vmem:[#allocation11 + $0x10c] sm:$0xf]
        %v5288 = vld [vmem:[#allocation11 + $0x110] sm:$0xf]
        %v5289 = vld [vmem:[#allocation11 + $0x114] sm:$0xf]
        %v5290 = vld [vmem:[#allocation11 + $0x118] sm:$0xf]
        %v5291 = vld [vmem:[#allocation11 + $0x11c] sm:$0xf]
        %v5292 = vld [vmem:[#allocation11 + $0x120] sm:$0xf]
        %v5293 = vld [vmem:[#allocation11 + $0x124] sm:$0xf]
        %v5294 = vld [vmem:[#allocation11 + $0x128] sm:$0xf]
        %v5295 = vld [vmem:[#allocation11 + $0x12c] sm:$0xf]
        %v5296 = vld [vmem:[#allocation11 + $0x130] sm:$0xf]
        %v5297 = vld [vmem:[#allocation11 + $0x134] sm:$0xf]
        %v5298 = vld [vmem:[#allocation11 + $0x138] sm:$0xf]
        %v5299 = vld [vmem:[#allocation11 + $0x13c] sm:$0xf]
        %v5300 = vld [vmem:[#allocation11 + $0x140] sm:$0xf]
        %v5301 = vld [vmem:[#allocation11 + $0x144] sm:$0xf]
        %v5302 = vld [vmem:[#allocation11 + $0x148] sm:$0xf]
        %v5303 = vld [vmem:[#allocation11 + $0x14c] sm:$0xf]
        %v5304 = vld [vmem:[#allocation11 + $0x150] sm:$0xf]
        %v5305 = vld [vmem:[#allocation11 + $0x154] sm:$0xf]
        %v5306 = vld [vmem:[#allocation11 + $0x158] sm:$0xf]
        %v5307 = vld [vmem:[#allocation11 + $0x15c] sm:$0xf]
        %v5308 = vld [vmem:[#allocation11 + $0x160] sm:$0xf]
        %v5309 = vld [vmem:[#allocation11 + $0x164] sm:$0xf]
        %v5310 = vld [vmem:[#allocation11 + $0x168] sm:$0xf]
        %v5311 = vld [vmem:[#allocation11 + $0x16c] sm:$0xf]
        %v5312 = vld [vmem:[#allocation11 + $0x170] sm:$0xf]
        %v5313 = vld [vmem:[#allocation11 + $0x174] sm:$0xf]
        %v5314 = vld [vmem:[#allocation11 + $0x178] sm:$0xf]
        %v5315 = vld [vmem:[#allocation11 + $0x17c] sm:$0xf]
        %v5316 = vld [vmem:[#allocation11 + $0x180] sm:$0xf]
        %v5317 = vld [vmem:[#allocation11 + $0x184] sm:$0xf]
        %v5318 = vld [vmem:[#allocation11 + $0x188] sm:$0xf]
        %v5319 = vld [vmem:[#allocation11 + $0x18c] sm:$0xf]
        %v5320 = vld [vmem:[#allocation11 + $0x190] sm:$0xf]
        %v5321 = vld [vmem:[#allocation11 + $0x194] sm:$0xf]
        %v5322 = vld [vmem:[#allocation11 + $0x198] sm:$0xf]
        %v5323 = vld [vmem:[#allocation11 + $0x19c] sm:$0xf]
        %v5324 = vld [vmem:[#allocation11 + $0x1a0] sm:$0xf]
        %v5325 = vld [vmem:[#allocation11 + $0x1a4] sm:$0xf]
        %v5326 = vld [vmem:[#allocation11 + $0x1a8] sm:$0xf]
        %v5327 = vld [vmem:[#allocation11 + $0x1ac] sm:$0xf]
        %v5328 = vld [vmem:[#allocation11 + $0x1b0] sm:$0xf]
        %v5329 = vld [vmem:[#allocation11 + $0x1b4] sm:$0xf]
        %v5330 = vld [vmem:[#allocation11 + $0x1b8] sm:$0xf]
        %v5331 = vld [vmem:[#allocation11 + $0x1bc] sm:$0xf]
        %v5332 = vld [vmem:[#allocation11 + $0x1c0] sm:$0xf]
        %v5333 = vld [vmem:[#allocation11 + $0x1c4] sm:$0xf]
        %v5334 = vld [vmem:[#allocation11 + $0x1c8] sm:$0xf]
        %v5335 = vld [vmem:[#allocation11 + $0x1cc] sm:$0xf]
        %v5336 = vld [vmem:[#allocation11 + $0x1d0] sm:$0xf]
        %v5337 = vld [vmem:[#allocation11 + $0x1d4] sm:$0xf]
        %v5338 = vld [vmem:[#allocation11 + $0x1d8] sm:$0xf]
        %v5339 = vld [vmem:[#allocation11 + $0x1dc] sm:$0xf]
        %v5340 = vld [vmem:[#allocation11 + $0x1e0] sm:$0xf]
        %v5341 = vld [vmem:[#allocation11 + $0x1e4] sm:$0xf]
        %v5342 = vld [vmem:[#allocation11 + $0x1e8] sm:$0xf]
        %v5343 = vld [vmem:[#allocation11 + $0x1ec] sm:$0xf]
        %v5344 = vld [vmem:[#allocation11 + $0x1f0] sm:$0xf]
        %v5345 = vld [vmem:[#allocation11 + $0x1f4] sm:$0xf]
        %v5346 = vld [vmem:[#allocation11 + $0x1f8] sm:$0xf]
        %v5347 = vld [vmem:[#allocation11 + $0x1fc] sm:$0xf]
        %v5348 = vld [vmem:[#allocation13] sm:$0x1]
        %v5350 = vlaneseq
        %v5351 = vshrl.u32 %v5350, 7
        %v5352 = vsub.s32 0, %v5351
        %v5353 = vrot.slane %v5348, %v5352
        %v5483 = vunpack.c.l.b16 %v5220
        %v5484 = vunpack.c.l.b16 %v5221
        %v5485 = vunpack.c.l.b16 %v5222
        %v5486 = vunpack.c.l.b16 %v5223
        %v5487 = vunpack.c.l.b16 %v5224
        %v5488 = vunpack.c.l.b16 %v5225
        %v5489 = vunpack.c.l.b16 %v5226
        %v5490 = vunpack.c.l.b16 %v5227
        %v5491 = vunpack.c.l.b16 %v5228
        %v5492 = vunpack.c.l.b16 %v5229
        %v5493 = vunpack.c.l.b16 %v5230
        %v5494 = vunpack.c.l.b16 %v5231
        %v5495 = vunpack.c.l.b16 %v5232
        %v5496 = vunpack.c.l.b16 %v5233
        %v5497 = vunpack.c.l.b16 %v5234
        %v5498 = vunpack.c.l.b16 %v5235
        %v5499 = vunpack.c.l.b16 %v5236
        %v5500 = vunpack.c.l.b16 %v5237
        %v5501 = vunpack.c.l.b16 %v5238
        %v5502 = vunpack.c.l.b16 %v5239
        %v5503 = vunpack.c.l.b16 %v5240
        %v5504 = vunpack.c.l.b16 %v5241
        %v5505 = vunpack.c.l.b16 %v5242
        %v5506 = vunpack.c.l.b16 %v5243
        %v5507 = vunpack.c.l.b16 %v5244
        %v5508 = vunpack.c.l.b16 %v5245
        %v5509 = vunpack.c.l.b16 %v5246
        %v5510 = vunpack.c.l.b16 %v5247
        %v5511 = vunpack.c.l.b16 %v5248
        %v5512 = vunpack.c.l.b16 %v5249
        %v5513 = vunpack.c.l.b16 %v5250
        %v5514 = vunpack.c.l.b16 %v5251
        %v5515 = vunpack.c.l.b16 %v5252
        %v5516 = vunpack.c.l.b16 %v5253
        %v5517 = vunpack.c.l.b16 %v5254
        %v5518 = vunpack.c.l.b16 %v5255
        %v5519 = vunpack.c.l.b16 %v5256
        %v5520 = vunpack.c.l.b16 %v5257
        %v5521 = vunpack.c.l.b16 %v5258
        %v5522 = vunpack.c.l.b16 %v5259
        %v5523 = vunpack.c.l.b16 %v5260
        %v5524 = vunpack.c.l.b16 %v5261
        %v5525 = vunpack.c.l.b16 %v5262
        %v5526 = vunpack.c.l.b16 %v5263
        %v5527 = vunpack.c.l.b16 %v5264
        %v5528 = vunpack.c.l.b16 %v5265
        %v5529 = vunpack.c.l.b16 %v5266
        %v5530 = vunpack.c.l.b16 %v5267
        %v5531 = vunpack.c.l.b16 %v5268
        %v5532 = vunpack.c.l.b16 %v5269
        %v5533 = vunpack.c.l.b16 %v5270
        %v5534 = vunpack.c.l.b16 %v5271
        %v5535 = vunpack.c.l.b16 %v5272
        %v5536 = vunpack.c.l.b16 %v5273
        %v5537 = vunpack.c.l.b16 %v5274
        %v5538 = vunpack.c.l.b16 %v5275
        %v5539 = vunpack.c.l.b16 %v5276
        %v5540 = vunpack.c.l.b16 %v5277
        %v5541 = vunpack.c.l.b16 %v5278
        %v5542 = vunpack.c.l.b16 %v5279
        %v5543 = vunpack.c.l.b16 %v5280
        %v5544 = vunpack.c.l.b16 %v5281
        %v5545 = vunpack.c.l.b16 %v5282
        %v5546 = vunpack.c.l.b16 %v5283
        %v5547 = vunpack.c.l.b16 %v5284
        %v5548 = vunpack.c.l.b16 %v5285
        %v5549 = vunpack.c.l.b16 %v5286
        %v5550 = vunpack.c.l.b16 %v5287
        %v5551 = vunpack.c.l.b16 %v5288
        %v5552 = vunpack.c.l.b16 %v5289
        %v5553 = vunpack.c.l.b16 %v5290
        %v5554 = vunpack.c.l.b16 %v5291
        %v5555 = vunpack.c.l.b16 %v5292
        %v5556 = vunpack.c.l.b16 %v5293
        %v5557 = vunpack.c.l.b16 %v5294
        %v5558 = vunpack.c.l.b16 %v5295
        %v5559 = vunpack.c.l.b16 %v5296
        %v5560 = vunpack.c.l.b16 %v5297
        %v5561 = vunpack.c.l.b16 %v5298
        %v5562 = vunpack.c.l.b16 %v5299
        %v5563 = vunpack.c.l.b16 %v5300
        %v5564 = vunpack.c.l.b16 %v5301
        %v5565 = vunpack.c.l.b16 %v5302
        %v5566 = vunpack.c.l.b16 %v5303
        %v5567 = vunpack.c.l.b16 %v5304
        %v5568 = vunpack.c.l.b16 %v5305
        %v5569 = vunpack.c.l.b16 %v5306
        %v5570 = vunpack.c.l.b16 %v5307
        %v5571 = vunpack.c.l.b16 %v5308
        %v5572 = vunpack.c.l.b16 %v5309
        %v5573 = vunpack.c.l.b16 %v5310
        %v5574 = vunpack.c.l.b16 %v5311
        %v5575 = vunpack.c.l.b16 %v5312
        %v5576 = vunpack.c.l.b16 %v5313
        %v5577 = vunpack.c.l.b16 %v5314
        %v5578 = vunpack.c.l.b16 %v5315
        %v5579 = vunpack.c.l.b16 %v5316
        %v5580 = vunpack.c.l.b16 %v5317
        %v5581 = vunpack.c.l.b16 %v5318
        %v5582 = vunpack.c.l.b16 %v5319
        %v5583 = vunpack.c.l.b16 %v5320
        %v5584 = vunpack.c.l.b16 %v5321
        %v5585 = vunpack.c.l.b16 %v5322
        %v5586 = vunpack.c.l.b16 %v5323
        %v5587 = vunpack.c.l.b16 %v5324
        %v5588 = vunpack.c.l.b16 %v5325
        %v5589 = vunpack.c.l.b16 %v5326
        %v5590 = vunpack.c.l.b16 %v5327
        %v5591 = vunpack.c.l.b16 %v5328
        %v5592 = vunpack.c.l.b16 %v5329
        %v5593 = vunpack.c.l.b16 %v5330
        %v5594 = vunpack.c.l.b16 %v5331
        %v5595 = vunpack.c.l.b16 %v5332
        %v5596 = vunpack.c.l.b16 %v5333
        %v5597 = vunpack.c.l.b16 %v5334
        %v5598 = vunpack.c.l.b16 %v5335
        %v5599 = vunpack.c.l.b16 %v5336
        %v5600 = vunpack.c.l.b16 %v5337
        %v5601 = vunpack.c.l.b16 %v5338
        %v5602 = vunpack.c.l.b16 %v5339
        %v5603 = vunpack.c.l.b16 %v5340
        %v5604 = vunpack.c.l.b16 %v5341
        %v5605 = vunpack.c.l.b16 %v5342
        %v5606 = vunpack.c.l.b16 %v5343
        %v5607 = vunpack.c.l.b16 %v5344
        %v5608 = vunpack.c.l.b16 %v5345
        %v5609 = vunpack.c.l.b16 %v5346
        %v5610 = vunpack.c.l.b16 %v5347
        %v5611 = vpack.c.b16 %v5484, %v5483
        %v5612 = vpack.c.b16 %v5486, %v5485
        %v5613 = vpack.c.b16 %v5488, %v5487
        %v5614 = vpack.c.b16 %v5490, %v5489
        %v5615 = vpack.c.b16 %v5492, %v5491
        %v5616 = vpack.c.b16 %v5494, %v5493
        %v5617 = vpack.c.b16 %v5496, %v5495
        %v5618 = vpack.c.b16 %v5498, %v5497
        %v5619 = vpack.c.b16 %v5500, %v5499
        %v5620 = vpack.c.b16 %v5502, %v5501
        %v5621 = vpack.c.b16 %v5504, %v5503
        %v5622 = vpack.c.b16 %v5506, %v5505
        %v5623 = vpack.c.b16 %v5508, %v5507
        %v5624 = vpack.c.b16 %v5510, %v5509
        %v5625 = vpack.c.b16 %v5512, %v5511
        %v5626 = vpack.c.b16 %v5514, %v5513
        %v5627 = vpack.c.b16 %v5516, %v5515
        %v5628 = vpack.c.b16 %v5518, %v5517
        %v5629 = vpack.c.b16 %v5520, %v5519
        %v5630 = vpack.c.b16 %v5522, %v5521
        %v5631 = vpack.c.b16 %v5524, %v5523
        %v5632 = vpack.c.b16 %v5526, %v5525
        %v5633 = vpack.c.b16 %v5528, %v5527
        %v5634 = vpack.c.b16 %v5530, %v5529
        %v5635 = vpack.c.b16 %v5532, %v5531
        %v5636 = vpack.c.b16 %v5534, %v5533
        %v5637 = vpack.c.b16 %v5536, %v5535
        %v5638 = vpack.c.b16 %v5538, %v5537
        %v5639 = vpack.c.b16 %v5540, %v5539
        %v5640 = vpack.c.b16 %v5542, %v5541
        %v5641 = vpack.c.b16 %v5544, %v5543
        %v5642 = vpack.c.b16 %v5546, %v5545
        %v5643 = vpack.c.b16 %v5548, %v5547
        %v5644 = vpack.c.b16 %v5550, %v5549
        %v5645 = vpack.c.b16 %v5552, %v5551
        %v5646 = vpack.c.b16 %v5554, %v5553
        %v5647 = vpack.c.b16 %v5556, %v5555
        %v5648 = vpack.c.b16 %v5558, %v5557
        %v5649 = vpack.c.b16 %v5560, %v5559
        %v5650 = vpack.c.b16 %v5562, %v5561
        %v5651 = vpack.c.b16 %v5564, %v5563
        %v5652 = vpack.c.b16 %v5566, %v5565
        %v5653 = vpack.c.b16 %v5568, %v5567
        %v5654 = vpack.c.b16 %v5570, %v5569
        %v5655 = vpack.c.b16 %v5572, %v5571
        %v5656 = vpack.c.b16 %v5574, %v5573
        %v5657 = vpack.c.b16 %v5576, %v5575
        %v5658 = vpack.c.b16 %v5578, %v5577
        %v5659 = vpack.c.b16 %v5580, %v5579
        %v5660 = vpack.c.b16 %v5582, %v5581
        %v5661 = vpack.c.b16 %v5584, %v5583
        %v5662 = vpack.c.b16 %v5586, %v5585
        %v5663 = vpack.c.b16 %v5588, %v5587
        %v5664 = vpack.c.b16 %v5590, %v5589
        %v5665 = vpack.c.b16 %v5592, %v5591
        %v5666 = vpack.c.b16 %v5594, %v5593
        %v5667 = vpack.c.b16 %v5596, %v5595
        %v5668 = vpack.c.b16 %v5598, %v5597
        %v5669 = vpack.c.b16 %v5600, %v5599
        %v5670 = vpack.c.b16 %v5602, %v5601
        %v5671 = vpack.c.b16 %v5604, %v5603
        %v5672 = vpack.c.b16 %v5606, %v5605
        %v5673 = vpack.c.b16 %v5608, %v5607
        %v5674 = vpack.c.b16 %v5610, %v5609
        %5739 = vmatprep.subr.bf16.mxu0 0
        %5740 = vmatpush1.bf16.msra.mxu0 %v5611
        %5741 = vmatprep.subr.bf16.mxu0 0
        %5742 = vmatpush1.bf16.msra.mxu0 %v5612
        %5743 = vmatprep.subr.bf16.mxu0 0
        %5744 = vmatpush1.bf16.msra.mxu0 %v5613
        %5745 = vmatprep.subr.bf16.mxu0 0
        %5746 = vmatpush1.bf16.msra.mxu0 %v5614
        %5747 = vmatprep.subr.bf16.mxu0 0
        %5748 = vmatpush1.bf16.msra.mxu0 %v5615
        %5749 = vmatprep.subr.bf16.mxu0 0
        %5750 = vmatpush1.bf16.msra.mxu0 %v5616
        %5751 = vmatprep.subr.bf16.mxu0 0
        %5752 = vmatpush1.bf16.msra.mxu0 %v5617
        %5753 = vmatprep.subr.bf16.mxu0 0
        %5754 = vmatpush1.bf16.msra.mxu0 %v5618
        %5755 = vmatprep.subr.bf16.mxu0 0
        %5756 = vmatpush1.bf16.msra.mxu0 %v5619
        %5757 = vmatprep.subr.bf16.mxu0 0
        %5758 = vmatpush1.bf16.msra.mxu0 %v5620
        %5759 = vmatprep.subr.bf16.mxu0 0
        %5760 = vmatpush1.bf16.msra.mxu0 %v5621
        %5761 = vmatprep.subr.bf16.mxu0 0
        %5762 = vmatpush1.bf16.msra.mxu0 %v5622
        %5763 = vmatprep.subr.bf16.mxu0 0
        %5764 = vmatpush1.bf16.msra.mxu0 %v5623
        %5765 = vmatprep.subr.bf16.mxu0 0
        %5766 = vmatpush1.bf16.msra.mxu0 %v5624
        %5767 = vmatprep.subr.bf16.mxu0 0
        %5768 = vmatpush1.bf16.msra.mxu0 %v5625
        %5769 = vmatprep.subr.bf16.mxu0 0
        %5770 = vmatpush1.bf16.msra.mxu0 %v5626
        %5771 = vmatprep.mubr.bf16.mxu0 %v5213
        %5772 = vmatmul.mubr.bf16.gmra.mrb[0].mxu0 %v5212
        %v5773 = vpop.f32.mrb[0].mxu0
        %v5774 = vadd.f32 %v5353, %v5773
        %v5775 = vpop.f32.mrb[0].mxu0
        %v5776 = vpop.f32.mrb[0].mxu0
        %v5777 = vadd.f32 %v5353, %v5776
        %v5778 = vpop.f32.mrb[0].mxu0
        %5779 = vdwg.mxu0
        %5780 = vmatprep.subr.bf16.mxu0 0
        %5781 = vmatpush1.bf16.msra.mxu0 %v5627
        %5782 = vmatprep.subr.bf16.mxu0 0
        %5783 = vmatpush1.bf16.msra.mxu0 %v5628
        %5784 = vmatprep.subr.bf16.mxu0 0
        %5785 = vmatpush1.bf16.msra.mxu0 %v5629
        %5786 = vmatprep.subr.bf16.mxu0 0
        %5787 = vmatpush1.bf16.msra.mxu0 %v5630
        %5788 = vmatprep.subr.bf16.mxu0 0
        %5789 = vmatpush1.bf16.msra.mxu0 %v5631
        %5790 = vmatprep.subr.bf16.mxu0 0
        %5791 = vmatpush1.bf16.msra.mxu0 %v5632
        %5792 = vmatprep.subr.bf16.mxu0 0
        %5793 = vmatpush1.bf16.msra.mxu0 %v5633
        %5794 = vmatprep.subr.bf16.mxu0 0
        %5795 = vmatpush1.bf16.msra.mxu0 %v5634
        %5796 = vmatprep.subr.bf16.mxu0 0
        %5797 = vmatpush1.bf16.msra.mxu0 %v5635
        %5798 = vmatprep.subr.bf16.mxu0 0
        %5799 = vmatpush1.bf16.msra.mxu0 %v5636
        %5800 = vmatprep.subr.bf16.mxu0 0
        %5801 = vmatpush1.bf16.msra.mxu0 %v5637
        %5802 = vmatprep.subr.bf16.mxu0 0
        %5803 = vmatpush1.bf16.msra.mxu0 %v5638
        %5804 = vmatprep.subr.bf16.mxu0 0
        %5805 = vmatpush1.bf16.msra.mxu0 %v5639
        %5806 = vmatprep.subr.bf16.mxu0 0
        %5807 = vmatpush1.bf16.msra.mxu0 %v5640
        %5808 = vmatprep.subr.bf16.mxu0 0
        %5809 = vmatpush1.bf16.msra.mxu0 %v5641
        %5810 = vmatprep.subr.bf16.mxu0 0
        %5811 = vmatpush1.bf16.msra.mxu0 %v5642
        %5812 = vmatprep.mubr.bf16.mxu0 %v5215
        %5813 = vmatmul.mubr.bf16.gmra.mrb[0].mxu0 %v5214
        %v5814 = vpop.f32.mrb[0].mxu0
        %v5815 = vadd.f32 %v5774, %v5814
        %v5816 = vpop.f32.mrb[0].mxu0
        %v5817 = vpop.f32.mrb[0].mxu0
        %v5818 = vadd.f32 %v5777, %v5817
        %v5819 = vpop.f32.mrb[0].mxu0
        %5820 = vdwg.mxu0
        %5821 = vmatprep.subr.bf16.mxu0 0
        %5822 = vmatpush1.bf16.msra.mxu0 %v5643
        %5823 = vmatprep.subr.bf16.mxu0 0
        %5824 = vmatpush1.bf16.msra.mxu0 %v5644
        %5825 = vmatprep.subr.bf16.mxu0 0
        %5826 = vmatpush1.bf16.msra.mxu0 %v5645
        %5827 = vmatprep.subr.bf16.mxu0 0
        %5828 = vmatpush1.bf16.msra.mxu0 %v5646
        %5829 = vmatprep.subr.bf16.mxu0 0
        %5830 = vmatpush1.bf16.msra.mxu0 %v5647
        %5831 = vmatprep.subr.bf16.mxu0 0
        %5832 = vmatpush1.bf16.msra.mxu0 %v5648
        %5833 = vmatprep.subr.bf16.mxu0 0
        %5834 = vmatpush1.bf16.msra.mxu0 %v5649
        %5835 = vmatprep.subr.bf16.mxu0 0
        %5836 = vmatpush1.bf16.msra.mxu0 %v5650
        %5837 = vmatprep.subr.bf16.mxu0 0
        %5838 = vmatpush1.bf16.msra.mxu0 %v5651
        %5839 = vmatprep.subr.bf16.mxu0 0
        %5840 = vmatpush1.bf16.msra.mxu0 %v5652
        %5841 = vmatprep.subr.bf16.mxu0 0
        %5842 = vmatpush1.bf16.msra.mxu0 %v5653
        %5843 = vmatprep.subr.bf16.mxu0 0
        %5844 = vmatpush1.bf16.msra.mxu0 %v5654
        %5845 = vmatprep.subr.bf16.mxu0 0
        %5846 = vmatpush1.bf16.msra.mxu0 %v5655
        %5847 = vmatprep.subr.bf16.mxu0 0
        %5848 = vmatpush1.bf16.msra.mxu0 %v5656
        %5849 = vmatprep.subr.bf16.mxu0 0
        %5850 = vmatpush1.bf16.msra.mxu0 %v5657
        %5851 = vmatprep.subr.bf16.mxu0 0
        %5852 = vmatpush1.bf16.msra.mxu0 %v5658
        %5853 = vmatprep.mubr.bf16.mxu0 %v5217
        %5854 = vmatmul.mubr.bf16.gmra.mrb[0].mxu0 %v5216
        %v5855 = vpop.f32.mrb[0].mxu0
        %v5856 = vadd.f32 %v5815, %v5855
        %v5857 = vpop.f32.mrb[0].mxu0
        %v5858 = vpop.f32.mrb[0].mxu0
        %v5859 = vadd.f32 %v5818, %v5858
        %v5860 = vpop.f32.mrb[0].mxu0
        %5861 = vdwg.mxu0
        %5862 = vmatprep.subr.bf16.mxu0 0
        %5863 = vmatpush1.bf16.msra.mxu0 %v5659
        %5864 = vmatprep.subr.bf16.mxu0 0
        %5865 = vmatpush1.bf16.msra.mxu0 %v5660
        %5866 = vmatprep.subr.bf16.mxu0 0
        %5867 = vmatpush1.bf16.msra.mxu0 %v5661
        %5868 = vmatprep.subr.bf16.mxu0 0
        %5869 = vmatpush1.bf16.msra.mxu0 %v5662
        %5870 = vmatprep.subr.bf16.mxu0 0
        %5871 = vmatpush1.bf16.msra.mxu0 %v5663
        %5872 = vmatprep.subr.bf16.mxu0 0
        %5873 = vmatpush1.bf16.msra.mxu0 %v5664
        %5874 = vmatprep.subr.bf16.mxu0 0
        %5875 = vmatpush1.bf16.msra.mxu0 %v5665
        %5876 = vmatprep.subr.bf16.mxu0 0
        %5877 = vmatpush1.bf16.msra.mxu0 %v5666
        %5878 = vmatprep.subr.bf16.mxu0 0
        %5879 = vmatpush1.bf16.msra.mxu0 %v5667
        %5880 = vmatprep.subr.bf16.mxu0 0
        %5881 = vmatpush1.bf16.msra.mxu0 %v5668
        %5882 = vmatprep.subr.bf16.mxu0 0
        %5883 = vmatpush1.bf16.msra.mxu0 %v5669
        %5884 = vmatprep.subr.bf16.mxu0 0
        %5885 = vmatpush1.bf16.msra.mxu0 %v5670
        %5886 = vmatprep.subr.bf16.mxu0 0
        %5887 = vmatpush1.bf16.msra.mxu0 %v5671
        %5888 = vmatprep.subr.bf16.mxu0 0
        %5889 = vmatpush1.bf16.msra.mxu0 %v5672
        %5890 = vmatprep.subr.bf16.mxu0 0
        %5891 = vmatpush1.bf16.msra.mxu0 %v5673
        %5892 = vmatprep.subr.bf16.mxu0 0
        %5893 = vmatpush1.bf16.msra.mxu0 %v5674
        %5894 = vmatprep.mubr.bf16.mxu0 %v5219
        %5895 = vmatmul.mubr.bf16.gmra.mrb[0].mxu0 %v5218
        %v5896 = vpop.f32.mrb[0].mxu0
        %v5897 = vadd.f32 %v5856, %v5896
        %v5898 = vpop.f32.mrb[0].mxu0
        %v5899 = vpop.f32.mrb[0].mxu0
        %v5900 = vadd.f32 %v5859, %v5899
        %v5901 = vpop.f32.mrb[0].mxu0
        %5902 = vdwg.mxu0
        %5903 = vst [vmem:[%s378] sm:$0xff] %v5897
        %5904 = vst [vmem:[%s378 + $0x8] sm:$0xff] %v5900
        %s5905 = sand.u32 %s187, 1
        %s5906 = scalar_lea.sflag [#allocation4], %s5905
        %s5907 = sand.u32 %s187, 1
        %s5908 = smul.addr %s5907, 16
        %s5909 = scalar_lea.vmem [#allocation14], %s5908
        // Predicated region
        $region77: #{tpu_custom_call.1} parent=47 // pred_check
          %p5910 = pneg %p197
        $region78: #{tpu_custom_call.1} parent=47 // pred_check_branch
          %5912 = sbr.rel (%p5910) target = $region80
        $region79: #{tpu_custom_call.1} parent=47 // pred_region
          %s5913 = smul.u32 2, %s27
          %s5915 = ssub.s32 256, 256
          %5916 = vsyncadd %s5906, %s5915
          %s5917 = smul.addr %s5913, 128
          %s5918 = scalar_lea.hbm %s7, %s5917
          %s5919 = sshll.u32 %s5909, 4
          %s5920 = int_to_ptr.vmem [resolvable:$true] %s5919
          %5925 = dma.vmem_to_hbm [thread:$0]  %s5920, 256, %s5918, %s5906, 128, 128, 8
        $region80: #{tpu_custom_call.1} parent=47 // pred_fallthru
          _
      $region48: #{tpu_custom_call.1} parent=5 // pred_fallthru
        _
      %p5926 = scmp.le.s32.totalorder 2, %s22
      // Predicated region
      $region81: #{tpu_custom_call.1} parent=5 // pred_check
        %p5927 = pneg %p5926
      $region82: #{tpu_custom_call.1} parent=5 // pred_check_branch
        %5929 = sbr.rel (%p5927) target = $region84
      $region83: #{tpu_custom_call.1} parent=5 // pred_region
        %s5930 = ssub.s32 %s22, 2
        // Predicated region
        $region85: #{tpu_custom_call.1} parent=83 // pred_check
          %p5931 = pneg %p203
        $region86: #{tpu_custom_call.1} parent=83 // pred_check_branch
          %5933 = sbr.rel (%p5931) target = $region88
        $region87: #{tpu_custom_call.1} parent=83 // pred_region
          %s5934 = sand.u32 %s188, 1
          %s5935 = scalar_lea.sflag [#allocation4], %s5934
          %s5936 = sand.u32 %s188, 1
          %s5937 = smul.addr %s5936, 16
          %s5938 = scalar_lea.vmem [#allocation14], %s5937
          %5939 = dma.done %s5935, 256
        $region88: #{tpu_custom_call.1} parent=83 // pred_fallthru
          _
      $region84: #{tpu_custom_call.1} parent=5 // pred_fallthru
        _
    $region6: #{tpu_custom_call.1} parent=1 // loop_footer
      %s26 = sadd.s32 1, %s22
    $region7: #{tpu_custom_call.1} parent=1 // loop_footer_branch
      %21 = sbr.rel target = $region3
    $region8: #{tpu_custom_call.1} parent=1 // loop_exit
      _
    %5940 = vsyncpa [#allocation3], 1
    %s5941 = scalar_lea.sflag [#allocation3], 1
    %5942 = vsyncpa %s5941, 1
    %5943 = vsyncpa [#allocation6], 1
    %5944 = vsyncpa [#allocation9], 1
    %5945 = vsyncpa [#allocation12], 1
    %5946 = vsyncpa [#allocation4], 1
    %s5947 = scalar_lea.sflag [#allocation4], 1
    %5948 = vsyncpa %s5947, 1

// kernel: tpu_custom_call.1
$region0: #{tpu_custom_call.1}
  #allocation0 [shape = 'u32[]', space=smem, size = 0x4, offset = 0x4, fixed_abs, tag = 'smem constant byte address 0x4 - core index']
  #allocation1 [shape = 'u32[144,128]{1,0:T(1,128)}', space=vmem, size = 0x12000, scoped, tag = 'internal scratch']
  %s0 = inlined_call_operand.hbm [shape: f32[64,256], index: 0, kind: input, shape index: {}]
  %s1 = inlined_call_operand.hbm [shape: bf16[256,1024], index: 1, kind: input, shape index: {}]
  %s2 = inlined_call_operand.hbm [shape: f32[1,1024], index: 2, kind: input, shape index: {}]
  %s3 = inlined_call_operand.hbm [shape: bf16[1024,1024], index: 3, kind: input, shape index: {}]
  %s4 = inlined_call_operand.hbm [shape: f32[1,1024], index: 4, kind: input, shape index: {}]
  %s5 = inlined_call_operand.hbm [shape: bf16[1024,128], index: 5, kind: input, shape index: {}]
  %s6 = inlined_call_operand.hbm [shape: f32[1,128], index: 6, kind: input, shape index: {}]
  %s7 = inlined_call_operand.hbm [shape: f32[64,128], index: 7, kind: output, shape index: {}]
  %s8 = sld [smem:[#allocation0]]
  $region89: #{tpu_custom_call.1} parent=0
    _
  %s10 = ssub.s32 1, %s8
  %s11 = scalar_select 0, %s10, %s8
  $region1: #{tpu_custom_call.1} parent=0
    #allocation2 [shape = 'u8[32768]{0}', space=vmem, size = 0x8000, scoped, tag = 'input window, operand 0']
    #allocation3 [shape = 's32[2]{0}', space=sflag, size = 0x8, scoped, tag = 'scoped memory for tpu_custom_call.1']
    #allocation4 [shape = 's32[2]{0}', space=sflag, size = 0x8, scoped, tag = 'scoped memory for tpu_custom_call.1']
    #allocation5 [shape = 'u8[524288]{0}', space=vmem, size = 0x80000, scoped, tag = 'input window, operand 1, single buffered']
    #allocation6 [shape = 's32[1]{0}', space=sflag, size = 0x4, scoped, tag = 'scoped memory for tpu_custom_call.1']
    #allocation7 [shape = 'u8[4096]{0}', space=vmem, size = 0x1000, scoped, tag = 'input window, operand 2, single buffered']
    #allocation8 [shape = 'u8[2097152]{0}', space=vmem, size = 0x200000, scoped, tag = 'input window, operand 3, single buffered']
    #allocation9 [shape = 's32[1]{0}', space=sflag, size = 0x4, scoped, tag = 'scoped memory for tpu_custom_call.1']
    #allocation10 [shape = 'u8[4096]{0}', space=vmem, size = 0x1000, scoped, tag = 'input window, operand 4, single buffered']
    #allocation11 [shape = 'u8[262144]{0}', space=vmem, size = 0x40000, scoped, tag = 'input window, operand 5, single buffered']
    #allocation12 [shape = 's32[1]{0}', space=sflag, size = 0x4, scoped, tag = 'scoped memory for tpu_custom_call.1']
    #allocation13 [shape = 'u8[512]{0}', space=vmem, size = 0x400, scoped, tag = 'input window, operand 6, single buffered']
    #allocation14 [shape = 'u8[16384]{0}', space=vmem, size = 0x4000, scoped, tag = 'output window, operand 0']
    %12 = vsyncpa [#allocation3], 0
    %s13 = scalar_lea.sflag [#allocation3], 1
    %14 = vsyncpa %s13, 0
    %15 = vsyncpa [#allocation6], 0
    %16 = vsyncpa [#allocation9], 0
    %17 = vsyncpa [#allocation12], 0
    %18 = vsyncpa [#allocation4], 0
    %s19 = scalar_lea.sflag [#allocation4], 1
    %20 = vsyncpa %s19, 0
    loop: start=0, step=1, limit=6
    $region2: #{tpu_custom_call.1} parent=1 // loop_pre_header
      _
    $region3: #{tpu_custom_call.1} parent=1 // loop_header
      %s22 = sphi 0, %s26
      %p23 = scmp.ge.s32.totalorder %s22, 6
      %s32 = sphi 0, %s34
      %s35 = sphi 0, %s32
      %s36 = sphi 0, %s35
      %s52 = sphi 0, %s36
      %s56 = sphi 0, %s56
      %s58 = sphi 0, %s56
      %s59 = sphi 0, %s58
      %s73 = sphi 0, %s59
      %s77 = sphi 0, %s77
      %s79 = sphi 0, %s77
      %s80 = sphi 0, %s79
      %s94 = sphi 0, %s80
      %s98 = sphi 0, %s98
      %s100 = sphi 0, %s98
      %s101 = sphi 0, %s100
      %s115 = sphi 0, %s101
      %s119 = sphi 0, %s119
      %s121 = sphi 0, %s119
      %s122 = sphi 0, %s121
      %s136 = sphi 0, %s122
      %s140 = sphi 0, %s140
      %s142 = sphi 0, %s140
      %s143 = sphi 0, %s142
      %s157 = sphi 0, %s143
      %s161 = sphi 0, %s161
      %s163 = sphi 0, %s161
      %s164 = sphi 0, %s163
      %s178 = sphi 0, %s164
      %s184 = sphi 0, %s186
      %s187 = sphi 0, %s184
      %s188 = sphi 0, %s187
      %s204 = sphi 0, %s188
    $region4: #{tpu_custom_call.1} parent=1 // loop_header_branch
      %25 = sbr.rel (%p23) target = $region8
    $region5: #{tpu_custom_call.1} parent=1 // loop_body
      %s27 = ssub.s32 %s22, 1
      %s28 = ssub.s32 %s22, 2
      %s29 = sadd.s32 %s22, 1
      %s30 = ssub.s32 %s22, %s29
      %p31 = scmp.eq.s32.totalorder %s30, 0
      %s33 = sadd.s32 %s32, 1
      %s34 = scalar_select %p31, %s32, %s33
      %p37 = pneg %p31
      %p38 = scmp.eq.s32.totalorder %s22, 3
      %p39 = por %p37, %p38
      %p40 = scmp.ne.s32.totalorder %s32, %s35
      %p41 = scmp.eq.s32.totalorder %s22, 0
      %p42 = por %p40, %p41
      %p43 = scmp.ne.s32.totalorder %s32, %s35
      %p44 = scmp.eq.s32.totalorder %s27, 3
      %p45 = por %p43, %p44
      %p46 = scmp.ne.s32.totalorder %s35, %s36
      %p47 = scmp.eq.s32.totalorder %s27, 0
      %p48 = por %p46, %p47
      %p49 = scmp.ne.s32.totalorder %s35, %s36
      %p50 = scmp.eq.s32.totalorder %s28, 3
      %p51 = por %p49, %p50
      %p53 = scmp.ne.s32.totalorder %s36, %s52
      %p54 = scmp.eq.s32.totalorder %s28, 0
      %p55 = por %p53, %p54
      %s57 = sadd.s32 %s56, 1
      %p60 = scmp.eq.s32.totalorder %s22, 3
      %p61 = scmp.ne.s32.totalorder %s56, %s58
      %p62 = scmp.eq.s32.totalorder %s22, 0
      %p63 = por %p61, %p62
      %p64 = scmp.ne.s32.totalorder %s56, %s58
      %p65 = scmp.eq.s32.totalorder %s27, 3
      %p66 = por %p64, %p65
      %p67 = scmp.ne.s32.totalorder %s58, %s59
      %p68 = scmp.eq.s32.totalorder %s27, 0
      %p69 = por %p67, %p68
      %p70 = scmp.ne.s32.totalorder %s58, %s59
      %p71 = scmp.eq.s32.totalorder %s28, 3
      %p72 = por %p70, %p71
      %p74 = scmp.ne.s32.totalorder %s59, %s73
      %p75 = scmp.eq.s32.totalorder %s28, 0
      %p76 = por %p74, %p75
      %s78 = sadd.s32 %s77, 1
      %p81 = scmp.eq.s32.totalorder %s22, 3
      %p82 = scmp.ne.s32.totalorder %s77, %s79
      %p83 = scmp.eq.s32.totalorder %s22, 0
      %p84 = por %p82, %p83
      %p85 = scmp.ne.s32.totalorder %s77, %s79
      %p86 = scmp.eq.s32.totalorder %s27, 3
      %p87 = por %p85, %p86
      %p88 = scmp.ne.s32.totalorder %s79, %s80
      %p89 = scmp.eq.s32.totalorder %s27, 0
      %p90 = por %p88, %p89
      %p91 = scmp.ne.s32.totalorder %s79, %s80
      %p92 = scmp.eq.s32.totalorder %s28, 3
      %p93 = por %p91, %p92
      %p95 = scmp.ne.s32.totalorder %s80, %s94
      %p96 = scmp.eq.s32.totalorder %s28, 0
      %p97 = por %p95, %p96
      %s99 = sadd.s32 %s98, 1
      %p102 = scmp.eq.s32.totalorder %s22, 3
      %p103 = scmp.ne.s32.totalorder %s98, %s100
      %p104 = scmp.eq.s32.totalorder %s22, 0
      %p105 = por %p103, %p104
      %p106 = scmp.ne.s32.totalorder %s98, %s100
      %p107 = scmp.eq.s32.totalorder %s27, 3
      %p108 = por %p106, %p107
      %p109 = scmp.ne.s32.totalorder %s100, %s101
      %p110 = scmp.eq.s32.totalorder %s27, 0
      %p111 = por %p109, %p110
      %p112 = scmp.ne.s32.totalorder %s100, %s101
      %p113 = scmp.eq.s32.totalorder %s28, 3
      %p114 = por %p112, %p113
      %p116 = scmp.ne.s32.totalorder %s101, %s115
      %p117 = scmp.eq.s32.totalorder %s28, 0
      %p118 = por %p116, %p117
      %s120 = sadd.s32 %s119, 1
      %p123 = scmp.eq.s32.totalorder %s22, 3
      %p124 = scmp.ne.s32.totalorder %s119, %s121
      %p125 = scmp.eq.s32.totalorder %s22, 0
      %p126 = por %p124, %p125
      %p127 = scmp.ne.s32.totalorder %s119, %s121
      %p128 = scmp.eq.s32.totalorder %s27, 3
      %p129 = por %p127, %p128
      %p130 = scmp.ne.s32.totalorder %s121, %s122
      %p131 = scmp.eq.s32.totalorder %s27, 0
      %p132 = por %p130, %p131
      %p133 = scmp.ne.s32.totalorder %s121, %s122
      %p134 = scmp.eq.s32.totalorder %s28, 3
      %p135 = por %p133, %p134
      %p137 = scmp.ne.s32.totalorder %s122, %s136
      %p138 = scmp.eq.s32.totalorder %s28, 0
      %p139 = por %p137, %p138
      %s141 = sadd.s32 %s140, 1
      %p144 = scmp.eq.s32.totalorder %s22, 3
      %p145 = scmp.ne.s32.totalorder %s140, %s142
      %p146 = scmp.eq.s32.totalorder %s22, 0
      %p147 = por %p145, %p146
      %p148 = scmp.ne.s32.totalorder %s140, %s142
      %p149 = scmp.eq.s32.totalorder %s27, 3
      %p150 = por %p148, %p149
      %p151 = scmp.ne.s32.totalorder %s142, %s143
      %p152 = scmp.eq.s32.totalorder %s27, 0
      %p153 = por %p151, %p152
      %p154 = scmp.ne.s32.totalorder %s142, %s143
      %p155 = scmp.eq.s32.totalorder %s28, 3
      %p156 = por %p154, %p155
      %p158 = scmp.ne.s32.totalorder %s143, %s157
      %p159 = scmp.eq.s32.totalorder %s28, 0
      %p160 = por %p158, %p159
      %s162 = sadd.s32 %s161, 1
      %p165 = scmp.eq.s32.totalorder %s22, 3
      %p166 = scmp.ne.s32.totalorder %s161, %s163
      %p167 = scmp.eq.s32.totalorder %s22, 0
      %p168 = por %p166, %p167
      %p169 = scmp.ne.s32.totalorder %s161, %s163
      %p170 = scmp.eq.s32.totalorder %s27, 3
      %p171 = por %p169, %p170
      %p172 = scmp.ne.s32.totalorder %s163, %s164
      %p173 = scmp.eq.s32.totalorder %s27, 0
      %p174 = por %p172, %p173
      %p175 = scmp.ne.s32.totalorder %s163, %s164
      %p176 = scmp.eq.s32.totalorder %s28, 3
      %p177 = por %p175, %p176
      %p179 = scmp.ne.s32.totalorder %s164, %s178
      %p180 = scmp.eq.s32.totalorder %s28, 0
      %p181 = por %p179, %p180
      %s182 = ssub.s32 %s22, %s29
      %p183 = scmp.eq.s32.totalorder %s182, 0
      %s185 = sadd.s32 %s184, 1
      %s186 = scalar_select %p183, %s184, %s185
      %p189 = pneg %p183
      %p190 = scmp.eq.s32.totalorder %s22, 3
      %p191 = por %p189, %p190
      %p192 = scmp.ne.s32.totalorder %s184, %s187
      %p193 = scmp.eq.s32.totalorder %s22, 0
      %p194 = por %p192, %p193
      %p195 = scmp.ne.s32.totalorder %s184, %s187
      %p196 = scmp.eq.s32.totalorder %s27, 3
      %p197 = por %p195, %p196
      %p198 = scmp.ne.s32.totalorder %s187, %s188
      %p199 = scmp.eq.s32.totalorder %s27, 0
      %p200 = por %p198, %p199
      %p201 = scmp.ne.s32.totalorder %s187, %s188
      %p202 = scmp.eq.s32.totalorder %s28, 3
      %p203 = por %p201, %p202
      %p205 = scmp.ne.s32.totalorder %s188, %s204
      %p206 = scmp.eq.s32.totalorder %s28, 0
      %p207 = por %p205, %p206
      %p208 = scmp.le.s32.totalorder 1, %s22
      %p209 = scmp.lt.s32.totalorder %s22, 5
      %p210 = pnand %p208, %p209
      %p211 = pneg %p210
      // Predicated region
      $region9: #{tpu_custom_call.1} parent=5 // pred_check
        _
      $region10: #{tpu_custom_call.1} parent=5 // pred_check_branch
        %213 = sbr.rel (%p210) target = $region12
      $region11: #{tpu_custom_call.1} parent=5 // pred_region
        %s214 = ssub.s32 %s22, 1
        // Predicated region
        $region13: #{tpu_custom_call.1} parent=11 // pred_check
          %p215 = pneg %p69
        $region14: #{tpu_custom_call.1} parent=11 // pred_check_branch
          %217 = sbr.rel (%p215) target = $region16
        $region15: #{tpu_custom_call.1} parent=11 // pred_region
          %s219 = ssub.s32 16384, 16384
          %220 = vsyncadd [#allocation6], %s219
          %s221 = sshll.u32 [#allocation5], 4
          %s222 = int_to_ptr.vmem [resolvable:$true] %s221
          %227 = dma.hbm_to_vmem [thread:$0]  %s1, 16384, %s222, [#allocation6], 512, 512, 32
        $region16: #{tpu_custom_call.1} parent=11 // pred_fallthru
          _
        // Predicated region
        $region17: #{tpu_custom_call.1} parent=11 // pred_check
          %p228 = pneg %p90
        $region18: #{tpu_custom_call.1} parent=11 // pred_check_branch
          %230 = sbr.rel (%p228) target = $region20
        $region19: #{tpu_custom_call.1} parent=11 // pred_region
          %s232 = ssub.s32 128, 128
          %233 = vsyncadd [#allocation6], %s232
          %s235 = sshll.u32 [#allocation7], 4
          %s236 = int_to_ptr.vmem [resolvable:$true] %s235
          %238 = dma.hbm_to_vmem [thread:$0]  %s2, 128, %s236, [#allocation6]
        $region20: #{tpu_custom_call.1} parent=11 // pred_fallthru
          _
        // Predicated region
        $region21: #{tpu_custom_call.1} parent=11 // pred_check
          %p239 = pneg %p111
        $region22: #{tpu_custom_call.1} parent=11 // pred_check_branch
          %241 = sbr.rel (%p239) target = $region24
        $region23: #{tpu_custom_call.1} parent=11 // pred_region
          %s243 = ssub.s32 65536, 65536
          %244 = vsyncadd [#allocation9], %s243
          %s245 = sshll.u32 [#allocation8], 4
          %s246 = int_to_ptr.vmem [resolvable:$true] %s245
          %251 = dma.hbm_to_vmem [thread:$0]  %s3, 65536, %s246, [#allocation9], 512, 512, 32
        $region24: #{tpu_custom_call.1} parent=11 // pred_fallthru
          _
        // Predicated region
        $region25: #{tpu_custom_call.1} parent=11 // pred_check
          %p252 = pneg %p132
        $region26: #{tpu_custom_call.1} parent=11 // pred_check_branch
          %254 = sbr.rel (%p252) target = $region28
        $region27: #{tpu_custom_call.1} parent=11 // pred_region
          %s256 = ssub.s32 128, 128
          %257 = vsyncadd [#allocation9], %s256
          %s259 = sshll.u32 [#allocation10], 4
          %s260 = int_to_ptr.vmem [resolvable:$true] %s259
          %262 = dma.hbm_to_vmem [thread:$0]  %s4, 128, %s260, [#allocation9]
        $region28: #{tpu_custom_call.1} parent=11 // pred_fallthru
          _
        // Predicated region
        $region29: #{tpu_custom_call.1} parent=11 // pred_check
          %p263 = pneg %p153
        $region30: #{tpu_custom_call.1} parent=11 // pred_check_branch
          %265 = sbr.rel (%p263) target = $region32
        $region31: #{tpu_custom_call.1} parent=11 // pred_region
          %s267 = ssub.s32 8192, 8192
          %268 = vsyncadd [#allocation12], %s267
          %s269 = sshll.u32 [#allocation11], 4
          %s270 = int_to_ptr.vmem [resolvable:$true] %s269
          %275 = dma.hbm_to_vmem [thread:$0]  %s5, 8192, %s270, [#allocation12], 64, 64, 4
        $region32: #{tpu_custom_call.1} parent=11 // pred_fallthru
          _
        // Predicated region
        $region33: #{tpu_custom_call.1} parent=11 // pred_check
          %p276 = pneg %p174
        $region34: #{tpu_custom_call.1} parent=11 // pred_check_branch
          %278 = sbr.rel (%p276) target = $region36
        $region35: #{tpu_custom_call.1} parent=11 // pred_region
          %s280 = ssub.s32 16, 16
          %281 = vsyncadd [#allocation12], %s280
          %s283 = sshll.u32 [#allocation13], 4
          %s284 = int_to_ptr.vmem [resolvable:$true] %s283
          %286 = dma.hbm_to_vmem [thread:$0]  %s6, 16, %s284, [#allocation12]
        $region36: #{tpu_custom_call.1} parent=11 // pred_fallthru
          _
      $region12: #{tpu_custom_call.1} parent=5 // pred_fallthru
        _
      %p287 = scmp.lt.s32.totalorder %s22, 4
      // Predicated region
      $region37: #{tpu_custom_call.1} parent=5 // pred_check
        %p288 = pneg %p287
      $region38: #{tpu_custom_call.1} parent=5 // pred_check_branch
        %290 = sbr.rel (%p288) target = $region40
      $region39: #{tpu_custom_call.1} parent=5 // pred_region
        // Predicated region
        $region41: #{tpu_custom_call.1} parent=39 // pred_check
          %p291 = pneg %p42
        $region42: #{tpu_custom_call.1} parent=39 // pred_check_branch
          %293 = sbr.rel (%p291) target = $region44
        $region43: #{tpu_custom_call.1} parent=39 // pred_region
          %s294 = sand.u32 %s32, 1
          %s295 = scalar_lea.sflag [#allocation3], %s294
          %s296 = sand.u32 %s32, 1
          %s297 = smul.addr %s296, 32
          %s298 = scalar_lea.vmem [#allocation2], %s297
          %s299 = smul.u32 2, %s22
          %s301 = ssub.s32 512, 512
          %302 = vsyncadd %s295, %s301
          %s303 = smul.addr %s299, 2
          %s304 = smul.addr %s303, 128
          %s305 = scalar_lea.hbm %s0, %s304
          %s306 = sshll.u32 %s298, 4
          %s307 = int_to_ptr.vmem [resolvable:$true] %s306
          %312 = dma.hbm_to_vmem [thread:$0]  %s305, 512, %s307, %s295, 256, 256, 16
        $region44: #{tpu_custom_call.1} parent=39 // pred_fallthru
          _
      $region40: #{tpu_custom_call.1} parent=5 // pred_fallthru
        _
      %p313 = scmp.le.s32.totalorder 1, %s22
      %p314 = scmp.lt.s32.totalorder %s22, 5
      %p315 = pnand %p313, %p314
      %p316 = pneg %p315
      // Predicated region
      $region45: #{tpu_custom_call.1} parent=5 // pred_check
        _
      $region46: #{tpu_custom_call.1} parent=5 // pred_check_branch
        %318 = sbr.rel (%p315) target = $region48
      $region47: #{tpu_custom_call.1} parent=5 // pred_region
        %s319 = ssub.s32 %s22, 1
        %s320 = sand.u32 %s35, 1
        %s321 = scalar_lea.sflag [#allocation3], %s320
        %s322 = sand.u32 %s35, 1
        %s323 = smul.addr %s322, 32
        %s324 = scalar_lea.vmem [#allocation2], %s323
        // Predicated region
        $region49: #{tpu_custom_call.1} parent=47 // pred_check
          %p325 = pneg %p48
        $region50: #{tpu_custom_call.1} parent=47 // pred_check_branch
          %327 = sbr.rel (%p325) target = $region52
        $region51: #{tpu_custom_call.1} parent=47 // pred_region
          %328 = dma.done %s321, 512
        $region52: #{tpu_custom_call.1} parent=47 // pred_fallthru
          _
        // Predicated region
        $region53: #{tpu_custom_call.1} parent=47 // pred_check
          %p329 = pneg %p69
        $region54: #{tpu_custom_call.1} parent=47 // pred_check_branch
          %331 = sbr.rel (%p329) target = $region56
        $region55: #{tpu_custom_call.1} parent=47 // pred_region
          %332 = dma.done [#allocation6], 16384
        $region56: #{tpu_custom_call.1} parent=47 // pred_fallthru
          _
        // Predicated region
        $region57: #{tpu_custom_call.1} parent=47 // pred_check
          %p333 = pneg %p90
        $region58: #{tpu_custom_call.1} parent=47 // pred_check_branch
          %335 = sbr.rel (%p333) target = $region60
        $region59: #{tpu_custom_call.1} parent=47 // pred_region
          %336 = dma.done [#allocation6], 128
        $region60: #{tpu_custom_call.1} parent=47 // pred_fallthru
          _
        // Predicated region
        $region61: #{tpu_custom_call.1} parent=47 // pred_check
          %p337 = pneg %p111
        $region62: #{tpu_custom_call.1} parent=47 // pred_check_branch
          %339 = sbr.rel (%p337) target = $region64
        $region63: #{tpu_custom_call.1} parent=47 // pred_region
          %340 = dma.done [#allocation9], 65536
        $region64: #{tpu_custom_call.1} parent=47 // pred_fallthru
          _
        // Predicated region
        $region65: #{tpu_custom_call.1} parent=47 // pred_check
          %p341 = pneg %p132
        $region66: #{tpu_custom_call.1} parent=47 // pred_check_branch
          %343 = sbr.rel (%p341) target = $region68
        $region67: #{tpu_custom_call.1} parent=47 // pred_region
          %344 = dma.done [#allocation9], 128
        $region68: #{tpu_custom_call.1} parent=47 // pred_fallthru
          _
        // Predicated region
        $region69: #{tpu_custom_call.1} parent=47 // pred_check
          %p345 = pneg %p153
        $region70: #{tpu_custom_call.1} parent=47 // pred_check_branch
          %347 = sbr.rel (%p345) target = $region72
        $region71: #{tpu_custom_call.1} parent=47 // pred_region
          %348 = dma.done [#allocation12], 8192
        $region72: #{tpu_custom_call.1} parent=47 // pred_fallthru
          _
        // Predicated region
        $region73: #{tpu_custom_call.1} parent=47 // pred_check
          %p349 = pneg %p174
        $region74: #{tpu_custom_call.1} parent=47 // pred_check_branch
          %351 = sbr.rel (%p349) target = $region76
        $region75: #{tpu_custom_call.1} parent=47 // pred_region
          %352 = dma.done [#allocation12], 16
        $region76: #{tpu_custom_call.1} parent=47 // pred_fallthru
          _
        %s353 = sand.u32 %s35, 1
        %s354 = scalar_lea.sflag [#allocation3], %s353
        %s355 = sand.u32 %s35, 1
        %s356 = smul.addr %s355, 32
        %s357 = scalar_lea.vmem [#allocation2], %s356
        %p358 = pneg %p48
        %p359 = pneg %p45
        %p360 = pneg %p69
        %p361 = pneg %p66
        %p362 = pneg %p90
        %p363 = pneg %p87
        %p364 = pneg %p111
        %p365 = pneg %p108
        %p366 = pneg %p132
        %p367 = pneg %p129
        %p368 = pneg %p153
        %p369 = pneg %p150
        %p370 = pneg %p174
        %p371 = pneg %p171
        %p372 = pneg %p200
        %p373 = pneg %p197
        %s374 = sand.u32 %s187, 1
        %s375 = scalar_lea.sflag [#allocation4], %s374
        %s376 = sand.u32 %s187, 1
        %s377 = smul.addr %s376, 16
        %s378 = scalar_lea.vmem [#allocation14], %s377
        %s379 = smul.u32 2, %s27
        %s380 = smul.u32 2, %s27
        %v382 = vld [vmem:[%s324] sm:$0xff]
        %v383 = vld [vmem:[%s324 + $0x8] sm:$0xff]
        %v384 = vld [vmem:[%s324 + $0x10] sm:$0xff]
        %v385 = vld [vmem:[%s324 + $0x18] sm:$0xff]
        %v386 = vpack.c.bf16 %v384, %v382
        %v387 = vpack.c.bf16 %v385, %v383
        %v388 = vld [vmem:[#allocation5] sm:$0xff]
        %v389 = vld [vmem:[#allocation5 + $0x8] sm:$0xff]
        %v390 = vld [vmem:[#allocation5 + $0x10] sm:$0xff]
        %v391 = vld [vmem:[#allocation5 + $0x18] sm:$0xff]
        %v392 = vld [vmem:[#allocation5 + $0x20] sm:$0xff]
        %v393 = vld [vmem:[#allocation5 + $0x28] sm:$0xff]
        %v394 = vld [vmem:[#allocation5 + $0x30] sm:$0xff]
        %v395 = vld [vmem:[#allocation5 + $0x38] sm:$0xff]
        %v396 = vld [vmem:[#allocation5 + $0x40] sm:$0xff]
        %v397 = vld [vmem:[#allocation5 + $0x48] sm:$0xff]
        %v398 = vld [vmem:[#allocation5 + $0x50] sm:$0xff]
        %v399 = vld [vmem:[#allocation5 + $0x58] sm:$0xff]
        %v400 = vld [vmem:[#allocation5 + $0x60] sm:$0xff]
        %v401 = vld [vmem:[#allocation5 + $0x68] sm:$0xff]
        %v402 = vld [vmem:[#allocation5 + $0x70] sm:$0xff]
        %v403 = vld [vmem:[#allocation5 + $0x78] sm:$0xff]
        %v404 = vld [vmem:[#allocation5 + $0x80] sm:$0xff]
        %v405 = vld [vmem:[#allocation5 + $0x88] sm:$0xff]
        %v406 = vld [vmem:[#allocation5 + $0x90] sm:$0xff]
        %v407 = vld [vmem:[#allocation5 + $0x98] sm:$0xff]
        %v408 = vld [vmem:[#allocation5 + $0xa0] sm:$0xff]
        %v409 = vld [vmem:[#allocation5 + $0xa8] sm:$0xff]
        %v410 = vld [vmem:[#allocation5 + $0xb0] sm:$0xff]
        %v411 = vld [vmem:[#allocation5 + $0xb8] sm:$0xff]
        %v412 = vld [vmem:[#allocation5 + $0xc0] sm:$0xff]
        %v413 = vld [vmem:[#allocation5 + $0xc8] sm:$0xff]
        %v414 = vld [vmem:[#allocation5 + $0xd0] sm:$0xff]
        %v415 = vld [vmem:[#allocation5 + $0xd8] sm:$0xff]
        %v416 = vld [vmem:[#allocation5 + $0xe0] sm:$0xff]
        %v417 = vld [vmem:[#allocation5 + $0xe8] sm:$0xff]
        %v418 = vld [vmem:[#allocation5 + $0xf0] sm:$0xff]
        %v419 = vld [vmem:[#allocation5 + $0xf8] sm:$0xff]
        %v420 = vld [vmem:[#allocation5 + $0x100] sm:$0xff]
        %v421 = vld [vmem:[#allocation5 + $0x108] sm:$0xff]
        %v422 = vld [vmem:[#allocation5 + $0x110] sm:$0xff]
        %v423 = vld [vmem:[#allocation5 + $0x118] sm:$0xff]
        %v424 = vld [vmem:[#allocation5 + $0x120] sm:$0xff]
        %v425 = vld [vmem:[#allocation5 + $0x128] sm:$0xff]
        %v426 = vld [vmem:[#allocation5 + $0x130] sm:$0xff]
        %v427 = vld [vmem:[#allocation5 + $0x138] sm:$0xff]
        %v428 = vld [vmem:[#allocation5 + $0x140] sm:$0xff]
        %v429 = vld [vmem:[#allocation5 + $0x148] sm:$0xff]
        %v430 = vld [vmem:[#allocation5 + $0x150] sm:$0xff]
        %v431 = vld [vmem:[#allocation5 + $0x158] sm:$0xff]
        %v432 = vld [vmem:[#allocation5 + $0x160] sm:$0xff]
        %v433 = vld [vmem:[#allocation5 + $0x168] sm:$0xff]
        %v434 = vld [vmem:[#allocation5 + $0x170] sm:$0xff]
        %v435 = vld [vmem:[#allocation5 + $0x178] sm:$0xff]
        %v436 = vld [vmem:[#allocation5 + $0x180] sm:$0xff]
        %v437 = vld [vmem:[#allocation5 + $0x188] sm:$0xff]
        %v438 = vld [vmem:[#allocation5 + $0x190] sm:$0xff]
        %v439 = vld [vmem:[#allocation5 + $0x198] sm:$0xff]
        %v440 = vld [vmem:[#allocation5 + $0x1a0] sm:$0xff]
        %v441 = vld [vmem:[#allocation5 + $0x1a8] sm:$0xff]
        %v442 = vld [vmem:[#allocation5 + $0x1b0] sm:$0xff]
        %v443 = vld [vmem:[#allocation5 + $0x1b8] sm:$0xff]
        %v444 = vld [vmem:[#allocation5 + $0x1c0] sm:$0xff]
        %v445 = vld [vmem:[#allocation5 + $0x1c8] sm:$0xff]
        %v446 = vld [vmem:[#allocation5 + $0x1d0] sm:$0xff]
        %v447 = vld [vmem:[#allocation5 + $0x1d8] sm:$0xff]
        %v448 = vld [vmem:[#allocation5 + $0x1e0] sm:$0xff]
        %v449 = vld [vmem:[#allocation5 + $0x1e8] sm:$0xff]
        %v450 = vld [vmem:[#allocation5 + $0x1f0] sm:$0xff]
        %v451 = vld [vmem:[#allocation5 + $0x1f8] sm:$0xff]
        %v452 = vld [vmem:[#allocation5 + $0x200] sm:$0xff]
        %v453 = vld [vmem:[#allocation5 + $0x208] sm:$0xff]
        %v454 = vld [vmem:[#allocation5 + $0x210] sm:$0xff]
        %v455 = vld [vmem:[#allocation5 + $0x218] sm:$0xff]
        %v456 = vld [vmem:[#allocation5 + $0x220] sm:$0xff]
        %v457 = vld [vmem:[#allocation5 + $0x228] sm:$0xff]
        %v458 = vld [vmem:[#allocation5 + $0x230] sm:$0xff]
        %v459 = vld [vmem:[#allocation5 + $0x238] sm:$0xff]
        %v460 = vld [vmem:[#allocation5 + $0x240] sm:$0xff]
        %v461 = vld [vmem:[#allocation5 + $0x248] sm:$0xff]
        %v462 = vld [vmem:[#allocation5 + $0x250] sm:$0xff]
        %v463 = vld [vmem:[#allocation5 + $0x258] sm:$0xff]
        %v464 = vld [vmem:[#allocation5 + $0x260] sm:$0xff]
        %v465 = vld [vmem:[#allocation5 + $0x268] sm:$0xff]
        %v466 = vld [vmem:[#allocation5 + $0x270] sm:$0xff]
        %v467 = vld [vmem:[#allocation5 + $0x278] sm:$0xff]
        %v468 = vld [vmem:[#allocation5 + $0x280] sm:$0xff]
        %v469 = vld [vmem:[#allocation5 + $0x288] sm:$0xff]
        %v470 = vld [vmem:[#allocation5 + $0x290] sm:$0xff]
        %v471 = vld [vmem:[#allocation5 + $0x298] sm:$0xff]
        %v472 = vld [vmem:[#allocation5 + $0x2a0] sm:$0xff]
        %v473 = vld [vmem:[#allocation5 + $0x2a8] sm:$0xff]
        %v474 = vld [vmem:[#allocation5 + $0x2b0] sm:$0xff]
        %v475 = vld [vmem:[#allocation5 + $0x2b8] sm:$0xff]
        %v476 = vld [vmem:[#allocation5 + $0x2c0] sm:$0xff]
        %v477 = vld [vmem:[#allocation5 + $0x2c8] sm:$0xff]
        %v478 = vld [vmem:[#allocation5 + $0x2d0] sm:$0xff]
        %v479 = vld [vmem:[#allocation5 + $0x2d8] sm:$0xff]
        %v480 = vld [vmem:[#allocation5 + $0x2e0] sm:$0xff]
        %v481 = vld [vmem:[#allocation5 + $0x2e8] sm:$0xff]
        %v482 = vld [vmem:[#allocation5 + $0x2f0] sm:$0xff]
        %v483 = vld [vmem:[#allocation5 + $0x2f8] sm:$0xff]
        %v484 = vld [vmem:[#allocation5 + $0x300] sm:$0xff]
        %v485 = vld [vmem:[#allocation5 + $0x308] sm:$0xff]
        %v486 = vld [vmem:[#allocation5 + $0x310] sm:$0xff]
        %v487 = vld [vmem:[#allocation5 + $0x318] sm:$0xff]
        %v488 = vld [vmem:[#allocation5 + $0x320] sm:$0xff]
        %v489 = vld [vmem:[#allocation5 + $0x328] sm:$0xff]
        %v490 = vld [vmem:[#allocation5 + $0x330] sm:$0xff]
        %v491 = vld [vmem:[#allocation5 + $0x338] sm:$0xff]
        %v492 = vld [vmem:[#allocation5 + $0x340] sm:$0xff]
        %v493 = vld [vmem:[#allocation5 + $0x348] sm:$0xff]
        %v494 = vld [vmem:[#allocation5 + $0x350] sm:$0xff]
        %v495 = vld [vmem:[#allocation5 + $0x358] sm:$0xff]
        %v496 = vld [vmem:[#allocation5 + $0x360] sm:$0xff]
        %v497 = vld [vmem:[#allocation5 + $0x368] sm:$0xff]
        %v498 = vld [vmem:[#allocation5 + $0x370] sm:$0xff]
        %v499 = vld [vmem:[#allocation5 + $0x378] sm:$0xff]
        %v500 = vld [vmem:[#allocation5 + $0x380] sm:$0xff]
        %v501 = vld [vmem:[#allocation5 + $0x388] sm:$0xff]
        %v502 = vld [vmem:[#allocation5 + $0x390] sm:$0xff]
        %v503 = vld [vmem:[#allocation5 + $0x398] sm:$0xff]
        %v504 = vld [vmem:[#allocation5 + $0x3a0] sm:$0xff]
        %v505 = vld [vmem:[#allocation5 + $0x3a8] sm:$0xff]
        %v506 = vld [vmem:[#allocation5 + $0x3b0] sm:$0xff]
        %v507 = vld [vmem:[#allocation5 + $0x3b8] sm:$0xff]
        %v508 = vld [vmem:[#allocation5 + $0x3c0] sm:$0xff]
        %v509 = vld [vmem:[#allocation5 + $0x3c8] sm:$0xff]
        %v510 = vld [vmem:[#allocation5 + $0x3d0] sm:$0xff]
        %v511 = vld [vmem:[#allocation5 + $0x3d8] sm:$0xff]
        %v512 = vld [vmem:[#allocation5 + $0x3e0] sm:$0xff]
        %v513 = vld [vmem:[#allocation5 + $0x3e8] sm:$0xff]
        %v514 = vld [vmem:[#allocation5 + $0x3f0] sm:$0xff]
        %v515 = vld [vmem:[#allocation5 + $0x3f8] sm:$0xff]
        %v516 = vld [vmem:[#allocation7] sm:$0xff]
        %v518 = vlaneseq
        %v519 = vshrl.u32 %v518, 7
        %v520 = vsub.s32 0, %v519
        %v521 = vrot.slane %v516, %v520
        %v522 = vlaneseq
        %v523 = vshrl.u32 %v522, 7
        %v524 = vsub.s32 1, %v523
        %v525 = vrot.slane %v516, %v524
        %v526 = vlaneseq
        %v527 = vshrl.u32 %v526, 7
        %v528 = vsub.s32 2, %v527
        %v529 = vrot.slane %v516, %v528
        %v530 = vlaneseq
        %v531 = vshrl.u32 %v530, 7
        %v532 = vsub.s32 3, %v531
        %v533 = vrot.slane %v516, %v532
        %v534 = vlaneseq
        %v535 = vshrl.u32 %v534, 7
        %v536 = vsub.s32 4, %v535
        %v537 = vrot.slane %v516, %v536
        %v538 = vlaneseq
        %v539 = vshrl.u32 %v538, 7
        %v540 = vsub.s32 5, %v539
        %v541 = vrot.slane %v516, %v540
        %v542 = vlaneseq
        %v543 = vshrl.u32 %v542, 7
        %v544 = vsub.s32 6, %v543
        %v545 = vrot.slane %v516, %v544
        %v546 = vlaneseq
        %v547 = vshrl.u32 %v546, 7
        %v548 = vsub.s32 7, %v547
        %v549 = vrot.slane %v516, %v548
        %v686 = vunpack.c.l.b16 %v388
        %v687 = vunpack.c.h.b16 %v388
        %v688 = vunpack.c.l.b16 %v389
        %v689 = vunpack.c.h.b16 %v389
        %v690 = vunpack.c.l.b16 %v390
        %v691 = vunpack.c.h.b16 %v390
        %v692 = vunpack.c.l.b16 %v391
        %v693 = vunpack.c.h.b16 %v391
        %v694 = vunpack.c.l.b16 %v392
        %v695 = vunpack.c.h.b16 %v392
        %v696 = vunpack.c.l.b16 %v393
        %v697 = vunpack.c.h.b16 %v393
        %v698 = vunpack.c.l.b16 %v394
        %v699 = vunpack.c.h.b16 %v394
        %v700 = vunpack.c.l.b16 %v395
        %v701 = vunpack.c.h.b16 %v395
        %v702 = vunpack.c.l.b16 %v396
        %v703 = vunpack.c.h.b16 %v396
        %v704 = vunpack.c.l.b16 %v397
        %v705 = vunpack.c.h.b16 %v397
        %v706 = vunpack.c.l.b16 %v398
        %v707 = vunpack.c.h.b16 %v398
        %v708 = vunpack.c.l.b16 %v399
        %v709 = vunpack.c.h.b16 %v399
        %v710 = vunpack.c.l.b16 %v400
        %v711 = vunpack.c.h.b16 %v400
        %v712 = vunpack.c.l.b16 %v401
        %v713 = vunpack.c.h.b16 %v401
        %v714 = vunpack.c.l.b16 %v402
        %v715 = vunpack.c.h.b16 %v402
        %v716 = vunpack.c.l.b16 %v403
        %v717 = vunpack.c.h.b16 %v403
        %v718 = vunpack.c.l.b16 %v404
        %v719 = vunpack.c.h.b16 %v404
        %v720 = vunpack.c.l.b16 %v405
        %v721 = vunpack.c.h.b16 %v405
        %v722 = vunpack.c.l.b16 %v406
        %v723 = vunpack.c.h.b16 %v406
        %v724 = vunpack.c.l.b16 %v407
        %v725 = vunpack.c.h.b16 %v407
        %v726 = vunpack.c.l.b16 %v408
        %v727 = vunpack.c.h.b16 %v408
        %v728 = vunpack.c.l.b16 %v409
        %v729 = vunpack.c.h.b16 %v409
        %v730 = vunpack.c.l.b16 %v410
        %v731 = vunpack.c.h.b16 %v410
        %v732 = vunpack.c.l.b16 %v411
        %v733 = vunpack.c.h.b16 %v411
        %v734 = vunpack.c.l.b16 %v412
        %v735 = vunpack.c.h.b16 %v412
        %v736 = vunpack.c.l.b16 %v413
        %v737 = vunpack.c.h.b16 %v413
        %v738 = vunpack.c.l.b16 %v414
        %v739 = vunpack.c.h.b16 %v414
        %v740 = vunpack.c.l.b16 %v415
        %v741 = vunpack.c.h.b16 %v415
        %v742 = vunpack.c.l.b16 %v416
        %v743 = vunpack.c.h.b16 %v416
        %v744 = vunpack.c.l.b16 %v417
        %v745 = vunpack.c.h.b16 %v417
        %v746 = vunpack.c.l.b16 %v418
        %v747 = vunpack.c.h.b16 %v418
        %v748 = vunpack.c.l.b16 %v419
        %v749 = vunpack.c.h.b16 %v419
        %v750 = vunpack.c.l.b16 %v420
        %v751 = vunpack.c.h.b16 %v420
        %v752 = vunpack.c.l.b16 %v421
        %v753 = vunpack.c.h.b16 %v421
        %v754 = vunpack.c.l.b16 %v422
        %v755 = vunpack.c.h.b16 %v422
        %v756 = vunpack.c.l.b16 %v423
        %v757 = vunpack.c.h.b16 %v423
        %v758 = vunpack.c.l.b16 %v424
        %v759 = vunpack.c.h.b16 %v424
        %v760 = vunpack.c.l.b16 %v425
        %v761 = vunpack.c.h.b16 %v425
        %v762 = vunpack.c.l.b16 %v426
        %v763 = vunpack.c.h.b16 %v426
        %v764 = vunpack.c.l.b16 %v427
        %v765 = vunpack.c.h.b16 %v427
        %v766 = vunpack.c.l.b16 %v428
        %v767 = vunpack.c.h.b16 %v428
        %v768 = vunpack.c.l.b16 %v429
        %v769 = vunpack.c.h.b16 %v429
        %v770 = vunpack.c.l.b16 %v430
        %v771 = vunpack.c.h.b16 %v430
        %v772 = vunpack.c.l.b16 %v431
        %v773 = vunpack.c.h.b16 %v431
        %v774 = vunpack.c.l.b16 %v432
        %v775 = vunpack.c.h.b16 %v432
        %v776 = vunpack.c.l.b16 %v433
        %v777 = vunpack.c.h.b16 %v433
        %v778 = vunpack.c.l.b16 %v434
        %v779 = vunpack.c.h.b16 %v434
        %v780 = vunpack.c.l.b16 %v435
        %v781 = vunpack.c.h.b16 %v435
        %v782 = vunpack.c.l.b16 %v436
        %v783 = vunpack.c.h.b16 %v436
        %v784 = vunpack.c.l.b16 %v437
        %v785 = vunpack.c.h.b16 %v437
        %v786 = vunpack.c.l.b16 %v438
        %v787 = vunpack.c.h.b16 %v438
        %v788 = vunpack.c.l.b16 %v439
        %v789 = vunpack.c.h.b16 %v439
        %v790 = vunpack.c.l.b16 %v440
        %v791 = vunpack.c.h.b16 %v440
        %v792 = vunpack.c.l.b16 %v441
        %v793 = vunpack.c.h.b16 %v441
        %v794 = vunpack.c.l.b16 %v442
        %v795 = vunpack.c.h.b16 %v442
        %v796 = vunpack.c.l.b16 %v443
        %v797 = vunpack.c.h.b16 %v443
        %v798 = vunpack.c.l.b16 %v444
        %v799 = vunpack.c.h.b16 %v444
        %v800 = vunpack.c.l.b16 %v445
        %v801 = vunpack.c.h.b16 %v445
        %v802 = vunpack.c.l.b16 %v446
        %v803 = vunpack.c.h.b16 %v446
        %v804 = vunpack.c.l.b16 %v447
        %v805 = vunpack.c.h.b16 %v447
        %v806 = vunpack.c.l.b16 %v448
        %v807 = vunpack.c.h.b16 %v448
        %v808 = vunpack.c.l.b16 %v449
        %v809 = vunpack.c.h.b16 %v449
        %v810 = vunpack.c.l.b16 %v450
        %v811 = vunpack.c.h.b16 %v450
        %v812 = vunpack.c.l.b16 %v451
        %v813 = vunpack.c.h.b16 %v451
        %v814 = vunpack.c.l.b16 %v452
        %v815 = vunpack.c.h.b16 %v452
        %v816 = vunpack.c.l.b16 %v453
        %v817 = vunpack.c.h.b16 %v453
        %v818 = vunpack.c.l.b16 %v454
        %v819 = vunpack.c.h.b16 %v454
        %v820 = vunpack.c.l.b16 %v455
        %v821 = vunpack.c.h.b16 %v455
        %v822 = vunpack.c.l.b16 %v456
        %v823 = vunpack.c.h.b16 %v456
        %v824 = vunpack.c.l.b16 %v457
        %v825 = vunpack.c.h.b16 %v457
        %v826 = vunpack.c.l.b16 %v458
        %v827 = vunpack.c.h.b16 %v458
        %v828 = vunpack.c.l.b16 %v459
        %v829 = vunpack.c.h.b16 %v459
        %v830 = vunpack.c.l.b16 %v460
        %v831 = vunpack.c.h.b16 %v460
        %v832 = vunpack.c.l.b16 %v461
        %v833 = vunpack.c.h.b16 %v461
        %v834 = vunpack.c.l.b16 %v462
        %v835 = vunpack.c.h.b16 %v462
        %v836 = vunpack.c.l.b16 %v463
        %v837 = vunpack.c.h.b16 %v463
        %v838 = vunpack.c.l.b16 %v464
        %v839 = vunpack.c.h.b16 %v464
        %v840 = vunpack.c.l.b16 %v465
        %v841 = vunpack.c.h.b16 %v465
        %v842 = vunpack.c.l.b16 %v466
        %v843 = vunpack.c.h.b16 %v466
        %v844 = vunpack.c.l.b16 %v467
        %v845 = vunpack.c.h.b16 %v467
        %v846 = vunpack.c.l.b16 %v468
        %v847 = vunpack.c.h.b16 %v468
        %v848 = vunpack.c.l.b16 %v469
        %v849 = vunpack.c.h.b16 %v469
        %v850 = vunpack.c.l.b16 %v470
        %v851 = vunpack.c.h.b16 %v470
        %v852 = vunpack.c.l.b16 %v471
        %v853 = vunpack.c.h.b16 %v471
        %v854 = vunpack.c.l.b16 %v472
        %v855 = vunpack.c.h.b16 %v472
        %v856 = vunpack.c.l.b16 %v473
        %v857 = vunpack.c.h.b16 %v473
        %v858 = vunpack.c.l.b16 %v474
        %v859 = vunpack.c.h.b16 %v474
        %v860 = vunpack.c.l.b16 %v475
        %v861 = vunpack.c.h.b16 %v475
        %v862 = vunpack.c.l.b16 %v476
        %v863 = vunpack.c.h.b16 %v476
        %v864 = vunpack.c.l.b16 %v477
        %v865 = vunpack.c.h.b16 %v477
        %v866 = vunpack.c.l.b16 %v478
        %v867 = vunpack.c.h.b16 %v478
        %v868 = vunpack.c.l.b16 %v479
        %v869 = vunpack.c.h.b16 %v479
        %v870 = vunpack.c.l.b16 %v480
        %v871 = vunpack.c.h.b16 %v480
        %v872 = vunpack.c.l.b16 %v481
        %v873 = vunpack.c.h.b16 %v481
        %v874 = vunpack.c.l.b16 %v482
        %v875 = vunpack.c.h.b16 %v482
        %v876 = vunpack.c.l.b16 %v483
        %v877 = vunpack.c.h.b16 %v483
        %v878 = vunpack.c.l.b16 %v484
        %v879 = vunpack.c.h.b16 %v484
        %v880 = vunpack.c.l.b16 %v485
        %v881 = vunpack.c.h.b16 %v485
        %v882 = vunpack.c.l.b16 %v486
        %v883 = vunpack.c.h.b16 %v486
        %v884 = vunpack.c.l.b16 %v487
        %v885 = vunpack.c.h.b16 %v487
        %v886 = vunpack.c.l.b16 %v488
        %v887 = vunpack.c.h.b16 %v488
        %v888 = vunpack.c.l.b16 %v489
        %v889 = vunpack.c.h.b16 %v489
        %v890 = vunpack.c.l.b16 %v490
        %v891 = vunpack.c.h.b16 %v490
        %v892 = vunpack.c.l.b16 %v491
        %v893 = vunpack.c.h.b16 %v491
        %v894 = vunpack.c.l.b16 %v492
        %v895 = vunpack.c.h.b16 %v492
        %v896 = vunpack.c.l.b16 %v493
        %v897 = vunpack.c.h.b16 %v493
        %v898 = vunpack.c.l.b16 %v494
        %v899 = vunpack.c.h.b16 %v494
        %v900 = vunpack.c.l.b16 %v495
        %v901 = vunpack.c.h.b16 %v495
        %v902 = vunpack.c.l.b16 %v496
        %v903 = vunpack.c.h.b16 %v496
        %v904 = vunpack.c.l.b16 %v497
        %v905 = vunpack.c.h.b16 %v497
        %v906 = vunpack.c.l.b16 %v498
        %v907 = vunpack.c.h.b16 %v498
        %v908 = vunpack.c.l.b16 %v499
        %v909 = vunpack.c.h.b16 %v499
        %v910 = vunpack.c.l.b16 %v500
        %v911 = vunpack.c.h.b16 %v500
        %v912 = vunpack.c.l.b16 %v501
        %v913 = vunpack.c.h.b16 %v501
        %v914 = vunpack.c.l.b16 %v502
        %v915 = vunpack.c.h.b16 %v502
        %v916 = vunpack.c.l.b16 %v503
        %v917 = vunpack.c.h.b16 %v503
        %v918 = vunpack.c.l.b16 %v504
        %v919 = vunpack.c.h.b16 %v504
        %v920 = vunpack.c.l.b16 %v505
        %v921 = vunpack.c.h.b16 %v505
        %v922 = vunpack.c.l.b16 %v506
        %v923 = vunpack.c.h.b16 %v506
        %v924 = vunpack.c.l.b16 %v507
        %v925 = vunpack.c.h.b16 %v507
        %v926 = vunpack.c.l.b16 %v508
        %v927 = vunpack.c.h.b16 %v508
        %v928 = vunpack.c.l.b16 %v509
        %v929 = vunpack.c.h.b16 %v509
        %v930 = vunpack.c.l.b16 %v510
        %v931 = vunpack.c.h.b16 %v510
        %v932 = vunpack.c.l.b16 %v511
        %v933 = vunpack.c.h.b16 %v511
        %v934 = vunpack.c.l.b16 %v512
        %v935 = vunpack.c.h.b16 %v512
        %v936 = vunpack.c.l.b16 %v513
        %v937 = vunpack.c.h.b16 %v513
        %v938 = vunpack.c.l.b16 %v514
        %v939 = vunpack.c.h.b16 %v514
        %v940 = vunpack.c.l.b16 %v515
        %v941 = vunpack.c.h.b16 %v515
        %v942 = vpack.c.b16 %v694, %v686
        %v943 = vpack.c.b16 %v695, %v687
        %v944 = vpack.c.b16 %v696, %v688
        %v945 = vpack.c.b16 %v697, %v689
        %v946 = vpack.c.b16 %v698, %v690
        %v947 = vpack.c.b16 %v699, %v691
        %v948 = vpack.c.b16 %v700, %v692
        %v949 = vpack.c.b16 %v701, %v693
        %v950 = vpack.c.b16 %v710, %v702
        %v951 = vpack.c.b16 %v711, %v703
        %v952 = vpack.c.b16 %v712, %v704
        %v953 = vpack.c.b16 %v713, %v705
        %v954 = vpack.c.b16 %v714, %v706
        %v955 = vpack.c.b16 %v715, %v707
        %v956 = vpack.c.b16 %v716, %v708
        %v957 = vpack.c.b16 %v717, %v709
        %v958 = vpack.c.b16 %v726, %v718
        %v959 = vpack.c.b16 %v727, %v719
        %v960 = vpack.c.b16 %v728, %v720
        %v961 = vpack.c.b16 %v729, %v721
        %v962 = vpack.c.b16 %v730, %v722
        %v963 = vpack.c.b16 %v731, %v723
        %v964 = vpack.c.b16 %v732, %v724
        %v965 = vpack.c.b16 %v733, %v725
        %v966 = vpack.c.b16 %v742, %v734
        %v967 = vpack.c.b16 %v743, %v735
        %v968 = vpack.c.b16 %v744, %v736
        %v969 = vpack.c.b16 %v745, %v737
        %v970 = vpack.c.b16 %v746, %v738
        %v971 = vpack.c.b16 %v747, %v739
        %v972 = vpack.c.b16 %v748, %v740
        %v973 = vpack.c.b16 %v749, %v741
        %v974 = vpack.c.b16 %v758, %v750
        %v975 = vpack.c.b16 %v759, %v751
        %v976 = vpack.c.b16 %v760, %v752
        %v977 = vpack.c.b16 %v761, %v753
        %v978 = vpack.c.b16 %v762, %v754
        %v979 = vpack.c.b16 %v763, %v755
        %v980 = vpack.c.b16 %v764, %v756
        %v981 = vpack.c.b16 %v765, %v757
        %v982 = vpack.c.b16 %v774, %v766
        %v983 = vpack.c.b16 %v775, %v767
        %v984 = vpack.c.b16 %v776, %v768
        %v985 = vpack.c.b16 %v777, %v769
        %v986 = vpack.c.b16 %v778, %v770
        %v987 = vpack.c.b16 %v779, %v771
        %v988 = vpack.c.b16 %v780, %v772
        %v989 = vpack.c.b16 %v781, %v773
        %v990 = vpack.c.b16 %v790, %v782
        %v991 = vpack.c.b16 %v791, %v783
        %v992 = vpack.c.b16 %v792, %v784
        %v993 = vpack.c.b16 %v793, %v785
        %v994 = vpack.c.b16 %v794, %v786
        %v995 = vpack.c.b16 %v795, %v787
        %v996 = vpack.c.b16 %v796, %v788
        %v997 = vpack.c.b16 %v797, %v789
        %v998 = vpack.c.b16 %v806, %v798
        %v999 = vpack.c.b16 %v807, %v799
        %v1000 = vpack.c.b16 %v808, %v800
        %v1001 = vpack.c.b16 %v809, %v801
        %v1002 = vpack.c.b16 %v810, %v802
        %v1003 = vpack.c.b16 %v811, %v803
        %v1004 = vpack.c.b16 %v812, %v804
        %v1005 = vpack.c.b16 %v813, %v805
        %v1006 = vpack.c.b16 %v822, %v814
        %v1007 = vpack.c.b16 %v823, %v815
        %v1008 = vpack.c.b16 %v824, %v816
        %v1009 = vpack.c.b16 %v825, %v817
        %v1010 = vpack.c.b16 %v826, %v818
        %v1011 = vpack.c.b16 %v827, %v819
        %v1012 = vpack.c.b16 %v828, %v820
        %v1013 = vpack.c.b16 %v829, %v821
        %v1014 = vpack.c.b16 %v838, %v830
        %v1015 = vpack.c.b16 %v839, %v831
        %v1016 = vpack.c.b16 %v840, %v832
        %v1017 = vpack.c.b16 %v841, %v833
        %v1018 = vpack.c.b16 %v842, %v834
        %v1019 = vpack.c.b16 %v843, %v835
        %v1020 = vpack.c.b16 %v844, %v836
        %v1021 = vpack.c.b16 %v845, %v837
        %v1022 = vpack.c.b16 %v854, %v846
        %v1023 = vpack.c.b16 %v855, %v847
        %v1024 = vpack.c.b16 %v856, %v848
        %v1025 = vpack.c.b16 %v857, %v849
        %v1026 = vpack.c.b16 %v858, %v850
        %v1027 = vpack.c.b16 %v859, %v851
        %v1028 = vpack.c.b16 %v860, %v852
        %v1029 = vpack.c.b16 %v861, %v853
        %v1030 = vpack.c.b16 %v870, %v862
        %v1031 = vpack.c.b16 %v871, %v863
        %v1032 = vpack.c.b16 %v872, %v864
        %v1033 = vpack.c.b16 %v873, %v865
        %v1034 = vpack.c.b16 %v874, %v866
        %v1035 = vpack.c.b16 %v875, %v867
        %v1036 = vpack.c.b16 %v876, %v868
        %v1037 = vpack.c.b16 %v877, %v869
        %v1038 = vpack.c.b16 %v886, %v878
        %v1039 = vpack.c.b16 %v887, %v879
        %v1040 = vpack.c.b16 %v888, %v880
        %v1041 = vpack.c.b16 %v889, %v881
        %v1042 = vpack.c.b16 %v890, %v882
        %v1043 = vpack.c.b16 %v891, %v883
        %v1044 = vpack.c.b16 %v892, %v884
        %v1045 = vpack.c.b16 %v893, %v885
        %v1046 = vpack.c.b16 %v902, %v894
        %v1047 = vpack.c.b16 %v903, %v895
        %v1048 = vpack.c.b16 %v904, %v896
        %v1049 = vpack.c.b16 %v905, %v897
        %v1050 = vpack.c.b16 %v906, %v898
        %v1051 = vpack.c.b16 %v907, %v899
        %v1052 = vpack.c.b16 %v908, %v900
        %v1053 = vpack.c.b16 %v909, %v901
        %v1054 = vpack.c.b16 %v918, %v910
        %v1055 = vpack.c.b16 %v919, %v911
        %v1056 = vpack.c.b16 %v920, %v912
        %v1057 = vpack.c.b16 %v921, %v913
        %v1058 = vpack.c.b16 %v922, %v914
        %v1059 = vpack.c.b16 %v923, %v915
        %v1060 = vpack.c.b16 %v924, %v916
        %v1061 = vpack.c.b16 %v925, %v917
        %v1062 = vpack.c.b16 %v934, %v926
        %v1063 = vpack.c.b16 %v935, %v927
        %v1064 = vpack.c.b16 %v936, %v928
        %v1065 = vpack.c.b16 %v937, %v929
        %v1066 = vpack.c.b16 %v938, %v930
        %v1067 = vpack.c.b16 %v939, %v931
        %v1068 = vpack.c.b16 %v940, %v932
        %v1069 = vpack.c.b16 %v941, %v933
        %1198 = vmatprep.subr.bf16.mxu0 %v943
        %1199 = vmatpush1.bf16.msra.mxu0 %v942
        %1200 = vmatprep.subr.bf16.mxu0 %v951
        %1201 = vmatpush1.bf16.msra.mxu0 %v950
        %1202 = vmatprep.subr.bf16.mxu0 %v959
        %1203 = vmatpush1.bf16.msra.mxu0 %v958
        %1204 = vmatprep.subr.bf16.mxu0 %v967
        %1205 = vmatpush1.bf16.msra.mxu0 %v966
        %1206 = vmatprep.subr.bf16.mxu0 %v975
        %1207 = vmatpush1.bf16.msra.mxu0 %v974
        %1208 = vmatprep.subr.bf16.mxu0 %v983
        %1209 = vmatpush1.bf16.msra.mxu0 %v982
        %1210 = vmatprep.subr.bf16.mxu0 %v991
        %1211 = vmatpush1.bf16.msra.mxu0 %v990
        %1212 = vmatprep.subr.bf16.mxu0 %v999
        %1213 = vmatpush1.bf16.msra.mxu0 %v998
        %1214 = vmatprep.subr.bf16.mxu0 %v1007
        %1215 = vmatpush1.bf16.msra.mxu0 %v1006
        %1216 = vmatprep.subr.bf16.mxu0 %v1015
        %1217 = vmatpush1.bf16.msra.mxu0 %v1014
        %1218 = vmatprep.subr.bf16.mxu0 %v1023
        %1219 = vmatpush1.bf16.msra.mxu0 %v1022
        %1220 = vmatprep.subr.bf16.mxu0 %v1031
        %1221 = vmatpush1.bf16.msra.mxu0 %v1030
        %1222 = vmatprep.subr.bf16.mxu0 %v1039
        %1223 = vmatpush1.bf16.msra.mxu0 %v1038
        %1224 = vmatprep.subr.bf16.mxu0 %v1047
        %1225 = vmatpush1.bf16.msra.mxu0 %v1046
        %1226 = vmatprep.subr.bf16.mxu0 %v1055
        %1227 = vmatpush1.bf16.msra.mxu0 %v1054
        %1228 = vmatprep.subr.bf16.mxu0 %v1063
        %1229 = vmatpush1.bf16.msra.mxu0 %v1062
        %1230 = vmatprep.mubr.bf16.mxu0 %v387
        %1231 = vmatmul.mubr.bf16.gmra.mrb[0].mxu0 %v386
        %v1232 = vpop.f32.mrb[0].mxu0
        %v1233 = vadd.f32 %v521, %v1232
        %v1234 = vpop.f32.mrb[0].mxu0
        %v1235 = vadd.f32 %v525, %v1234
        %v1236 = vpop.f32.mrb[0].mxu0
        %v1237 = vadd.f32 %v521, %v1236
        %v1238 = vpop.f32.mrb[0].mxu0
        %v1239 = vadd.f32 %v525, %v1238
        %1240 = vdwg.mxu0
        %1241 = vmatprep.subr.bf16.mxu0 %v945
        %1242 = vmatpush1.bf16.msra.mxu0 %v944
        %1243 = vmatprep.subr.bf16.mxu0 %v953
        %1244 = vmatpush1.bf16.msra.mxu0 %v952
        %1245 = vmatprep.subr.bf16.mxu0 %v961
        %1246 = vmatpush1.bf16.msra.mxu0 %v960
        %1247 = vmatprep.subr.bf16.mxu0 %v969
        %1248 = vmatpush1.bf16.msra.mxu0 %v968
        %1249 = vmatprep.subr.bf16.mxu0 %v977
        %1250 = vmatpush1.bf16.msra.mxu0 %v976
        %1251 = vmatprep.subr.bf16.mxu0 %v985
        %1252 = vmatpush1.bf16.msra.mxu0 %v984
        %1253 = vmatprep.subr.bf16.mxu0 %v993
        %1254 = vmatpush1.bf16.msra.mxu0 %v992
        %1255 = vmatprep.subr.bf16.mxu0 %v1001
        %1256 = vmatpush1.bf16.msra.mxu0 %v1000
        %1257 = vmatprep.subr.bf16.mxu0 %v1009
        %1258 = vmatpush1.bf16.msra.mxu0 %v1008
        %1259 = vmatprep.subr.bf16.mxu0 %v1017
        %1260 = vmatpush1.bf16.msra.mxu0 %v1016
        %1261 = vmatprep.subr.bf16.mxu0 %v1025
        %1262 = vmatpush1.bf16.msra.mxu0 %v1024
        %1263 = vmatprep.subr.bf16.mxu0 %v1033
        %1264 = vmatpush1.bf16.msra.mxu0 %v1032
        %1265 = vmatprep.subr.bf16.mxu0 %v1041
        %1266 = vmatpush1.bf16.msra.mxu0 %v1040
        %1267 = vmatprep.subr.bf16.mxu0 %v1049
        %1268 = vmatpush1.bf16.msra.mxu0 %v1048
        %1269 = vmatprep.subr.bf16.mxu0 %v1057
        %1270 = vmatpush1.bf16.msra.mxu0 %v1056
        %1271 = vmatprep.subr.bf16.mxu0 %v1065
        %1272 = vmatpush1.bf16.msra.mxu0 %v1064
        %1273 = vmatprep.mubr.bf16.mxu0 %v387
        %1274 = vmatmul.mubr.bf16.gmra.mrb[0].mxu0 %v386
        %v1275 = vpop.f32.mrb[0].mxu0
        %v1276 = vadd.f32 %v529, %v1275
        %v1277 = vpop.f32.mrb[0].mxu0
        %v1278 = vadd.f32 %v533, %v1277
        %v1279 = vpop.f32.mrb[0].mxu0
        %v1280 = vadd.f32 %v529, %v1279
        %v1281 = vpop.f32.mrb[0].mxu0
        %v1282 = vadd.f32 %v533, %v1281
        %1283 = vdwg.mxu0
        %1284 = vmatprep.subr.bf16.mxu0 %v947
        %1285 = vmatpush1.bf16.msra.mxu0 %v946
        %1286 = vmatprep.subr.bf16.mxu0 %v955
        %1287 = vmatpush1.bf16.msra.mxu0 %v954
        %1288 = vmatprep.subr.bf16.mxu0 %v963
        %1289 = vmatpush1.bf16.msra.mxu0 %v962
        %1290 = vmatprep.subr.bf16.mxu0 %v971
        %1291 = vmatpush1.bf16.msra.mxu0 %v970
        %1292 = vmatprep.subr.bf16.mxu0 %v979
        %1293 = vmatpush1.bf16.msra.mxu0 %v978
        %1294 = vmatprep.subr.bf16.mxu0 %v987
        %1295 = vmatpush1.bf16.msra.mxu0 %v986
        %1296 = vmatprep.subr.bf16.mxu0 %v995
        %1297 = vmatpush1.bf16.msra.mxu0 %v994
        %1298 = vmatprep.subr.bf16.mxu0 %v1003
        %1299 = vmatpush1.bf16.msra.mxu0 %v1002
        %1300 = vmatprep.subr.bf16.mxu0 %v1011
        %1301 = vmatpush1.bf16.msra.mxu0 %v1010
        %1302 = vmatprep.subr.bf16.mxu0 %v1019
        %1303 = vmatpush1.bf16.msra.mxu0 %v1018
        %1304 = vmatprep.subr.bf16.mxu0 %v1027
        %1305 = vmatpush1.bf16.msra.mxu0 %v1026
        %1306 = vmatprep.subr.bf16.mxu0 %v1035
        %1307 = vmatpush1.bf16.msra.mxu0 %v1034
        %1308 = vmatprep.subr.bf16.mxu0 %v1043
        %1309 = vmatpush1.bf16.msra.mxu0 %v1042
        %1310 = vmatprep.subr.bf16.mxu0 %v1051
        %1311 = vmatpush1.bf16.msra.mxu0 %v1050
        %1312 = vmatprep.subr.bf16.mxu0 %v1059
        %1313 = vmatpush1.bf16.msra.mxu0 %v1058
        %1314 = vmatprep.subr.bf16.mxu0 %v1067
        %1315 = vmatpush1.bf16.msra.mxu0 %v1066
        %1316 = vmatprep.mubr.bf16.mxu0 %v387
        %1317 = vmatmul.mubr.bf16.gmra.mrb[0].mxu0 %v386
        %v1318 = vpop.f32.mrb[0].mxu0
        %v1319 = vadd.f32 %v537, %v1318
        %v1320 = vpop.f32.mrb[0].mxu0
        %v1321 = vadd.f32 %v541, %v1320
        %v1322 = vpop.f32.mrb[0].mxu0
        %v1323 = vadd.f32 %v537, %v1322
        %v1324 = vpop.f32.mrb[0].mxu0
        %v1325 = vadd.f32 %v541, %v1324
        %1326 = vdwg.mxu0
        %1327 = vmatprep.subr.bf16.mxu0 %v949
        %1328 = vmatpush1.bf16.msra.mxu0 %v948
        %1329 = vmatprep.subr.bf16.mxu0 %v957
        %1330 = vmatpush1.bf16.msra.mxu0 %v956
        %1331 = vmatprep.subr.bf16.mxu0 %v965
        %1332 = vmatpush1.bf16.msra.mxu0 %v964
        %1333 = vmatprep.subr.bf16.mxu0 %v973
        %1334 = vmatpush1.bf16.msra.mxu0 %v972
        %1335 = vmatprep.subr.bf16.mxu0 %v981
        %1336 = vmatpush1.bf16.msra.mxu0 %v980
        %1337 = vmatprep.subr.bf16.mxu0 %v989
        %1338 = vmatpush1.bf16.msra.mxu0 %v988
        %1339 = vmatprep.subr.bf16.mxu0 %v997
        %1340 = vmatpush1.bf16.msra.mxu0 %v996
        %1341 = vmatprep.subr.bf16.mxu0 %v1005
        %1342 = vmatpush1.bf16.msra.mxu0 %v1004
        %1343 = vmatprep.subr.bf16.mxu0 %v1013
        %1344 = vmatpush1.bf16.msra.mxu0 %v1012
        %1345 = vmatprep.subr.bf16.mxu0 %v1021
        %1346 = vmatpush1.bf16.msra.mxu0 %v1020
        %1347 = vmatprep.subr.bf16.mxu0 %v1029
        %1348 = vmatpush1.bf16.msra.mxu0 %v1028
        %1349 = vmatprep.subr.bf16.mxu0 %v1037
        %1350 = vmatpush1.bf16.msra.mxu0 %v1036
        %1351 = vmatprep.subr.bf16.mxu0 %v1045
        %1352 = vmatpush1.bf16.msra.mxu0 %v1044
        %1353 = vmatprep.subr.bf16.mxu0 %v1053
        %1354 = vmatpush1.bf16.msra.mxu0 %v1052
        %1355 = vmatprep.subr.bf16.mxu0 %v1061
        %1356 = vmatpush1.bf16.msra.mxu0 %v1060
        %1357 = vmatprep.subr.bf16.mxu0 %v1069
        %1358 = vmatpush1.bf16.msra.mxu0 %v1068
        %1359 = vmatprep.mubr.bf16.mxu0 %v387
        %1360 = vmatmul.mubr.bf16.gmra.mrb[0].mxu0 %v386
        %v1361 = vpop.f32.mrb[0].mxu0
        %v1362 = vadd.f32 %v545, %v1361
        %v1363 = vpop.f32.mrb[0].mxu0
        %v1364 = vadd.f32 %v549, %v1363
        %v1365 = vpop.f32.mrb[0].mxu0
        %v1366 = vadd.f32 %v545, %v1365
        %v1367 = vpop.f32.mrb[0].mxu0
        %v1368 = vadd.f32 %v549, %v1367
        %1369 = vdwg.mxu0
        %v1370 = vmax.f32 %v1233, 0.0
        %v1371 = vmax.f32 %v1235, 0.0
        %v1372 = vmax.f32 %v1276, 0.0
        %v1373 = vmax.f32 %v1278, 0.0
        %v1374 = vmax.f32 %v1319, 0.0
        %v1375 = vmax.f32 %v1321, 0.0
        %v1376 = vmax.f32 %v1362, 0.0
        %v1377 = vmax.f32 %v1364, 0.0
        %v1378 = vmax.f32 %v1237, 0.0
        %v1379 = vmax.f32 %v1239, 0.0
        %v1380 = vmax.f32 %v1280, 0.0
        %v1381 = vmax.f32 %v1282, 0.0
        %v1382 = vmax.f32 %v1323, 0.0
        %v1383 = vmax.f32 %v1325, 0.0
        %v1384 = vmax.f32 %v1366, 0.0
        %v1385 = vmax.f32 %v1368, 0.0
        %v1386 = vpack.c.bf16 %v1378, %v1370
        %v1387 = vpack.c.bf16 %v1379, %v1371
        %v1388 = vpack.c.bf16 %v1380, %v1372
        %v1389 = vpack.c.bf16 %v1381, %v1373
        %v1390 = vpack.c.bf16 %v1382, %v1374
        %v1391 = vpack.c.bf16 %v1383, %v1375
        %v1392 = vpack.c.bf16 %v1384, %v1376
        %v1393 = vpack.c.bf16 %v1385, %v1377
        %v1394 = vld [vmem:[#allocation8] sm:$0xff]
        %v1395 = vld [vmem:[#allocation8 + $0x8] sm:$0xff]
        %v1396 = vld [vmem:[#allocation8 + $0x10] sm:$0xff]
        %v1397 = vld [vmem:[#allocation8 + $0x18] sm:$0xff]
        %v1398 = vld [vmem:[#allocation8 + $0x20] sm:$0xff]
        %v1399 = vld [vmem:[#allocation8 + $0x28] sm:$0xff]
        %v1400 = vld [vmem:[#allocation8 + $0x30] sm:$0xff]
        %v1401 = vld [vmem:[#allocation8 + $0x38] sm:$0xff]
        %v1402 = vld [vmem:[#allocation8 + $0x40] sm:$0xff]
        %v1403 = vld [vmem:[#allocation8 + $0x48] sm:$0xff]
        %v1404 = vld [vmem:[#allocation8 + $0x50] sm:$0xff]
        %v1405 = vld [vmem:[#allocation8 + $0x58] sm:$0xff]
        %v1406 = vld [vmem:[#allocation8 + $0x60] sm:$0xff]
        %v1407 = vld [vmem:[#allocation8 + $0x68] sm:$0xff]
        %v1408 = vld [vmem:[#allocation8 + $0x70] sm:$0xff]
        %v1409 = vld [vmem:[#allocation8 + $0x78] sm:$0xff]
        %v1410 = vld [vmem:[#allocation8 + $0x80] sm:$0xff]
        %v1411 = vld [vmem:[#allocation8 + $0x88] sm:$0xff]
        %v1412 = vld [vmem:[#allocation8 + $0x90] sm:$0xff]
        %v1413 = vld [vmem:[#allocation8 + $0x98] sm:$0xff]
        %v1414 = vld [vmem:[#allocation8 + $0xa0] sm:$0xff]
        %v1415 = vld [vmem:[#allocation8 + $0xa8] sm:$0xff]
        %v1416 = vld [vmem:[#allocation8 + $0xb0] sm:$0xff]
        %v1417 = vld [vmem:[#allocation8 + $0xb8] sm:$0xff]
        %v1418 = vld [vmem:[#allocation8 + $0xc0] sm:$0xff]
        %v1419 = vld [vmem:[#allocation8 + $0xc8] sm:$0xff]
        %v1420 = vld [vmem:[#allocation8 + $0xd0] sm:$0xff]
        %v1421 = vld [vmem:[#allocation8 + $0xd8] sm:$0xff]
        %v1422 = vld [vmem:[#allocation8 + $0xe0] sm:$0xff]
        %v1423 = vld [vmem:[#allocation8 + $0xe8] sm:$0xff]
        %v1424 = vld [vmem:[#allocation8 + $0xf0] sm:$0xff]
        %v1425 = vld [vmem:[#allocation8 + $0xf8] sm:$0xff]
        %v1426 = vld [vmem:[#allocation8 + $0x100] sm:$0xff]
        %v1427 = vld [vmem:[#allocation8 + $0x108] sm:$0xff]
        %v1428 = vld [vmem:[#allocation8 + $0x110] sm:$0xff]
        %v1429 = vld [vmem:[#allocation8 + $0x118] sm:$0xff]
        %v1430 = vld [vmem:[#allocation8 + $0x120] sm:$0xff]
        %v1431 = vld [vmem:[#allocation8 + $0x128] sm:$0xff]
        %v1432 = vld [vmem:[#allocation8 + $0x130] sm:$0xff]
        %v1433 = vld [vmem:[#allocation8 + $0x138] sm:$0xff]
        %v1434 = vld [vmem:[#allocation8 + $0x140] sm:$0xff]
        %v1435 = vld [vmem:[#allocation8 + $0x148] sm:$0xff]
        %v1436 = vld [vmem:[#allocation8 + $0x150] sm:$0xff]
        %v1437 = vld [vmem:[#allocation8 + $0x158] sm:$0xff]
        %v1438 = vld [vmem:[#allocation8 + $0x160] sm:$0xff]
        %v1439 = vld [vmem:[#allocation8 + $0x168] sm:$0xff]
        %v1440 = vld [vmem:[#allocation8 + $0x170] sm:$0xff]
        %v1441 = vld [vmem:[#allocation8 + $0x178] sm:$0xff]
        %v1442 = vld [vmem:[#allocation8 + $0x180] sm:$0xff]
        %v1443 = vld [vmem:[#allocation8 + $0x188] sm:$0xff]
        %v1444 = vld [vmem:[#allocation8 + $0x190] sm:$0xff]
        %v1445 = vld [vmem:[#allocation8 + $0x198] sm:$0xff]
        %v1446 = vld [vmem:[#allocation8 + $0x1a0] sm:$0xff]
        %v1447 = vld [vmem:[#allocation8 + $0x1a8] sm:$0xff]
        %v1448 = vld [vmem:[#allocation8 + $0x1b0] sm:$0xff]
        %v1449 = vld [vmem:[#allocation8 + $0x1b8] sm:$0xff]
        %v1450 = vld [vmem:[#allocation8 + $0x1c0] sm:$0xff]
        %v1451 = vld [vmem:[#allocation8 + $0x1c8] sm:$0xff]
        %v1452 = vld [vmem:[#allocation8 + $0x1d0] sm:$0xff]
        %v1453 = vld [vmem:[#allocation8 + $0x1d8] sm:$0xff]
        %v1454 = vld [vmem:[#allocation8 + $0x1e0] sm:$0xff]
        %v1455 = vld [vmem:[#allocation8 + $0x1e8] sm:$0xff]
        %v1456 = vld [vmem:[#allocation8 + $0x1f0] sm:$0xff]
        %v1457 = vld [vmem:[#allocation8 + $0x1f8] sm:$0xff]
        %v1458 = vld [vmem:[#allocation8 + $0x200] sm:$0xff]
        %v1459 = vld [vmem:[#allocation8 + $0x208] sm:$0xff]
        %v1460 = vld [vmem:[#allocation8 + $0x210] sm:$0xff]
        %v1461 = vld [vmem:[#allocation8 + $0x218] sm:$0xff]
        %v1462 = vld [vmem:[#allocation8 + $0x220] sm:$0xff]
        %v1463 = vld [vmem:[#allocation8 + $0x228] sm:$0xff]
        %v1464 = vld [vmem:[#allocation8 + $0x230] sm:$0xff]
        %v1465 = vld [vmem:[#allocation8 + $0x238] sm:$0xff]
        %v1466 = vld [vmem:[#allocation8 + $0x240] sm:$0xff]
        %v1467 = vld [vmem:[#allocation8 + $0x248] sm:$0xff]
        %v1468 = vld [vmem:[#allocation8 + $0x250] sm:$0xff]
        %v1469 = vld [vmem:[#allocation8 + $0x258] sm:$0xff]
        %v1470 = vld [vmem:[#allocation8 + $0x260] sm:$0xff]
        %v1471 = vld [vmem:[#allocation8 + $0x268] sm:$0xff]
        %v1472 = vld [vmem:[#allocation8 + $0x270] sm:$0xff]
        %v1473 = vld [vmem:[#allocation8 + $0x278] sm:$0xff]
        %v1474 = vld [vmem:[#allocation8 + $0x280] sm:$0xff]
        %v1475 = vld [vmem:[#allocation8 + $0x288] sm:$0xff]
        %v1476 = vld [vmem:[#allocation8 + $0x290] sm:$0xff]
        %v1477 = vld [vmem:[#allocation8 + $0x298] sm:$0xff]
        %v1478 = vld [vmem:[#allocation8 + $0x2a0] sm:$0xff]
        %v1479 = vld [vmem:[#allocation8 + $0x2a8] sm:$0xff]
        %v1480 = vld [vmem:[#allocation8 + $0x2b0] sm:$0xff]
        %v1481 = vld [vmem:[#allocation8 + $0x2b8] sm:$0xff]
        %v1482 = vld [vmem:[#allocation8 + $0x2c0] sm:$0xff]
        %v1483 = vld [vmem:[#allocation8 + $0x2c8] sm:$0xff]
        %v1484 = vld [vmem:[#allocation8 + $0x2d0] sm:$0xff]
        %v1485 = vld [vmem:[#allocation8 + $0x2d8] sm:$0xff]
        %v1486 = vld [vmem:[#allocation8 + $0x2e0] sm:$0xff]
        %v1487 = vld [vmem:[#allocation8 + $0x2e8] sm:$0xff]
        %v1488 = vld [vmem:[#allocation8 + $0x2f0] sm:$0xff]
        %v1489 = vld [vmem:[#allocation8 + $0x2f8] sm:$0xff]
        %v1490 = vld [vmem:[#allocation8 + $0x300] sm:$0xff]
        %v1491 = vld [vmem:[#allocation8 + $0x308] sm:$0xff]
        %v1492 = vld [vmem:[#allocation8 + $0x310] sm:$0xff]
        %v1493 = vld [vmem:[#allocation8 + $0x318] sm:$0xff]
        %v1494 = vld [vmem:[#allocation8 + $0x320] sm:$0xff]
        %v1495 = vld [vmem:[#allocation8 + $0x328] sm:$0xff]
        %v1496 = vld [vmem:[#allocation8 + $0x330] sm:$0xff]
        %v1497 = vld [vmem:[#allocation8 + $0x338] sm:$0xff]
        %v1498 = vld [vmem:[#allocation8 + $0x340] sm:$0xff]
        %v1499 = vld [vmem:[#allocation8 + $0x348] sm:$0xff]
        %v1500 = vld [vmem:[#allocation8 + $0x350] sm:$0xff]
        %v1501 = vld [vmem:[#allocation8 + $0x358] sm:$0xff]
        %v1502 = vld [vmem:[#allocation8 + $0x360] sm:$0xff]
        %v1503 = vld [vmem:[#allocation8 + $0x368] sm:$0xff]
        %v1504 = vld [vmem:[#allocation8 + $0x370] sm:$0xff]
        %v1505 = vld [vmem:[#allocation8 + $0x378] sm:$0xff]
        %v1506 = vld [vmem:[#allocation8 + $0x380] sm:$0xff]
        %v1507 = vld [vmem:[#allocation8 + $0x388] sm:$0xff]
        %v1508 = vld [vmem:[#allocation8 + $0x390] sm:$0xff]
        %v1509 = vld [vmem:[#allocation8 + $0x398] sm:$0xff]
        %v1510 = vld [vmem:[#allocation8 + $0x3a0] sm:$0xff]
        %v1511 = vld [vmem:[#allocation8 + $0x3a8] sm:$0xff]
        %v1512 = vld [vmem:[#allocation8 + $0x3b0] sm:$0xff]
        %v1513 = vld [vmem:[#allocation8 + $0x3b8] sm:$0xff]
        %v1514 = vld [vmem:[#allocation8 + $0x3c0] sm:$0xff]
        %v1515 = vld [vmem:[#allocation8 + $0x3c8] sm:$0xff]
        %v1516 = vld [vmem:[#allocation8 + $0x3d0] sm:$0xff]
        %v1517 = vld [vmem:[#allocation8 + $0x3d8] sm:$0xff]
        %v1518 = vld [vmem:[#allocation8 + $0x3e0] sm:$0xff]
        %v1519 = vld [vmem:[#allocation8 + $0x3e8] sm:$0xff]
        %v1520 = vld [vmem:[#allocation8 + $0x3f0] sm:$0xff]
        %v1521 = vld [vmem:[#allocation8 + $0x3f8] sm:$0xff]
        %v1522 = vld [vmem:[#allocation8 + $0x400] sm:$0xff]
        %v1523 = vld [vmem:[#allocation8 + $0x408] sm:$0xff]
        %v1524 = vld [vmem:[#allocation8 + $0x410] sm:$0xff]
        %v1525 = vld [vmem:[#allocation8 + $0x418] sm:$0xff]
        %v1526 = vld [vmem:[#allocation8 + $0x420] sm:$0xff]
        %v1527 = vld [vmem:[#allocation8 + $0x428] sm:$0xff]
        %v1528 = vld [vmem:[#allocation8 + $0x430] sm:$0xff]
        %v1529 = vld [vmem:[#allocation8 + $0x438] sm:$0xff]
        %v1530 = vld [vmem:[#allocation8 + $0x440] sm:$0xff]
        %v1531 = vld [vmem:[#allocation8 + $0x448] sm:$0xff]
        %v1532 = vld [vmem:[#allocation8 + $0x450] sm:$0xff]
        %v1533 = vld [vmem:[#allocation8 + $0x458] sm:$0xff]
        %v1534 = vld [vmem:[#allocation8 + $0x460] sm:$0xff]
        %v1535 = vld [vmem:[#allocation8 + $0x468] sm:$0xff]
        %v1536 = vld [vmem:[#allocation8 + $0x470] sm:$0xff]
        %v1537 = vld [vmem:[#allocation8 + $0x478] sm:$0xff]
        %v1538 = vld [vmem:[#allocation8 + $0x480] sm:$0xff]
        %v1539 = vld [vmem:[#allocation8 + $0x488] sm:$0xff]
        %v1540 = vld [vmem:[#allocation8 + $0x490] sm:$0xff]
        %v1541 = vld [vmem:[#allocation8 + $0x498] sm:$0xff]
        %v1542 = vld [vmem:[#allocation8 + $0x4a0] sm:$0xff]
        %v1543 = vld [vmem:[#allocation8 + $0x4a8] sm:$0xff]
        %v1544 = vld [vmem:[#allocation8 + $0x4b0] sm:$0xff]
        %v1545 = vld [vmem:[#allocation8 + $0x4b8] sm:$0xff]
        %v1546 = vld [vmem:[#allocation8 + $0x4c0] sm:$0xff]
        %v1547 = vld [vmem:[#allocation8 + $0x4c8] sm:$0xff]
        %v1548 = vld [vmem:[#allocation8 + $0x4d0] sm:$0xff]
        %v1549 = vld [vmem:[#allocation8 + $0x4d8] sm:$0xff]
        %v1550 = vld [vmem:[#allocation8 + $0x4e0] sm:$0xff]
        %v1551 = vld [vmem:[#allocation8 + $0x4e8] sm:$0xff]
        %v1552 = vld [vmem:[#allocation8 + $0x4f0] sm:$0xff]
        %v1553 = vld [vmem:[#allocation8 + $0x4f8] sm:$0xff]
        %v1554 = vld [vmem:[#allocation8 + $0x500] sm:$0xff]
        %v1555 = vld [vmem:[#allocation8 + $0x508] sm:$0xff]
        %v1556 = vld [vmem:[#allocation8 + $0x510] sm:$0xff]
        %v1557 = vld [vmem:[#allocation8 + $0x518] sm:$0xff]
        %v1558 = vld [vmem:[#allocation8 + $0x520] sm:$0xff]
        %v1559 = vld [vmem:[#allocation8 + $0x528] sm:$0xff]
        %v1560 = vld [vmem:[#allocation8 + $0x530] sm:$0xff]
        %v1561 = vld [vmem:[#allocation8 + $0x538] sm:$0xff]
        %v1562 = vld [vmem:[#allocation8 + $0x540] sm:$0xff]
        %v1563 = vld [vmem:[#allocation8 + $0x548] sm:$0xff]
        %v1564 = vld [vmem:[#allocation8 + $0x550] sm:$0xff]
        %v1565 = vld [vmem:[#allocation8 + $0x558] sm:$0xff]
        %v1566 = vld [vmem:[#allocation8 + $0x560] sm:$0xff]
        %v1567 = vld [vmem:[#allocation8 + $0x568] sm:$0xff]
        %v1568 = vld [vmem:[#allocation8 + $0x570] sm:$0xff]
        %v1569 = vld [vmem:[#allocation8 + $0x578] sm:$0xff]
        %v1570 = vld [vmem:[#allocation8 + $0x580] sm:$0xff]
        %v1571 = vld [vmem:[#allocation8 + $0x588] sm:$0xff]
        %v1572 = vld [vmem:[#allocation8 + $0x590] sm:$0xff]
        %v1573 = vld [vmem:[#allocation8 + $0x598] sm:$0xff]
        %v1574 = vld [vmem:[#allocation8 + $0x5a0] sm:$0xff]
        %v1575 = vld [vmem:[#allocation8 + $0x5a8] sm:$0xff]
        %v1576 = vld [vmem:[#allocation8 + $0x5b0] sm:$0xff]
        %v1577 = vld [vmem:[#allocation8 + $0x5b8] sm:$0xff]
        %v1578 = vld [vmem:[#allocation8 + $0x5c0] sm:$0xff]
        %v1579 = vld [vmem:[#allocation8 + $0x5c8] sm:$0xff]
        %v1580 = vld [vmem:[#allocation8 + $0x5d0] sm:$0xff]
        %v1581 = vld [vmem:[#allocation8 + $0x5d8] sm:$0xff]
        %v1582 = vld [vmem:[#allocation8 + $0x5e0] sm:$0xff]
        %v1583 = vld [vmem:[#allocation8 + $0x5e8] sm:$0xff]
        %v1584 = vld [vmem:[#allocation8 + $0x5f0] sm:$0xff]
        %v1585 = vld [vmem:[#allocation8 + $0x5f8] sm:$0xff]
        %v1586 = vld [vmem:[#allocation8 + $0x600] sm:$0xff]
        %v1587 = vld [vmem:[#allocation8 + $0x608] sm:$0xff]
        %v1588 = vld [vmem:[#allocation8 + $0x610] sm:$0xff]
        %v1589 = vld [vmem:[#allocation8 + $0x618] sm:$0xff]
        %v1590 = vld [vmem:[#allocation8 + $0x620] sm:$0xff]
        %v1591 = vld [vmem:[#allocation8 + $0x628] sm:$0xff]
        %v1592 = vld [vmem:[#allocation8 + $0x630] sm:$0xff]
        %v1593 = vld [vmem:[#allocation8 + $0x638] sm:$0xff]
        %v1594 = vld [vmem:[#allocation8 + $0x640] sm:$0xff]
        %v1595 = vld [vmem:[#allocation8 + $0x648] sm:$0xff]
        %v1596 = vld [vmem:[#allocation8 + $0x650] sm:$0xff]
        %v1597 = vld [vmem:[#allocation8 + $0x658] sm:$0xff]
        %v1598 = vld [vmem:[#allocation8 + $0x660] sm:$0xff]
        %v1599 = vld [vmem:[#allocation8 + $0x668] sm:$0xff]
        %v1600 = vld [vmem:[#allocation8 + $0x670] sm:$0xff]
        %v1601 = vld [vmem:[#allocation8 + $0x678] sm:$0xff]
        %v1602 = vld [vmem:[#allocation8 + $0x680] sm:$0xff]
        %v1603 = vld [vmem:[#allocation8 + $0x688] sm:$0xff]
        %v1604 = vld [vmem:[#allocation8 + $0x690] sm:$0xff]
        %v1605 = vld [vmem:[#allocation8 + $0x698] sm:$0xff]
        %v1606 = vld [vmem:[#allocation8 + $0x6a0] sm:$0xff]
        %v1607 = vld [vmem:[#allocation8 + $0x6a8] sm:$0xff]
        %v1608 = vld [vmem:[#allocation8 + $0x6b0] sm:$0xff]
        %v1609 = vld [vmem:[#allocation8 + $0x6b8] sm:$0xff]
        %v1610 = vld [vmem:[#allocation8 + $0x6c0] sm:$0xff]
        %v1611 = vld [vmem:[#allocation8 + $0x6c8] sm:$0xff]
        %v1612 = vld [vmem:[#allocation8 + $0x6d0] sm:$0xff]
        %v1613 = vld [vmem:[#allocation8 + $0x6d8] sm:$0xff]
        %v1614 = vld [vmem:[#allocation8 + $0x6e0] sm:$0xff]
        %v1615 = vld [vmem:[#allocation8 + $0x6e8] sm:$0xff]
        %v1616 = vld [vmem:[#allocation8 + $0x6f0] sm:$0xff]
        %v1617 = vld [vmem:[#allocation8 + $0x6f8] sm:$0xff]
        %v1618 = vld [vmem:[#allocation8 + $0x700] sm:$0xff]
        %v1619 = vld [vmem:[#allocation8 + $0x708] sm:$0xff]
        %v1620 = vld [vmem:[#allocation8 + $0x710] sm:$0xff]
        %v1621 = vld [vmem:[#allocation8 + $0x718] sm:$0xff]
        %v1622 = vld [vmem:[#allocation8 + $0x720] sm:$0xff]
        %v1623 = vld [vmem:[#allocation8 + $0x728] sm:$0xff]
        %v1624 = vld [vmem:[#allocation8 + $0x730] sm:$0xff]
        %v1625 = vld [vmem:[#allocation8 + $0x738] sm:$0xff]
        %v1626 = vld [vmem:[#allocation8 + $0x740] sm:$0xff]
        %v1627 = vld [vmem:[#allocation8 + $0x748] sm:$0xff]
        %v1628 = vld [vmem:[#allocation8 + $0x750] sm:$0xff]
        %v1629 = vld [vmem:[#allocation8 + $0x758] sm:$0xff]
        %v1630 = vld [vmem:[#allocation8 + $0x760] sm:$0xff]
        %v1631 = vld [vmem:[#allocation8 + $0x768] sm:$0xff]
        %v1632 = vld [vmem:[#allocation8 + $0x770] sm:$0xff]
        %v1633 = vld [vmem:[#allocation8 + $0x778] sm:$0xff]
        %v1634 = vld [vmem:[#allocation8 + $0x780] sm:$0xff]
        %v1635 = vld [vmem:[#allocation8 + $0x788] sm:$0xff]
        %v1636 = vld [vmem:[#allocation8 + $0x790] sm:$0xff]
        %v1637 = vld [vmem:[#allocation8 + $0x798] sm:$0xff]
        %v1638 = vld [vmem:[#allocation8 + $0x7a0] sm:$0xff]
        %v1639 = vld [vmem:[#allocation8 + $0x7a8] sm:$0xff]
        %v1640 = vld [vmem:[#allocation8 + $0x7b0] sm:$0xff]
        %v1641 = vld [vmem:[#allocation8 + $0x7b8] sm:$0xff]
        %v1642 = vld [vmem:[#allocation8 + $0x7c0] sm:$0xff]
        %v1643 = vld [vmem:[#allocation8 + $0x7c8] sm:$0xff]
        %v1644 = vld [vmem:[#allocation8 + $0x7d0] sm:$0xff]
        %v1645 = vld [vmem:[#allocation8 + $0x7d8] sm:$0xff]
        %v1646 = vld [vmem:[#allocation8 + $0x7e0] sm:$0xff]
        %v1647 = vld [vmem:[#allocation8 + $0x7e8] sm:$0xff]
        %v1648 = vld [vmem:[#allocation8 + $0x7f0] sm:$0xff]
        %v1649 = vld [vmem:[#allocation8 + $0x7f8] sm:$0xff]
        %v1650 = vld [vmem:[#allocation8 + $0x800] sm:$0xff]
        %v1651 = vld [vmem:[#allocation8 + $0x808] sm:$0xff]
        %v1652 = vld [vmem:[#allocation8 + $0x810] sm:$0xff]
        %v1653 = vld [vmem:[#allocation8 + $0x818] sm:$0xff]
        %v1654 = vld [vmem:[#allocation8 + $0x820] sm:$0xff]
        %v1655 = vld [vmem:[#allocation8 + $0x828] sm:$0xff]
        %v1656 = vld [vmem:[#allocation8 + $0x830] sm:$0xff]
        %v1657 = vld [vmem:[#allocation8 + $0x838] sm:$0xff]
        %v1658 = vld [vmem:[#allocation8 + $0x840] sm:$0xff]
        %v1659 = vld [vmem:[#allocation8 + $0x848] sm:$0xff]
        %v1660 = vld [vmem:[#allocation8 + $0x850] sm:$0xff]
        %v1661 = vld [vmem:[#allocation8 + $0x858] sm:$0xff]
        %v1662 = vld [vmem:[#allocation8 + $0x860] sm:$0xff]
        %v1663 = vld [vmem:[#allocation8 + $0x868] sm:$0xff]
        %v1664 = vld [vmem:[#allocation8 + $0x870] sm:$0xff]
        %v1665 = vld [vmem:[#allocation8 + $0x878] sm:$0xff]
        %v1666 = vld [vmem:[#allocation8 + $0x880] sm:$0xff]
        %v1667 = vld [vmem:[#allocation8 + $0x888] sm:$0xff]
        %v1668 = vld [vmem:[#allocation8 + $0x890] sm:$0xff]
        %v1669 = vld [vmem:[#allocation8 + $0x898] sm:$0xff]
        %v1670 = vld [vmem:[#allocation8 + $0x8a0] sm:$0xff]
        %v1671 = vld [vmem:[#allocation8 + $0x8a8] sm:$0xff]
        %v1672 = vld [vmem:[#allocation8 + $0x8b0] sm:$0xff]
        %v1673 = vld [vmem:[#allocation8 + $0x8b8] sm:$0xff]
        %v1674 = vld [vmem:[#allocation8 + $0x8c0] sm:$0xff]
        %v1675 = vld [vmem:[#allocation8 + $0x8c8] sm:$0xff]
        %v1676 = vld [vmem:[#allocation8 + $0x8d0] sm:$0xff]
        %v1677 = vld [vmem:[#allocation8 + $0x8d8] sm:$0xff]
        %v1678 = vld [vmem:[#allocation8 + $0x8e0] sm:$0xff]
        %v1679 = vld [vmem:[#allocation8 + $0x8e8] sm:$0xff]
        %v1680 = vld [vmem:[#allocation8 + $0x8f0] sm:$0xff]
        %v1681 = vld [vmem:[#allocation8 + $0x8f8] sm:$0xff]
        %v1682 = vld [vmem:[#allocation8 + $0x900] sm:$0xff]
        %v1683 = vld [vmem:[#allocation8 + $0x908] sm:$0xff]
        %v1684 = vld [vmem:[#allocation8 + $0x910] sm:$0xff]
        %v1685 = vld [vmem:[#allocation8 + $0x918] sm:$0xff]
        %v1686 = vld [vmem:[#allocation8 + $0x920] sm:$0xff]
        %v1687 = vld [vmem:[#allocation8 + $0x928] sm:$0xff]
        %v1688 = vld [vmem:[#allocation8 + $0x930] sm:$0xff]
        %v1689 = vld [vmem:[#allocation8 + $0x938] sm:$0xff]
        %v1690 = vld [vmem:[#allocation8 + $0x940] sm:$0xff]
        %v1691 = vld [vmem:[#allocation8 + $0x948] sm:$0xff]
        %v1692 = vld [vmem:[#allocation8 + $0x950] sm:$0xff]
        %v1693 = vld [vmem:[#allocation8 + $0x958] sm:$0xff]
        %v1694 = vld [vmem:[#allocation8 + $0x960] sm:$0xff]
        %v1695 = vld [vmem:[#allocation8 + $0x968] sm:$0xff]
        %v1696 = vld [vmem:[#allocation8 + $0x970] sm:$0xff]
        %v1697 = vld [vmem:[#allocation8 + $0x978] sm:$0xff]
        %v1698 = vld [vmem:[#allocation8 + $0x980] sm:$0xff]
        %v1699 = vld [vmem:[#allocation8 + $0x988] sm:$0xff]
        %v1700 = vld [vmem:[#allocation8 + $0x990] sm:$0xff]
        %v1701 = vld [vmem:[#allocation8 + $0x998] sm:$0xff]
        %v1702 = vld [vmem:[#allocation8 + $0x9a0] sm:$0xff]
        %v1703 = vld [vmem:[#allocation8 + $0x9a8] sm:$0xff]
        %v1704 = vld [vmem:[#allocation8 + $0x9b0] sm:$0xff]
        %v1705 = vld [vmem:[#allocation8 + $0x9b8] sm:$0xff]
        %v1706 = vld [vmem:[#allocation8 + $0x9c0] sm:$0xff]
        %v1707 = vld [vmem:[#allocation8 + $0x9c8] sm:$0xff]
        %v1708 = vld [vmem:[#allocation8 + $0x9d0] sm:$0xff]
        %v1709 = vld [vmem:[#allocation8 + $0x9d8] sm:$0xff]
        %v1710 = vld [vmem:[#allocation8 + $0x9e0] sm:$0xff]
        %v1711 = vld [vmem:[#allocation8 + $0x9e8] sm:$0xff]
        %v1712 = vld [vmem:[#allocation8 + $0x9f0] sm:$0xff]
        %v1713 = vld [vmem:[#allocation8 + $0x9f8] sm:$0xff]
        %v1714 = vld [vmem:[#allocation8 + $0xa00] sm:$0xff]
        %v1715 = vld [vmem:[#allocation8 + $0xa08] sm:$0xff]
        %v1716 = vld [vmem:[#allocation8 + $0xa10] sm:$0xff]
        %v1717 = vld [vmem:[#allocation8 + $0xa18] sm:$0xff]
        %v1718 = vld [vmem:[#allocation8 + $0xa20] sm:$0xff]
        %v1719 = vld [vmem:[#allocation8 + $0xa28] sm:$0xff]
        %v1720 = vld [vmem:[#allocation8 + $0xa30] sm:$0xff]
        %v1721 = vld [vmem:[#allocation8 + $0xa38] sm:$0xff]
        %v1722 = vld [vmem:[#allocation8 + $0xa40] sm:$0xff]
        %v1723 = vld [vmem:[#allocation8 + $0xa48] sm:$0xff]
        %v1724 = vld [vmem:[#allocation8 + $0xa50] sm:$0xff]
        %v1725 = vld [vmem:[#allocation8 + $0xa58] sm:$0xff]
        %v1726 = vld [vmem:[#allocation8 + $0xa60] sm:$0xff]
        %v1727 = vld [vmem:[#allocation8 + $0xa68] sm:$0xff]
        %v1728 = vld [vmem:[#allocation8 + $0xa70] sm:$0xff]
        %v1729 = vld [vmem:[#allocation8 + $0xa78] sm:$0xff]
        %v1730 = vld [vmem:[#allocation8 + $0xa80] sm:$0xff]
        %v1731 = vld [vmem:[#allocation8 + $0xa88] sm:$0xff]
        %v1732 = vld [vmem:[#allocation8 + $0xa90] sm:$0xff]
        %v1733 = vld [vmem:[#allocation8 + $0xa98] sm:$0xff]
        %v1734 = vld [vmem:[#allocation8 + $0xaa0] sm:$0xff]
        %v1735 = vld [vmem:[#allocation8 + $0xaa8] sm:$0xff]
        %v1736 = vld [vmem:[#allocation8 + $0xab0] sm:$0xff]
        %v1737 = vld [vmem:[#allocation8 + $0xab8] sm:$0xff]
        %v1738 = vld [vmem:[#allocation8 + $0xac0] sm:$0xff]
        %v1739 = vld [vmem:[#allocation8 + $0xac8] sm:$0xff]
        %v1740 = vld [vmem:[#allocation8 + $0xad0] sm:$0xff]
        %v1741 = vld [vmem:[#allocation8 + $0xad8] sm:$0xff]
        %v1742 = vld [vmem:[#allocation8 + $0xae0] sm:$0xff]
        %v1743 = vld [vmem:[#allocation8 + $0xae8] sm:$0xff]
        %v1744 = vld [vmem:[#allocation8 + $0xaf0] sm:$0xff]
        %v1745 = vld [vmem:[#allocation8 + $0xaf8] sm:$0xff]
        %v1746 = vld [vmem:[#allocation8 + $0xb00] sm:$0xff]
        %v1747 = vld [vmem:[#allocation8 + $0xb08] sm:$0xff]
        %v1748 = vld [vmem:[#allocation8 + $0xb10] sm:$0xff]
        %v1749 = vld [vmem:[#allocation8 + $0xb18] sm:$0xff]
        %v1750 = vld [vmem:[#allocation8 + $0xb20] sm:$0xff]
        %v1751 = vld [vmem:[#allocation8 + $0xb28] sm:$0xff]
        %v1752 = vld [vmem:[#allocation8 + $0xb30] sm:$0xff]
        %v1753 = vld [vmem:[#allocation8 + $0xb38] sm:$0xff]
        %v1754 = vld [vmem:[#allocation8 + $0xb40] sm:$0xff]
        %v1755 = vld [vmem:[#allocation8 + $0xb48] sm:$0xff]
        %v1756 = vld [vmem:[#allocation8 + $0xb50] sm:$0xff]
        %v1757 = vld [vmem:[#allocation8 + $0xb58] sm:$0xff]
        %v1758 = vld [vmem:[#allocation8 + $0xb60] sm:$0xff]
        %v1759 = vld [vmem:[#allocation8 + $0xb68] sm:$0xff]
        %v1760 = vld [vmem:[#allocation8 + $0xb70] sm:$0xff]
        %v1761 = vld [vmem:[#allocation8 + $0xb78] sm:$0xff]
        %v1762 = vld [vmem:[#allocation8 + $0xb80] sm:$0xff]
        %v1763 = vld [vmem:[#allocation8 + $0xb88] sm:$0xff]
        %v1764 = vld [vmem:[#allocation8 + $0xb90] sm:$0xff]
        %v1765 = vld [vmem:[#allocation8 + $0xb98] sm:$0xff]
        %v1766 = vld [vmem:[#allocation8 + $0xba0] sm:$0xff]
        %v1767 = vld [vmem:[#allocation8 + $0xba8] sm:$0xff]
        %v1768 = vld [vmem:[#allocation8 + $0xbb0] sm:$0xff]
        %v1769 = vld [vmem:[#allocation8 + $0xbb8] sm:$0xff]
        %v1770 = vld [vmem:[#allocation8 + $0xbc0] sm:$0xff]
        %v1771 = vld [vmem:[#allocation8 + $0xbc8] sm:$0xff]
        %v1772 = vld [vmem:[#allocation8 + $0xbd0] sm:$0xff]
        %v1773 = vld [vmem:[#allocation8 + $0xbd8] sm:$0xff]
        %v1774 = vld [vmem:[#allocation8 + $0xbe0] sm:$0xff]
        %v1775 = vld [vmem:[#allocation8 + $0xbe8] sm:$0xff]
        %v1776 = vld [vmem:[#allocation8 + $0xbf0] sm:$0xff]
        %v1777 = vld [vmem:[#allocation8 + $0xbf8] sm:$0xff]
        %v1778 = vld [vmem:[#allocation8 + $0xc00] sm:$0xff]
        %v1779 = vld [vmem:[#allocation8 + $0xc08] sm:$0xff]
        %v1780 = vld [vmem:[#allocation8 + $0xc10] sm:$0xff]
        %v1781 = vld [vmem:[#allocation8 + $0xc18] sm:$0xff]
        %v1782 = vld [vmem:[#allocation8 + $0xc20] sm:$0xff]
        %v1783 = vld [vmem:[#allocation8 + $0xc28] sm:$0xff]
        %v1784 = vld [vmem:[#allocation8 + $0xc30] sm:$0xff]
        %v1785 = vld [vmem:[#allocation8 + $0xc38] sm:$0xff]
        %v1786 = vld [vmem:[#allocation8 + $0xc40] sm:$0xff]
        %v1787 = vld [vmem:[#allocation8 + $0xc48] sm:$0xff]
        %v1788 = vld [vmem:[#allocation8 + $0xc50] sm:$0xff]
        %v1789 = vld [vmem:[#allocation8 + $0xc58] sm:$0xff]
        %v1790 = vld [vmem:[#allocation8 + $0xc60] sm:$0xff]
        %v1791 = vld [vmem:[#allocation8 + $0xc68] sm:$0xff]
        %v1792 = vld [vmem:[#allocation8 + $0xc70] sm:$0xff]
        %v1793 = vld [vmem:[#allocation8 + $0xc78] sm:$0xff]
        %v1794 = vld [vmem:[#allocation8 + $0xc80] sm:$0xff]
        %v1795 = vld [vmem:[#allocation8 + $0xc88] sm:$0xff]
        %v1796 = vld [vmem:[#allocation8 + $0xc90] sm:$0xff]
        %v1797 = vld [vmem:[#allocation8 + $0xc98] sm:$0xff]
        %v1798 = vld [vmem:[#allocation8 + $0xca0] sm:$0xff]
        %v1799 = vld [vmem:[#allocation8 + $0xca8] sm:$0xff]
        %v1800 = vld [vmem:[#allocation8 + $0xcb0] sm:$0xff]
        %v1801 = vld [vmem:[#allocation8 + $0xcb8] sm:$0xff]
        %v1802 = vld [vmem:[#allocation8 + $0xcc0] sm:$0xff]
        %v1803 = vld [vmem:[#allocation8 + $0xcc8] sm:$0xff]
        %v1804 = vld [vmem:[#allocation8 + $0xcd0] sm:$0xff]
        %v1805 = vld [vmem:[#allocation8 + $0xcd8] sm:$0xff]
        %v1806 = vld [vmem:[#allocation8 + $0xce0] sm:$0xff]
        %v1807 = vld [vmem:[#allocation8 + $0xce8] sm:$0xff]
        %v1808 = vld [vmem:[#allocation8 + $0xcf0] sm:$0xff]
        %v1809 = vld [vmem:[#allocation8 + $0xcf8] sm:$0xff]
        %v1810 = vld [vmem:[#allocation8 + $0xd00] sm:$0xff]
        %v1811 = vld [vmem:[#allocation8 + $0xd08] sm:$0xff]
        %v1812 = vld [vmem:[#allocation8 + $0xd10] sm:$0xff]
        %v1813 = vld [vmem:[#allocation8 + $0xd18] sm:$0xff]
        %v1814 = vld [vmem:[#allocation8 + $0xd20] sm:$0xff]
        %v1815 = vld [vmem:[#allocation8 + $0xd28] sm:$0xff]
        %v1816 = vld [vmem:[#allocation8 + $0xd30] sm:$0xff]
        %v1817 = vld [vmem:[#allocation8 + $0xd38] sm:$0xff]
        %v1818 = vld [vmem:[#allocation8 + $0xd40] sm:$0xff]
        %v1819 = vld [vmem:[#allocation8 + $0xd48] sm:$0xff]
        %v1820 = vld [vmem:[#allocation8 + $0xd50] sm:$0xff]
        %v1821 = vld [vmem:[#allocation8 + $0xd58] sm:$0xff]
        %v1822 = vld [vmem:[#allocation8 + $0xd60] sm:$0xff]
        %v1823 = vld [vmem:[#allocation8 + $0xd68] sm:$0xff]
        %v1824 = vld [vmem:[#allocation8 + $0xd70] sm:$0xff]
        %v1825 = vld [vmem:[#allocation8 + $0xd78] sm:$0xff]
        %v1826 = vld [vmem:[#allocation8 + $0xd80] sm:$0xff]
        %v1827 = vld [vmem:[#allocation8 + $0xd88] sm:$0xff]
        %v1828 = vld [vmem:[#allocation8 + $0xd90] sm:$0xff]
        %v1829 = vld [vmem:[#allocation8 + $0xd98] sm:$0xff]
        %v1830 = vld [vmem:[#allocation8 + $0xda0] sm:$0xff]
        %v1831 = vld [vmem:[#allocation8 + $0xda8] sm:$0xff]
        %v1832 = vld [vmem:[#allocation8 + $0xdb0] sm:$0xff]
        %v1833 = vld [vmem:[#allocation8 + $0xdb8] sm:$0xff]
        %v1834 = vld [vmem:[#allocation8 + $0xdc0] sm:$0xff]
        %v1835 = vld [vmem:[#allocation8 + $0xdc8] sm:$0xff]
        %v1836 = vld [vmem:[#allocation8 + $0xdd0] sm:$0xff]
        %v1837 = vld [vmem:[#allocation8 + $0xdd8] sm:$0xff]
        %v1838 = vld [vmem:[#allocation8 + $0xde0] sm:$0xff]
        %v1839 = vld [vmem:[#allocation8 + $0xde8] sm:$0xff]
        %v1840 = vld [vmem:[#allocation8 + $0xdf0] sm:$0xff]
        %v1841 = vld [vmem:[#allocation8 + $0xdf8] sm:$0xff]
        %v1842 = vld [vmem:[#allocation8 + $0xe00] sm:$0xff]
        %v1843 = vld [vmem:[#allocation8 + $0xe08] sm:$0xff]
        %v1844 = vld [vmem:[#allocation8 + $0xe10] sm:$0xff]
        %v1845 = vld [vmem:[#allocation8 + $0xe18] sm:$0xff]
        %v1846 = vld [vmem:[#allocation8 + $0xe20] sm:$0xff]
        %v1847 = vld [vmem:[#allocation8 + $0xe28] sm:$0xff]
        %v1848 = vld [vmem:[#allocation8 + $0xe30] sm:$0xff]
        %v1849 = vld [vmem:[#allocation8 + $0xe38] sm:$0xff]
        %v1850 = vld [vmem:[#allocation8 + $0xe40] sm:$0xff]
        %v1851 = vld [vmem:[#allocation8 + $0xe48] sm:$0xff]
        %v1852 = vld [vmem:[#allocation8 + $0xe50] sm:$0xff]
        %v1853 = vld [vmem:[#allocation8 + $0xe58] sm:$0xff]
        %v1854 = vld [vmem:[#allocation8 + $0xe60] sm:$0xff]
        %v1855 = vld [vmem:[#allocation8 + $0xe68] sm:$0xff]
        %v1856 = vld [vmem:[#allocation8 + $0xe70] sm:$0xff]
        %v1857 = vld [vmem:[#allocation8 + $0xe78] sm:$0xff]
        %v1858 = vld [vmem:[#allocation8 + $0xe80] sm:$0xff]
        %v1859 = vld [vmem:[#allocation8 + $0xe88] sm:$0xff]
        %v1860 = vld [vmem:[#allocation8 + $0xe90] sm:$0xff]
        %v1861 = vld [vmem:[#allocation8 + $0xe98] sm:$0xff]
        %v1862 = vld [vmem:[#allocation8 + $0xea0] sm:$0xff]
        %v1863 = vld [vmem:[#allocation8 + $0xea8] sm:$0xff]
        %v1864 = vld [vmem:[#allocation8 + $0xeb0] sm:$0xff]
        %v1865 = vld [vmem:[#allocation8 + $0xeb8] sm:$0xff]
        %v1866 = vld [vmem:[#allocation8 + $0xec0] sm:$0xff]
        %v1867 = vld [vmem:[#allocation8 + $0xec8] sm:$0xff]
        %v1868 = vld [vmem:[#allocation8 + $0xed0] sm:$0xff]
        %v1869 = vld [vmem:[#allocation8 + $0xed8] sm:$0xff]
        %v1870 = vld [vmem:[#allocation8 + $0xee0] sm:$0xff]
        %v1871 = vld [vmem:[#allocation8 + $0xee8] sm:$0xff]
        %v1872 = vld [vmem:[#allocation8 + $0xef0] sm:$0xff]
        %v1873 = vld [vmem:[#allocation8 + $0xef8] sm:$0xff]
        %v1874 = vld [vmem:[#allocation8 + $0xf00] sm:$0xff]
        %v1875 = vld [vmem:[#allocation8 + $0xf08] sm:$0xff]
        %v1876 = vld [vmem:[#allocation8 + $0xf10] sm:$0xff]
        %v1877 = vld [vmem:[#allocation8 + $0xf18] sm:$0xff]
        %v1878 = vld [vmem:[#allocation8 + $0xf20] sm:$0xff]
        %v1879 = vld [vmem:[#allocation8 + $0xf28] sm:$0xff]
        %v1880 = vld [vmem:[#allocation8 + $0xf30] sm:$0xff]
        %v1881 = vld [vmem:[#allocation8 + $0xf38] sm:$0xff]
        %v1882 = vld [vmem:[#allocation8 + $0xf40] sm:$0xff]
        %v1883 = vld [vmem:[#allocation8 + $0xf48] sm:$0xff]
        %v1884 = vld [vmem:[#allocation8 + $0xf50] sm:$0xff]
        %v1885 = vld [vmem:[#allocation8 + $0xf58] sm:$0xff]
        %v1886 = vld [vmem:[#allocation8 + $0xf60] sm:$0xff]
        %v1887 = vld [vmem:[#allocation8 + $0xf68] sm:$0xff]
        %v1888 = vld [vmem:[#allocation8 + $0xf70] sm:$0xff]
        %v1889 = vld [vmem:[#allocation8 + $0xf78] sm:$0xff]
        %v1890 = vld [vmem:[#allocation8 + $0xf80] sm:$0xff]
        %v1891 = vld [vmem:[#allocation8 + $0xf88] sm:$0xff]
        %v1892 = vld [vmem:[#allocation8 + $0xf90] sm:$0xff]
        %v1893 = vld [vmem:[#allocation8 + $0xf98] sm:$0xff]
        %v1894 = vld [vmem:[#allocation8 + $0xfa0] sm:$0xff]
        %v1895 = vld [vmem:[#allocation8 + $0xfa8] sm:$0xff]
        %v1896 = vld [vmem:[#allocation8 + $0xfb0] sm:$0xff]
        %v1897 = vld [vmem:[#allocation8 + $0xfb8] sm:$0xff]
        %v1898 = vld [vmem:[#allocation8 + $0xfc0] sm:$0xff]
        %v1899 = vld [vmem:[#allocation8 + $0xfc8] sm:$0xff]
        %v1900 = vld [vmem:[#allocation8 + $0xfd0] sm:$0xff]
        %v1901 = vld [vmem:[#allocation8 + $0xfd8] sm:$0xff]
        %v1902 = vld [vmem:[#allocation8 + $0xfe0] sm:$0xff]
        %v1903 = vld [vmem:[#allocation8 + $0xfe8] sm:$0xff]
        %v1904 = vld [vmem:[#allocation8 + $0xff0] sm:$0xff]
        %v1905 = vld [vmem:[#allocation8 + $0xff8] sm:$0xff]
        %v1906 = vld [vmem:[#allocation10] sm:$0xff]
        %v1908 = vlaneseq
        %v1909 = vshrl.u32 %v1908, 7
        %v1910 = vsub.s32 0, %v1909
        %v1911 = vrot.slane %v1906, %v1910
        %v1912 = vlaneseq
        %v1913 = vshrl.u32 %v1912, 7
        %v1914 = vsub.s32 1, %v1913
        %v1915 = vrot.slane %v1906, %v1914
        %v1916 = vlaneseq
        %v1917 = vshrl.u32 %v1916, 7
        %v1918 = vsub.s32 2, %v1917
        %v1919 = vrot.slane %v1906, %v1918
        %v1920 = vlaneseq
        %v1921 = vshrl.u32 %v1920, 7
        %v1922 = vsub.s32 3, %v1921
        %v1923 = vrot.slane %v1906, %v1922
        %v1924 = vlaneseq
        %v1925 = vshrl.u32 %v1924, 7
        %v1926 = vsub.s32 4, %v1925
        %v1927 = vrot.slane %v1906, %v1926
        %v1928 = vlaneseq
        %v1929 = vshrl.u32 %v1928, 7
        %v1930 = vsub.s32 5, %v1929
        %v1931 = vrot.slane %v1906, %v1930
        %v1932 = vlaneseq
        %v1933 = vshrl.u32 %v1932, 7
        %v1934 = vsub.s32 6, %v1933
        %v1935 = vrot.slane %v1906, %v1934
        %v1936 = vlaneseq
        %v1937 = vshrl.u32 %v1936, 7
        %v1938 = vsub.s32 7, %v1937
        %v1939 = vrot.slane %v1906, %v1938
        %v2460 = vunpack.c.l.b16 %v1394
        %v2461 = vunpack.c.h.b16 %v1394
        %v2462 = vunpack.c.l.b16 %v1395
        %v2463 = vunpack.c.h.b16 %v1395
        %v2464 = vunpack.c.l.b16 %v1396
        %v2465 = vunpack.c.h.b16 %v1396
        %v2466 = vunpack.c.l.b16 %v1397
        %v2467 = vunpack.c.h.b16 %v1397
        %v2468 = vunpack.c.l.b16 %v1398
        %v2469 = vunpack.c.h.b16 %v1398
        %v2470 = vunpack.c.l.b16 %v1399
        %v2471 = vunpack.c.h.b16 %v1399
        %v2472 = vunpack.c.l.b16 %v1400
        %v2473 = vunpack.c.h.b16 %v1400
        %v2474 = vunpack.c.l.b16 %v1401
        %v2475 = vunpack.c.h.b16 %v1401
        %v2476 = vunpack.c.l.b16 %v1402
        %v2477 = vunpack.c.h.b16 %v1402
        %v2478 = vunpack.c.l.b16 %v1403
        %v2479 = vunpack.c.h.b16 %v1403
        %v2480 = vunpack.c.l.b16 %v1404
        %v2481 = vunpack.c.h.b16 %v1404
        %v2482 = vunpack.c.l.b16 %v1405
        %v2483 = vunpack.c.h.b16 %v1405
        %v2484 = vunpack.c.l.b16 %v1406
        %v2485 = vunpack.c.h.b16 %v1406
        %v2486 = vunpack.c.l.b16 %v1407
        %v2487 = vunpack.c.h.b16 %v1407
        %v2488 = vunpack.c.l.b16 %v1408
        %v2489 = vunpack.c.h.b16 %v1408
        %v2490 = vunpack.c.l.b16 %v1409
        %v2491 = vunpack.c.h.b16 %v1409
        %v2492 = vunpack.c.l.b16 %v1410
        %v2493 = vunpack.c.h.b16 %v1410
        %v2494 = vunpack.c.l.b16 %v1411
        %v2495 = vunpack.c.h.b16 %v1411
        %v2496 = vunpack.c.l.b16 %v1412
        %v2497 = vunpack.c.h.b16 %v1412
        %v2498 = vunpack.c.l.b16 %v1413
        %v2499 = vunpack.c.h.b16 %v1413
        %v2500 = vunpack.c.l.b16 %v1414
        %v2501 = vunpack.c.h.b16 %v1414
        %v2502 = vunpack.c.l.b16 %v1415
        %v2503 = vunpack.c.h.b16 %v1415
        %v2504 = vunpack.c.l.b16 %v1416
        %v2505 = vunpack.c.h.b16 %v1416
        %v2506 = vunpack.c.l.b16 %v1417
        %v2507 = vunpack.c.h.b16 %v1417
        %v2508 = vunpack.c.l.b16 %v1418
        %v2509 = vunpack.c.h.b16 %v1418
        %v2510 = vunpack.c.l.b16 %v1419
        %v2511 = vunpack.c.h.b16 %v1419
        %v2512 = vunpack.c.l.b16 %v1420
        %v2513 = vunpack.c.h.b16 %v1420
        %v2514 = vunpack.c.l.b16 %v1421
        %v2515 = vunpack.c.h.b16 %v1421
        %v2516 = vunpack.c.l.b16 %v1422
        %v2517 = vunpack.c.h.b16 %v1422
        %v2518 = vunpack.c.l.b16 %v1423
        %v2519 = vunpack.c.h.b16 %v1423
        %v2520 = vunpack.c.l.b16 %v1424
        %v2521 = vunpack.c.h.b16 %v1424
        %v2522 = vunpack.c.l.b16 %v1425
        %v2523 = vunpack.c.h.b16 %v1425
        %v2524 = vunpack.c.l.b16 %v1426
        %v2525 = vunpack.c.h.b16 %v1426
        %v2526 = vunpack.c.l.b16 %v1427
        %v2527 = vunpack.c.h.b16 %v1427
        %v2528 = vunpack.c.l.b16 %v1428
        %v2529 = vunpack.c.h.b16 %v1428
        %v2530 = vunpack.c.l.b16 %v1429
        %v2531 = vunpack.c.h.b16 %v1429
        %v2532 = vunpack.c.l.b16 %v1430
        %v2533 = vunpack.c.h.b16 %v1430
        %v2534 = vunpack.c.l.b16 %v1431
        %v2535 = vunpack.c.h.b16 %v1431
        %v2536 = vunpack.c.l.b16 %v1432
        %v2537 = vunpack.c.h.b16 %v1432
        %v2538 = vunpack.c.l.b16 %v1433
        %v2539 = vunpack.c.h.b16 %v1433
        %v2540 = vunpack.c.l.b16 %v1434
        %v2541 = vunpack.c.h.b16 %v1434
        %v2542 = vunpack.c.l.b16 %v1435
        %v2543 = vunpack.c.h.b16 %v1435
        %v2544 = vunpack.c.l.b16 %v1436
        %v2545 = vunpack.c.h.b16 %v1436
        %v2546 = vunpack.c.l.b16 %v1437
        %v2547 = vunpack.c.h.b16 %v1437
        %v2548 = vunpack.c.l.b16 %v1438
        %v2549 = vunpack.c.h.b16 %v1438
        %v2550 = vunpack.c.l.b16 %v1439
        %v2551 = vunpack.c.h.b16 %v1439
        %v2552 = vunpack.c.l.b16 %v1440
        %v2553 = vunpack.c.h.b16 %v1440
        %v2554 = vunpack.c.l.b16 %v1441
        %v2555 = vunpack.c.h.b16 %v1441
        %v2556 = vunpack.c.l.b16 %v1442
        %v2557 = vunpack.c.h.b16 %v1442
        %v2558 = vunpack.c.l.b16 %v1443
        %v2559 = vunpack.c.h.b16 %v1443
        %v2560 = vunpack.c.l.b16 %v1444
        %v2561 = vunpack.c.h.b16 %v1444
        %v2562 = vunpack.c.l.b16 %v1445
        %v2563 = vunpack.c.h.b16 %v1445
        %v2564 = vunpack.c.l.b16 %v1446
        %v2565 = vunpack.c.h.b16 %v1446
        %v2566 = vunpack.c.l.b16 %v1447
        %v2567 = vunpack.c.h.b16 %v1447
        %v2568 = vunpack.c.l.b16 %v1448
        %v2569 = vunpack.c.h.b16 %v1448
        %v2570 = vunpack.c.l.b16 %v1449
        %v2571 = vunpack.c.h.b16 %v1449
        %v2572 = vunpack.c.l.b16 %v1450
        %v2573 = vunpack.c.h.b16 %v1450
        %v2574 = vunpack.c.l.b16 %v1451
        %v2575 = vunpack.c.h.b16 %v1451
        %v2576 = vunpack.c.l.b16 %v1452
        %v2577 = vunpack.c.h.b16 %v1452
        %v2578 = vunpack.c.l.b16 %v1453
        %v2579 = vunpack.c.h.b16 %v1453
        %v2580 = vunpack.c.l.b16 %v1454
        %v2581 = vunpack.c.h.b16 %v1454
        %v2582 = vunpack.c.l.b16 %v1455
        %v2583 = vunpack.c.h.b16 %v1455
        %v2584 = vunpack.c.l.b16 %v1456
        %v2585 = vunpack.c.h.b16 %v1456
        %v2586 = vunpack.c.l.b16 %v1457
        %v2587 = vunpack.c.h.b16 %v1457
        %v2588 = vunpack.c.l.b16 %v1458
        %v2589 = vunpack.c.h.b16 %v1458
        %v2590 = vunpack.c.l.b16 %v1459
        %v2591 = vunpack.c.h.b16 %v1459
        %v2592 = vunpack.c.l.b16 %v1460
        %v2593 = vunpack.c.h.b16 %v1460
        %v2594 = vunpack.c.l.b16 %v1461
        %v2595 = vunpack.c.h.b16 %v1461
        %v2596 = vunpack.c.l.b16 %v1462
        %v2597 = vunpack.c.h.b16 %v1462
        %v2598 = vunpack.c.l.b16 %v1463
        %v2599 = vunpack.c.h.b16 %v1463
        %v2600 = vunpack.c.l.b16 %v1464
        %v2601 = vunpack.c.h.b16 %v1464
        %v2602 = vunpack.c.l.b16 %v1465
        %v2603 = vunpack.c.h.b16 %v1465
        %v2604 = vunpack.c.l.b16 %v1466
        %v2605 = vunpack.c.h.b16 %v1466
        %v2606 = vunpack.c.l.b16 %v1467
        %v2607 = vunpack.c.h.b16 %v1467
        %v2608 = vunpack.c.l.b16 %v1468
        %v2609 = vunpack.c.h.b16 %v1468
        %v2610 = vunpack.c.l.b16 %v1469
        %v2611 = vunpack.c.h.b16 %v1469
        %v2612 = vunpack.c.l.b16 %v1470
        %v2613 = vunpack.c.h.b16 %v1470
        %v2614 = vunpack.c.l.b16 %v1471
        %v2615 = vunpack.c.h.b16 %v1471
        %v2616 = vunpack.c.l.b16 %v1472
        %v2617 = vunpack.c.h.b16 %v1472
        %v2618 = vunpack.c.l.b16 %v1473
        %v2619 = vunpack.c.h.b16 %v1473
        %v2620 = vunpack.c.l.b16 %v1474
        %v2621 = vunpack.c.h.b16 %v1474
        %v2622 = vunpack.c.l.b16 %v1475
        %v2623 = vunpack.c.h.b16 %v1475
        %v2624 = vunpack.c.l.b16 %v1476
        %v2625 = vunpack.c.h.b16 %v1476
        %v2626 = vunpack.c.l.b16 %v1477
        %v2627 = vunpack.c.h.b16 %v1477
        %v2628 = vunpack.c.l.b16 %v1478
        %v2629 = vunpack.c.h.b16 %v1478
        %v2630 = vunpack.c.l.b16 %v1479
        %v2631 = vunpack.c.h.b16 %v1479
        %v2632 = vunpack.c.l.b16 %v1480
        %v2633 = vunpack.c.h.b16 %v1480
        %v2634 = vunpack.c.l.b16 %v1481
        %v2635 = vunpack.c.h.b16 %v1481
        %v2636 = vunpack.c.l.b16 %v1482
        %v2637 = vunpack.c.h.b16 %v1482
        %v2638 = vunpack.c.l.b16 %v1483
        %v2639 = vunpack.c.h.b16 %v1483
        %v2640 = vunpack.c.l.b16 %v1484
        %v2641 = vunpack.c.h.b16 %v1484
        %v2642 = vunpack.c.l.b16 %v1485
        %v2643 = vunpack.c.h.b16 %v1485
        %v2644 = vunpack.c.l.b16 %v1486
        %v2645 = vunpack.c.h.b16 %v1486
        %v2646 = vunpack.c.l.b16 %v1487
        %v2647 = vunpack.c.h.b16 %v1487
        %v2648 = vunpack.c.l.b16 %v1488
        %v2649 = vunpack.c.h.b16 %v1488
        %v2650 = vunpack.c.l.b16 %v1489
        %v2651 = vunpack.c.h.b16 %v1489
        %v2652 = vunpack.c.l.b16 %v1490
        %v2653 = vunpack.c.h.b16 %v1490
        %v2654 = vunpack.c.l.b16 %v1491
        %v2655 = vunpack.c.h.b16 %v1491
        %v2656 = vunpack.c.l.b16 %v1492
        %v2657 = vunpack.c.h.b16 %v1492
        %v2658 = vunpack.c.l.b16 %v1493
        %v2659 = vunpack.c.h.b16 %v1493
        %v2660 = vunpack.c.l.b16 %v1494
        %v2661 = vunpack.c.h.b16 %v1494
        %v2662 = vunpack.c.l.b16 %v1495
        %v2663 = vunpack.c.h.b16 %v1495
        %v2664 = vunpack.c.l.b16 %v1496
        %v2665 = vunpack.c.h.b16 %v1496
        %v2666 = vunpack.c.l.b16 %v1497
        %v2667 = vunpack.c.h.b16 %v1497
        %v2668 = vunpack.c.l.b16 %v1498
        %v2669 = vunpack.c.h.b16 %v1498
        %v2670 = vunpack.c.l.b16 %v1499
        %v2671 = vunpack.c.h.b16 %v1499
        %v2672 = vunpack.c.l.b16 %v1500
        %v2673 = vunpack.c.h.b16 %v1500
        %v2674 = vunpack.c.l.b16 %v1501
        %v2675 = vunpack.c.h.b16 %v1501
        %v2676 = vunpack.c.l.b16 %v1502
        %v2677 = vunpack.c.h.b16 %v1502
        %v2678 = vunpack.c.l.b16 %v1503
        %v2679 = vunpack.c.h.b16 %v1503
        %v2680 = vunpack.c.l.b16 %v1504
        %v2681 = vunpack.c.h.b16 %v1504
        %v2682 = vunpack.c.l.b16 %v1505
        %v2683 = vunpack.c.h.b16 %v1505
        %v2684 = vunpack.c.l.b16 %v1506
        %v2685 = vunpack.c.h.b16 %v1506
        %v2686 = vunpack.c.l.b16 %v1507
        %v2687 = vunpack.c.h.b16 %v1507
        %v2688 = vunpack.c.l.b16 %v1508
        %v2689 = vunpack.c.h.b16 %v1508
        %v2690 = vunpack.c.l.b16 %v1509
        %v2691 = vunpack.c.h.b16 %v1509
        %v2692 = vunpack.c.l.b16 %v1510
        %v2693 = vunpack.c.h.b16 %v1510
        %v2694 = vunpack.c.l.b16 %v1511
        %v2695 = vunpack.c.h.b16 %v1511
        %v2696 = vunpack.c.l.b16 %v1512
        %v2697 = vunpack.c.h.b16 %v1512
        %v2698 = vunpack.c.l.b16 %v1513
        %v2699 = vunpack.c.h.b16 %v1513
        %v2700 = vunpack.c.l.b16 %v1514
        %v2701 = vunpack.c.h.b16 %v1514
        %v2702 = vunpack.c.l.b16 %v1515
        %v2703 = vunpack.c.h.b16 %v1515
        %v2704 = vunpack.c.l.b16 %v1516
        %v2705 = vunpack.c.h.b16 %v1516
        %v2706 = vunpack.c.l.b16 %v1517
        %v2707 = vunpack.c.h.b16 %v1517
        %v2708 = vunpack.c.l.b16 %v1518
        %v2709 = vunpack.c.h.b16 %v1518
        %v2710 = vunpack.c.l.b16 %v1519
        %v2711 = vunpack.c.h.b16 %v1519
        %v2712 = vunpack.c.l.b16 %v1520
        %v2713 = vunpack.c.h.b16 %v1520
        %v2714 = vunpack.c.l.b16 %v1521
        %v2715 = vunpack.c.h.b16 %v1521
        %v2716 = vunpack.c.l.b16 %v1522
        %v2717 = vunpack.c.h.b16 %v1522
        %v2718 = vunpack.c.l.b16 %v1523
        %v2719 = vunpack.c.h.b16 %v1523
        %v2720 = vunpack.c.l.b16 %v1524
        %v2721 = vunpack.c.h.b16 %v1524
        %v2722 = vunpack.c.l.b16 %v1525
        %v2723 = vunpack.c.h.b16 %v1525
        %v2724 = vunpack.c.l.b16 %v1526
        %v2725 = vunpack.c.h.b16 %v1526
        %v2726 = vunpack.c.l.b16 %v1527
        %v2727 = vunpack.c.h.b16 %v1527
        %v2728 = vunpack.c.l.b16 %v1528
        %v2729 = vunpack.c.h.b16 %v1528
        %v2730 = vunpack.c.l.b16 %v1529
        %v2731 = vunpack.c.h.b16 %v1529
        %v2732 = vunpack.c.l.b16 %v1530
        %v2733 = vunpack.c.h.b16 %v1530
        %v2734 = vunpack.c.l.b16 %v1531
        %v2735 = vunpack.c.h.b16 %v1531
        %v2736 = vunpack.c.l.b16 %v1532
        %v2737 = vunpack.c.h.b16 %v1532
        %v2738 = vunpack.c.l.b16 %v1533
        %v2739 = vunpack.c.h.b16 %v1533
        %v2740 = vunpack.c.l.b16 %v1534
        %v2741 = vunpack.c.h.b16 %v1534
        %v2742 = vunpack.c.l.b16 %v1535
        %v2743 = vunpack.c.h.b16 %v1535
        %v2744 = vunpack.c.l.b16 %v1536
        %v2745 = vunpack.c.h.b16 %v1536
        %v2746 = vunpack.c.l.b16 %v1537
        %v2747 = vunpack.c.h.b16 %v1537
        %v2748 = vunpack.c.l.b16 %v1538
        %v2749 = vunpack.c.h.b16 %v1538
        %v2750 = vunpack.c.l.b16 %v1539
        %v2751 = vunpack.c.h.b16 %v1539
        %v2752 = vunpack.c.l.b16 %v1540
        %v2753 = vunpack.c.h.b16 %v1540
        %v2754 = vunpack.c.l.b16 %v1541
        %v2755 = vunpack.c.h.b16 %v1541
        %v2756 = vunpack.c.l.b16 %v1542
        %v2757 = vunpack.c.h.b16 %v1542
        %v2758 = vunpack.c.l.b16 %v1543
        %v2759 = vunpack.c.h.b16 %v1543
        %v2760 = vunpack.c.l.b16 %v1544
        %v2761 = vunpack.c.h.b16 %v1544
        %v2762 = vunpack.c.l.b16 %v1545
        %v2763 = vunpack.c.h.b16 %v1545
        %v2764 = vunpack.c.l.b16 %v1546
        %v2765 = vunpack.c.h.b16 %v1546
        %v2766 = vunpack.c.l.b16 %v1547
        %v2767 = vunpack.c.h.b16 %v1547
        %v2768 = vunpack.c.l.b16 %v1548
        %v2769 = vunpack.c.h.b16 %v1548
        %v2770 = vunpack.c.l.b16 %v1549
        %v2771 = vunpack.c.h.b16 %v1549
        %v2772 = vunpack.c.l.b16 %v1550
        %v2773 = vunpack.c.h.b16 %v1550
        %v2774 = vunpack.c.l.b16 %v1551
        %v2775 = vunpack.c.h.b16 %v1551
        %v2776 = vunpack.c.l.b16 %v1552
        %v2777 = vunpack.c.h.b16 %v1552
        %v2778 = vunpack.c.l.b16 %v1553
        %v2779 = vunpack.c.h.b16 %v1553
        %v2780 = vunpack.c.l.b16 %v1554
        %v2781 = vunpack.c.h.b16 %v1554
        %v2782 = vunpack.c.l.b16 %v1555
        %v2783 = vunpack.c.h.b16 %v1555
        %v2784 = vunpack.c.l.b16 %v1556
        %v2785 = vunpack.c.h.b16 %v1556
        %v2786 = vunpack.c.l.b16 %v1557
        %v2787 = vunpack.c.h.b16 %v1557
        %v2788 = vunpack.c.l.b16 %v1558
        %v2789 = vunpack.c.h.b16 %v1558
        %v2790 = vunpack.c.l.b16 %v1559
        %v2791 = vunpack.c.h.b16 %v1559
        %v2792 = vunpack.c.l.b16 %v1560
        %v2793 = vunpack.c.h.b16 %v1560
        %v2794 = vunpack.c.l.b16 %v1561
        %v2795 = vunpack.c.h.b16 %v1561
        %v2796 = vunpack.c.l.b16 %v1562
        %v2797 = vunpack.c.h.b16 %v1562
        %v2798 = vunpack.c.l.b16 %v1563
        %v2799 = vunpack.c.h.b16 %v1563
        %v2800 = vunpack.c.l.b16 %v1564
        %v2801 = vunpack.c.h.b16 %v1564
        %v2802 = vunpack.c.l.b16 %v1565
        %v2803 = vunpack.c.h.b16 %v1565
        %v2804 = vunpack.c.l.b16 %v1566
        %v2805 = vunpack.c.h.b16 %v1566
        %v2806 = vunpack.c.l.b16 %v1567
        %v2807 = vunpack.c.h.b16 %v1567
        %v2808 = vunpack.c.l.b16 %v1568
        %v2809 = vunpack.c.h.b16 %v1568
        %v2810 = vunpack.c.l.b16 %v1569
        %v2811 = vunpack.c.h.b16 %v1569
        %v2812 = vunpack.c.l.b16 %v1570
        %v2813 = vunpack.c.h.b16 %v1570
        %v2814 = vunpack.c.l.b16 %v1571
        %v2815 = vunpack.c.h.b16 %v1571
        %v2816 = vunpack.c.l.b16 %v1572
        %v2817 = vunpack.c.h.b16 %v1572
        %v2818 = vunpack.c.l.b16 %v1573
        %v2819 = vunpack.c.h.b16 %v1573
        %v2820 = vunpack.c.l.b16 %v1574
        %v2821 = vunpack.c.h.b16 %v1574
        %v2822 = vunpack.c.l.b16 %v1575
        %v2823 = vunpack.c.h.b16 %v1575
        %v2824 = vunpack.c.l.b16 %v1576
        %v2825 = vunpack.c.h.b16 %v1576
        %v2826 = vunpack.c.l.b16 %v1577
        %v2827 = vunpack.c.h.b16 %v1577
        %v2828 = vunpack.c.l.b16 %v1578
        %v2829 = vunpack.c.h.b16 %v1578
        %v2830 = vunpack.c.l.b16 %v1579
        %v2831 = vunpack.c.h.b16 %v1579
        %v2832 = vunpack.c.l.b16 %v1580
        %v2833 = vunpack.c.h.b16 %v1580
        %v2834 = vunpack.c.l.b16 %v1581
        %v2835 = vunpack.c.h.b16 %v1581
        %v2836 = vunpack.c.l.b16 %v1582
        %v2837 = vunpack.c.h.b16 %v1582
        %v2838 = vunpack.c.l.b16 %v1583
        %v2839 = vunpack.c.h.b16 %v1583
        %v2840 = vunpack.c.l.b16 %v1584
        %v2841 = vunpack.c.h.b16 %v1584
        %v2842 = vunpack.c.l.b16 %v1585
        %v2843 = vunpack.c.h.b16 %v1585
        %v2844 = vunpack.c.l.b16 %v1586
        %v2845 = vunpack.c.h.b16 %v1586
        %v2846 = vunpack.c.l.b16 %v1587
        %v2847 = vunpack.c.h.b16 %v1587
        %v2848 = vunpack.c.l.b16 %v1588
        %v2849 = vunpack.c.h.b16 %v1588
        %v2850 = vunpack.c.l.b16 %v1589
        %v2851 = vunpack.c.h.b16 %v1589
        %v2852 = vunpack.c.l.b16 %v1590
        %v2853 = vunpack.c.h.b16 %v1590
        %v2854 = vunpack.c.l.b16 %v1591
        %v2855 = vunpack.c.h.b16 %v1591
        %v2856 = vunpack.c.l.b16 %v1592
        %v2857 = vunpack.c.h.b16 %v1592
        %v2858 = vunpack.c.l.b16 %v1593
        %v2859 = vunpack.c.h.b16 %v1593
        %v2860 = vunpack.c.l.b16 %v1594
        %v2861 = vunpack.c.h.b16 %v1594
        %v2862 = vunpack.c.l.b16 %v1595
        %v2863 = vunpack.c.h.b16 %v1595
        %v2864 = vunpack.c.l.b16 %v1596
        %v2865 = vunpack.c.h.b16 %v1596
        %v2866 = vunpack.c.l.b16 %v1597
        %v2867 = vunpack.c.h.b16 %v1597
        %v2868 = vunpack.c.l.b16 %v1598
        %v2869 = vunpack.c.h.b16 %v1598
        %v2870 = vunpack.c.l.b16 %v1599
        %v2871 = vunpack.c.h.b16 %v1599
        %v2872 = vunpack.c.l.b16 %v1600
        %v2873 = vunpack.c.h.b16 %v1600
        %v2874 = vunpack.c.l.b16 %v1601
        %v2875 = vunpack.c.h.b16 %v1601
        %v2876 = vunpack.c.l.b16 %v1602
        %v2877 = vunpack.c.h.b16 %v1602
        %v2878 = vunpack.c.l.b16 %v1603
        %v2879 = vunpack.c.h.b16 %v1603
        %v2880 = vunpack.c.l.b16 %v1604
        %v2881 = vunpack.c.h.b16 %v1604
        %v2882 = vunpack.c.l.b16 %v1605
        %v2883 = vunpack.c.h.b16 %v1605
        %v2884 = vunpack.c.l.b16 %v1606
        %v2885 = vunpack.c.h.b16 %v1606
        %v2886 = vunpack.c.l.b16 %v1607
        %v2887 = vunpack.c.h.b16 %v1607
        %v2888 = vunpack.c.l.b16 %v1608
        %v2889 = vunpack.c.h.b16 %v1608
        %v2890 = vunpack.c.l.b16 %v1609
        %v2891 = vunpack.c.h.b16 %v1609
        %v2892 = vunpack.c.l.b16 %v1610
        %v2893 = vunpack.c.h.b16 %v1610
        %v2894 = vunpack.c.l.b16 %v1611
        %v2895 = vunpack.c.h.b16 %v1611
        %v2896 = vunpack.c.l.b16 %v1612
        %v2897 = vunpack.c.h.b16 %v1612
        %v2898 = vunpack.c.l.b16 %v1613
        %v2899 = vunpack.c.h.b16 %v1613
        %v2900 = vunpack.c.l.b16 %v1614
        %v2901 = vunpack.c.h.b16 %v1614
        %v2902 = vunpack.c.l.b16 %v1615
        %v2903 = vunpack.c.h.b16 %v1615
        %v2904 = vunpack.c.l.b16 %v1616
        %v2905 = vunpack.c.h.b16 %v1616
        %v2906 = vunpack.c.l.b16 %v1617
        %v2907 = vunpack.c.h.b16 %v1617
        %v2908 = vunpack.c.l.b16 %v1618
        %v2909 = vunpack.c.h.b16 %v1618
        %v2910 = vunpack.c.l.b16 %v1619
        %v2911 = vunpack.c.h.b16 %v1619
        %v2912 = vunpack.c.l.b16 %v1620
        %v2913 = vunpack.c.h.b16 %v1620
        %v2914 = vunpack.c.l.b16 %v1621
        %v2915 = vunpack.c.h.b16 %v1621
        %v2916 = vunpack.c.l.b16 %v1622
        %v2917 = vunpack.c.h.b16 %v1622
        %v2918 = vunpack.c.l.b16 %v1623
        %v2919 = vunpack.c.h.b16 %v1623
        %v2920 = vunpack.c.l.b16 %v1624
        %v2921 = vunpack.c.h.b16 %v1624
        %v2922 = vunpack.c.l.b16 %v1625
        %v2923 = vunpack.c.h.b16 %v1625
        %v2924 = vunpack.c.l.b16 %v1626
        %v2925 = vunpack.c.h.b16 %v1626
        %v2926 = vunpack.c.l.b16 %v1627
        %v2927 = vunpack.c.h.b16 %v1627
        %v2928 = vunpack.c.l.b16 %v1628
        %v2929 = vunpack.c.h.b16 %v1628
        %v2930 = vunpack.c.l.b16 %v1629
        %v2931 = vunpack.c.h.b16 %v1629
        %v2932 = vunpack.c.l.b16 %v1630
        %v2933 = vunpack.c.h.b16 %v1630
        %v2934 = vunpack.c.l.b16 %v1631
        %v2935 = vunpack.c.h.b16 %v1631
        %v2936 = vunpack.c.l.b16 %v1632
        %v2937 = vunpack.c.h.b16 %v1632
        %v2938 = vunpack.c.l.b16 %v1633
        %v2939 = vunpack.c.h.b16 %v1633
        %v2940 = vunpack.c.l.b16 %v1634
        %v2941 = vunpack.c.h.b16 %v1634
        %v2942 = vunpack.c.l.b16 %v1635
        %v2943 = vunpack.c.h.b16 %v1635
        %v2944 = vunpack.c.l.b16 %v1636
        %v2945 = vunpack.c.h.b16 %v1636
        %v2946 = vunpack.c.l.b16 %v1637
        %v2947 = vunpack.c.h.b16 %v1637
        %v2948 = vunpack.c.l.b16 %v1638
        %v2949 = vunpack.c.h.b16 %v1638
        %v2950 = vunpack.c.l.b16 %v1639
        %v2951 = vunpack.c.h.b16 %v1639
        %v2952 = vunpack.c.l.b16 %v1640
        %v2953 = vunpack.c.h.b16 %v1640
        %v2954 = vunpack.c.l.b16 %v1641
        %v2955 = vunpack.c.h.b16 %v1641
        %v2956 = vunpack.c.l.b16 %v1642
        %v2957 = vunpack.c.h.b16 %v1642
        %v2958 = vunpack.c.l.b16 %v1643
        %v2959 = vunpack.c.h.b16 %v1643
        %v2960 = vunpack.c.l.b16 %v1644
        %v2961 = vunpack.c.h.b16 %v1644
        %v2962 = vunpack.c.l.b16 %v1645
        %v2963 = vunpack.c.h.b16 %v1645
        %v2964 = vunpack.c.l.b16 %v1646
        %v2965 = vunpack.c.h.b16 %v1646
        %v2966 = vunpack.c.l.b16 %v1647
        %v2967 = vunpack.c.h.b16 %v1647
        %v2968 = vunpack.c.l.b16 %v1648
        %v2969 = vunpack.c.h.b16 %v1648
        %v2970 = vunpack.c.l.b16 %v1649
        %v2971 = vunpack.c.h.b16 %v1649
        %v2972 = vunpack.c.l.b16 %v1650
        %v2973 = vunpack.c.h.b16 %v1650
        %v2974 = vunpack.c.l.b16 %v1651
        %v2975 = vunpack.c.h.b16 %v1651
        %v2976 = vunpack.c.l.b16 %v1652
        %v2977 = vunpack.c.h.b16 %v1652
        %v2978 = vunpack.c.l.b16 %v1653
        %v2979 = vunpack.c.h.b16 %v1653
        %v2980 = vunpack.c.l.b16 %v1654
        %v2981 = vunpack.c.h.b16 %v1654
        %v2982 = vunpack.c.l.b16 %v1655
        %v2983 = vunpack.c.h.b16 %v1655
        %v2984 = vunpack.c.l.b16 %v1656
        %v2985 = vunpack.c.h.b16 %v1656
        %v2986 = vunpack.c.l.b16 %v1657
        %v2987 = vunpack.c.h.b16 %v1657
        %v2988 = vunpack.c.l.b16 %v1658
        %v2989 = vunpack.c.h.b16 %v1658
        %v2990 = vunpack.c.l.b16 %v1659
        %v2991 = vunpack.c.h.b16 %v1659
        %v2992 = vunpack.c.l.b16 %v1660
        %v2993 = vunpack.c.h.b16 %v1660
        %v2994 = vunpack.c.l.b16 %v1661
        %v2995 = vunpack.c.h.b16 %v1661
        %v2996 = vunpack.c.l.b16 %v1662
        %v2997 = vunpack.c.h.b16 %v1662
        %v2998 = vunpack.c.l.b16 %v1663
        %v2999 = vunpack.c.h.b16 %v1663
        %v3000 = vunpack.c.l.b16 %v1664
        %v3001 = vunpack.c.h.b16 %v1664
        %v3002 = vunpack.c.l.b16 %v1665
        %v3003 = vunpack.c.h.b16 %v1665
        %v3004 = vunpack.c.l.b16 %v1666
        %v3005 = vunpack.c.h.b16 %v1666
        %v3006 = vunpack.c.l.b16 %v1667
        %v3007 = vunpack.c.h.b16 %v1667
        %v3008 = vunpack.c.l.b16 %v1668
        %v3009 = vunpack.c.h.b16 %v1668
        %v3010 = vunpack.c.l.b16 %v1669
        %v3011 = vunpack.c.h.b16 %v1669
        %v3012 = vunpack.c.l.b16 %v1670
        %v3013 = vunpack.c.h.b16 %v1670
        %v3014 = vunpack.c.l.b16 %v1671
        %v3015 = vunpack.c.h.b16 %v1671
        %v3016 = vunpack.c.l.b16 %v1672
        %v3017 = vunpack.c.h.b16 %v1672
        %v3018 = vunpack.c.l.b16 %v1673
        %v3019 = vunpack.c.h.b16 %v1673
        %v3020 = vunpack.c.l.b16 %v1674
        %v3021 = vunpack.c.h.b16 %v1674
        %v3022 = vunpack.c.l.b16 %v1675
        %v3023 = vunpack.c.h.b16 %v1675
        %v3024 = vunpack.c.l.b16 %v1676
        %v3025 = vunpack.c.h.b16 %v1676
        %v3026 = vunpack.c.l.b16 %v1677
        %v3027 = vunpack.c.h.b16 %v1677
        %v3028 = vunpack.c.l.b16 %v1678
        %v3029 = vunpack.c.h.b16 %v1678
        %v3030 = vunpack.c.l.b16 %v1679
        %v3031 = vunpack.c.h.b16 %v1679
        %v3032 = vunpack.c.l.b16 %v1680
        %v3033 = vunpack.c.h.b16 %v1680
        %v3034 = vunpack.c.l.b16 %v1681
        %v3035 = vunpack.c.h.b16 %v1681
        %v3036 = vunpack.c.l.b16 %v1682
        %v3037 = vunpack.c.h.b16 %v1682
        %v3038 = vunpack.c.l.b16 %v1683
        %v3039 = vunpack.c.h.b16 %v1683
        %v3040 = vunpack.c.l.b16 %v1684
        %v3041 = vunpack.c.h.b16 %v1684
        %v3042 = vunpack.c.l.b16 %v1685
        %v3043 = vunpack.c.h.b16 %v1685
        %v3044 = vunpack.c.l.b16 %v1686
        %v3045 = vunpack.c.h.b16 %v1686
        %v3046 = vunpack.c.l.b16 %v1687
        %v3047 = vunpack.c.h.b16 %v1687
        %v3048 = vunpack.c.l.b16 %v1688
        %v3049 = vunpack.c.h.b16 %v1688
        %v3050 = vunpack.c.l.b16 %v1689
        %v3051 = vunpack.c.h.b16 %v1689
        %v3052 = vunpack.c.l.b16 %v1690
        %v3053 = vunpack.c.h.b16 %v1690
        %v3054 = vunpack.c.l.b16 %v1691
        %v3055 = vunpack.c.h.b16 %v1691
        %v3056 = vunpack.c.l.b16 %v1692
        %v3057 = vunpack.c.h.b16 %v1692
        %v3058 = vunpack.c.l.b16 %v1693
        %v3059 = vunpack.c.h.b16 %v1693
        %v3060 = vunpack.c.l.b16 %v1694
        %v3061 = vunpack.c.h.b16 %v1694
        %v3062 = vunpack.c.l.b16 %v1695
        %v3063 = vunpack.c.h.b16 %v1695
        %v3064 = vunpack.c.l.b16 %v1696
        %v3065 = vunpack.c.h.b16 %v1696
        %v3066 = vunpack.c.l.b16 %v1697
        %v3067 = vunpack.c.h.b16 %v1697
        %v3068 = vunpack.c.l.b16 %v1698
        %v3069 = vunpack.c.h.b16 %v1698
        %v3070 = vunpack.c.l.b16 %v1699
        %v3071 = vunpack.c.h.b16 %v1699
        %v3072 = vunpack.c.l.b16 %v1700
        %v3073 = vunpack.c.h.b16 %v1700
        %v3074 = vunpack.c.l.b16 %v1701
        %v3075 = vunpack.c.h.b16 %v1701
        %v3076 = vunpack.c.l.b16 %v1702
        %v3077 = vunpack.c.h.b16 %v1702
        %v3078 = vunpack.c.l.b16 %v1703
        %v3079 = vunpack.c.h.b16 %v1703
        %v3080 = vunpack.c.l.b16 %v1704
        %v3081 = vunpack.c.h.b16 %v1704
        %v3082 = vunpack.c.l.b16 %v1705
        %v3083 = vunpack.c.h.b16 %v1705
        %v3084 = vunpack.c.l.b16 %v1706
        %v3085 = vunpack.c.h.b16 %v1706
        %v3086 = vunpack.c.l.b16 %v1707
        %v3087 = vunpack.c.h.b16 %v1707
        %v3088 = vunpack.c.l.b16 %v1708
        %v3089 = vunpack.c.h.b16 %v1708
        %v3090 = vunpack.c.l.b16 %v1709
        %v3091 = vunpack.c.h.b16 %v1709
        %v3092 = vunpack.c.l.b16 %v1710
        %v3093 = vunpack.c.h.b16 %v1710
        %v3094 = vunpack.c.l.b16 %v1711
        %v3095 = vunpack.c.h.b16 %v1711
        %v3096 = vunpack.c.l.b16 %v1712
        %v3097 = vunpack.c.h.b16 %v1712
        %v3098 = vunpack.c.l.b16 %v1713
        %v3099 = vunpack.c.h.b16 %v1713
        %v3100 = vunpack.c.l.b16 %v1714
        %v3101 = vunpack.c.h.b16 %v1714
        %v3102 = vunpack.c.l.b16 %v1715
        %v3103 = vunpack.c.h.b16 %v1715
        %v3104 = vunpack.c.l.b16 %v1716
        %v3105 = vunpack.c.h.b16 %v1716
        %v3106 = vunpack.c.l.b16 %v1717
        %v3107 = vunpack.c.h.b16 %v1717
        %v3108 = vunpack.c.l.b16 %v1718
        %v3109 = vunpack.c.h.b16 %v1718
        %v3110 = vunpack.c.l.b16 %v1719
        %v3111 = vunpack.c.h.b16 %v1719
        %v3112 = vunpack.c.l.b16 %v1720
        %v3113 = vunpack.c.h.b16 %v1720
        %v3114 = vunpack.c.l.b16 %v1721
        %v3115 = vunpack.c.h.b16 %v1721
        %v3116 = vunpack.c.l.b16 %v1722
        %v3117 = vunpack.c.h.b16 %v1722
        %v3118 = vunpack.c.l.b16 %v1723
        %v3119 = vunpack.c.h.b16 %v1723
        %v3120 = vunpack.c.l.b16 %v1724
        %v3121 = vunpack.c.h.b16 %v1724
        %v3122 = vunpack.c.l.b16 %v1725
        %v3123 = vunpack.c.h.b16 %v1725
        %v3124 = vunpack.c.l.b16 %v1726
        %v3125 = vunpack.c.h.b16 %v1726
        %v3126 = vunpack.c.l.b16 %v1727
        %v3127 = vunpack.c.h.b16 %v1727
        %v3128 = vunpack.c.l.b16 %v1728
        %v3129 = vunpack.c.h.b16 %v1728
        %v3130 = vunpack.c.l.b16 %v1729
        %v3131 = vunpack.c.h.b16 %v1729
        %v3132 = vunpack.c.l.b16 %v1730
        %v3133 = vunpack.c.h.b16 %v1730
        %v3134 = vunpack.c.l.b16 %v1731
        %v3135 = vunpack.c.h.b16 %v1731
        %v3136 = vunpack.c.l.b16 %v1732
        %v3137 = vunpack.c.h.b16 %v1732
        %v3138 = vunpack.c.l.b16 %v1733
        %v3139 = vunpack.c.h.b16 %v1733
        %v3140 = vunpack.c.l.b16 %v1734
        %v3141 = vunpack.c.h.b16 %v1734
        %v3142 = vunpack.c.l.b16 %v1735
        %v3143 = vunpack.c.h.b16 %v1735
        %v3144 = vunpack.c.l.b16 %v1736
        %v3145 = vunpack.c.h.b16 %v1736
        %v3146 = vunpack.c.l.b16 %v1737
        %v3147 = vunpack.c.h.b16 %v1737
        %v3148 = vunpack.c.l.b16 %v1738
        %v3149 = vunpack.c.h.b16 %v1738
        %v3150 = vunpack.c.l.b16 %v1739
        %v3151 = vunpack.c.h.b16 %v1739
        %v3152 = vunpack.c.l.b16 %v1740
        %v3153 = vunpack.c.h.b16 %v1740
        %v3154 = vunpack.c.l.b16 %v1741
        %v3155 = vunpack.c.h.b16 %v1741
        %v3156 = vunpack.c.l.b16 %v1742
        %v3157 = vunpack.c.h.b16 %v1742
        %v3158 = vunpack.c.l.b16 %v1743
        %v3159 = vunpack.c.h.b16 %v1743
        %v3160 = vunpack.c.l.b16 %v1744
        %v3161 = vunpack.c.h.b16 %v1744
        %v3162 = vunpack.c.l.b16 %v1745
        %v3163 = vunpack.c.h.b16 %v1745
        %v3164 = vunpack.c.l.b16 %v1746
        %v3165 = vunpack.c.h.b16 %v1746
        %v3166 = vunpack.c.l.b16 %v1747
        %v3167 = vunpack.c.h.b16 %v1747
        %v3168 = vunpack.c.l.b16 %v1748
        %v3169 = vunpack.c.h.b16 %v1748
        %v3170 = vunpack.c.l.b16 %v1749
        %v3171 = vunpack.c.h.b16 %v1749
        %v3172 = vunpack.c.l.b16 %v1750
        %v3173 = vunpack.c.h.b16 %v1750
        %v3174 = vunpack.c.l.b16 %v1751
        %v3175 = vunpack.c.h.b16 %v1751
        %v3176 = vunpack.c.l.b16 %v1752
        %v3177 = vunpack.c.h.b16 %v1752
        %v3178 = vunpack.c.l.b16 %v1753
        %v3179 = vunpack.c.h.b16 %v1753
        %v3180 = vunpack.c.l.b16 %v1754
        %v3181 = vunpack.c.h.b16 %v1754
        %v3182 = vunpack.c.l.b16 %v1755
        %v3183 = vunpack.c.h.b16 %v1755
        %v3184 = vunpack.c.l.b16 %v1756
        %v3185 = vunpack.c.h.b16 %v1756
        %v3186 = vunpack.c.l.b16 %v1757
        %v3187 = vunpack.c.h.b16 %v1757
        %v3188 = vunpack.c.l.b16 %v1758
        %v3189 = vunpack.c.h.b16 %v1758
        %v3190 = vunpack.c.l.b16 %v1759
        %v3191 = vunpack.c.h.b16 %v1759
        %v3192 = vunpack.c.l.b16 %v1760
        %v3193 = vunpack.c.h.b16 %v1760
        %v3194 = vunpack.c.l.b16 %v1761
        %v3195 = vunpack.c.h.b16 %v1761
        %v3196 = vunpack.c.l.b16 %v1762
        %v3197 = vunpack.c.h.b16 %v1762
        %v3198 = vunpack.c.l.b16 %v1763
        %v3199 = vunpack.c.h.b16 %v1763
        %v3200 = vunpack.c.l.b16 %v1764
        %v3201 = vunpack.c.h.b16 %v1764
        %v3202 = vunpack.c.l.b16 %v1765
        %v3203 = vunpack.c.h.b16 %v1765
        %v3204 = vunpack.c.l.b16 %v1766
        %v3205 = vunpack.c.h.b16 %v1766
        %v3206 = vunpack.c.l.b16 %v1767
        %v3207 = vunpack.c.h.b16 %v1767
        %v3208 = vunpack.c.l.b16 %v1768
        %v3209 = vunpack.c.h.b16 %v1768
        %v3210 = vunpack.c.l.b16 %v1769
        %v3211 = vunpack.c.h.b16 %v1769
        %v3212 = vunpack.c.l.b16 %v1770
        %v3213 = vunpack.c.h.b16 %v1770
        %v3214 = vunpack.c.l.b16 %v1771
        %v3215 = vunpack.c.h.b16 %v1771
        %v3216 = vunpack.c.l.b16 %v1772
        %v3217 = vunpack.c.h.b16 %v1772
        %v3218 = vunpack.c.l.b16 %v1773
        %v3219 = vunpack.c.h.b16 %v1773
        %v3220 = vunpack.c.l.b16 %v1774
        %v3221 = vunpack.c.h.b16 %v1774
        %v3222 = vunpack.c.l.b16 %v1775
        %v3223 = vunpack.c.h.b16 %v1775
        %v3224 = vunpack.c.l.b16 %v1776
        %v3225 = vunpack.c.h.b16 %v1776
        %v3226 = vunpack.c.l.b16 %v1777
        %v3227 = vunpack.c.h.b16 %v1777
        %v3228 = vunpack.c.l.b16 %v1778
        %v3229 = vunpack.c.h.b16 %v1778
        %v3230 = vunpack.c.l.b16 %v1779
        %v3231 = vunpack.c.h.b16 %v1779
        %v3232 = vunpack.c.l.b16 %v1780
        %v3233 = vunpack.c.h.b16 %v1780
        %v3234 = vunpack.c.l.b16 %v1781
        %v3235 = vunpack.c.h.b16 %v1781
        %v3236 = vunpack.c.l.b16 %v1782
        %v3237 = vunpack.c.h.b16 %v1782
        %v3238 = vunpack.c.l.b16 %v1783
        %v3239 = vunpack.c.h.b16 %v1783
        %v3240 = vunpack.c.l.b16 %v1784
        %v3241 = vunpack.c.h.b16 %v1784
        %v3242 = vunpack.c.l.b16 %v1785
        %v3243 = vunpack.c.h.b16 %v1785
        %v3244 = vunpack.c.l.b16 %v1786
        %v3245 = vunpack.c.h.b16 %v1786
        %v3246 = vunpack.c.l.b16 %v1787
        %v3247 = vunpack.c.h.b16 %v1787
        %v3248 = vunpack.c.l.b16 %v1788
        %v3249 = vunpack.c.h.b16 %v1788
        %v3250 = vunpack.c.l.b16 %v1789
        %v3251 = vunpack.c.h.b16 %v1789
        %v3252 = vunpack.c.l.b16 %v1790
        %v3253 = vunpack.c.h.b16 %v1790
        %v3254 = vunpack.c.l.b16 %v1791
        %v3255 = vunpack.c.h.b16 %v1791
        %v3256 = vunpack.c.l.b16 %v1792
        %v3257 = vunpack.c.h.b16 %v1792
        %v3258 = vunpack.c.l.b16 %v1793
        %v3259 = vunpack.c.h.b16 %v1793
        %v3260 = vunpack.c.l.b16 %v1794
        %v3261 = vunpack.c.h.b16 %v1794
        %v3262 = vunpack.c.l.b16 %v1795
        %v3263 = vunpack.c.h.b16 %v1795
        %v3264 = vunpack.c.l.b16 %v1796
        %v3265 = vunpack.c.h.b16 %v1796
        %v3266 = vunpack.c.l.b16 %v1797
        %v3267 = vunpack.c.h.b16 %v1797
        %v3268 = vunpack.c.l.b16 %v1798
        %v3269 = vunpack.c.h.b16 %v1798
        %v3270 = vunpack.c.l.b16 %v1799
        %v3271 = vunpack.c.h.b16 %v1799
        %v3272 = vunpack.c.l.b16 %v1800
        %v3273 = vunpack.c.h.b16 %v1800
        %v3274 = vunpack.c.l.b16 %v1801
        %v3275 = vunpack.c.h.b16 %v1801
        %v3276 = vunpack.c.l.b16 %v1802
        %v3277 = vunpack.c.h.b16 %v1802
        %v3278 = vunpack.c.l.b16 %v1803
        %v3279 = vunpack.c.h.b16 %v1803
        %v3280 = vunpack.c.l.b16 %v1804
        %v3281 = vunpack.c.h.b16 %v1804
        %v3282 = vunpack.c.l.b16 %v1805
        %v3283 = vunpack.c.h.b16 %v1805
        %v3284 = vunpack.c.l.b16 %v1806
        %v3285 = vunpack.c.h.b16 %v1806
        %v3286 = vunpack.c.l.b16 %v1807
        %v3287 = vunpack.c.h.b16 %v1807
        %v3288 = vunpack.c.l.b16 %v1808
        %v3289 = vunpack.c.h.b16 %v1808
        %v3290 = vunpack.c.l.b16 %v1809
        %v3291 = vunpack.c.h.b16 %v1809
        %v3292 = vunpack.c.l.b16 %v1810
        %v3293 = vunpack.c.h.b16 %v1810
        %v3294 = vunpack.c.l.b16 %v1811
        %v3295 = vunpack.c.h.b16 %v1811
        %v3296 = vunpack.c.l.b16 %v1812
        %v3297 = vunpack.c.h.b16 %v1812
        %v3298 = vunpack.c.l.b16 %v1813
        %v3299 = vunpack.c.h.b16 %v1813
        %v3300 = vunpack.c.l.b16 %v1814
        %v3301 = vunpack.c.h.b16 %v1814
        %v3302 = vunpack.c.l.b16 %v1815
        %v3303 = vunpack.c.h.b16 %v1815
        %v3304 = vunpack.c.l.b16 %v1816
        %v3305 = vunpack.c.h.b16 %v1816
        %v3306 = vunpack.c.l.b16 %v1817
        %v3307 = vunpack.c.h.b16 %v1817
        %v3308 = vunpack.c.l.b16 %v1818
        %v3309 = vunpack.c.h.b16 %v1818
        %v3310 = vunpack.c.l.b16 %v1819
        %v3311 = vunpack.c.h.b16 %v1819
        %v3312 = vunpack.c.l.b16 %v1820
        %v3313 = vunpack.c.h.b16 %v1820
        %v3314 = vunpack.c.l.b16 %v1821
        %v3315 = vunpack.c.h.b16 %v1821
        %v3316 = vunpack.c.l.b16 %v1822
        %v3317 = vunpack.c.h.b16 %v1822
        %v3318 = vunpack.c.l.b16 %v1823
        %v3319 = vunpack.c.h.b16 %v1823
        %v3320 = vunpack.c.l.b16 %v1824
        %v3321 = vunpack.c.h.b16 %v1824
        %v3322 = vunpack.c.l.b16 %v1825
        %v3323 = vunpack.c.h.b16 %v1825
        %v3324 = vunpack.c.l.b16 %v1826
        %v3325 = vunpack.c.h.b16 %v1826
        %v3326 = vunpack.c.l.b16 %v1827
        %v3327 = vunpack.c.h.b16 %v1827
        %v3328 = vunpack.c.l.b16 %v1828
        %v3329 = vunpack.c.h.b16 %v1828
        %v3330 = vunpack.c.l.b16 %v1829
        %v3331 = vunpack.c.h.b16 %v1829
        %v3332 = vunpack.c.l.b16 %v1830
        %v3333 = vunpack.c.h.b16 %v1830
        %v3334 = vunpack.c.l.b16 %v1831
        %v3335 = vunpack.c.h.b16 %v1831
        %v3336 = vunpack.c.l.b16 %v1832
        %v3337 = vunpack.c.h.b16 %v1832
        %v3338 = vunpack.c.l.b16 %v1833
        %v3339 = vunpack.c.h.b16 %v1833
        %v3340 = vunpack.c.l.b16 %v1834
        %v3341 = vunpack.c.h.b16 %v1834
        %v3342 = vunpack.c.l.b16 %v1835
        %v3343 = vunpack.c.h.b16 %v1835
        %v3344 = vunpack.c.l.b16 %v1836
        %v3345 = vunpack.c.h.b16 %v1836
        %v3346 = vunpack.c.l.b16 %v1837
        %v3347 = vunpack.c.h.b16 %v1837
        %v3348 = vunpack.c.l.b16 %v1838
        %v3349 = vunpack.c.h.b16 %v1838
        %v3350 = vunpack.c.l.b16 %v1839
        %v3351 = vunpack.c.h.b16 %v1839
        %v3352 = vunpack.c.l.b16 %v1840
        %v3353 = vunpack.c.h.b16 %v1840
        %v3354 = vunpack.c.l.b16 %v1841
        %v3355 = vunpack.c.h.b16 %v1841
        %v3356 = vunpack.c.l.b16 %v1842
        %v3357 = vunpack.c.h.b16 %v1842
        %v3358 = vunpack.c.l.b16 %v1843
        %v3359 = vunpack.c.h.b16 %v1843
        %v3360 = vunpack.c.l.b16 %v1844
        %v3361 = vunpack.c.h.b16 %v1844
        %v3362 = vunpack.c.l.b16 %v1845
        %v3363 = vunpack.c.h.b16 %v1845
        %v3364 = vunpack.c.l.b16 %v1846
        %v3365 = vunpack.c.h.b16 %v1846
        %v3366 = vunpack.c.l.b16 %v1847
        %v3367 = vunpack.c.h.b16 %v1847
        %v3368 = vunpack.c.l.b16 %v1848
        %v3369 = vunpack.c.h.b16 %v1848
        %v3370 = vunpack.c.l.b16 %v1849
        %v3371 = vunpack.c.h.b16 %v1849
        %v3372 = vunpack.c.l.b16 %v1850
        %v3373 = vunpack.c.h.b16 %v1850
        %v3374 = vunpack.c.l.b16 %v1851
        %v3375 = vunpack.c.h.b16 %v1851
        %v3376 = vunpack.c.l.b16 %v1852
        %v3377 = vunpack.c.h.b16 %v1852
        %v3378 = vunpack.c.l.b16 %v1853
        %v3379 = vunpack.c.h.b16 %v1853
        %v3380 = vunpack.c.l.b16 %v1854
        %v3381 = vunpack.c.h.b16 %v1854
        %v3382 = vunpack.c.l.b16 %v1855
        %v3383 = vunpack.c.h.b16 %v1855
        %v3384 = vunpack.c.l.b16 %v1856
        %v3385 = vunpack.c.h.b16 %v1856
        %v3386 = vunpack.c.l.b16 %v1857
        %v3387 = vunpack.c.h.b16 %v1857
        %v3388 = vunpack.c.l.b16 %v1858
        %v3389 = vunpack.c.h.b16 %v1858
        %v3390 = vunpack.c.l.b16 %v1859
        %v3391 = vunpack.c.h.b16 %v1859
        %v3392 = vunpack.c.l.b16 %v1860
        %v3393 = vunpack.c.h.b16 %v1860
        %v3394 = vunpack.c.l.b16 %v1861
        %v3395 = vunpack.c.h.b16 %v1861
        %v3396 = vunpack.c.l.b16 %v1862
        %v3397 = vunpack.c.h.b16 %v1862
        %v3398 = vunpack.c.l.b16 %v1863
        %v3399 = vunpack.c.h.b16 %v1863
        %v3400 = vunpack.c.l.b16 %v1864
        %v3401 = vunpack.c.h.b16 %v1864
        %v3402 = vunpack.c.l.b16 %v1865
        %v3403 = vunpack.c.h.b16 %v1865
        %v3404 = vunpack.c.l.b16 %v1866
        %v3405 = vunpack.c.h.b16 %v1866
        %v3406 = vunpack.c.l.b16 %v1867
        %v3407 = vunpack.c.h.b16 %v1867
        %v3408 = vunpack.c.l.b16 %v1868
        %v3409 = vunpack.c.h.b16 %v1868
        %v3410 = vunpack.c.l.b16 %v1869
        %v3411 = vunpack.c.h.b16 %v1869
        %v3412 = vunpack.c.l.b16 %v1870
        %v3413 = vunpack.c.h.b16 %v1870
        %v3414 = vunpack.c.l.b16 %v1871
        %v3415 = vunpack.c.h.b16 %v1871
        %v3416 = vunpack.c.l.b16 %v1872
        %v3417 = vunpack.c.h.b16 %v1872
        %v3418 = vunpack.c.l.b16 %v1873
        %v3419 = vunpack.c.h.b16 %v1873
        %v3420 = vunpack.c.l.b16 %v1874
        %v3421 = vunpack.c.h.b16 %v1874
        %v3422 = vunpack.c.l.b16 %v1875
        %v3423 = vunpack.c.h.b16 %v1875
        %v3424 = vunpack.c.l.b16 %v1876
        %v3425 = vunpack.c.h.b16 %v1876
        %v3426 = vunpack.c.l.b16 %v1877
        %v3427 = vunpack.c.h.b16 %v1877
        %v3428 = vunpack.c.l.b16 %v1878
        %v3429 = vunpack.c.h.b16 %v1878
        %v3430 = vunpack.c.l.b16 %v1879
        %v3431 = vunpack.c.h.b16 %v1879
        %v3432 = vunpack.c.l.b16 %v1880
        %v3433 = vunpack.c.h.b16 %v1880
        %v3434 = vunpack.c.l.b16 %v1881
        %v3435 = vunpack.c.h.b16 %v1881
        %v3436 = vunpack.c.l.b16 %v1882
        %v3437 = vunpack.c.h.b16 %v1882
        %v3438 = vunpack.c.l.b16 %v1883
        %v3439 = vunpack.c.h.b16 %v1883
        %v3440 = vunpack.c.l.b16 %v1884
        %v3441 = vunpack.c.h.b16 %v1884
        %v3442 = vunpack.c.l.b16 %v1885
        %v3443 = vunpack.c.h.b16 %v1885
        %v3444 = vunpack.c.l.b16 %v1886
        %v3445 = vunpack.c.h.b16 %v1886
        %v3446 = vunpack.c.l.b16 %v1887
        %v3447 = vunpack.c.h.b16 %v1887
        %v3448 = vunpack.c.l.b16 %v1888
        %v3449 = vunpack.c.h.b16 %v1888
        %v3450 = vunpack.c.l.b16 %v1889
        %v3451 = vunpack.c.h.b16 %v1889
        %v3452 = vunpack.c.l.b16 %v1890
        %v3453 = vunpack.c.h.b16 %v1890
        %v3454 = vunpack.c.l.b16 %v1891
        %v3455 = vunpack.c.h.b16 %v1891
        %v3456 = vunpack.c.l.b16 %v1892
        %v3457 = vunpack.c.h.b16 %v1892
        %v3458 = vunpack.c.l.b16 %v1893
        %v3459 = vunpack.c.h.b16 %v1893
        %v3460 = vunpack.c.l.b16 %v1894
        %v3461 = vunpack.c.h.b16 %v1894
        %v3462 = vunpack.c.l.b16 %v1895
        %v3463 = vunpack.c.h.b16 %v1895
        %v3464 = vunpack.c.l.b16 %v1896
        %v3465 = vunpack.c.h.b16 %v1896
        %v3466 = vunpack.c.l.b16 %v1897
        %v3467 = vunpack.c.h.b16 %v1897
        %v3468 = vunpack.c.l.b16 %v1898
        %v3469 = vunpack.c.h.b16 %v1898
        %v3470 = vunpack.c.l.b16 %v1899
        %v3471 = vunpack.c.h.b16 %v1899
        %v3472 = vunpack.c.l.b16 %v1900
        %v3473 = vunpack.c.h.b16 %v1900
        %v3474 = vunpack.c.l.b16 %v1901
        %v3475 = vunpack.c.h.b16 %v1901
        %v3476 = vunpack.c.l.b16 %v1902
        %v3477 = vunpack.c.h.b16 %v1902
        %v3478 = vunpack.c.l.b16 %v1903
        %v3479 = vunpack.c.h.b16 %v1903
        %v3480 = vunpack.c.l.b16 %v1904
        %v3481 = vunpack.c.h.b16 %v1904
        %v3482 = vunpack.c.l.b16 %v1905
        %v3483 = vunpack.c.h.b16 %v1905
        %v3484 = vpack.c.b16 %v2468, %v2460
        %v3485 = vpack.c.b16 %v2469, %v2461
        %v3486 = vpack.c.b16 %v2470, %v2462
        %v3487 = vpack.c.b16 %v2471, %v2463
        %v3488 = vpack.c.b16 %v2472, %v2464
        %v3489 = vpack.c.b16 %v2473, %v2465
        %v3490 = vpack.c.b16 %v2474, %v2466
        %v3491 = vpack.c.b16 %v2475, %v2467
        %v3492 = vpack.c.b16 %v2484, %v2476
        %v3493 = vpack.c.b16 %v2485, %v2477
        %v3494 = vpack.c.b16 %v2486, %v2478
        %v3495 = vpack.c.b16 %v2487, %v2479
        %v3496 = vpack.c.b16 %v2488, %v2480
        %v3497 = vpack.c.b16 %v2489, %v2481
        %v3498 = vpack.c.b16 %v2490, %v2482
        %v3499 = vpack.c.b16 %v2491, %v2483
        %v3500 = vpack.c.b16 %v2500, %v2492
        %v3501 = vpack.c.b16 %v2501, %v2493
        %v3502 = vpack.c.b16 %v2502, %v2494
        %v3503 = vpack.c.b16 %v2503, %v2495
        %v3504 = vpack.c.b16 %v2504, %v2496
        %v3505 = vpack.c.b16 %v2505, %v2497
        %v3506 = vpack.c.b16 %v2506, %v2498
        %v3507 = vpack.c.b16 %v2507, %v2499
        %v3508 = vpack.c.b16 %v2516, %v2508
        %v3509 = vpack.c.b16 %v2517, %v2509
        %v3510 = vpack.c.b16 %v2518, %v2510
        %v3511 = vpack.c.b16 %v2519, %v2511
        %v3512 = vpack.c.b16 %v2520, %v2512
        %v3513 = vpack.c.b16 %v2521, %v2513
        %v3514 = vpack.c.b16 %v2522, %v2514
        %v3515 = vpack.c.b16 %v2523, %v2515
        %v3516 = vpack.c.b16 %v2532, %v2524
        %v3517 = vpack.c.b16 %v2533, %v2525
        %v3518 = vpack.c.b16 %v2534, %v2526
        %v3519 = vpack.c.b16 %v2535, %v2527
        %v3520 = vpack.c.b16 %v2536, %v2528
        %v3521 = vpack.c.b16 %v2537, %v2529
        %v3522 = vpack.c.b16 %v2538, %v2530
        %v3523 = vpack.c.b16 %v2539, %v2531
        %v3524 = vpack.c.b16 %v2548, %v2540
        %v3525 = vpack.c.b16 %v2549, %v2541
        %v3526 = vpack.c.b16 %v2550, %v2542
        %v3527 = vpack.c.b16 %v2551, %v2543
        %v3528 = vpack.c.b16 %v2552, %v2544
        %v3529 = vpack.c.b16 %v2553, %v2545
        %v3530 = vpack.c.b16 %v2554, %v2546
        %v3531 = vpack.c.b16 %v2555, %v2547
        %v3532 = vpack.c.b16 %v2564, %v2556
        %v3533 = vpack.c.b16 %v2565, %v2557
        %v3534 = vpack.c.b16 %v2566, %v2558
        %v3535 = vpack.c.b16 %v2567, %v2559
        %v3536 = vpack.c.b16 %v2568, %v2560
        %v3537 = vpack.c.b16 %v2569, %v2561
        %v3538 = vpack.c.b16 %v2570, %v2562
        %v3539 = vpack.c.b16 %v2571, %v2563
        %v3540 = vpack.c.b16 %v2580, %v2572
        %v3541 = vpack.c.b16 %v2581, %v2573
        %v3542 = vpack.c.b16 %v2582, %v2574
        %v3543 = vpack.c.b16 %v2583, %v2575
        %v3544 = vpack.c.b16 %v2584, %v2576
        %v3545 = vpack.c.b16 %v2585, %v2577
        %v3546 = vpack.c.b16 %v2586, %v2578
        %v3547 = vpack.c.b16 %v2587, %v2579
        %v3548 = vpack.c.b16 %v2596, %v2588
        %v3549 = vpack.c.b16 %v2597, %v2589
        %v3550 = vpack.c.b16 %v2598, %v2590
        %v3551 = vpack.c.b16 %v2599, %v2591
        %v3552 = vpack.c.b16 %v2600, %v2592
        %v3553 = vpack.c.b16 %v2601, %v2593
        %v3554 = vpack.c.b16 %v2602, %v2594
        %v3555 = vpack.c.b16 %v2603, %v2595
        %v3556 = vpack.c.b16 %v2612, %v2604
        %v3557 = vpack.c.b16 %v2613, %v2605
        %v3558 = vpack.c.b16 %v2614, %v2606
        %v3559 = vpack.c.b16 %v2615, %v2607
        %v3560 = vpack.c.b16 %v2616, %v2608
        %v3561 = vpack.c.b16 %v2617, %v2609
        %v3562 = vpack.c.b16 %v2618, %v2610
        %v3563 = vpack.c.b16 %v2619, %v2611
        %v3564 = vpack.c.b16 %v2628, %v2620
        %v3565 = vpack.c.b16 %v2629, %v2621
        %v3566 = vpack.c.b16 %v2630, %v2622
        %v3567 = vpack.c.b16 %v2631, %v2623
        %v3568 = vpack.c.b16 %v2632, %v2624
        %v3569 = vpack.c.b16 %v2633, %v2625
        %v3570 = vpack.c.b16 %v2634, %v2626
        %v3571 = vpack.c.b16 %v2635, %v2627
        %v3572 = vpack.c.b16 %v2644, %v2636
        %v3573 = vpack.c.b16 %v2645, %v2637
        %v3574 = vpack.c.b16 %v2646, %v2638
        %v3575 = vpack.c.b16 %v2647, %v2639
        %v3576 = vpack.c.b16 %v2648, %v2640
        %v3577 = vpack.c.b16 %v2649, %v2641
        %v3578 = vpack.c.b16 %v2650, %v2642
        %v3579 = vpack.c.b16 %v2651, %v2643
        %v3580 = vpack.c.b16 %v2660, %v2652
        %v3581 = vpack.c.b16 %v2661, %v2653
        %v3582 = vpack.c.b16 %v2662, %v2654
        %v3583 = vpack.c.b16 %v2663, %v2655
        %v3584 = vpack.c.b16 %v2664, %v2656
        %v3585 = vpack.c.b16 %v2665, %v2657
        %v3586 = vpack.c.b16 %v2666, %v2658
        %v3587 = vpack.c.b16 %v2667, %v2659
        %v3588 = vpack.c.b16 %v2676, %v2668
        %v3589 = vpack.c.b16 %v2677, %v2669
        %v3590 = vpack.c.b16 %v2678, %v2670
        %v3591 = vpack.c.b16 %v2679, %v2671
        %v3592 = vpack.c.b16 %v2680, %v2672
        %v3593 = vpack.c.b16 %v2681, %v2673
        %v3594 = vpack.c.b16 %v2682, %v2674
        %v3595 = vpack.c.b16 %v2683, %v2675
        %v3596 = vpack.c.b16 %v2692, %v2684
        %v3597 = vpack.c.b16 %v2693, %v2685
        %v3598 = vpack.c.b16 %v2694, %v2686
        %v3599 = vpack.c.b16 %v2695, %v2687
        %v3600 = vpack.c.b16 %v2696, %v2688
        %v3601 = vpack.c.b16 %v2697, %v2689
        %v3602 = vpack.c.b16 %v2698, %v2690
        %v3603 = vpack.c.b16 %v2699, %v2691
        %v3604 = vpack.c.b16 %v2708, %v2700
        %v3605 = vpack.c.b16 %v2709, %v2701
        %v3606 = vpack.c.b16 %v2710, %v2702
        %v3607 = vpack.c.b16 %v2711, %v2703
        %v3608 = vpack.c.b16 %v2712, %v2704
        %v3609 = vpack.c.b16 %v2713, %v2705
        %v3610 = vpack.c.b16 %v2714, %v2706
        %v3611 = vpack.c.b16 %v2715, %v2707
        %v3612 = vpack.c.b16 %v2724, %v2716
        %v3613 = vpack.c.b16 %v2725, %v2717
        %v3614 = vpack.c.b16 %v2726, %v2718
        %v3615 = vpack.c.b16 %v2727, %v2719
        %v3616 = vpack.c.b16 %v2728, %v2720
        %v3617 = vpack.c.b16 %v2729, %v2721
        %v3618 = vpack.c.b16 %v2730, %v2722
        %v3619 = vpack.c.b16 %v2731, %v2723
        %v3620 = vpack.c.b16 %v2740, %v2732
        %v3621 = vpack.c.b16 %v2741, %v2733
        %v3622 = vpack.c.b16 %v2742, %v2734
        %v3623 = vpack.c.b16 %v2743, %v2735
        %v3624 = vpack.c.b16 %v2744, %v2736
        %v3625 = vpack.c.b16 %v2745, %v2737
        %v3626 = vpack.c.b16 %v2746, %v2738
        %v3627 = vpack.c.b16 %v2747, %v2739
        %v3628 = vpack.c.b16 %v2756, %v2748
        %v3629 = vpack.c.b16 %v2757, %v2749
        %v3630 = vpack.c.b16 %v2758, %v2750
        %v3631 = vpack.c.b16 %v2759, %v2751
        %v3632 = vpack.c.b16 %v2760, %v2752
        %v3633 = vpack.c.b16 %v2761, %v2753
        %v3634 = vpack.c.b16 %v2762, %v2754
        %v3635 = vpack.c.b16 %v2763, %v2755
        %v3636 = vpack.c.b16 %v2772, %v2764
        %v3637 = vpack.c.b16 %v2773, %v2765
        %v3638 = vpack.c.b16 %v2774, %v2766
        %v3639 = vpack.c.b16 %v2775, %v2767
        %v3640 = vpack.c.b16 %v2776, %v2768
        %v3641 = vpack.c.b16 %v2777, %v2769
        %v3642 = vpack.c.b16 %v2778, %v2770
        %v3643 = vpack.c.b16 %v2779, %v2771
        %v3644 = vpack.c.b16 %v2788, %v2780
        %v3645 = vpack.c.b16 %v2789, %v2781
        %v3646 = vpack.c.b16 %v2790, %v2782
        %v3647 = vpack.c.b16 %v2791, %v2783
        %v3648 = vpack.c.b16 %v2792, %v2784
        %v3649 = vpack.c.b16 %v2793, %v2785
        %v3650 = vpack.c.b16 %v2794, %v2786
        %v3651 = vpack.c.b16 %v2795, %v2787
        %v3652 = vpack.c.b16 %v2804, %v2796
        %v3653 = vpack.c.b16 %v2805, %v2797
        %v3654 = vpack.c.b16 %v2806, %v2798
        %v3655 = vpack.c.b16 %v2807, %v2799
        %v3656 = vpack.c.b16 %v2808, %v2800
        %v3657 = vpack.c.b16 %v2809, %v2801
        %v3658 = vpack.c.b16 %v2810, %v2802
        %v3659 = vpack.c.b16 %v2811, %v2803
        %v3660 = vpack.c.b16 %v2820, %v2812
        %v3661 = vpack.c.b16 %v2821, %v2813
        %v3662 = vpack.c.b16 %v2822, %v2814
        %v3663 = vpack.c.b16 %v2823, %v2815
        %v3664 = vpack.c.b16 %v2824, %v2816
        %v3665 = vpack.c.b16 %v2825, %v2817
        %v3666 = vpack.c.b16 %v2826, %v2818
        %v3667 = vpack.c.b16 %v2827, %v2819
        %v3668 = vpack.c.b16 %v2836, %v2828
        %v3669 = vpack.c.b16 %v2837, %v2829
        %v3670 = vpack.c.b16 %v2838, %v2830
        %v3671 = vpack.c.b16 %v2839, %v2831
        %v3672 = vpack.c.b16 %v2840, %v2832
        %v3673 = vpack.c.b16 %v2841, %v2833
        %v3674 = vpack.c.b16 %v2842, %v2834
        %v3675 = vpack.c.b16 %v2843, %v2835
        %v3676 = vpack.c.b16 %v2852, %v2844
        %v3677 = vpack.c.b16 %v2853, %v2845
        %v3678 = vpack.c.b16 %v2854, %v2846
        %v3679 = vpack.c.b16 %v2855, %v2847
        %v3680 = vpack.c.b16 %v2856, %v2848
        %v3681 = vpack.c.b16 %v2857, %v2849
        %v3682 = vpack.c.b16 %v2858, %v2850
        %v3683 = vpack.c.b16 %v2859, %v2851
        %v3684 = vpack.c.b16 %v2868, %v2860
        %v3685 = vpack.c.b16 %v2869, %v2861
        %v3686 = vpack.c.b16 %v2870, %v2862
        %v3687 = vpack.c.b16 %v2871, %v2863
        %v3688 = vpack.c.b16 %v2872, %v2864
        %v3689 = vpack.c.b16 %v2873, %v2865
        %v3690 = vpack.c.b16 %v2874, %v2866
        %v3691 = vpack.c.b16 %v2875, %v2867
        %v3692 = vpack.c.b16 %v2884, %v2876
        %v3693 = vpack.c.b16 %v2885, %v2877
        %v3694 = vpack.c.b16 %v2886, %v2878
        %v3695 = vpack.c.b16 %v2887, %v2879
        %v3696 = vpack.c.b16 %v2888, %v2880
        %v3697 = vpack.c.b16 %v2889, %v2881
        %v3698 = vpack.c.b16 %v2890, %v2882
        %v3699 = vpack.c.b16 %v2891, %v2883
        %v3700 = vpack.c.b16 %v2900, %v2892
        %v3701 = vpack.c.b16 %v2901, %v2893
        %v3702 = vpack.c.b16 %v2902, %v2894
        %v3703 = vpack.c.b16 %v2903, %v2895
        %v3704 = vpack.c.b16 %v2904, %v2896
        %v3705 = vpack.c.b16 %v2905, %v2897
        %v3706 = vpack.c.b16 %v2906, %v2898
        %v3707 = vpack.c.b16 %v2907, %v2899
        %v3708 = vpack.c.b16 %v2916, %v2908
        %v3709 = vpack.c.b16 %v2917, %v2909
        %v3710 = vpack.c.b16 %v2918, %v2910
        %v3711 = vpack.c.b16 %v2919, %v2911
        %v3712 = vpack.c.b16 %v2920, %v2912
        %v3713 = vpack.c.b16 %v2921, %v2913
        %v3714 = vpack.c.b16 %v2922, %v2914
        %v3715 = vpack.c.b16 %v2923, %v2915
        %v3716 = vpack.c.b16 %v2932, %v2924
        %v3717 = vpack.c.b16 %v2933, %v2925
        %v3718 = vpack.c.b16 %v2934, %v2926
        %v3719 = vpack.c.b16 %v2935, %v2927
        %v3720 = vpack.c.b16 %v2936, %v2928
        %v3721 = vpack.c.b16 %v2937, %v2929
        %v3722 = vpack.c.b16 %v2938, %v2930
        %v3723 = vpack.c.b16 %v2939, %v2931
        %v3724 = vpack.c.b16 %v2948, %v2940
        %v3725 = vpack.c.b16 %v2949, %v2941
        %v3726 = vpack.c.b16 %v2950, %v2942
        %v3727 = vpack.c.b16 %v2951, %v2943
        %v3728 = vpack.c.b16 %v2952, %v2944
        %v3729 = vpack.c.b16 %v2953, %v2945
        %v3730 = vpack.c.b16 %v2954, %v2946
        %v3731 = vpack.c.b16 %v2955, %v2947
        %v3732 = vpack.c.b16 %v2964, %v2956
        %v3733 = vpack.c.b16 %v2965, %v2957
        %v3734 = vpack.c.b16 %v2966, %v2958
        %v3735 = vpack.c.b16 %v2967, %v2959
        %v3736 = vpack.c.b16 %v2968, %v2960
        %v3737 = vpack.c.b16 %v2969, %v2961
        %v3738 = vpack.c.b16 %v2970, %v2962
        %v3739 = vpack.c.b16 %v2971, %v2963
        %v3740 = vpack.c.b16 %v2980, %v2972
        %v3741 = vpack.c.b16 %v2981, %v2973
        %v3742 = vpack.c.b16 %v2982, %v2974
        %v3743 = vpack.c.b16 %v2983, %v2975
        %v3744 = vpack.c.b16 %v2984, %v2976
        %v3745 = vpack.c.b16 %v2985, %v2977
        %v3746 = vpack.c.b16 %v2986, %v2978
        %v3747 = vpack.c.b16 %v2987, %v2979
        %v3748 = vpack.c.b16 %v2996, %v2988
        %v3749 = vpack.c.b16 %v2997, %v2989
        %v3750 = vpack.c.b16 %v2998, %v2990
        %v3751 = vpack.c.b16 %v2999, %v2991
        %v3752 = vpack.c.b16 %v3000, %v2992
        %v3753 = vpack.c.b16 %v3001, %v2993
        %v3754 = vpack.c.b16 %v3002, %v2994
        %v3755 = vpack.c.b16 %v3003, %v2995
        %v3756 = vpack.c.b16 %v3012, %v3004
        %v3757 = vpack.c.b16 %v3013, %v3005
        %v3758 = vpack.c.b16 %v3014, %v3006
        %v3759 = vpack.c.b16 %v3015, %v3007
        %v3760 = vpack.c.b16 %v3016, %v3008
        %v3761 = vpack.c.b16 %v3017, %v3009
        %v3762 = vpack.c.b16 %v3018, %v3010
        %v3763 = vpack.c.b16 %v3019, %v3011
        %v3764 = vpack.c.b16 %v3028, %v3020
        %v3765 = vpack.c.b16 %v3029, %v3021
        %v3766 = vpack.c.b16 %v3030, %v3022
        %v3767 = vpack.c.b16 %v3031, %v3023
        %v3768 = vpack.c.b16 %v3032, %v3024
        %v3769 = vpack.c.b16 %v3033, %v3025
        %v3770 = vpack.c.b16 %v3034, %v3026
        %v3771 = vpack.c.b16 %v3035, %v3027
        %v3772 = vpack.c.b16 %v3044, %v3036
        %v3773 = vpack.c.b16 %v3045, %v3037
        %v3774 = vpack.c.b16 %v3046, %v3038
        %v3775 = vpack.c.b16 %v3047, %v3039
        %v3776 = vpack.c.b16 %v3048, %v3040
        %v3777 = vpack.c.b16 %v3049, %v3041
        %v3778 = vpack.c.b16 %v3050, %v3042
        %v3779 = vpack.c.b16 %v3051, %v3043
        %v3780 = vpack.c.b16 %v3060, %v3052
        %v3781 = vpack.c.b16 %v3061, %v3053
        %v3782 = vpack.c.b16 %v3062, %v3054
        %v3783 = vpack.c.b16 %v3063, %v3055
        %v3784 = vpack.c.b16 %v3064, %v3056
        %v3785 = vpack.c.b16 %v3065, %v3057
        %v3786 = vpack.c.b16 %v3066, %v3058
        %v3787 = vpack.c.b16 %v3067, %v3059
        %v3788 = vpack.c.b16 %v3076, %v3068
        %v3789 = vpack.c.b16 %v3077, %v3069
        %v3790 = vpack.c.b16 %v3078, %v3070
        %v3791 = vpack.c.b16 %v3079, %v3071
        %v3792 = vpack.c.b16 %v3080, %v3072
        %v3793 = vpack.c.b16 %v3081, %v3073
        %v3794 = vpack.c.b16 %v3082, %v3074
        %v3795 = vpack.c.b16 %v3083, %v3075
        %v3796 = vpack.c.b16 %v3092, %v3084
        %v3797 = vpack.c.b16 %v3093, %v3085
        %v3798 = vpack.c.b16 %v3094, %v3086
        %v3799 = vpack.c.b16 %v3095, %v3087
        %v3800 = vpack.c.b16 %v3096, %v3088
        %v3801 = vpack.c.b16 %v3097, %v3089
        %v3802 = vpack.c.b16 %v3098, %v3090
        %v3803 = vpack.c.b16 %v3099, %v3091
        %v3804 = vpack.c.b16 %v3108, %v3100
        %v3805 = vpack.c.b16 %v3109, %v3101
        %v3806 = vpack.c.b16 %v3110, %v3102
        %v3807 = vpack.c.b16 %v3111, %v3103
        %v3808 = vpack.c.b16 %v3112, %v3104
        %v3809 = vpack.c.b16 %v3113, %v3105
        %v3810 = vpack.c.b16 %v3114, %v3106
        %v3811 = vpack.c.b16 %v3115, %v3107
        %v3812 = vpack.c.b16 %v3124, %v3116
        %v3813 = vpack.c.b16 %v3125, %v3117
        %v3814 = vpack.c.b16 %v3126, %v3118
        %v3815 = vpack.c.b16 %v3127, %v3119
        %v3816 = vpack.c.b16 %v3128, %v3120
        %v3817 = vpack.c.b16 %v3129, %v3121
        %v3818 = vpack.c.b16 %v3130, %v3122
        %v3819 = vpack.c.b16 %v3131, %v3123
        %v3820 = vpack.c.b16 %v3140, %v3132
        %v3821 = vpack.c.b16 %v3141, %v3133
        %v3822 = vpack.c.b16 %v3142, %v3134
        %v3823 = vpack.c.b16 %v3143, %v3135
        %v3824 = vpack.c.b16 %v3144, %v3136
        %v3825 = vpack.c.b16 %v3145, %v3137
        %v3826 = vpack.c.b16 %v3146, %v3138
        %v3827 = vpack.c.b16 %v3147, %v3139
        %v3828 = vpack.c.b16 %v3156, %v3148
        %v3829 = vpack.c.b16 %v3157, %v3149
        %v3830 = vpack.c.b16 %v3158, %v3150
        %v3831 = vpack.c.b16 %v3159, %v3151
        %v3832 = vpack.c.b16 %v3160, %v3152
        %v3833 = vpack.c.b16 %v3161, %v3153
        %v3834 = vpack.c.b16 %v3162, %v3154
        %v3835 = vpack.c.b16 %v3163, %v3155
        %v3836 = vpack.c.b16 %v3172, %v3164
        %v3837 = vpack.c.b16 %v3173, %v3165
        %v3838 = vpack.c.b16 %v3174, %v3166
        %v3839 = vpack.c.b16 %v3175, %v3167
        %v3840 = vpack.c.b16 %v3176, %v3168
        %v3841 = vpack.c.b16 %v3177, %v3169
        %v3842 = vpack.c.b16 %v3178, %v3170
        %v3843 = vpack.c.b16 %v3179, %v3171
        %v3844 = vpack.c.b16 %v3188, %v3180
        %v3845 = vpack.c.b16 %v3189, %v3181
        %v3846 = vpack.c.b16 %v3190, %v3182
        %v3847 = vpack.c.b16 %v3191, %v3183
        %v3848 = vpack.c.b16 %v3192, %v3184
        %v3849 = vpack.c.b16 %v3193, %v3185
        %v3850 = vpack.c.b16 %v3194, %v3186
        %v3851 = vpack.c.b16 %v3195, %v3187
        %v3852 = vpack.c.b16 %v3204, %v3196
        %v3853 = vpack.c.b16 %v3205, %v3197
        %v3854 = vpack.c.b16 %v3206, %v3198
        %v3855 = vpack.c.b16 %v3207, %v3199
        %v3856 = vpack.c.b16 %v3208, %v3200
        %v3857 = vpack.c.b16 %v3209, %v3201
        %v3858 = vpack.c.b16 %v3210, %v3202
        %v3859 = vpack.c.b16 %v3211, %v3203
        %v3860 = vpack.c.b16 %v3220, %v3212
        %v3861 = vpack.c.b16 %v3221, %v3213
        %v3862 = vpack.c.b16 %v3222, %v3214
        %v3863 = vpack.c.b16 %v3223, %v3215
        %v3864 = vpack.c.b16 %v3224, %v3216
        %v3865 = vpack.c.b16 %v3225, %v3217
        %v3866 = vpack.c.b16 %v3226, %v3218
        %v3867 = vpack.c.b16 %v3227, %v3219
        %v3868 = vpack.c.b16 %v3236, %v3228
        %v3869 = vpack.c.b16 %v3237, %v3229
        %v3870 = vpack.c.b16 %v3238, %v3230
        %v3871 = vpack.c.b16 %v3239, %v3231
        %v3872 = vpack.c.b16 %v3240, %v3232
        %v3873 = vpack.c.b16 %v3241, %v3233
        %v3874 = vpack.c.b16 %v3242, %v3234
        %v3875 = vpack.c.b16 %v3243, %v3235
        %v3876 = vpack.c.b16 %v3252, %v3244
        %v3877 = vpack.c.b16 %v3253, %v3245
        %v3878 = vpack.c.b16 %v3254, %v3246
        %v3879 = vpack.c.b16 %v3255, %v3247
        %v3880 = vpack.c.b16 %v3256, %v3248
        %v3881 = vpack.c.b16 %v3257, %v3249
        %v3882 = vpack.c.b16 %v3258, %v3250
        %v3883 = vpack.c.b16 %v3259, %v3251
        %v3884 = vpack.c.b16 %v3268, %v3260
        %v3885 = vpack.c.b16 %v3269, %v3261
        %v3886 = vpack.c.b16 %v3270, %v3262
        %v3887 = vpack.c.b16 %v3271, %v3263
        %v3888 = vpack.c.b16 %v3272, %v3264
        %v3889 = vpack.c.b16 %v3273, %v3265
        %v3890 = vpack.c.b16 %v3274, %v3266
        %v3891 = vpack.c.b16 %v3275, %v3267
        %v3892 = vpack.c.b16 %v3284, %v3276
        %v3893 = vpack.c.b16 %v3285, %v3277
        %v3894 = vpack.c.b16 %v3286, %v3278
        %v3895 = vpack.c.b16 %v3287, %v3279
        %v3896 = vpack.c.b16 %v3288, %v3280
        %v3897 = vpack.c.b16 %v3289, %v3281
        %v3898 = vpack.c.b16 %v3290, %v3282
        %v3899 = vpack.c.b16 %v3291, %v3283
        %v3900 = vpack.c.b16 %v3300, %v3292
        %v3901 = vpack.c.b16 %v3301, %v3293
        %v3902 = vpack.c.b16 %v3302, %v3294
        %v3903 = vpack.c.b16 %v3303, %v3295
        %v3904 = vpack.c.b16 %v3304, %v3296
        %v3905 = vpack.c.b16 %v3305, %v3297
        %v3906 = vpack.c.b16 %v3306, %v3298
        %v3907 = vpack.c.b16 %v3307, %v3299
        %v3908 = vpack.c.b16 %v3316, %v3308
        %v3909 = vpack.c.b16 %v3317, %v3309
        %v3910 = vpack.c.b16 %v3318, %v3310
        %v3911 = vpack.c.b16 %v3319, %v3311
        %v3912 = vpack.c.b16 %v3320, %v3312
        %v3913 = vpack.c.b16 %v3321, %v3313
        %v3914 = vpack.c.b16 %v3322, %v3314
        %v3915 = vpack.c.b16 %v3323, %v3315
        %v3916 = vpack.c.b16 %v3332, %v3324
        %v3917 = vpack.c.b16 %v3333, %v3325
        %v3918 = vpack.c.b16 %v3334, %v3326
        %v3919 = vpack.c.b16 %v3335, %v3327
        %v3920 = vpack.c.b16 %v3336, %v3328
        %v3921 = vpack.c.b16 %v3337, %v3329
        %v3922 = vpack.c.b16 %v3338, %v3330
        %v3923 = vpack.c.b16 %v3339, %v3331
        %v3924 = vpack.c.b16 %v3348, %v3340
        %v3925 = vpack.c.b16 %v3349, %v3341
        %v3926 = vpack.c.b16 %v3350, %v3342
        %v3927 = vpack.c.b16 %v3351, %v3343
        %v3928 = vpack.c.b16 %v3352, %v3344
        %v3929 = vpack.c.b16 %v3353, %v3345
        %v3930 = vpack.c.b16 %v3354, %v3346
        %v3931 = vpack.c.b16 %v3355, %v3347
        %v3932 = vpack.c.b16 %v3364, %v3356
        %v3933 = vpack.c.b16 %v3365, %v3357
        %v3934 = vpack.c.b16 %v3366, %v3358
        %v3935 = vpack.c.b16 %v3367, %v3359
        %v3936 = vpack.c.b16 %v3368, %v3360
        %v3937 = vpack.c.b16 %v3369, %v3361
        %v3938 = vpack.c.b16 %v3370, %v3362
        %v3939 = vpack.c.b16 %v3371, %v3363
        %v3940 = vpack.c.b16 %v3380, %v3372
        %v3941 = vpack.c.b16 %v3381, %v3373
        %v3942 = vpack.c.b16 %v3382, %v3374
        %v3943 = vpack.c.b16 %v3383, %v3375
        %v3944 = vpack.c.b16 %v3384, %v3376
        %v3945 = vpack.c.b16 %v3385, %v3377
        %v3946 = vpack.c.b16 %v3386, %v3378
        %v3947 = vpack.c.b16 %v3387, %v3379
        %v3948 = vpack.c.b16 %v3396, %v3388
        %v3949 = vpack.c.b16 %v3397, %v3389
        %v3950 = vpack.c.b16 %v3398, %v3390
        %v3951 = vpack.c.b16 %v3399, %v3391
        %v3952 = vpack.c.b16 %v3400, %v3392
        %v3953 = vpack.c.b16 %v3401, %v3393
        %v3954 = vpack.c.b16 %v3402, %v3394
        %v3955 = vpack.c.b16 %v3403, %v3395
        %v3956 = vpack.c.b16 %v3412, %v3404
        %v3957 = vpack.c.b16 %v3413, %v3405
        %v3958 = vpack.c.b16 %v3414, %v3406
        %v3959 = vpack.c.b16 %v3415, %v3407
        %v3960 = vpack.c.b16 %v3416, %v3408
        %v3961 = vpack.c.b16 %v3417, %v3409
        %v3962 = vpack.c.b16 %v3418, %v3410
        %v3963 = vpack.c.b16 %v3419, %v3411
        %v3964 = vpack.c.b16 %v3428, %v3420
        %v3965 = vpack.c.b16 %v3429, %v3421
        %v3966 = vpack.c.b16 %v3430, %v3422
        %v3967 = vpack.c.b16 %v3431, %v3423
        %v3968 = vpack.c.b16 %v3432, %v3424
        %v3969 = vpack.c.b16 %v3433, %v3425
        %v3970 = vpack.c.b16 %v3434, %v3426
        %v3971 = vpack.c.b16 %v3435, %v3427
        %v3972 = vpack.c.b16 %v3444, %v3436
        %v3973 = vpack.c.b16 %v3445, %v3437
        %v3974 = vpack.c.b16 %v3446, %v3438
        %v3975 = vpack.c.b16 %v3447, %v3439
        %v3976 = vpack.c.b16 %v3448, %v3440
        %v3977 = vpack.c.b16 %v3449, %v3441
        %v3978 = vpack.c.b16 %v3450, %v3442
        %v3979 = vpack.c.b16 %v3451, %v3443
        %v3980 = vpack.c.b16 %v3460, %v3452
        %v3981 = vpack.c.b16 %v3461, %v3453
        %v3982 = vpack.c.b16 %v3462, %v3454
        %v3983 = vpack.c.b16 %v3463, %v3455
        %v3984 = vpack.c.b16 %v3464, %v3456
        %v3985 = vpack.c.b16 %v3465, %v3457
        %v3986 = vpack.c.b16 %v3466, %v3458
        %v3987 = vpack.c.b16 %v3467, %v3459
        %v3988 = vpack.c.b16 %v3476, %v3468
        %v3989 = vpack.c.b16 %v3477, %v3469
        %v3990 = vpack.c.b16 %v3478, %v3470
        %v3991 = vpack.c.b16 %v3479, %v3471
        %v3992 = vpack.c.b16 %v3480, %v3472
        %v3993 = vpack.c.b16 %v3481, %v3473
        %v3994 = vpack.c.b16 %v3482, %v3474
        %v3995 = vpack.c.b16 %v3483, %v3475
        %4508 = vmatprep.subr.bf16.mxu0 %v3485
        %4509 = vmatpush1.bf16.msra.mxu0 %v3484
        %4510 = vmatprep.subr.bf16.mxu0 %v3493
        %4511 = vmatpush1.bf16.msra.mxu0 %v3492
        %4512 = vmatprep.subr.bf16.mxu0 %v3501
        %4513 = vmatpush1.bf16.msra.mxu0 %v3500
        %4514 = vmatprep.subr.bf16.mxu0 %v3509
        %4515 = vmatpush1.bf16.msra.mxu0 %v3508
        %4516 = vmatprep.subr.bf16.mxu0 %v3517
        %4517 = vmatpush1.bf16.msra.mxu0 %v3516
        %4518 = vmatprep.subr.bf16.mxu0 %v3525
        %4519 = vmatpush1.bf16.msra.mxu0 %v3524
        %4520 = vmatprep.subr.bf16.mxu0 %v3533
        %4521 = vmatpush1.bf16.msra.mxu0 %v3532
        %4522 = vmatprep.subr.bf16.mxu0 %v3541
        %4523 = vmatpush1.bf16.msra.mxu0 %v3540
        %4524 = vmatprep.subr.bf16.mxu0 %v3549
        %4525 = vmatpush1.bf16.msra.mxu0 %v3548
        %4526 = vmatprep.subr.bf16.mxu0 %v3557
        %4527 = vmatpush1.bf16.msra.mxu0 %v3556
        %4528 = vmatprep.subr.bf16.mxu0 %v3565
        %4529 = vmatpush1.bf16.msra.mxu0 %v3564
        %4530 = vmatprep.subr.bf16.mxu0 %v3573
        %4531 = vmatpush1.bf16.msra.mxu0 %v3572
        %4532 = vmatprep.subr.bf16.mxu0 %v3581
        %4533 = vmatpush1.bf16.msra.mxu0 %v3580
        %4534 = vmatprep.subr.bf16.mxu0 %v3589
        %4535 = vmatpush1.bf16.msra.mxu0 %v3588
        %4536 = vmatprep.subr.bf16.mxu0 %v3597
        %4537 = vmatpush1.bf16.msra.mxu0 %v3596
        %4538 = vmatprep.subr.bf16.mxu0 %v3605
        %4539 = vmatpush1.bf16.msra.mxu0 %v3604
        %4540 = vmatprep.mubr.bf16.mxu0 %v1387
        %4541 = vmatmul.mubr.bf16.gmra.mrb[0].mxu0 %v1386
        %v4542 = vpop.f32.mrb[0].mxu0
        %v4543 = vadd.f32 %v1911, %v4542
        %v4544 = vpop.f32.mrb[0].mxu0
        %v4545 = vadd.f32 %v1915, %v4544
        %v4546 = vpop.f32.mrb[0].mxu0
        %v4547 = vadd.f32 %v1911, %v4546
        %v4548 = vpop.f32.mrb[0].mxu0
        %v4549 = vadd.f32 %v1915, %v4548
        %4550 = vdwg.mxu0
        %4551 = vmatprep.subr.bf16.mxu0 %v3613
        %4552 = vmatpush1.bf16.msra.mxu0 %v3612
        %4553 = vmatprep.subr.bf16.mxu0 %v3621
        %4554 = vmatpush1.bf16.msra.mxu0 %v3620
        %4555 = vmatprep.subr.bf16.mxu0 %v3629
        %4556 = vmatpush1.bf16.msra.mxu0 %v3628
        %4557 = vmatprep.subr.bf16.mxu0 %v3637
        %4558 = vmatpush1.bf16.msra.mxu0 %v3636
        %4559 = vmatprep.subr.bf16.mxu0 %v3645
        %4560 = vmatpush1.bf16.msra.mxu0 %v3644
        %4561 = vmatprep.subr.bf16.mxu0 %v3653
        %4562 = vmatpush1.bf16.msra.mxu0 %v3652
        %4563 = vmatprep.subr.bf16.mxu0 %v3661
        %4564 = vmatpush1.bf16.msra.mxu0 %v3660
        %4565 = vmatprep.subr.bf16.mxu0 %v3669
        %4566 = vmatpush1.bf16.msra.mxu0 %v3668
        %4567 = vmatprep.subr.bf16.mxu0 %v3677
        %4568 = vmatpush1.bf16.msra.mxu0 %v3676
        %4569 = vmatprep.subr.bf16.mxu0 %v3685
        %4570 = vmatpush1.bf16.msra.mxu0 %v3684
        %4571 = vmatprep.subr.bf16.mxu0 %v3693
        %4572 = vmatpush1.bf16.msra.mxu0 %v3692
        %4573 = vmatprep.subr.bf16.mxu0 %v3701
        %4574 = vmatpush1.bf16.msra.mxu0 %v3700
        %4575 = vmatprep.subr.bf16.mxu0 %v3709
        %4576 = vmatpush1.bf16.msra.mxu0 %v3708
        %4577 = vmatprep.subr.bf16.mxu0 %v3717
        %4578 = vmatpush1.bf16.msra.mxu0 %v3716
        %4579 = vmatprep.subr.bf16.mxu0 %v3725
        %4580 = vmatpush1.bf16.msra.mxu0 %v3724
        %4581 = vmatprep.subr.bf16.mxu0 %v3733
        %4582 = vmatpush1.bf16.msra.mxu0 %v3732
        %4583 = vmatprep.mubr.bf16.mxu0 %v1389
        %4584 = vmatmul.mubr.bf16.gmra.mrb[0].mxu0 %v1388
        %v4585 = vpop.f32.mrb[0].mxu0
        %v4586 = vadd.f32 %v4543, %v4585
        %v4587 = vpop.f32.mrb[0].mxu0
        %v4588 = vadd.f32 %v4545, %v4587
        %v4589 = vpop.f32.mrb[0].mxu0
        %v4590 = vadd.f32 %v4547, %v4589
        %v4591 = vpop.f32.mrb[0].mxu0
        %v4592 = vadd.f32 %v4549, %v4591
        %4593 = vdwg.mxu0
        %4594 = vmatprep.subr.bf16.mxu0 %v3741
        %4595 = vmatpush1.bf16.msra.mxu0 %v3740
        %4596 = vmatprep.subr.bf16.mxu0 %v3749
        %4597 = vmatpush1.bf16.msra.mxu0 %v3748
        %4598 = vmatprep.subr.bf16.mxu0 %v3757
        %4599 = vmatpush1.bf16.msra.mxu0 %v3756
        %4600 = vmatprep.subr.bf16.mxu0 %v3765
        %4601 = vmatpush1.bf16.msra.mxu0 %v3764
        %4602 = vmatprep.subr.bf16.mxu0 %v3773
        %4603 = vmatpush1.bf16.msra.mxu0 %v3772
        %4604 = vmatprep.subr.bf16.mxu0 %v3781
        %4605 = vmatpush1.bf16.msra.mxu0 %v3780
        %4606 = vmatprep.subr.bf16.mxu0 %v3789
        %4607 = vmatpush1.bf16.msra.mxu0 %v3788
        %4608 = vmatprep.subr.bf16.mxu0 %v3797
        %4609 = vmatpush1.bf16.msra.mxu0 %v3796
        %4610 = vmatprep.subr.bf16.mxu0 %v3805
        %4611 = vmatpush1.bf16.msra.mxu0 %v3804
        %4612 = vmatprep.subr.bf16.mxu0 %v3813
        %4613 = vmatpush1.bf16.msra.mxu0 %v3812
        %4614 = vmatprep.subr.bf16.mxu0 %v3821
        %4615 = vmatpush1.bf16.msra.mxu0 %v3820
        %4616 = vmatprep.subr.bf16.mxu0 %v3829
        %4617 = vmatpush1.bf16.msra.mxu0 %v3828
        %4618 = vmatprep.subr.bf16.mxu0 %v3837
        %4619 = vmatpush1.bf16.msra.mxu0 %v3836
        %4620 = vmatprep.subr.bf16.mxu0 %v3845
        %4621 = vmatpush1.bf16.msra.mxu0 %v3844
        %4622 = vmatprep.subr.bf16.mxu0 %v3853
        %4623 = vmatpush1.bf16.msra.mxu0 %v3852
        %4624 = vmatprep.subr.bf16.mxu0 %v3861
        %4625 = vmatpush1.bf16.msra.mxu0 %v3860
        %4626 = vmatprep.mubr.bf16.mxu0 %v1391
        %4627 = vmatmul.mubr.bf16.gmra.mrb[0].mxu0 %v1390
        %v4628 = vpop.f32.mrb[0].mxu0
        %v4629 = vadd.f32 %v4586, %v4628
        %v4630 = vpop.f32.mrb[0].mxu0
        %v4631 = vadd.f32 %v4588, %v4630
        %v4632 = vpop.f32.mrb[0].mxu0
        %v4633 = vadd.f32 %v4590, %v4632
        %v4634 = vpop.f32.mrb[0].mxu0
        %v4635 = vadd.f32 %v4592, %v4634
        %4636 = vdwg.mxu0
        %4637 = vmatprep.subr.bf16.mxu0 %v3869
        %4638 = vmatpush1.bf16.msra.mxu0 %v3868
        %4639 = vmatprep.subr.bf16.mxu0 %v3877
        %4640 = vmatpush1.bf16.msra.mxu0 %v3876
        %4641 = vmatprep.subr.bf16.mxu0 %v3885
        %4642 = vmatpush1.bf16.msra.mxu0 %v3884
        %4643 = vmatprep.subr.bf16.mxu0 %v3893
        %4644 = vmatpush1.bf16.msra.mxu0 %v3892
        %4645 = vmatprep.subr.bf16.mxu0 %v3901
        %4646 = vmatpush1.bf16.msra.mxu0 %v3900
        %4647 = vmatprep.subr.bf16.mxu0 %v3909
        %4648 = vmatpush1.bf16.msra.mxu0 %v3908
        %4649 = vmatprep.subr.bf16.mxu0 %v3917
        %4650 = vmatpush1.bf16.msra.mxu0 %v3916
        %4651 = vmatprep.subr.bf16.mxu0 %v3925
        %4652 = vmatpush1.bf16.msra.mxu0 %v3924
        %4653 = vmatprep.subr.bf16.mxu0 %v3933
        %4654 = vmatpush1.bf16.msra.mxu0 %v3932
        %4655 = vmatprep.subr.bf16.mxu0 %v3941
        %4656 = vmatpush1.bf16.msra.mxu0 %v3940
        %4657 = vmatprep.subr.bf16.mxu0 %v3949
        %4658 = vmatpush1.bf16.msra.mxu0 %v3948
        %4659 = vmatprep.subr.bf16.mxu0 %v3957
        %4660 = vmatpush1.bf16.msra.mxu0 %v3956
        %4661 = vmatprep.subr.bf16.mxu0 %v3965
        %4662 = vmatpush1.bf16.msra.mxu0 %v3964
        %4663 = vmatprep.subr.bf16.mxu0 %v3973
        %4664 = vmatpush1.bf16.msra.mxu0 %v3972
        %4665 = vmatprep.subr.bf16.mxu0 %v3981
        %4666 = vmatpush1.bf16.msra.mxu0 %v3980
        %4667 = vmatprep.subr.bf16.mxu0 %v3989
        %4668 = vmatpush1.bf16.msra.mxu0 %v3988
        %4669 = vmatprep.mubr.bf16.mxu0 %v1393
        %4670 = vmatmul.mubr.bf16.gmra.mrb[0].mxu0 %v1392
        %v4671 = vpop.f32.mrb[0].mxu0
        %v4672 = vadd.f32 %v4629, %v4671
        %v4673 = vpop.f32.mrb[0].mxu0
        %v4674 = vadd.f32 %v4631, %v4673
        %v4675 = vpop.f32.mrb[0].mxu0
        %v4676 = vadd.f32 %v4633, %v4675
        %v4677 = vpop.f32.mrb[0].mxu0
        %v4678 = vadd.f32 %v4635, %v4677
        %4679 = vdwg.mxu0
        %4680 = vmatprep.subr.bf16.mxu0 %v3487
        %4681 = vmatpush1.bf16.msra.mxu0 %v3486
        %4682 = vmatprep.subr.bf16.mxu0 %v3495
        %4683 = vmatpush1.bf16.msra.mxu0 %v3494
        %4684 = vmatprep.subr.bf16.mxu0 %v3503
        %4685 = vmatpush1.bf16.msra.mxu0 %v3502
        %4686 = vmatprep.subr.bf16.mxu0 %v3511
        %4687 = vmatpush1.bf16.msra.mxu0 %v3510
        %4688 = vmatprep.subr.bf16.mxu0 %v3519
        %4689 = vmatpush1.bf16.msra.mxu0 %v3518
        %4690 = vmatprep.subr.bf16.mxu0 %v3527
        %4691 = vmatpush1.bf16.msra.mxu0 %v3526
        %4692 = vmatprep.subr.bf16.mxu0 %v3535
        %4693 = vmatpush1.bf16.msra.mxu0 %v3534
        %4694 = vmatprep.subr.bf16.mxu0 %v3543
        %4695 = vmatpush1.bf16.msra.mxu0 %v3542
        %4696 = vmatprep.subr.bf16.mxu0 %v3551
        %4697 = vmatpush1.bf16.msra.mxu0 %v3550
        %4698 = vmatprep.subr.bf16.mxu0 %v3559
        %4699 = vmatpush1.bf16.msra.mxu0 %v3558
        %4700 = vmatprep.subr.bf16.mxu0 %v3567
        %4701 = vmatpush1.bf16.msra.mxu0 %v3566
        %4702 = vmatprep.subr.bf16.mxu0 %v3575
        %4703 = vmatpush1.bf16.msra.mxu0 %v3574
        %4704 = vmatprep.subr.bf16.mxu0 %v3583
        %4705 = vmatpush1.bf16.msra.mxu0 %v3582
        %4706 = vmatprep.subr.bf16.mxu0 %v3591
        %4707 = vmatpush1.bf16.msra.mxu0 %v3590
        %4708 = vmatprep.subr.bf16.mxu0 %v3599
        %4709 = vmatpush1.bf16.msra.mxu0 %v3598
        %4710 = vmatprep.subr.bf16.mxu0 %v3607
        %4711 = vmatpush1.bf16.msra.mxu0 %v3606
        %4712 = vmatprep.mubr.bf16.mxu0 %v1387
        %4713 = vmatmul.mubr.bf16.gmra.mrb[0].mxu0 %v1386
        %v4714 = vpop.f32.mrb[0].mxu0
        %v4715 = vadd.f32 %v1919, %v4714
        %v4716 = vpop.f32.mrb[0].mxu0
        %v4717 = vadd.f32 %v1923, %v4716
        %v4718 = vpop.f32.mrb[0].mxu0
        %v4719 = vadd.f32 %v1919, %v4718
        %v4720 = vpop.f32.mrb[0].mxu0
        %v4721 = vadd.f32 %v1923, %v4720
        %4722 = vdwg.mxu0
        %4723 = vmatprep.subr.bf16.mxu0 %v3615
        %4724 = vmatpush1.bf16.msra.mxu0 %v3614
        %4725 = vmatprep.subr.bf16.mxu0 %v3623
        %4726 = vmatpush1.bf16.msra.mxu0 %v3622
        %4727 = vmatprep.subr.bf16.mxu0 %v3631
        %4728 = vmatpush1.bf16.msra.mxu0 %v3630
        %4729 = vmatprep.subr.bf16.mxu0 %v3639
        %4730 = vmatpush1.bf16.msra.mxu0 %v3638
        %4731 = vmatprep.subr.bf16.mxu0 %v3647
        %4732 = vmatpush1.bf16.msra.mxu0 %v3646
        %4733 = vmatprep.subr.bf16.mxu0 %v3655
        %4734 = vmatpush1.bf16.msra.mxu0 %v3654
        %4735 = vmatprep.subr.bf16.mxu0 %v3663
        %4736 = vmatpush1.bf16.msra.mxu0 %v3662
        %4737 = vmatprep.subr.bf16.mxu0 %v3671
        %4738 = vmatpush1.bf16.msra.mxu0 %v3670
        %4739 = vmatprep.subr.bf16.mxu0 %v3679
        %4740 = vmatpush1.bf16.msra.mxu0 %v3678
        %4741 = vmatprep.subr.bf16.mxu0 %v3687
        %4742 = vmatpush1.bf16.msra.mxu0 %v3686
        %4743 = vmatprep.subr.bf16.mxu0 %v3695
        %4744 = vmatpush1.bf16.msra.mxu0 %v3694
        %4745 = vmatprep.subr.bf16.mxu0 %v3703
        %4746 = vmatpush1.bf16.msra.mxu0 %v3702
        %4747 = vmatprep.subr.bf16.mxu0 %v3711
        %4748 = vmatpush1.bf16.msra.mxu0 %v3710
        %4749 = vmatprep.subr.bf16.mxu0 %v3719
        %4750 = vmatpush1.bf16.msra.mxu0 %v3718
        %4751 = vmatprep.subr.bf16.mxu0 %v3727
        %4752 = vmatpush1.bf16.msra.mxu0 %v3726
        %4753 = vmatprep.subr.bf16.mxu0 %v3735
        %4754 = vmatpush1.bf16.msra.mxu0 %v3734
        %4755 = vmatprep.mubr.bf16.mxu0 %v1389
        %4756 = vmatmul.mubr.bf16.gmra.mrb[0].mxu0 %v1388
        %v4757 = vpop.f32.mrb[0].mxu0
        %v4758 = vadd.f32 %v4715, %v4757
        %v4759 = vpop.f32.mrb[0].mxu0
        %v4760 = vadd.f32 %v4717, %v4759
        %v4761 = vpop.f32.mrb[0].mxu0
        %v4762 = vadd.f32 %v4719, %v4761
        %v4763 = vpop.f32.mrb[0].mxu0
        %v4764 = vadd.f32 %v4721, %v4763
        %4765 = vdwg.mxu0
        %4766 = vmatprep.subr.bf16.mxu0 %v3743
        %4767 = vmatpush1.bf16.msra.mxu0 %v3742
        %4768 = vmatprep.subr.bf16.mxu0 %v3751
        %4769 = vmatpush1.bf16.msra.mxu0 %v3750
        %4770 = vmatprep.subr.bf16.mxu0 %v3759
        %4771 = vmatpush1.bf16.msra.mxu0 %v3758
        %4772 = vmatprep.subr.bf16.mxu0 %v3767
        %4773 = vmatpush1.bf16.msra.mxu0 %v3766
        %4774 = vmatprep.subr.bf16.mxu0 %v3775
        %4775 = vmatpush1.bf16.msra.mxu0 %v3774
        %4776 = vmatprep.subr.bf16.mxu0 %v3783
        %4777 = vmatpush1.bf16.msra.mxu0 %v3782
        %4778 = vmatprep.subr.bf16.mxu0 %v3791
        %4779 = vmatpush1.bf16.msra.mxu0 %v3790
        %4780 = vmatprep.subr.bf16.mxu0 %v3799
        %4781 = vmatpush1.bf16.msra.mxu0 %v3798
        %4782 = vmatprep.subr.bf16.mxu0 %v3807
        %4783 = vmatpush1.bf16.msra.mxu0 %v3806
        %4784 = vmatprep.subr.bf16.mxu0 %v3815
        %4785 = vmatpush1.bf16.msra.mxu0 %v3814
        %4786 = vmatprep.subr.bf16.mxu0 %v3823
        %4787 = vmatpush1.bf16.msra.mxu0 %v3822
        %4788 = vmatprep.subr.bf16.mxu0 %v3831
        %4789 = vmatpush1.bf16.msra.mxu0 %v3830
        %4790 = vmatprep.subr.bf16.mxu0 %v3839
        %4791 = vmatpush1.bf16.msra.mxu0 %v3838
        %4792 = vmatprep.subr.bf16.mxu0 %v3847
        %4793 = vmatpush1.bf16.msra.mxu0 %v3846
        %4794 = vmatprep.subr.bf16.mxu0 %v3855
        %4795 = vmatpush1.bf16.msra.mxu0 %v3854
        %4796 = vmatprep.subr.bf16.mxu0 %v3863
        %4797 = vmatpush1.bf16.msra.mxu0 %v3862
        %4798 = vmatprep.mubr.bf16.mxu0 %v1391
        %4799 = vmatmul.mubr.bf16.gmra.mrb[0].mxu0 %v1390
        %v4800 = vpop.f32.mrb[0].mxu0
        %v4801 = vadd.f32 %v4758, %v4800
        %v4802 = vpop.f32.mrb[0].mxu0
        %v4803 = vadd.f32 %v4760, %v4802
        %v4804 = vpop.f32.mrb[0].mxu0
        %v4805 = vadd.f32 %v4762, %v4804
        %v4806 = vpop.f32.mrb[0].mxu0
        %v4807 = vadd.f32 %v4764, %v4806
        %4808 = vdwg.mxu0
        %4809 = vmatprep.subr.bf16.mxu0 %v3871
        %4810 = vmatpush1.bf16.msra.mxu0 %v3870
        %4811 = vmatprep.subr.bf16.mxu0 %v3879
        %4812 = vmatpush1.bf16.msra.mxu0 %v3878
        %4813 = vmatprep.subr.bf16.mxu0 %v3887
        %4814 = vmatpush1.bf16.msra.mxu0 %v3886
        %4815 = vmatprep.subr.bf16.mxu0 %v3895
        %4816 = vmatpush1.bf16.msra.mxu0 %v3894
        %4817 = vmatprep.subr.bf16.mxu0 %v3903
        %4818 = vmatpush1.bf16.msra.mxu0 %v3902
        %4819 = vmatprep.subr.bf16.mxu0 %v3911
        %4820 = vmatpush1.bf16.msra.mxu0 %v3910
        %4821 = vmatprep.subr.bf16.mxu0 %v3919
        %4822 = vmatpush1.bf16.msra.mxu0 %v3918
        %4823 = vmatprep.subr.bf16.mxu0 %v3927
        %4824 = vmatpush1.bf16.msra.mxu0 %v3926
        %4825 = vmatprep.subr.bf16.mxu0 %v3935
        %4826 = vmatpush1.bf16.msra.mxu0 %v3934
        %4827 = vmatprep.subr.bf16.mxu0 %v3943
        %4828 = vmatpush1.bf16.msra.mxu0 %v3942
        %4829 = vmatprep.subr.bf16.mxu0 %v3951
        %4830 = vmatpush1.bf16.msra.mxu0 %v3950
        %4831 = vmatprep.subr.bf16.mxu0 %v3959
        %4832 = vmatpush1.bf16.msra.mxu0 %v3958
        %4833 = vmatprep.subr.bf16.mxu0 %v3967
        %4834 = vmatpush1.bf16.msra.mxu0 %v3966
        %4835 = vmatprep.subr.bf16.mxu0 %v3975
        %4836 = vmatpush1.bf16.msra.mxu0 %v3974
        %4837 = vmatprep.subr.bf16.mxu0 %v3983
        %4838 = vmatpush1.bf16.msra.mxu0 %v3982
        %4839 = vmatprep.subr.bf16.mxu0 %v3991
        %4840 = vmatpush1.bf16.msra.mxu0 %v3990
        %4841 = vmatprep.mubr.bf16.mxu0 %v1393
        %4842 = vmatmul.mubr.bf16.gmra.mrb[0].mxu0 %v1392
        %v4843 = vpop.f32.mrb[0].mxu0
        %v4844 = vadd.f32 %v4801, %v4843
        %v4845 = vpop.f32.mrb[0].mxu0
        %v4846 = vadd.f32 %v4803, %v4845
        %v4847 = vpop.f32.mrb[0].mxu0
        %v4848 = vadd.f32 %v4805, %v4847
        %v4849 = vpop.f32.mrb[0].mxu0
        %v4850 = vadd.f32 %v4807, %v4849
        %4851 = vdwg.mxu0
        %4852 = vmatprep.subr.bf16.mxu0 %v3489
        %4853 = vmatpush1.bf16.msra.mxu0 %v3488
        %4854 = vmatprep.subr.bf16.mxu0 %v3497
        %4855 = vmatpush1.bf16.msra.mxu0 %v3496
        %4856 = vmatprep.subr.bf16.mxu0 %v3505
        %4857 = vmatpush1.bf16.msra.mxu0 %v3504
        %4858 = vmatprep.subr.bf16.mxu0 %v3513
        %4859 = vmatpush1.bf16.msra.mxu0 %v3512
        %4860 = vmatprep.subr.bf16.mxu0 %v3521
        %4861 = vmatpush1.bf16.msra.mxu0 %v3520
        %4862 = vmatprep.subr.bf16.mxu0 %v3529
        %4863 = vmatpush1.bf16.msra.mxu0 %v3528
        %4864 = vmatprep.subr.bf16.mxu0 %v3537
        %4865 = vmatpush1.bf16.msra.mxu0 %v3536
        %4866 = vmatprep.subr.bf16.mxu0 %v3545
        %4867 = vmatpush1.bf16.msra.mxu0 %v3544
        %4868 = vmatprep.subr.bf16.mxu0 %v3553
        %4869 = vmatpush1.bf16.msra.mxu0 %v3552
        %4870 = vmatprep.subr.bf16.mxu0 %v3561
        %4871 = vmatpush1.bf16.msra.mxu0 %v3560
        %4872 = vmatprep.subr.bf16.mxu0 %v3569
        %4873 = vmatpush1.bf16.msra.mxu0 %v3568
        %4874 = vmatprep.subr.bf16.mxu0 %v3577
        %4875 = vmatpush1.bf16.msra.mxu0 %v3576
        %4876 = vmatprep.subr.bf16.mxu0 %v3585
        %4877 = vmatpush1.bf16.msra.mxu0 %v3584
        %4878 = vmatprep.subr.bf16.mxu0 %v3593
        %4879 = vmatpush1.bf16.msra.mxu0 %v3592
        %4880 = vmatprep.subr.bf16.mxu0 %v3601
        %4881 = vmatpush1.bf16.msra.mxu0 %v3600
        %4882 = vmatprep.subr.bf16.mxu0 %v3609
        %4883 = vmatpush1.bf16.msra.mxu0 %v3608
        %4884 = vmatprep.mubr.bf16.mxu0 %v1387
        %4885 = vmatmul.mubr.bf16.gmra.mrb[0].mxu0 %v1386
        %v4886 = vpop.f32.mrb[0].mxu0
        %v4887 = vadd.f32 %v1927, %v4886
        %v4888 = vpop.f32.mrb[0].mxu0
        %v4889 = vadd.f32 %v1931, %v4888
        %v4890 = vpop.f32.mrb[0].mxu0
        %v4891 = vadd.f32 %v1927, %v4890
        %v4892 = vpop.f32.mrb[0].mxu0
        %v4893 = vadd.f32 %v1931, %v4892
        %4894 = vdwg.mxu0
        %4895 = vmatprep.subr.bf16.mxu0 %v3617
        %4896 = vmatpush1.bf16.msra.mxu0 %v3616
        %4897 = vmatprep.subr.bf16.mxu0 %v3625
        %4898 = vmatpush1.bf16.msra.mxu0 %v3624
        %4899 = vmatprep.subr.bf16.mxu0 %v3633
        %4900 = vmatpush1.bf16.msra.mxu0 %v3632
        %4901 = vmatprep.subr.bf16.mxu0 %v3641
        %4902 = vmatpush1.bf16.msra.mxu0 %v3640
        %4903 = vmatprep.subr.bf16.mxu0 %v3649
        %4904 = vmatpush1.bf16.msra.mxu0 %v3648
        %4905 = vmatprep.subr.bf16.mxu0 %v3657
        %4906 = vmatpush1.bf16.msra.mxu0 %v3656
        %4907 = vmatprep.subr.bf16.mxu0 %v3665
        %4908 = vmatpush1.bf16.msra.mxu0 %v3664
        %4909 = vmatprep.subr.bf16.mxu0 %v3673
        %4910 = vmatpush1.bf16.msra.mxu0 %v3672
        %4911 = vmatprep.subr.bf16.mxu0 %v3681
        %4912 = vmatpush1.bf16.msra.mxu0 %v3680
        %4913 = vmatprep.subr.bf16.mxu0 %v3689
        %4914 = vmatpush1.bf16.msra.mxu0 %v3688
        %4915 = vmatprep.subr.bf16.mxu0 %v3697
        %4916 = vmatpush1.bf16.msra.mxu0 %v3696
        %4917 = vmatprep.subr.bf16.mxu0 %v3705
        %4918 = vmatpush1.bf16.msra.mxu0 %v3704
        %4919 = vmatprep.subr.bf16.mxu0 %v3713
        %4920 = vmatpush1.bf16.msra.mxu0 %v3712
        %4921 = vmatprep.subr.bf16.mxu0 %v3721
        %4922 = vmatpush1.bf16.msra.mxu0 %v3720
        %4923 = vmatprep.subr.bf16.mxu0 %v3729
        %4924 = vmatpush1.bf16.msra.mxu0 %v3728
        %4925 = vmatprep.subr.bf16.mxu0 %v3737
        %4926 = vmatpush1.bf16.msra.mxu0 %v3736
        %4927 = vmatprep.mubr.bf16.mxu0 %v1389
        %4928 = vmatmul.mubr.bf16.gmra.mrb[0].mxu0 %v1388
        %v4929 = vpop.f32.mrb[0].mxu0
        %v4930 = vadd.f32 %v4887, %v4929
        %v4931 = vpop.f32.mrb[0].mxu0
        %v4932 = vadd.f32 %v4889, %v4931
        %v4933 = vpop.f32.mrb[0].mxu0
        %v4934 = vadd.f32 %v4891, %v4933
        %v4935 = vpop.f32.mrb[0].mxu0
        %v4936 = vadd.f32 %v4893, %v4935
        %4937 = vdwg.mxu0
        %4938 = vmatprep.subr.bf16.mxu0 %v3745
        %4939 = vmatpush1.bf16.msra.mxu0 %v3744
        %4940 = vmatprep.subr.bf16.mxu0 %v3753
        %4941 = vmatpush1.bf16.msra.mxu0 %v3752
        %4942 = vmatprep.subr.bf16.mxu0 %v3761
        %4943 = vmatpush1.bf16.msra.mxu0 %v3760
        %4944 = vmatprep.subr.bf16.mxu0 %v3769
        %4945 = vmatpush1.bf16.msra.mxu0 %v3768
        %4946 = vmatprep.subr.bf16.mxu0 %v3777
        %4947 = vmatpush1.bf16.msra.mxu0 %v3776
        %4948 = vmatprep.subr.bf16.mxu0 %v3785
        %4949 = vmatpush1.bf16.msra.mxu0 %v3784
        %4950 = vmatprep.subr.bf16.mxu0 %v3793
        %4951 = vmatpush1.bf16.msra.mxu0 %v3792
        %4952 = vmatprep.subr.bf16.mxu0 %v3801
        %4953 = vmatpush1.bf16.msra.mxu0 %v3800
        %4954 = vmatprep.subr.bf16.mxu0 %v3809
        %4955 = vmatpush1.bf16.msra.mxu0 %v3808
        %4956 = vmatprep.subr.bf16.mxu0 %v3817
        %4957 = vmatpush1.bf16.msra.mxu0 %v3816
        %4958 = vmatprep.subr.bf16.mxu0 %v3825
        %4959 = vmatpush1.bf16.msra.mxu0 %v3824
        %4960 = vmatprep.subr.bf16.mxu0 %v3833
        %4961 = vmatpush1.bf16.msra.mxu0 %v3832
        %4962 = vmatprep.subr.bf16.mxu0 %v3841
        %4963 = vmatpush1.bf16.msra.mxu0 %v3840
        %4964 = vmatprep.subr.bf16.mxu0 %v3849
        %4965 = vmatpush1.bf16.msra.mxu0 %v3848
        %4966 = vmatprep.subr.bf16.mxu0 %v3857
        %4967 = vmatpush1.bf16.msra.mxu0 %v3856
        %4968 = vmatprep.subr.bf16.mxu0 %v3865
        %4969 = vmatpush1.bf16.msra.mxu0 %v3864
        %4970 = vmatprep.mubr.bf16.mxu0 %v1391
        %4971 = vmatmul.mubr.bf16.gmra.mrb[0].mxu0 %v1390
        %v4972 = vpop.f32.mrb[0].mxu0
        %v4973 = vadd.f32 %v4930, %v4972
        %v4974 = vpop.f32.mrb[0].mxu0
        %v4975 = vadd.f32 %v4932, %v4974
        %v4976 = vpop.f32.mrb[0].mxu0
        %v4977 = vadd.f32 %v4934, %v4976
        %v4978 = vpop.f32.mrb[0].mxu0
        %v4979 = vadd.f32 %v4936, %v4978
        %4980 = vdwg.mxu0
        %4981 = vmatprep.subr.bf16.mxu0 %v3873
        %4982 = vmatpush1.bf16.msra.mxu0 %v3872
        %4983 = vmatprep.subr.bf16.mxu0 %v3881
        %4984 = vmatpush1.bf16.msra.mxu0 %v3880
        %4985 = vmatprep.subr.bf16.mxu0 %v3889
        %4986 = vmatpush1.bf16.msra.mxu0 %v3888
        %4987 = vmatprep.subr.bf16.mxu0 %v3897
        %4988 = vmatpush1.bf16.msra.mxu0 %v3896
        %4989 = vmatprep.subr.bf16.mxu0 %v3905
        %4990 = vmatpush1.bf16.msra.mxu0 %v3904
        %4991 = vmatprep.subr.bf16.mxu0 %v3913
        %4992 = vmatpush1.bf16.msra.mxu0 %v3912
        %4993 = vmatprep.subr.bf16.mxu0 %v3921
        %4994 = vmatpush1.bf16.msra.mxu0 %v3920
        %4995 = vmatprep.subr.bf16.mxu0 %v3929
        %4996 = vmatpush1.bf16.msra.mxu0 %v3928
        %4997 = vmatprep.subr.bf16.mxu0 %v3937
        %4998 = vmatpush1.bf16.msra.mxu0 %v3936
        %4999 = vmatprep.subr.bf16.mxu0 %v3945
        %5000 = vmatpush1.bf16.msra.mxu0 %v3944
        %5001 = vmatprep.subr.bf16.mxu0 %v3953
        %5002 = vmatpush1.bf16.msra.mxu0 %v3952
        %5003 = vmatprep.subr.bf16.mxu0 %v3961
        %5004 = vmatpush1.bf16.msra.mxu0 %v3960
        %5005 = vmatprep.subr.bf16.mxu0 %v3969
        %5006 = vmatpush1.bf16.msra.mxu0 %v3968
        %5007 = vmatprep.subr.bf16.mxu0 %v3977
        %5008 = vmatpush1.bf16.msra.mxu0 %v3976
        %5009 = vmatprep.subr.bf16.mxu0 %v3985
        %5010 = vmatpush1.bf16.msra.mxu0 %v3984
        %5011 = vmatprep.subr.bf16.mxu0 %v3993
        %5012 = vmatpush1.bf16.msra.mxu0 %v3992
        %5013 = vmatprep.mubr.bf16.mxu0 %v1393
        %5014 = vmatmul.mubr.bf16.gmra.mrb[0].mxu0 %v1392
        %v5015 = vpop.f32.mrb[0].mxu0
        %v5016 = vadd.f32 %v4973, %v5015
        %v5017 = vpop.f32.mrb[0].mxu0
        %v5018 = vadd.f32 %v4975, %v5017
        %v5019 = vpop.f32.mrb[0].mxu0
        %v5020 = vadd.f32 %v4977, %v5019
        %v5021 = vpop.f32.mrb[0].mxu0
        %v5022 = vadd.f32 %v4979, %v5021
        %5023 = vdwg.mxu0
        %5024 = vmatprep.subr.bf16.mxu0 %v3491
        %5025 = vmatpush1.bf16.msra.mxu0 %v3490
        %5026 = vmatprep.subr.bf16.mxu0 %v3499
        %5027 = vmatpush1.bf16.msra.mxu0 %v3498
        %5028 = vmatprep.subr.bf16.mxu0 %v3507
        %5029 = vmatpush1.bf16.msra.mxu0 %v3506
        %5030 = vmatprep.subr.bf16.mxu0 %v3515
        %5031 = vmatpush1.bf16.msra.mxu0 %v3514
        %5032 = vmatprep.subr.bf16.mxu0 %v3523
        %5033 = vmatpush1.bf16.msra.mxu0 %v3522
        %5034 = vmatprep.subr.bf16.mxu0 %v3531
        %5035 = vmatpush1.bf16.msra.mxu0 %v3530
        %5036 = vmatprep.subr.bf16.mxu0 %v3539
        %5037 = vmatpush1.bf16.msra.mxu0 %v3538
        %5038 = vmatprep.subr.bf16.mxu0 %v3547
        %5039 = vmatpush1.bf16.msra.mxu0 %v3546
        %5040 = vmatprep.subr.bf16.mxu0 %v3555
        %5041 = vmatpush1.bf16.msra.mxu0 %v3554
        %5042 = vmatprep.subr.bf16.mxu0 %v3563
        %5043 = vmatpush1.bf16.msra.mxu0 %v3562
        %5044 = vmatprep.subr.bf16.mxu0 %v3571
        %5045 = vmatpush1.bf16.msra.mxu0 %v3570
        %5046 = vmatprep.subr.bf16.mxu0 %v3579
        %5047 = vmatpush1.bf16.msra.mxu0 %v3578
        %5048 = vmatprep.subr.bf16.mxu0 %v3587
        %5049 = vmatpush1.bf16.msra.mxu0 %v3586
        %5050 = vmatprep.subr.bf16.mxu0 %v3595
        %5051 = vmatpush1.bf16.msra.mxu0 %v3594
        %5052 = vmatprep.subr.bf16.mxu0 %v3603
        %5053 = vmatpush1.bf16.msra.mxu0 %v3602
        %5054 = vmatprep.subr.bf16.mxu0 %v3611
        %5055 = vmatpush1.bf16.msra.mxu0 %v3610
        %5056 = vmatprep.mubr.bf16.mxu0 %v1387
        %5057 = vmatmul.mubr.bf16.gmra.mrb[0].mxu0 %v1386
        %v5058 = vpop.f32.mrb[0].mxu0
        %v5059 = vadd.f32 %v1935, %v5058
        %v5060 = vpop.f32.mrb[0].mxu0
        %v5061 = vadd.f32 %v1939, %v5060
        %v5062 = vpop.f32.mrb[0].mxu0
        %v5063 = vadd.f32 %v1935, %v5062
        %v5064 = vpop.f32.mrb[0].mxu0
        %v5065 = vadd.f32 %v1939, %v5064
        %5066 = vdwg.mxu0
        %5067 = vmatprep.subr.bf16.mxu0 %v3619
        %5068 = vmatpush1.bf16.msra.mxu0 %v3618
        %5069 = vmatprep.subr.bf16.mxu0 %v3627
        %5070 = vmatpush1.bf16.msra.mxu0 %v3626
        %5071 = vmatprep.subr.bf16.mxu0 %v3635
        %5072 = vmatpush1.bf16.msra.mxu0 %v3634
        %5073 = vmatprep.subr.bf16.mxu0 %v3643
        %5074 = vmatpush1.bf16.msra.mxu0 %v3642
        %5075 = vmatprep.subr.bf16.mxu0 %v3651
        %5076 = vmatpush1.bf16.msra.mxu0 %v3650
        %5077 = vmatprep.subr.bf16.mxu0 %v3659
        %5078 = vmatpush1.bf16.msra.mxu0 %v3658
        %5079 = vmatprep.subr.bf16.mxu0 %v3667
        %5080 = vmatpush1.bf16.msra.mxu0 %v3666
        %5081 = vmatprep.subr.bf16.mxu0 %v3675
        %5082 = vmatpush1.bf16.msra.mxu0 %v3674
        %5083 = vmatprep.subr.bf16.mxu0 %v3683
        %5084 = vmatpush1.bf16.msra.mxu0 %v3682
        %5085 = vmatprep.subr.bf16.mxu0 %v3691
        %5086 = vmatpush1.bf16.msra.mxu0 %v3690
        %5087 = vmatprep.subr.bf16.mxu0 %v3699
        %5088 = vmatpush1.bf16.msra.mxu0 %v3698
        %5089 = vmatprep.subr.bf16.mxu0 %v3707
        %5090 = vmatpush1.bf16.msra.mxu0 %v3706
        %5091 = vmatprep.subr.bf16.mxu0 %v3715
        %5092 = vmatpush1.bf16.msra.mxu0 %v3714
        %5093 = vmatprep.subr.bf16.mxu0 %v3723
        %5094 = vmatpush1.bf16.msra.mxu0 %v3722
        %5095 = vmatprep.subr.bf16.mxu0 %v3731
        %5096 = vmatpush1.bf16.msra.mxu0 %v3730
        %5097 = vmatprep.subr.bf16.mxu0 %v3739
        %5098 = vmatpush1.bf16.msra.mxu0 %v3738
        %5099 = vmatprep.mubr.bf16.mxu0 %v1389
        %5100 = vmatmul.mubr.bf16.gmra.mrb[0].mxu0 %v1388
        %v5101 = vpop.f32.mrb[0].mxu0
        %v5102 = vadd.f32 %v5059, %v5101
        %v5103 = vpop.f32.mrb[0].mxu0
        %v5104 = vadd.f32 %v5061, %v5103
        %v5105 = vpop.f32.mrb[0].mxu0
        %v5106 = vadd.f32 %v5063, %v5105
        %v5107 = vpop.f32.mrb[0].mxu0
        %v5108 = vadd.f32 %v5065, %v5107
        %5109 = vdwg.mxu0
        %5110 = vmatprep.subr.bf16.mxu0 %v3747
        %5111 = vmatpush1.bf16.msra.mxu0 %v3746
        %5112 = vmatprep.subr.bf16.mxu0 %v3755
        %5113 = vmatpush1.bf16.msra.mxu0 %v3754
        %5114 = vmatprep.subr.bf16.mxu0 %v3763
        %5115 = vmatpush1.bf16.msra.mxu0 %v3762
        %5116 = vmatprep.subr.bf16.mxu0 %v3771
        %5117 = vmatpush1.bf16.msra.mxu0 %v3770
        %5118 = vmatprep.subr.bf16.mxu0 %v3779
        %5119 = vmatpush1.bf16.msra.mxu0 %v3778
        %5120 = vmatprep.subr.bf16.mxu0 %v3787
        %5121 = vmatpush1.bf16.msra.mxu0 %v3786
        %5122 = vmatprep.subr.bf16.mxu0 %v3795
        %5123 = vmatpush1.bf16.msra.mxu0 %v3794
        %5124 = vmatprep.subr.bf16.mxu0 %v3803
        %5125 = vmatpush1.bf16.msra.mxu0 %v3802
        %5126 = vmatprep.subr.bf16.mxu0 %v3811
        %5127 = vmatpush1.bf16.msra.mxu0 %v3810
        %5128 = vmatprep.subr.bf16.mxu0 %v3819
        %5129 = vmatpush1.bf16.msra.mxu0 %v3818
        %5130 = vmatprep.subr.bf16.mxu0 %v3827
        %5131 = vmatpush1.bf16.msra.mxu0 %v3826
        %5132 = vmatprep.subr.bf16.mxu0 %v3835
        %5133 = vmatpush1.bf16.msra.mxu0 %v3834
        %5134 = vmatprep.subr.bf16.mxu0 %v3843
        %5135 = vmatpush1.bf16.msra.mxu0 %v3842
        %5136 = vmatprep.subr.bf16.mxu0 %v3851
        %5137 = vmatpush1.bf16.msra.mxu0 %v3850
        %5138 = vmatprep.subr.bf16.mxu0 %v3859
        %5139 = vmatpush1.bf16.msra.mxu0 %v3858
        %5140 = vmatprep.subr.bf16.mxu0 %v3867
        %5141 = vmatpush1.bf16.msra.mxu0 %v3866
        %5142 = vmatprep.mubr.bf16.mxu0 %v1391
        %5143 = vmatmul.mubr.bf16.gmra.mrb[0].mxu0 %v1390
        %v5144 = vpop.f32.mrb[0].mxu0
        %v5145 = vadd.f32 %v5102, %v5144
        %v5146 = vpop.f32.mrb[0].mxu0
        %v5147 = vadd.f32 %v5104, %v5146
        %v5148 = vpop.f32.mrb[0].mxu0
        %v5149 = vadd.f32 %v5106, %v5148
        %v5150 = vpop.f32.mrb[0].mxu0
        %v5151 = vadd.f32 %v5108, %v5150
        %5152 = vdwg.mxu0
        %5153 = vmatprep.subr.bf16.mxu0 %v3875
        %5154 = vmatpush1.bf16.msra.mxu0 %v3874
        %5155 = vmatprep.subr.bf16.mxu0 %v3883
        %5156 = vmatpush1.bf16.msra.mxu0 %v3882
        %5157 = vmatprep.subr.bf16.mxu0 %v3891
        %5158 = vmatpush1.bf16.msra.mxu0 %v3890
        %5159 = vmatprep.subr.bf16.mxu0 %v3899
        %5160 = vmatpush1.bf16.msra.mxu0 %v3898
        %5161 = vmatprep.subr.bf16.mxu0 %v3907
        %5162 = vmatpush1.bf16.msra.mxu0 %v3906
        %5163 = vmatprep.subr.bf16.mxu0 %v3915
        %5164 = vmatpush1.bf16.msra.mxu0 %v3914
        %5165 = vmatprep.subr.bf16.mxu0 %v3923
        %5166 = vmatpush1.bf16.msra.mxu0 %v3922
        %5167 = vmatprep.subr.bf16.mxu0 %v3931
        %5168 = vmatpush1.bf16.msra.mxu0 %v3930
        %5169 = vmatprep.subr.bf16.mxu0 %v3939
        %5170 = vmatpush1.bf16.msra.mxu0 %v3938
        %5171 = vmatprep.subr.bf16.mxu0 %v3947
        %5172 = vmatpush1.bf16.msra.mxu0 %v3946
        %5173 = vmatprep.subr.bf16.mxu0 %v3955
        %5174 = vmatpush1.bf16.msra.mxu0 %v3954
        %5175 = vmatprep.subr.bf16.mxu0 %v3963
        %5176 = vmatpush1.bf16.msra.mxu0 %v3962
        %5177 = vmatprep.subr.bf16.mxu0 %v3971
        %5178 = vmatpush1.bf16.msra.mxu0 %v3970
        %5179 = vmatprep.subr.bf16.mxu0 %v3979
        %5180 = vmatpush1.bf16.msra.mxu0 %v3978
        %5181 = vmatprep.subr.bf16.mxu0 %v3987
        %5182 = vmatpush1.bf16.msra.mxu0 %v3986
        %5183 = vmatprep.subr.bf16.mxu0 %v3995
        %5184 = vmatpush1.bf16.msra.mxu0 %v3994
        %5185 = vmatprep.mubr.bf16.mxu0 %v1393
        %5186 = vmatmul.mubr.bf16.gmra.mrb[0].mxu0 %v1392
        %v5187 = vpop.f32.mrb[0].mxu0
        %v5188 = vadd.f32 %v5145, %v5187
        %v5189 = vpop.f32.mrb[0].mxu0
        %v5190 = vadd.f32 %v5147, %v5189
        %v5191 = vpop.f32.mrb[0].mxu0
        %v5192 = vadd.f32 %v5149, %v5191
        %v5193 = vpop.f32.mrb[0].mxu0
        %v5194 = vadd.f32 %v5151, %v5193
        %5195 = vdwg.mxu0
        %v5196 = vmax.f32 %v4672, 0.0
        %v5197 = vmax.f32 %v4674, 0.0
        %v5198 = vmax.f32 %v4844, 0.0
        %v5199 = vmax.f32 %v4846, 0.0
        %v5200 = vmax.f32 %v5016, 0.0
        %v5201 = vmax.f32 %v5018, 0.0
        %v5202 = vmax.f32 %v5188, 0.0
        %v5203 = vmax.f32 %v5190, 0.0
        %v5204 = vmax.f32 %v4676, 0.0
        %v5205 = vmax.f32 %v4678, 0.0
        %v5206 = vmax.f32 %v4848, 0.0
        %v5207 = vmax.f32 %v4850, 0.0
        %v5208 = vmax.f32 %v5020, 0.0
        %v5209 = vmax.f32 %v5022, 0.0
        %v5210 = vmax.f32 %v5192, 0.0
        %v5211 = vmax.f32 %v5194, 0.0
        %v5212 = vpack.c.bf16 %v5204, %v5196
        %v5213 = vpack.c.bf16 %v5205, %v5197
        %v5214 = vpack.c.bf16 %v5206, %v5198
        %v5215 = vpack.c.bf16 %v5207, %v5199
        %v5216 = vpack.c.bf16 %v5208, %v5200
        %v5217 = vpack.c.bf16 %v5209, %v5201
        %v5218 = vpack.c.bf16 %v5210, %v5202
        %v5219 = vpack.c.bf16 %v5211, %v5203
        %v5220 = vld [vmem:[#allocation11] sm:$0xf]
        %v5221 = vld [vmem:[#allocation11 + $0x4] sm:$0xf]
        %v5222 = vld [vmem:[#allocation11 + $0x8] sm:$0xf]
        %v5223 = vld [vmem:[#allocation11 + $0xc] sm:$0xf]
        %v5224 = vld [vmem:[#allocation11 + $0x10] sm:$0xf]
        %v5225 = vld [vmem:[#allocation11 + $0x14] sm:$0xf]
        %v5226 = vld [vmem:[#allocation11 + $0x18] sm:$0xf]
        %v5227 = vld [vmem:[#allocation11 + $0x1c] sm:$0xf]
        %v5228 = vld [vmem:[#allocation11 + $0x20] sm:$0xf]
        %v5229 = vld [vmem:[#allocation11 + $0x24] sm:$0xf]
        %v5230 = vld [vmem:[#allocation11 + $0x28] sm:$0xf]
        %v5231 = vld [vmem:[#allocation11 + $0x2c] sm:$0xf]
        %v5232 = vld [vmem:[#allocation11 + $0x30] sm:$0xf]
        %v5233 = vld [vmem:[#allocation11 + $0x34] sm:$0xf]
        %v5234 = vld [vmem:[#allocation11 + $0x38] sm:$0xf]
        %v5235 = vld [vmem:[#allocation11 + $0x3c] sm:$0xf]
        %v5236 = vld [vmem:[#allocation11 + $0x40] sm:$0xf]
        %v5237 = vld [vmem:[#allocation11 + $0x44] sm:$0xf]
        %v5238 = vld [vmem:[#allocation11 + $0x48] sm:$0xf]
        %v5239 = vld [vmem:[#allocation11 + $0x4c] sm:$0xf]
        %v5240 = vld [vmem:[#allocation11 + $0x50] sm:$0xf]
        %v5241 = vld [vmem:[#allocation11 + $0x54] sm:$0xf]
        %v5242 = vld [vmem:[#allocation11 + $0x58] sm:$0xf]
        %v5243 = vld [vmem:[#allocation11 + $0x5c] sm:$0xf]
        %v5244 = vld [vmem:[#allocation11 + $0x60] sm:$0xf]
        %v5245 = vld [vmem:[#allocation11 + $0x64] sm:$0xf]
        %v5246 = vld [vmem:[#allocation11 + $0x68] sm:$0xf]
        %v5247 = vld [vmem:[#allocation11 + $0x6c] sm:$0xf]
        %v5248 = vld [vmem:[#allocation11 + $0x70] sm:$0xf]
        %v5249 = vld [vmem:[#allocation11 + $0x74] sm:$0xf]
        %v5250 = vld [vmem:[#allocation11 + $0x78] sm:$0xf]
        %v5251 = vld [vmem:[#allocation11 + $0x7c] sm:$0xf]
        %v5252 = vld [vmem:[#allocation11 + $0x80] sm:$0xf]
        %v5253 = vld [vmem:[#allocation11 + $0x84] sm:$0xf]
        %v5254 = vld [vmem:[#allocation11 + $0x88] sm:$0xf]
        %v5255 = vld [vmem:[#allocation11 + $0x8c] sm:$0xf]
        %v5256 = vld [vmem:[#allocation11 + $0x90] sm:$0xf]
        %v5257 = vld [vmem:[#allocation11 + $0x94] sm:$0xf]
        %v5258 = vld [vmem:[#allocation11 + $0x98] sm:$0xf]
        %v5259 = vld [vmem:[#allocation11 + $0x9c] sm:$0xf]
        %v5260 = vld [vmem:[#allocation11 + $0xa0] sm:$0xf]
        %v5261 = vld [vmem:[#allocation11 + $0xa4] sm:$0xf]
        %v5262 = vld [vmem:[#allocation11 + $0xa8] sm:$0xf]
        %v5263 = vld [vmem:[#allocation11 + $0xac] sm:$0xf]
        %v5264 = vld [vmem:[#allocation11 + $0xb0] sm:$0xf]
        %v5265 = vld [vmem:[#allocation11 + $0xb4] sm:$0xf]
        %v5266 = vld [vmem:[#allocation11 + $0xb8] sm:$0xf]
        %v5267 = vld [vmem:[#allocation11 + $0xbc] sm:$0xf]
        %v5268 = vld [vmem:[#allocation11 + $0xc0] sm:$0xf]
        %v5269 = vld [vmem:[#allocation11 + $0xc4] sm:$0xf]
        %v5270 = vld [vmem:[#allocation11 + $0xc8] sm:$0xf]
        %v5271 = vld [vmem:[#allocation11 + $0xcc] sm:$0xf]
        %v5272 = vld [vmem:[#allocation11 + $0xd0] sm:$0xf]
        %v5273 = vld [vmem:[#allocation11 + $0xd4] sm:$0xf]
        %v5274 = vld [vmem:[#allocation11 + $0xd8] sm:$0xf]
        %v5275 = vld [vmem:[#allocation11 + $0xdc] sm:$0xf]
        %v5276 = vld [vmem:[#allocation11 + $0xe0] sm:$0xf]
        %v5277 = vld [vmem:[#allocation11 + $0xe4] sm:$0xf]
        %v5278 = vld [vmem:[#allocation11 + $0xe8] sm:$0xf]
        %v5279 = vld [vmem:[#allocation11 + $0xec] sm:$0xf]
        %v5280 = vld [vmem:[#allocation11 + $0xf0] sm:$0xf]
        %v5281 = vld [vmem:[#allocation11 + $0xf4] sm:$0xf]
        %v5282 = vld [vmem:[#allocation11 + $0xf8] sm:$0xf]
        %v5283 = vld [vmem:[#allocation11 + $0xfc] sm:$0xf]
        %v5284 = vld [vmem:[#allocation11 + $0x100] sm:$0xf]
        %v5285 = vld [vmem:[#allocation11 + $0x104] sm:$0xf]
        %v5286 = vld [vmem:[#allocation11 + $0x108] sm:$0xf]
        %v5287 = vld [vmem:[#allocation11 + $0x10c] sm:$0xf]
        %v5288 = vld [vmem:[#allocation11 + $0x110] sm:$0xf]
        %v5289 = vld [vmem:[#allocation11 + $0x114] sm:$0xf]
        %v5290 = vld [vmem:[#allocation11 + $0x118] sm:$0xf]
        %v5291 = vld [vmem:[#allocation11 + $0x11c] sm:$0xf]
        %v5292 = vld [vmem:[#allocation11 + $0x120] sm:$0xf]
        %v5293 = vld [vmem:[#allocation11 + $0x124] sm:$0xf]
        %v5294 = vld [vmem:[#allocation11 + $0x128] sm:$0xf]
        %v5295 = vld [vmem:[#allocation11 + $0x12c] sm:$0xf]
        %v5296 = vld [vmem:[#allocation11 + $0x130] sm:$0xf]
        %v5297 = vld [vmem:[#allocation11 + $0x134] sm:$0xf]
        %v5298 = vld [vmem:[#allocation11 + $0x138] sm:$0xf]
        %v5299 = vld [vmem:[#allocation11 + $0x13c] sm:$0xf]
        %v5300 = vld [vmem:[#allocation11 + $0x140] sm:$0xf]
        %v5301 = vld [vmem:[#allocation11 + $0x144] sm:$0xf]
        %v5302 = vld [vmem:[#allocation11 + $0x148] sm:$0xf]
        %v5303 = vld [vmem:[#allocation11 + $0x14c] sm:$0xf]
        %v5304 = vld [vmem:[#allocation11 + $0x150] sm:$0xf]
        %v5305 = vld [vmem:[#allocation11 + $0x154] sm:$0xf]
        %v5306 = vld [vmem:[#allocation11 + $0x158] sm:$0xf]
        %v5307 = vld [vmem:[#allocation11 + $0x15c] sm:$0xf]
        %v5308 = vld [vmem:[#allocation11 + $0x160] sm:$0xf]
        %v5309 = vld [vmem:[#allocation11 + $0x164] sm:$0xf]
        %v5310 = vld [vmem:[#allocation11 + $0x168] sm:$0xf]
        %v5311 = vld [vmem:[#allocation11 + $0x16c] sm:$0xf]
        %v5312 = vld [vmem:[#allocation11 + $0x170] sm:$0xf]
        %v5313 = vld [vmem:[#allocation11 + $0x174] sm:$0xf]
        %v5314 = vld [vmem:[#allocation11 + $0x178] sm:$0xf]
        %v5315 = vld [vmem:[#allocation11 + $0x17c] sm:$0xf]
        %v5316 = vld [vmem:[#allocation11 + $0x180] sm:$0xf]
        %v5317 = vld [vmem:[#allocation11 + $0x184] sm:$0xf]
        %v5318 = vld [vmem:[#allocation11 + $0x188] sm:$0xf]
        %v5319 = vld [vmem:[#allocation11 + $0x18c] sm:$0xf]
        %v5320 = vld [vmem:[#allocation11 + $0x190] sm:$0xf]
        %v5321 = vld [vmem:[#allocation11 + $0x194] sm:$0xf]
        %v5322 = vld [vmem:[#allocation11 + $0x198] sm:$0xf]
        %v5323 = vld [vmem:[#allocation11 + $0x19c] sm:$0xf]
        %v5324 = vld [vmem:[#allocation11 + $0x1a0] sm:$0xf]
        %v5325 = vld [vmem:[#allocation11 + $0x1a4] sm:$0xf]
        %v5326 = vld [vmem:[#allocation11 + $0x1a8] sm:$0xf]
        %v5327 = vld [vmem:[#allocation11 + $0x1ac] sm:$0xf]
        %v5328 = vld [vmem:[#allocation11 + $0x1b0] sm:$0xf]
        %v5329 = vld [vmem:[#allocation11 + $0x1b4] sm:$0xf]
        %v5330 = vld [vmem:[#allocation11 + $0x1b8] sm:$0xf]
        %v5331 = vld [vmem:[#allocation11 + $0x1bc] sm:$0xf]
        %v5332 = vld [vmem:[#allocation11 + $0x1c0] sm:$0xf]
        %v5333 = vld [vmem:[#allocation11 + $0x1c4] sm:$0xf]
        %v5334 = vld [vmem:[#allocation11 + $0x1c8] sm:$0xf]
        %v5335 = vld [vmem:[#allocation11 + $0x1cc] sm:$0xf]
        %v5336 = vld [vmem:[#allocation11 + $0x1d0] sm:$0xf]
        %v5337 = vld [vmem:[#allocation11 + $0x1d4] sm:$0xf]
        %v5338 = vld [vmem:[#allocation11 + $0x1d8] sm:$0xf]
        %v5339 = vld [vmem:[#allocation11 + $0x1dc] sm:$0xf]
        %v5340 = vld [vmem:[#allocation11 + $0x1e0] sm:$0xf]
        %v5341 = vld [vmem:[#allocation11 + $0x1e4] sm:$0xf]
        %v5342 = vld [vmem:[#allocation11 + $0x1e8] sm:$0xf]
        %v5343 = vld [vmem:[#allocation11 + $0x1ec] sm:$0xf]
        %v5344 = vld [vmem:[#allocation11 + $0x1f0] sm:$0xf]
        %v5345 = vld [vmem:[#allocation11 + $0x1f4] sm:$0xf]
        %v5346 = vld [vmem:[#allocation11 + $0x1f8] sm:$0xf]
        %v5347 = vld [vmem:[#allocation11 + $0x1fc] sm:$0xf]
        %v5348 = vld [vmem:[#allocation13] sm:$0x1]
        %v5350 = vlaneseq
        %v5351 = vshrl.u32 %v5350, 7
        %v5352 = vsub.s32 0, %v5351
        %v5353 = vrot.slane %v5348, %v5352
        %v5483 = vunpack.c.l.b16 %v5220
        %v5484 = vunpack.c.l.b16 %v5221
        %v5485 = vunpack.c.l.b16 %v5222
        %v5486 = vunpack.c.l.b16 %v5223
        %v5487 = vunpack.c.l.b16 %v5224
        %v5488 = vunpack.c.l.b16 %v5225
        %v5489 = vunpack.c.l.b16 %v5226
        %v5490 = vunpack.c.l.b16 %v5227
        %v5491 = vunpack.c.l.b16 %v5228
        %v5492 = vunpack.c.l.b16 %v5229
        %v5493 = vunpack.c.l.b16 %v5230
        %v5494 = vunpack.c.l.b16 %v5231
        %v5495 = vunpack.c.l.b16 %v5232
        %v5496 = vunpack.c.l.b16 %v5233
        %v5497 = vunpack.c.l.b16 %v5234
        %v5498 = vunpack.c.l.b16 %v5235
        %v5499 = vunpack.c.l.b16 %v5236
        %v5500 = vunpack.c.l.b16 %v5237
        %v5501 = vunpack.c.l.b16 %v5238
        %v5502 = vunpack.c.l.b16 %v5239
        %v5503 = vunpack.c.l.b16 %v5240
        %v5504 = vunpack.c.l.b16 %v5241
        %v5505 = vunpack.c.l.b16 %v5242
        %v5506 = vunpack.c.l.b16 %v5243
        %v5507 = vunpack.c.l.b16 %v5244
        %v5508 = vunpack.c.l.b16 %v5245
        %v5509 = vunpack.c.l.b16 %v5246
        %v5510 = vunpack.c.l.b16 %v5247
        %v5511 = vunpack.c.l.b16 %v5248
        %v5512 = vunpack.c.l.b16 %v5249
        %v5513 = vunpack.c.l.b16 %v5250
        %v5514 = vunpack.c.l.b16 %v5251
        %v5515 = vunpack.c.l.b16 %v5252
        %v5516 = vunpack.c.l.b16 %v5253
        %v5517 = vunpack.c.l.b16 %v5254
        %v5518 = vunpack.c.l.b16 %v5255
        %v5519 = vunpack.c.l.b16 %v5256
        %v5520 = vunpack.c.l.b16 %v5257
        %v5521 = vunpack.c.l.b16 %v5258
        %v5522 = vunpack.c.l.b16 %v5259
        %v5523 = vunpack.c.l.b16 %v5260
        %v5524 = vunpack.c.l.b16 %v5261
        %v5525 = vunpack.c.l.b16 %v5262
        %v5526 = vunpack.c.l.b16 %v5263
        %v5527 = vunpack.c.l.b16 %v5264
        %v5528 = vunpack.c.l.b16 %v5265
        %v5529 = vunpack.c.l.b16 %v5266
        %v5530 = vunpack.c.l.b16 %v5267
        %v5531 = vunpack.c.l.b16 %v5268
        %v5532 = vunpack.c.l.b16 %v5269
        %v5533 = vunpack.c.l.b16 %v5270
        %v5534 = vunpack.c.l.b16 %v5271
        %v5535 = vunpack.c.l.b16 %v5272
        %v5536 = vunpack.c.l.b16 %v5273
        %v5537 = vunpack.c.l.b16 %v5274
        %v5538 = vunpack.c.l.b16 %v5275
        %v5539 = vunpack.c.l.b16 %v5276
        %v5540 = vunpack.c.l.b16 %v5277
        %v5541 = vunpack.c.l.b16 %v5278
        %v5542 = vunpack.c.l.b16 %v5279
        %v5543 = vunpack.c.l.b16 %v5280
        %v5544 = vunpack.c.l.b16 %v5281
        %v5545 = vunpack.c.l.b16 %v5282
        %v5546 = vunpack.c.l.b16 %v5283
        %v5547 = vunpack.c.l.b16 %v5284
        %v5548 = vunpack.c.l.b16 %v5285
        %v5549 = vunpack.c.l.b16 %v5286
        %v5550 = vunpack.c.l.b16 %v5287
        %v5551 = vunpack.c.l.b16 %v5288
        %v5552 = vunpack.c.l.b16 %v5289
        %v5553 = vunpack.c.l.b16 %v5290
        %v5554 = vunpack.c.l.b16 %v5291
        %v5555 = vunpack.c.l.b16 %v5292
        %v5556 = vunpack.c.l.b16 %v5293
        %v5557 = vunpack.c.l.b16 %v5294
        %v5558 = vunpack.c.l.b16 %v5295
        %v5559 = vunpack.c.l.b16 %v5296
        %v5560 = vunpack.c.l.b16 %v5297
        %v5561 = vunpack.c.l.b16 %v5298
        %v5562 = vunpack.c.l.b16 %v5299
        %v5563 = vunpack.c.l.b16 %v5300
        %v5564 = vunpack.c.l.b16 %v5301
        %v5565 = vunpack.c.l.b16 %v5302
        %v5566 = vunpack.c.l.b16 %v5303
        %v5567 = vunpack.c.l.b16 %v5304
        %v5568 = vunpack.c.l.b16 %v5305
        %v5569 = vunpack.c.l.b16 %v5306
        %v5570 = vunpack.c.l.b16 %v5307
        %v5571 = vunpack.c.l.b16 %v5308
        %v5572 = vunpack.c.l.b16 %v5309
        %v5573 = vunpack.c.l.b16 %v5310
        %v5574 = vunpack.c.l.b16 %v5311
        %v5575 = vunpack.c.l.b16 %v5312
        %v5576 = vunpack.c.l.b16 %v5313
        %v5577 = vunpack.c.l.b16 %v5314
        %v5578 = vunpack.c.l.b16 %v5315
        %v5579 = vunpack.c.l.b16 %v5316
        %v5580 = vunpack.c.l.b16 %v5317
        %v5581 = vunpack.c.l.b16 %v5318
        %v5582 = vunpack.c.l.b16 %v5319
        %v5583 = vunpack.c.l.b16 %v5320
        %v5584 = vunpack.c.l.b16 %v5321
        %v5585 = vunpack.c.l.b16 %v5322
        %v5586 = vunpack.c.l.b16 %v5323
        %v5587 = vunpack.c.l.b16 %v5324
        %v5588 = vunpack.c.l.b16 %v5325
        %v5589 = vunpack.c.l.b16 %v5326
        %v5590 = vunpack.c.l.b16 %v5327
        %v5591 = vunpack.c.l.b16 %v5328
        %v5592 = vunpack.c.l.b16 %v5329
        %v5593 = vunpack.c.l.b16 %v5330
        %v5594 = vunpack.c.l.b16 %v5331
        %v5595 = vunpack.c.l.b16 %v5332
        %v5596 = vunpack.c.l.b16 %v5333
        %v5597 = vunpack.c.l.b16 %v5334
        %v5598 = vunpack.c.l.b16 %v5335
        %v5599 = vunpack.c.l.b16 %v5336
        %v5600 = vunpack.c.l.b16 %v5337
        %v5601 = vunpack.c.l.b16 %v5338
        %v5602 = vunpack.c.l.b16 %v5339
        %v5603 = vunpack.c.l.b16 %v5340
        %v5604 = vunpack.c.l.b16 %v5341
        %v5605 = vunpack.c.l.b16 %v5342
        %v5606 = vunpack.c.l.b16 %v5343
        %v5607 = vunpack.c.l.b16 %v5344
        %v5608 = vunpack.c.l.b16 %v5345
        %v5609 = vunpack.c.l.b16 %v5346
        %v5610 = vunpack.c.l.b16 %v5347
        %v5611 = vpack.c.b16 %v5484, %v5483
        %v5612 = vpack.c.b16 %v5486, %v5485
        %v5613 = vpack.c.b16 %v5488, %v5487
        %v5614 = vpack.c.b16 %v5490, %v5489
        %v5615 = vpack.c.b16 %v5492, %v5491
        %v5616 = vpack.c.b16 %v5494, %v5493
        %v5617 = vpack.c.b16 %v5496, %v5495
        %v5618 = vpack.c.b16 %v5498, %v5497
        %v5619 = vpack.c.b16 %v5500, %v5499
        %v5620 = vpack.c.b16 %v5502, %v5501
        %v5621 = vpack.c.b16 %v5504, %v5503
        %v5622 = vpack.c.b16 %v5506, %v5505
        %v5623 = vpack.c.b16 %v5508, %v5507
        %v5624 = vpack.c.b16 %v5510, %v5509
        %v5625 = vpack.c.b16 %v5512, %v5511
        %v5626 = vpack.c.b16 %v5514, %v5513
        %v5627 = vpack.c.b16 %v5516, %v5515
        %v5628 = vpack.c.b16 %v5518, %v5517
        %v5629 = vpack.c.b16 %v5520, %v5519
        %v5630 = vpack.c.b16 %v5522, %v5521
        %v5631 = vpack.c.b16 %v5524, %v5523
        %v5632 = vpack.c.b16 %v5526, %v5525
        %v5633 = vpack.c.b16 %v5528, %v5527
        %v5634 = vpack.c.b16 %v5530, %v5529
        %v5635 = vpack.c.b16 %v5532, %v5531
        %v5636 = vpack.c.b16 %v5534, %v5533
        %v5637 = vpack.c.b16 %v5536, %v5535
        %v5638 = vpack.c.b16 %v5538, %v5537
        %v5639 = vpack.c.b16 %v5540, %v5539
        %v5640 = vpack.c.b16 %v5542, %v5541
        %v5641 = vpack.c.b16 %v5544, %v5543
        %v5642 = vpack.c.b16 %v5546, %v5545
        %v5643 = vpack.c.b16 %v5548, %v5547
        %v5644 = vpack.c.b16 %v5550, %v5549
        %v5645 = vpack.c.b16 %v5552, %v5551
        %v5646 = vpack.c.b16 %v5554, %v5553
        %v5647 = vpack.c.b16 %v5556, %v5555
        %v5648 = vpack.c.b16 %v5558, %v5557
        %v5649 = vpack.c.b16 %v5560, %v5559
        %v5650 = vpack.c.b16 %v5562, %v5561
        %v5651 = vpack.c.b16 %v5564, %v5563
        %v5652 = vpack.c.b16 %v5566, %v5565
        %v5653 = vpack.c.b16 %v5568, %v5567
        %v5654 = vpack.c.b16 %v5570, %v5569
        %v5655 = vpack.c.b16 %v5572, %v5571
        %v5656 = vpack.c.b16 %v5574, %v5573
        %v5657 = vpack.c.b16 %v5576, %v5575
        %v5658 = vpack.c.b16 %v5578, %v5577
        %v5659 = vpack.c.b16 %v5580, %v5579
        %v5660 = vpack.c.b16 %v5582, %v5581
        %v5661 = vpack.c.b16 %v5584, %v5583
        %v5662 = vpack.c.b16 %v5586, %v5585
        %v5663 = vpack.c.b16 %v5588, %v5587
        %v5664 = vpack.c.b16 %v5590, %v5589
        %v5665 = vpack.c.b16 %v5592, %v5591
        %v5666 = vpack.c.b16 %v5594, %v5593
        %v5667 = vpack.c.b16 %v5596, %v5595
        %v5668 = vpack.c.b16 %v5598, %v5597
        %v5669 = vpack.c.b16 %v5600, %v5599
        %v5670 = vpack.c.b16 %v5602, %v5601
        %v5671 = vpack.c.b16 %v5604, %v5603
        %v5672 = vpack.c.b16 %v5606, %v5605
        %v5673 = vpack.c.b16 %v5608, %v5607
        %v5674 = vpack.c.b16 %v5610, %v5609
        %5739 = vmatprep.subr.bf16.mxu0 0
        %5740 = vmatpush1.bf16.msra.mxu0 %v5611
        %5741 = vmatprep.subr.bf16.mxu0 0
        %5742 = vmatpush1.bf16.msra.mxu0 %v5612
        %5743 = vmatprep.subr.bf16.mxu0 0
        %5744 = vmatpush1.bf16.msra.mxu0 %v5613
        %5745 = vmatprep.subr.bf16.mxu0 0
        %5746 = vmatpush1.bf16.msra.mxu0 %v5614
        %5747 = vmatprep.subr.bf16.mxu0 0
        %5748 = vmatpush1.bf16.msra.mxu0 %v5615
        %5749 = vmatprep.subr.bf16.mxu0 0
        %5750 = vmatpush1.bf16.msra.mxu0 %v5616
        %5751 = vmatprep.subr.bf16.mxu0 0
        %5752 = vmatpush1.bf16.msra.mxu0 %v5617
        %5753 = vmatprep.subr.bf16.mxu0 0
        %5754 = vmatpush1.bf16.msra.mxu0 %v5618
        %5755 = vmatprep.subr.bf16.mxu0 0
        %5756 = vmatpush1.bf16.msra.mxu0 %v5619
        %5757 = vmatprep.subr.bf16.mxu0 0
        %5758 = vmatpush1.bf16.msra.mxu0 %v5620
        %5759 = vmatprep.subr.bf16.mxu0 0
        %5760 = vmatpush1.bf16.msra.mxu0 %v5621
        %5761 = vmatprep.subr.bf16.mxu0 0
        %5762 = vmatpush1.bf16.msra.mxu0 %v5622
        %5763 = vmatprep.subr.bf16.mxu0 0
        %5764 = vmatpush1.bf16.msra.mxu0 %v5623
        %5765 = vmatprep.subr.bf16.mxu0 0
        %5766 = vmatpush1.bf16.msra.mxu0 %v5624
        %5767 = vmatprep.subr.bf16.mxu0 0
        %5768 = vmatpush1.bf16.msra.mxu0 %v5625
        %5769 = vmatprep.subr.bf16.mxu0 0
        %5770 = vmatpush1.bf16.msra.mxu0 %v5626
        %5771 = vmatprep.mubr.bf16.mxu0 %v5213
        %5772 = vmatmul.mubr.bf16.gmra.mrb[0].mxu0 %v5212
        %v5773 = vpop.f32.mrb[0].mxu0
        %v5774 = vadd.f32 %v5353, %v5773
        %v5775 = vpop.f32.mrb[0].mxu0
        %v5776 = vpop.f32.mrb[0].mxu0
        %v5777 = vadd.f32 %v5353, %v5776
        %v5778 = vpop.f32.mrb[0].mxu0
        %5779 = vdwg.mxu0
        %5780 = vmatprep.subr.bf16.mxu0 0
        %5781 = vmatpush1.bf16.msra.mxu0 %v5627
        %5782 = vmatprep.subr.bf16.mxu0 0
        %5783 = vmatpush1.bf16.msra.mxu0 %v5628
        %5784 = vmatprep.subr.bf16.mxu0 0
        %5785 = vmatpush1.bf16.msra.mxu0 %v5629
        %5786 = vmatprep.subr.bf16.mxu0 0
        %5787 = vmatpush1.bf16.msra.mxu0 %v5630
        %5788 = vmatprep.subr.bf16.mxu0 0
        %5789 = vmatpush1.bf16.msra.mxu0 %v5631
        %5790 = vmatprep.subr.bf16.mxu0 0
        %5791 = vmatpush1.bf16.msra.mxu0 %v5632
        %5792 = vmatprep.subr.bf16.mxu0 0
        %5793 = vmatpush1.bf16.msra.mxu0 %v5633
        %5794 = vmatprep.subr.bf16.mxu0 0
        %5795 = vmatpush1.bf16.msra.mxu0 %v5634
        %5796 = vmatprep.subr.bf16.mxu0 0
        %5797 = vmatpush1.bf16.msra.mxu0 %v5635
        %5798 = vmatprep.subr.bf16.mxu0 0
        %5799 = vmatpush1.bf16.msra.mxu0 %v5636
        %5800 = vmatprep.subr.bf16.mxu0 0
        %5801 = vmatpush1.bf16.msra.mxu0 %v5637
        %5802 = vmatprep.subr.bf16.mxu0 0
        %5803 = vmatpush1.bf16.msra.mxu0 %v5638
        %5804 = vmatprep.subr.bf16.mxu0 0
        %5805 = vmatpush1.bf16.msra.mxu0 %v5639
        %5806 = vmatprep.subr.bf16.mxu0 0
        %5807 = vmatpush1.bf16.msra.mxu0 %v5640
        %5808 = vmatprep.subr.bf16.mxu0 0
        %5809 = vmatpush1.bf16.msra.mxu0 %v5641
        %5810 = vmatprep.subr.bf16.mxu0 0
        %5811 = vmatpush1.bf16.msra.mxu0 %v5642
        %5812 = vmatprep.mubr.bf16.mxu0 %v5215
        %5813 = vmatmul.mubr.bf16.gmra.mrb[0].mxu0 %v5214
        %v5814 = vpop.f32.mrb[0].mxu0
        %v5815 = vadd.f32 %v5774, %v5814
        %v5816 = vpop.f32.mrb[0].mxu0
        %v5817 = vpop.f32.mrb[0].mxu0
        %v5818 = vadd.f32 %v5777, %v5817
        %v5819 = vpop.f32.mrb[0].mxu0
        %5820 = vdwg.mxu0
        %5821 = vmatprep.subr.bf16.mxu0 0
        %5822 = vmatpush1.bf16.msra.mxu0 %v5643
        %5823 = vmatprep.subr.bf16.mxu0 0
        %5824 = vmatpush1.bf16.msra.mxu0 %v5644
        %5825 = vmatprep.subr.bf16.mxu0 0
        %5826 = vmatpush1.bf16.msra.mxu0 %v5645
        %5827 = vmatprep.subr.bf16.mxu0 0
        %5828 = vmatpush1.bf16.msra.mxu0 %v5646
        %5829 = vmatprep.subr.bf16.mxu0 0
        %5830 = vmatpush1.bf16.msra.mxu0 %v5647
        %5831 = vmatprep.subr.bf16.mxu0 0
        %5832 = vmatpush1.bf16.msra.mxu0 %v5648
        %5833 = vmatprep.subr.bf16.mxu0 0
        %5834 = vmatpush1.bf16.msra.mxu0 %v5649
        %5835 = vmatprep.subr.bf16.mxu0 0
        %5836 = vmatpush1.bf16.msra.mxu0 %v5650
        %5837 = vmatprep.subr.bf16.mxu0 0
        %5838 = vmatpush1.bf16.msra.mxu0 %v5651
        %5839 = vmatprep.subr.bf16.mxu0 0
        %5840 = vmatpush1.bf16.msra.mxu0 %v5652
        %5841 = vmatprep.subr.bf16.mxu0 0
        %5842 = vmatpush1.bf16.msra.mxu0 %v5653
        %5843 = vmatprep.subr.bf16.mxu0 0
        %5844 = vmatpush1.bf16.msra.mxu0 %v5654
        %5845 = vmatprep.subr.bf16.mxu0 0
        %5846 = vmatpush1.bf16.msra.mxu0 %v5655
        %5847 = vmatprep.subr.bf16.mxu0 0
        %5848 = vmatpush1.bf16.msra.mxu0 %v5656
        %5849 = vmatprep.subr.bf16.mxu0 0
        %5850 = vmatpush1.bf16.msra.mxu0 %v5657
        %5851 = vmatprep.subr.bf16.mxu0 0
        %5852 = vmatpush1.bf16.msra.mxu0 %v5658
        %5853 = vmatprep.mubr.bf16.mxu0 %v5217
        %5854 = vmatmul.mubr.bf16.gmra.mrb[0].mxu0 %v5216
        %v5855 = vpop.f32.mrb[0].mxu0
        %v5856 = vadd.f32 %v5815, %v5855
        %v5857 = vpop.f32.mrb[0].mxu0
        %v5858 = vpop.f32.mrb[0].mxu0
        %v5859 = vadd.f32 %v5818, %v5858
        %v5860 = vpop.f32.mrb[0].mxu0
        %5861 = vdwg.mxu0
        %5862 = vmatprep.subr.bf16.mxu0 0
        %5863 = vmatpush1.bf16.msra.mxu0 %v5659
        %5864 = vmatprep.subr.bf16.mxu0 0
        %5865 = vmatpush1.bf16.msra.mxu0 %v5660
        %5866 = vmatprep.subr.bf16.mxu0 0
        %5867 = vmatpush1.bf16.msra.mxu0 %v5661
        %5868 = vmatprep.subr.bf16.mxu0 0
        %5869 = vmatpush1.bf16.msra.mxu0 %v5662
        %5870 = vmatprep.subr.bf16.mxu0 0
        %5871 = vmatpush1.bf16.msra.mxu0 %v5663
        %5872 = vmatprep.subr.bf16.mxu0 0
        %5873 = vmatpush1.bf16.msra.mxu0 %v5664
        %5874 = vmatprep.subr.bf16.mxu0 0
        %5875 = vmatpush1.bf16.msra.mxu0 %v5665
        %5876 = vmatprep.subr.bf16.mxu0 0
        %5877 = vmatpush1.bf16.msra.mxu0 %v5666
        %5878 = vmatprep.subr.bf16.mxu0 0
        %5879 = vmatpush1.bf16.msra.mxu0 %v5667
        %5880 = vmatprep.subr.bf16.mxu0 0
        %5881 = vmatpush1.bf16.msra.mxu0 %v5668
        %5882 = vmatprep.subr.bf16.mxu0 0
        %5883 = vmatpush1.bf16.msra.mxu0 %v5669
        %5884 = vmatprep.subr.bf16.mxu0 0
        %5885 = vmatpush1.bf16.msra.mxu0 %v5670
        %5886 = vmatprep.subr.bf16.mxu0 0
        %5887 = vmatpush1.bf16.msra.mxu0 %v5671
        %5888 = vmatprep.subr.bf16.mxu0 0
        %5889 = vmatpush1.bf16.msra.mxu0 %v5672
        %5890 = vmatprep.subr.bf16.mxu0 0
        %5891 = vmatpush1.bf16.msra.mxu0 %v5673
        %5892 = vmatprep.subr.bf16.mxu0 0
        %5893 = vmatpush1.bf16.msra.mxu0 %v5674
        %5894 = vmatprep.mubr.bf16.mxu0 %v5219
        %5895 = vmatmul.mubr.bf16.gmra.mrb[0].mxu0 %v5218
        %v5896 = vpop.f32.mrb[0].mxu0
        %v5897 = vadd.f32 %v5856, %v5896
        %v5898 = vpop.f32.mrb[0].mxu0
        %v5899 = vpop.f32.mrb[0].mxu0
        %v5900 = vadd.f32 %v5859, %v5899
        %v5901 = vpop.f32.mrb[0].mxu0
        %5902 = vdwg.mxu0
        %5903 = vst [vmem:[%s378] sm:$0xff] %v5897
        %5904 = vst [vmem:[%s378 + $0x8] sm:$0xff] %v5900
        %s5905 = sand.u32 %s187, 1
        %s5906 = scalar_lea.sflag [#allocation4], %s5905
        %s5907 = sand.u32 %s187, 1
        %s5908 = smul.addr %s5907, 16
        %s5909 = scalar_lea.vmem [#allocation14], %s5908
        // Predicated region
        $region77: #{tpu_custom_call.1} parent=47 // pred_check
          %p5910 = pneg %p197
        $region78: #{tpu_custom_call.1} parent=47 // pred_check_branch
          %5912 = sbr.rel (%p5910) target = $region80
        $region79: #{tpu_custom_call.1} parent=47 // pred_region
          %s5913 = smul.u32 2, %s27
          %s5915 = ssub.s32 256, 256
          %5916 = vsyncadd %s5906, %s5915
          %s5917 = smul.addr %s5913, 128
          %s5918 = scalar_lea.hbm %s7, %s5917
          %s5919 = sshll.u32 %s5909, 4
          %s5920 = int_to_ptr.vmem [resolvable:$true] %s5919
          %5925 = dma.vmem_to_hbm [thread:$0]  %s5920, 256, %s5918, %s5906, 128, 128, 8
        $region80: #{tpu_custom_call.1} parent=47 // pred_fallthru
          _
      $region48: #{tpu_custom_call.1} parent=5 // pred_fallthru
        _
      %p5926 = scmp.le.s32.totalorder 2, %s22
      // Predicated region
      $region81: #{tpu_custom_call.1} parent=5 // pred_check
        %p5927 = pneg %p5926
      $region82: #{tpu_custom_call.1} parent=5 // pred_check_branch
        %5929 = sbr.rel (%p5927) target = $region84
      $region83: #{tpu_custom_call.1} parent=5 // pred_region
        %s5930 = ssub.s32 %s22, 2
        // Predicated region
        $region85: #{tpu_custom_call.1} parent=83 // pred_check
          %p5931 = pneg %p203
        $region86: #{tpu_custom_call.1} parent=83 // pred_check_branch
          %5933 = sbr.rel (%p5931) target = $region88
        $region87: #{tpu_custom_call.1} parent=83 // pred_region
          %s5934 = sand.u32 %s188, 1
          %s5935 = scalar_lea.sflag [#allocation4], %s5934
          %s5936 = sand.u32 %s188, 1
          %s5937 = smul.addr %s5936, 16
          %s5938 = scalar_lea.vmem [#allocation14], %s5937
          %5939 = dma.done %s5935, 256
        $region88: #{tpu_custom_call.1} parent=83 // pred_fallthru
          _
      $region84: #{tpu_custom_call.1} parent=5 // pred_fallthru
        _
    $region6: #{tpu_custom_call.1} parent=1 // loop_footer
      %s26 = sadd.s32 1, %s22
    $region7: #{tpu_custom_call.1} parent=1 // loop_footer_branch
      %21 = sbr.rel target = $region3
    $region8: #{tpu_custom_call.1} parent=1 // loop_exit
      _
    %5940 = vsyncpa [#allocation3], 1
    %s5941 = scalar_lea.sflag [#allocation3], 1
    %5942 = vsyncpa %s5941, 1
    %5943 = vsyncpa [#allocation6], 1
    %5944 = vsyncpa [#allocation9], 1
    %5945 = vsyncpa [#allocation12], 1
    %5946 = vsyncpa [#allocation4], 1
    %s5947 = scalar_lea.sflag [#allocation4], 1
    %5948 = vsyncpa %s5947, 1

</llo_original>
